<compile_context>
chip_gen: v7x
topology: tpu7x:2x2x1
jax: 0.10.0
libtpu: 0.0.40
codegen_flags: <defaults>
</compile_context>

<pallas_src>
import functools

import jax
import jax.numpy as jnp
from jax.experimental import pallas as pl
from jax.experimental.pallas import tpu as pltpu

EPS = 1e-5
VMEM_LIMIT = 32 * 1024 * 1024           # safe on v5e / v6e / v7x


def _largest_divisor(n, cap, align=1):
    """Largest d <= cap dividing n with (d % align == 0 or d == n)."""
    cap = max(1, min(cap, n))
    for d in range(cap, 0, -1):
        if n % d == 0 and (d % align == 0 or d == n):
            return d
    return n


# ----------------------------------------------------------------------------
# Kernel 1: conv_1 (1x1) matmul + per-tile BN1 statistics
# ----------------------------------------------------------------------------

def _conv1_stats_kernel(x_ref, w_ref, y_ref, s_ref, q_ref):
    y = jnp.dot(x_ref[...], w_ref[...], preferred_element_type=jnp.float32)
    y_ref[...] = y.astype(y_ref.dtype)
    s_ref[...] = jnp.sum(y, axis=0)[None, None, :]
    q_ref[...] = jnp.sum(y * y, axis=0)[None, None, :]


def conv1x1_stats(x2d, w, chunk):
    npix, cin = x2d.shape
    cout = w.shape[1]
    nt = npix // chunk
    return pl.pallas_call(
        _conv1_stats_kernel,
        grid=(nt,),
        in_specs=[pl.BlockSpec((chunk, cin), lambda i: (i, 0)),
                  pl.BlockSpec((cin, cout), lambda i: (0, 0))],
        out_specs=[pl.BlockSpec((chunk, cout), lambda i: (i, 0)),
                   pl.BlockSpec((1, 1, cout), lambda i: (i, 0, 0)),
                   pl.BlockSpec((1, 1, cout), lambda i: (i, 0, 0))],
        out_shape=(jax.ShapeDtypeStruct((npix, cout), jnp.bfloat16),
                   jax.ShapeDtypeStruct((nt, 1, cout), jnp.float32),
                   jax.ShapeDtypeStruct((nt, 1, cout), jnp.float32)),
        compiler_params=pltpu.CompilerParams(
            dimension_semantics=("parallel",),
            vmem_limit_bytes=VMEM_LIMIT),
    )(x2d, w)


# ----------------------------------------------------------------------------
# Kernel 2 (fused): BN1-apply + ReLU + channel-concat + conv_2 (3x3, pad 1)
#                   + per-tile BN2 statistics
# ----------------------------------------------------------------------------

def _conv3x3_fused_kernel(yt_ref, yb_ref, yd_ref, xt_ref, xb_ref, xd_ref,
                          s1_ref, t1_ref, wll_ref, wxr_ref,
                          z_ref, s2_ref, q2_ref, ell_ref, exr_ref,
                          *, th, width):
    j = pl.program_id(1)
    nj = pl.num_programs(1)
    m = th * width
    cl = ell_ref.shape[1]          # 64  (low-level feature channels)
    cx = exr_ref.shape[1]          # 256 (ASPP feature channels)
    co = z_ref.shape[2]            # 256
    es = ell_ref.shape[0]          # 2 + (th + 2) * width

    s1 = s1_ref[0]
    t1 = t1_ref[0]

    def bn1_relu(v):               # folded BN1 affine + ReLU, f32 math
        return jnp.maximum(v.astype(jnp.float32) * s1 + t1,
                           0.0).astype(jnp.bfloat16)

    # Zero the two guard pixels (they are only ever read through a zero mask,
    # but fresh scratch could hold NaN bit patterns and NaN*0 = NaN).
    ell_ref[0:1, :] = jnp.zeros((1, cl), jnp.bfloat16)
    exr_ref[0:1, :] = jnp.zeros((1, cx), jnp.bfloat16)
    ell_ref[es - 1:es, :] = jnp.zeros((1, cl), jnp.bfloat16)
    exr_ref[es - 1:es, :] = jnp.zeros((1, cx), jnp.bfloat16)

    # Body rows: BN1 + ReLU fused onto the low-level-feature channels.
    ell_ref[1 + width:1 + width + m, :] = bn1_relu(yb_ref[0])
    exr_ref[1 + width:1 + width + m, :] = xb_ref[0]

    # Top halo row (zeros at the image border).
    @pl.when(j > 0)
    def _():
        ell_ref[1:1 + width, :] = bn1_relu(yt_ref[0])
        exr_ref[1:1 + width, :] = xt_ref[0]

    @pl.when(j == 0)
    def _():
        ell_ref[1:1 + width, :] = jnp.zeros((width, cl), jnp.bfloat16)
        exr_ref[1:1 + width, :] = jnp.zeros((width, cx), jnp.bfloat16)

    # Bottom halo row (zeros at the image border).
    @pl.when(j < nj - 1)
    def _():
        ell_ref[1 + width + m:1 + 2 * width + m, :] = bn1_relu(yd_ref[0])
        exr_ref[1 + width + m:1 + 2 * width + m, :] = xd_ref[0]

    @pl.when(j == nj - 1)
    def _():
        ell_ref[1 + width + m:1 + 2 * width + m, :] = (
            jnp.zeros((width, cl), jnp.bfloat16))
        exr_ref[1 + width + m:1 + 2 * width + m, :] = (
            jnp.zeros((width, cx), jnp.bfloat16))

    # Column masks emulating the left/right zero padding of a 'SAME' conv.
    col = jax.lax.broadcasted_iota(jnp.int32, (m, 1), 0) % width
    m_left = (col > 0).astype(jnp.bfloat16)          # used for kx == 0 taps
    m_right = (col < width - 1).astype(jnp.bfloat16)  # used for kx == 2 taps

    # 9 taps x 2 channel groups; every matmul has M = th*width rows.
    acc = jnp.zeros((m, co), jnp.float32)
    for ky in range(3):
        for kx in range(3):
            off = ky * width + kx
            a = ell_ref[off:off + m, :]
            b = exr_ref[off:off + m, :]
            if kx == 0:
                a = a * m_left
                b = b * m_left
            elif kx == 2:
                a = a * m_right
                b = b * m_right
            acc = acc + jnp.dot(a, wll_ref[ky, kx],
                                preferred_element_type=jnp.float32)
            acc = acc + jnp.dot(b, wxr_ref[ky, kx],
                                preferred_element_type=jnp.float32)

    z_ref[0] = acc.astype(z_ref.dtype)
    s2_ref[...] = jnp.sum(acc, axis=0)[None, None, :]
    q2_ref[...] = jnp.sum(acc * acc, axis=0)[None, None, :]


def conv3x3_bn_fused(y2d, xr4d, sc1, sh1, w2_ll, w2_xr, th):
    n, h, width, cx = xr4d.shape
    cl = y2d.shape[-1]
    co = w2_ll.shape[-1]
    hw = h * width
    nj = h // th
    m = th * width
    es = 2 + (th + 2) * width

    y3 = y2d.reshape(n, hw, cl)
    x3 = xr4d.reshape(n, hw, cx)

    kernel = functools.partial(_conv3x3_fused_kernel, th=th, width=width)

    def body_map(i, j):
        return (i, j, 0)

    def top_map(i, j):                    # image row index (block size = width)
        return (i, jnp.maximum(j * th - 1, 0), 0)

    def bot_map(i, j):
        return (i, jnp.minimum(j * th + th, h - 1), 0)

    return pl.pallas_call(
        kernel,
        grid=(n, nj),
        in_specs=[
            pl.BlockSpec((1, width, cl), top_map),
            pl.BlockSpec((1, m, cl), body_map),
            pl.BlockSpec((1, width, cl), bot_map),
            pl.BlockSpec((1, width, cx), top_map),
            pl.BlockSpec((1, m, cx), body_map),
            pl.BlockSpec((1, width, cx), bot_map),
            pl.BlockSpec((1, cl), lambda i, j: (0, 0)),
            pl.BlockSpec((1, cl), lambda i, j: (0, 0)),
            pl.BlockSpec((3, 3, cl, co), lambda i, j: (0, 0, 0, 0)),
            pl.BlockSpec((3, 3, cx, co), lambda i, j: (0, 0, 0, 0)),
        ],
        out_specs=[
            pl.BlockSpec((1, m, co), body_map),
            pl.BlockSpec((1, 1, co), lambda i, j: (i * nj + j, 0, 0)),
            pl.BlockSpec((1, 1, co), lambda i, j: (i * nj + j, 0, 0)),
        ],
        out_shape=(
            jax.ShapeDtypeStruct((n, hw, co), jnp.bfloat16),
            jax.ShapeDtypeStruct((n * nj, 1, co), jnp.float32),
            jax.ShapeDtypeStruct((n * nj, 1, co), jnp.float32),
        ),
        scratch_shapes=[
            pltpu.VMEM((es, cl), jnp.bfloat16),   # padded ll tile (flattened)
            pltpu.VMEM((es, cx), jnp.bfloat16),   # padded xr tile (flattened)
        ],
        compiler_params=pltpu.CompilerParams(
            dimension_semantics=("parallel", "parallel"),
            vmem_limit_bytes=VMEM_LIMIT),
    )(y3, y3, y3, x3, x3, x3, sc1, sh1, w2_ll, w2_xr)


# ----------------------------------------------------------------------------
# Kernel 3: folded BN2 FMA + ReLU + out_conv (256 -> 1), chunked over pixels
# ----------------------------------------------------------------------------

def _bn_relu_outconv_kernel(z_ref, s_ref, t_ref, wo_ref, bo_ref, o_ref):
    z = z_ref[...].astype(jnp.float32)
    zn = jnp.maximum(z * s_ref[...] + t_ref[...], 0.0)
    o_ref[...] = jnp.sum(zn * wo_ref[...], axis=-1, keepdims=True) + bo_ref[...]


def bn_relu_outconv(z2d, scale, shift, wo_row, bo, chunk):
    npix, c = z2d.shape
    nt = npix // chunk
    return pl.pallas_call(
        _bn_relu_outconv_kernel,
        grid=(nt,),
        in_specs=[pl.BlockSpec((chunk, c), lambda i: (i, 0)),
                  pl.BlockSpec((1, c), lambda i: (0, 0)),
                  pl.BlockSpec((1, c), lambda i: (0, 0)),
                  pl.BlockSpec((1, c), lambda i: (0, 0)),
                  pl.BlockSpec((1, 1), lambda i: (0, 0))],
        out_specs=pl.BlockSpec((chunk, 1), lambda i: (i, 0)),
        out_shape=jax.ShapeDtypeStruct((npix, 1), jnp.float32),
        compiler_params=pltpu.CompilerParams(
            dimension_semantics=("parallel",),
            vmem_limit_bytes=VMEM_LIMIT),
    )(z2d, scale, shift, wo_row, bo)


# ----------------------------------------------------------------------------
# JAX glue
# ----------------------------------------------------------------------------

def bilinear_resize_ac(x, out_h, out_w):
    """F.interpolate(mode='bilinear', align_corners=True) on NHWC input."""
    N, H, W, C = x.shape

    def coords(out_n, in_n):
        if out_n == 1 or in_n == 1:
            z = jnp.zeros((out_n,), jnp.float32)
            return z, jnp.zeros((out_n,), jnp.int32), jnp.zeros((out_n,), jnp.int32)
        src = jnp.arange(out_n) * ((in_n - 1) / (out_n - 1))
        i0 = jnp.clip(jnp.floor(src).astype(jnp.int32), 0, in_n - 1)
        i1 = jnp.clip(i0 + 1, 0, in_n - 1)
        return (src - i0).astype(jnp.float32), i0, i1

    wh, h0, h1 = coords(out_h, H)
    ww, w0, w1 = coords(out_w, W)
    top, bot = x[:, h0, :, :], x[:, h1, :, :]
    xr = top * (1 - wh)[None, :, None, None] + bot * wh[None, :, None, None]
    left, right = xr[:, :, w0, :], xr[:, :, w1, :]
    return left * (1 - ww)[None, None, :, None] + right * ww[None, None, :, None]


def _fold_bn(sum_all, sumsq_all, count, gamma, beta):
    mean = sum_all / count
    var = sumsq_all / count - mean * mean      # biased variance (train-mode BN)
    scale = gamma * jax.lax.rsqrt(var + EPS)
    shift = beta - mean * scale
    return (scale.reshape(1, -1).astype(jnp.float32),
            shift.reshape(1, -1).astype(jnp.float32))


@functools.partial(jax.jit, static_argnums=(3,))
def decoder_forward(x_nchw, llf_nchw, params, input_size):
    x = jnp.transpose(x_nchw, (0, 2, 3, 1)).astype(jnp.float32)
    llf = jnp.transpose(llf_nchw, (0, 2, 3, 1)).astype(jnp.float32)
    n, hl, wl, cin = llf.shape
    npix = n * hl * wl
    assert wl % 8 == 0, "feature-map width must be a multiple of 8"
    cl = params['w1'].shape[1]                     # 64

    # ---- conv_1 (1x1, bias cancels under train-mode BN) + BN1 stats ---------
    c1 = _largest_divisor(npix, 2048, align=8)
    llf2d = llf.reshape(npix, cin).astype(jnp.bfloat16)
    y, s1p, q1p = conv1x1_stats(llf2d, params['w1'].astype(jnp.bfloat16), c1)
    sc1, sh1 = _fold_bn(s1p.sum(axis=(0, 1)), q1p.sum(axis=(0, 1)), npix,
                        params['g1'], params['beta1'])

    # ---- upsample ASPP features (JAX glue) -----------------------------------
    xr = bilinear_resize_ac(x, hl, wl).astype(jnp.bfloat16)

    # ---- fused BN1-apply + ReLU + concat + conv_2 (3x3) + BN2 stats ----------
    th = _largest_divisor(hl, max(1, 2048 // wl))
    w2_ll = params['w2_hwio'][:, :, :cl, :].astype(jnp.bfloat16)
    w2_xr = params['w2_hwio'][:, :, cl:, :].astype(jnp.bfloat16)
    z, s2p, q2p = conv3x3_bn_fused(y, xr, sc1, sh1, w2_ll, w2_xr, th)
    sc2, sh2 = _fold_bn(s2p.sum(axis=(0, 1)), q2p.sum(axis=(0, 1)), npix,
                        params['g2'], params['beta2'])

    # ---- BN2-apply + ReLU + out_conv (1x1, 256 -> 1) --------------------------
    cout2 = z.shape[-1]
    c4 = _largest_divisor(npix, 2048, align=8)
    o = bn_relu_outconv(z.reshape(npix, cout2), sc2, sh2,
                        params['wo'].reshape(1, -1).astype(jnp.float32),
                        params['bo'].reshape(1, 1).astype(jnp.float32), c4)
    o = o.reshape(n, hl, wl, 1)

    # ---- final upsample to input_size, back to NCHW ---------------------------
    o = bilinear_resize_ac(o, input_size[0], input_size[1])
    return jnp.transpose(o, (0, 3, 1, 2))


def decoder_reference(x_nchw, llf_nchw, params, input_size):
    """Pure-JAX f32 reference (no Pallas) for validation."""
    x = jnp.transpose(x_nchw, (0, 2, 3, 1)).astype(jnp.float32)
    llf = jnp.transpose(llf_nchw, (0, 2, 3, 1)).astype(jnp.float32)
    y = jnp.einsum('nhwc,co->nhwo', llf, params['w1'],
                   precision=jax.lax.Precision.HIGHEST) + params['b1']
    mean = y.mean(axis=(0, 1, 2)); var = ((y - mean) ** 2).mean(axis=(0, 1, 2))
    y = jnp.maximum((y - mean) * jax.lax.rsqrt(var + EPS) * params['g1']
                    + params['beta1'], 0.0)
    xr = bilinear_resize_ac(x, llf.shape[1], llf.shape[2])
    cat = jnp.concatenate([y, xr], axis=-1)
    z = jax.lax.conv_general_dilated(cat, params['w2_hwio'], (1, 1), 'SAME',
                                     dimension_numbers=('NHWC', 'HWIO', 'NHWC'),
                                     precision=jax.lax.Precision.HIGHEST) + params['b2']
    mean = z.mean(axis=(0, 1, 2)); var = ((z - mean) ** 2).mean(axis=(0, 1, 2))
    z = jnp.maximum((z - mean) * jax.lax.rsqrt(var + EPS) * params['g2']
                    + params['beta2'], 0.0)
    o = jnp.einsum('nhwc,co->nhwo', z, params['wo'],
                   precision=jax.lax.Precision.HIGHEST) + params['bo']
    o = bilinear_resize_ac(o, input_size[0], input_size[1])
    return jnp.transpose(o, (0, 3, 1, 2))


# ----------------------------------------------------------------------------
# main
# ----------------------------------------------------------------------------

if __name__ == "__main__":
    # Shapes consistent with the module: cat channel dim must be 64 + C_x = 320.
    N = 2
    in_channel = 32           # low-level feature channels
    Hl = Wl = 8               # low-level spatial size
    Hx = Wx = 4               # ASPP feature spatial size
    Cx = 256                  # ASPP feature channels (320 - 64)
    input_size = (16, 16)     # Decoder(input_size, in_channel)

    key = jax.random.PRNGKey(0)
    ks = jax.random.split(key, 12)

    params = {
        'w1':    jax.random.normal(ks[0], (in_channel, 64), jnp.float32) * 0.1,
        'b1':    jax.random.normal(ks[1], (64,), jnp.float32) * 0.1,
        'g1':    1.0 + jax.random.normal(ks[2], (64,), jnp.float32) * 0.1,
        'beta1': jax.random.normal(ks[3], (64,), jnp.float32) * 0.1,
        'b2':    jax.random.normal(ks[5], (256,), jnp.float32) * 0.1,
        'g2':    1.0 + jax.random.normal(ks[6], (256,), jnp.float32) * 0.1,
        'beta2': jax.random.normal(ks[7], (256,), jnp.float32) * 0.1,
        'wo':    jax.random.normal(ks[8], (256, 1), jnp.float32) * 0.1,
        'bo':    jax.random.normal(ks[9], (1,), jnp.float32) * 0.1,
        'w2_hwio': jax.random.normal(ks[4], (3, 3, 320, 256), jnp.float32) * 0.05,
    }

    x = jax.random.normal(ks[10], (N, Cx, Hx, Wx), jnp.float32)
    low_level_feature = jax.random.normal(ks[11], (N, in_channel, Hl, Wl), jnp.float32)

    out = decoder_forward(x, low_level_feature, params, input_size)
    out = jax.block_until_ready(out)
    assert out.shape == (N, 1, input_size[0], input_size[1]), out.shape

    ref = jax.block_until_ready(decoder_reference(x, low_level_feature, params, input_size))
    err = float(jnp.max(jnp.abs(out - ref)))
    scale = float(jnp.max(jnp.abs(ref))) + 1e-6
    assert err <= 5e-2 * scale + 1e-3, f"mismatch vs reference: max abs err {err} (ref max {scale})"

    print("KERNEL_OK")
</pallas_src>

<mosaic_0001>
module attributes {stable_mosaic.version = 11 : i64} {
  func.func @_conv1_stats_kernel(%arg0: i32, %arg1: memref<128x32xbf16, #tpu.memory_space<vmem>>, %arg2: memref<32x64xbf16, #tpu.memory_space<vmem>>, %arg3: memref<128x64xbf16, #tpu.memory_space<vmem>>, %arg4: memref<1x1x64xf32, #tpu.memory_space<vmem>>, %arg5: memref<1x1x64xf32, #tpu.memory_space<vmem>>) attributes {dimension_semantics = [#tpu.dimension_semantics<parallel>], iteration_bounds = array<i64: 1>, scalar_prefetch = 0 : i64, scratch_operands = 0 : i64, tpu.core_type = #tpu.core_type<tc>, window_params = [{transform_indices = @transform_0, window_bounds = array<i64: 128, 32>}, {pipeline_mode = #tpu.pipeline_mode<synchronous>, transform_indices = @transform_1, window_bounds = array<i64: 32, 64>}, {transform_indices = @transform_2, window_bounds = array<i64: 128, 64>}, {transform_indices = @transform_3, window_bounds = array<i64: 1, 1, 64>}, {transform_indices = @transform_4, window_bounds = array<i64: 1, 1, 64>}]} {
    %c0 = arith.constant 0 : index
    %c0_0 = arith.constant 0 : index
    %0 = vector.load %arg1[%c0, %c0_0] : memref<128x32xbf16, #tpu.memory_space<vmem>>, vector<128x32xbf16>
    %c0_1 = arith.constant 0 : index
    %c0_2 = arith.constant 0 : index
    %1 = vector.load %arg2[%c0_1, %c0_2] : memref<32x64xbf16, #tpu.memory_space<vmem>>, vector<32x64xbf16>
    %cst = arith.constant dense<0.000000e+00> : vector<128x64xf32>
    %2 = tpu.matmul %0, %1, %cst {dimension_numbers = #tpu.dot_dimension_numbers<[1], [0], [0], [1], [0, 0, 1, 1], [], []>} : vector<128x32xbf16>, vector<32x64xbf16>, vector<128x64xf32> -> vector<128x64xf32>
    %3 = arith.truncf %2 : vector<128x64xf32> to vector<128x64xbf16>
    %c0_3 = arith.constant 0 : index
    %c0_4 = arith.constant 0 : index
    %4 = vector.load %arg3[%c0_3, %c0_4] : memref<128x64xbf16, #tpu.memory_space<vmem>>, vector<128x64xbf16>
    tpu.vector_store %arg3[%c0_3, %c0_4], %3 {strides = array<i32>} : memref<128x64xbf16, #tpu.memory_space<vmem>>, vector<128x64xbf16>,
    %cst_5 = arith.constant dense<0.000000e+00> : vector<64xf32>
    %5 = vector.multi_reduction <add>, %2, %cst_5 [0] : vector<128x64xf32> to vector<64xf32>
    %6 = vector.shape_cast %5 : vector<64xf32> to vector<1x1x64xf32>
    %c0_6 = arith.constant 0 : index
    %c0_7 = arith.constant 0 : index
    %c0_8 = arith.constant 0 : index
    %7 = vector.load %arg4[%c0_6, %c0_7, %c0_8] : memref<1x1x64xf32, #tpu.memory_space<vmem>>, vector<1x1x64xf32>
    tpu.vector_store %arg4[%c0_6, %c0_7, %c0_8], %6 {strides = array<i32>} : memref<1x1x64xf32, #tpu.memory_space<vmem>>, vector<1x1x64xf32>,
    %8 = arith.mulf %2, %2 : vector<128x64xf32>
    %cst_9 = arith.constant dense<0.000000e+00> : vector<64xf32>
    %9 = vector.multi_reduction <add>, %8, %cst_9 [0] : vector<128x64xf32> to vector<64xf32>
    %10 = vector.shape_cast %9 : vector<64xf32> to vector<1x1x64xf32>
    %c0_10 = arith.constant 0 : index
    %c0_11 = arith.constant 0 : index
    %c0_12 = arith.constant 0 : index
    %11 = vector.load %arg5[%c0_10, %c0_11, %c0_12] : memref<1x1x64xf32, #tpu.memory_space<vmem>>, vector<1x1x64xf32>
    tpu.vector_store %arg5[%c0_10, %c0_11, %c0_12], %10 {strides = array<i32>} : memref<1x1x64xf32, #tpu.memory_space<vmem>>, vector<1x1x64xf32>,
    return
  }
  func.func @transform_0(%arg0: i32) -> (i32, i32) {
    %c0_i32 = arith.constant 0 : i32
    %c0_i32_0 = arith.constant 0 : i32
    return %arg0, %c0_i32 : i32, i32
  }
  func.func @transform_1(%arg0: i32) -> (i32, i32) {
    %c0_i32 = arith.constant 0 : i32
    %c0_i32_0 = arith.constant 0 : i32
    %c0_i32_1 = arith.constant 0 : i32
    return %c0_i32, %c0_i32_0 : i32, i32
  }
  func.func @transform_2(%arg0: i32) -> (i32, i32) {
    %c0_i32 = arith.constant 0 : i32
    %c0_i32_0 = arith.constant 0 : i32
    return %arg0, %c0_i32 : i32, i32
  }
  func.func @transform_3(%arg0: i32) -> (i32, i32, i32) {
    %c0_i32 = arith.constant 0 : i32
    %c0_i32_0 = arith.constant 0 : i32
    %c0_i32_1 = arith.constant 0 : i32
    return %arg0, %c0_i32, %c0_i32_0 : i32, i32, i32
  }
  func.func @transform_4(%arg0: i32) -> (i32, i32, i32) {
    %c0_i32 = arith.constant 0 : i32
    %c0_i32_0 = arith.constant 0 : i32
    %c0_i32_1 = arith.constant 0 : i32
    return %arg0, %c0_i32, %c0_i32_0 : i32, i32, i32
  }
}

module attributes {stable_mosaic.version = 11 : i64} {
  func.func @_conv3x3_fused_kernel(%arg0: i32, %arg1: i32, %arg2: memref<1x8x64xbf16, #tpu.memory_space<vmem>>, %arg3: memref<1x64x64xbf16, #tpu.memory_space<vmem>>, %arg4: memref<1x8x64xbf16, #tpu.memory_space<vmem>>, %arg5: memref<1x8x256xbf16, #tpu.memory_space<vmem>>, %arg6: memref<1x64x256xbf16, #tpu.memory_space<vmem>>, %arg7: memref<1x8x256xbf16, #tpu.memory_space<vmem>>, %arg8: memref<1x64xf32, #tpu.memory_space<vmem>>, %arg9: memref<1x64xf32, #tpu.memory_space<vmem>>, %arg10: memref<3x3x64x256xbf16, #tpu.memory_space<vmem>>, %arg11: memref<3x3x256x256xbf16, #tpu.memory_space<vmem>>, %arg12: memref<1x64x256xbf16, #tpu.memory_space<vmem>>, %arg13: memref<1x1x256xf32, #tpu.memory_space<vmem>>, %arg14: memref<1x1x256xf32, #tpu.memory_space<vmem>>, %arg15: memref<82x64xbf16, #tpu.memory_space<vmem>>, %arg16: memref<82x256xbf16, #tpu.memory_space<vmem>>) attributes {dimension_semantics = [#tpu.dimension_semantics<parallel>, #tpu.dimension_semantics<parallel>], iteration_bounds = array<i64: 2, 1>, scalar_prefetch = 0 : i64, scratch_operands = 2 : i64, tpu.core_type = #tpu.core_type<tc>, window_params = [{transform_indices = @transform_0, window_bounds = array<i64: 1, 8, 64>}, {transform_indices = @transform_1, window_bounds = array<i64: 1, 64, 64>}, {transform_indices = @transform_2, window_bounds = array<i64: 1, 8, 64>}, {transform_indices = @transform_3, window_bounds = array<i64: 1, 8, 256>}, {transform_indices = @transform_4, window_bounds = array<i64: 1, 64, 256>}, {transform_indices = @transform_5, window_bounds = array<i64: 1, 8, 256>}, {pipeline_mode = #tpu.pipeline_mode<synchronous>, transform_indices = @transform_6, window_bounds = array<i64: 1, 64>}, {pipeline_mode = #tpu.pipeline_mode<synchronous>, transform_indices = @transform_7, window_bounds = array<i64: 1, 64>}, {pipeline_mode = #tpu.pipeline_mode<synchronous>, transform_indices = @transform_8, window_bounds = array<i64: 3, 3, 64, 256>}, {pipeline_mode = #tpu.pipeline_mode<synchronous>, transform_indices = @transform_9, window_bounds = array<i64: 3, 3, 256, 256>}, {transform_indices = @transform_10, window_bounds = array<i64: 1, 64, 256>}, {transform_indices = @transform_11, window_bounds = array<i64: 1, 1, 256>}, {transform_indices = @transform_12, window_bounds = array<i64: 1, 1, 256>}]} {
    %c0 = arith.constant 0 : index
    %c0_0 = arith.constant 0 : index
    %0 = vector.load %arg8[%c0, %c0_0] : memref<1x64xf32, #tpu.memory_space<vmem>>, vector<1x64xf32>
    %1 = vector.shape_cast %0 : vector<1x64xf32> to vector<64xf32>
    %c0_1 = arith.constant 0 : index
    %c0_2 = arith.constant 0 : index
    %2 = vector.load %arg9[%c0_1, %c0_2] : memref<1x64xf32, #tpu.memory_space<vmem>>, vector<1x64xf32>
    %3 = vector.shape_cast %2 : vector<1x64xf32> to vector<64xf32>
    %cst = arith.constant 0.000000e+00 : bf16
    %4 = vector.broadcast %cst : bf16 to vector<1x64xbf16>
    %c0_3 = arith.constant 0 : index
    %c0_4 = arith.constant 0 : index
    %5 = vector.load %arg15[%c0_3, %c0_4] : memref<82x64xbf16, #tpu.memory_space<vmem>>, vector<1x64xbf16>
    tpu.vector_store %arg15[%c0_3, %c0_4], %4 {strides = array<i32>} : memref<82x64xbf16, #tpu.memory_space<vmem>>, vector<1x64xbf16>,
    %cst_5 = arith.constant 0.000000e+00 : bf16
    %6 = vector.broadcast %cst_5 : bf16 to vector<1x256xbf16>
    %c0_6 = arith.constant 0 : index
    %c0_7 = arith.constant 0 : index
    %7 = vector.load %arg16[%c0_6, %c0_7] : memref<82x256xbf16, #tpu.memory_space<vmem>>, vector<1x256xbf16>
    tpu.vector_store %arg16[%c0_6, %c0_7], %6 {strides = array<i32>} : memref<82x256xbf16, #tpu.memory_space<vmem>>, vector<1x256xbf16>,
    %cst_8 = arith.constant 0.000000e+00 : bf16
    %8 = vector.broadcast %cst_8 : bf16 to vector<1x64xbf16>
    %c81 = arith.constant 81 : index
    %c0_9 = arith.constant 0 : index
    %9 = vector.load %arg15[%c81, %c0_9] : memref<82x64xbf16, #tpu.memory_space<vmem>>, vector<1x64xbf16>
    tpu.vector_store %arg15[%c81, %c0_9], %8 {strides = array<i32>} : memref<82x64xbf16, #tpu.memory_space<vmem>>, vector<1x64xbf16>,
    %cst_10 = arith.constant 0.000000e+00 : bf16
    %10 = vector.broadcast %cst_10 : bf16 to vector<1x256xbf16>
    %c81_11 = arith.constant 81 : index
    %c0_12 = arith.constant 0 : index
    %11 = vector.load %arg16[%c81_11, %c0_12] : memref<82x256xbf16, #tpu.memory_space<vmem>>, vector<1x256xbf16>
    tpu.vector_store %arg16[%c81_11, %c0_12], %10 {strides = array<i32>} : memref<82x256xbf16, #tpu.memory_space<vmem>>, vector<1x256xbf16>,
    %c0_13 = arith.constant 0 : index
    %c0_14 = arith.constant 0 : index
    %c0_15 = arith.constant 0 : index
    %12 = vector.load %arg3[%c0_13, %c0_14, %c0_15] : memref<1x64x64xbf16, #tpu.memory_space<vmem>>, vector<1x64x64xbf16>
    %13 = vector.shape_cast %12 : vector<1x64x64xbf16> to vector<64x64xbf16>
    %14 = arith.extf %13 : vector<64x64xbf16> to vector<64x64xf32>
    %15 = vector.shape_cast %1 : vector<64xf32> to vector<1x64xf32>
    %16 = vector.broadcast %15 : vector<1x64xf32> to vector<64x64xf32>
    %17 = arith.mulf %14, %16 : vector<64x64xf32>
    %18 = vector.shape_cast %3 : vector<64xf32> to vector<1x64xf32>
    %19 = vector.broadcast %18 : vector<1x64xf32> to vector<64x64xf32>
    %20 = arith.addf %17, %19 : vector<64x64xf32>
    %cst_16 = arith.constant 0.000000e+00 : f32
    %21 = vector.broadcast %cst_16 : f32 to vector<64x64xf32>
    %22 = arith.maximumf %20, %21 : vector<64x64xf32>
    %23 = arith.truncf %22 : vector<64x64xf32> to vector<64x64xbf16>
    %c9 = arith.constant 9 : index
    %c0_17 = arith.constant 0 : index
    %24 = vector.load %arg15[%c9, %c0_17] : memref<82x64xbf16, #tpu.memory_space<vmem>>, vector<64x64xbf16>
    tpu.vector_store %arg15[%c9, %c0_17], %23 {strides = array<i32>} : memref<82x64xbf16, #tpu.memory_space<vmem>>, vector<64x64xbf16>,
    %c0_18 = arith.constant 0 : index
    %c0_19 = arith.constant 0 : index
    %c0_20 = arith.constant 0 : index
    %25 = vector.load %arg6[%c0_18, %c0_19, %c0_20] : memref<1x64x256xbf16, #tpu.memory_space<vmem>>, vector<1x64x256xbf16>
    %26 = vector.shape_cast %25 : vector<1x64x256xbf16> to vector<64x256xbf16>
    %c9_21 = arith.constant 9 : index
    %c0_22 = arith.constant 0 : index
    %27 = vector.load %arg16[%c9_21, %c0_22] : memref<82x256xbf16, #tpu.memory_space<vmem>>, vector<64x256xbf16>
    tpu.vector_store %arg16[%c9_21, %c0_22], %26 {strides = array<i32>} : memref<82x256xbf16, #tpu.memory_space<vmem>>, vector<64x256xbf16>,
    %c0_i32 = arith.constant 0 : i32
    %28 = arith.cmpi sgt, %arg1, %c0_i32 : i32
    %29 = arith.extui %28 : i1 to i32
    %c0_i32_23 = arith.constant 0 : i32
    %30 = arith.cmpi ne, %29, %c0_i32_23 : i32
    scf.if %30 {
      %c0_166 = arith.constant 0 : index
      %c0_167 = arith.constant 0 : index
      %c0_168 = arith.constant 0 : index
      %193 = vector.load %arg2[%c0_166, %c0_167, %c0_168] : memref<1x8x64xbf16, #tpu.memory_space<vmem>>, vector<1x8x64xbf16>
      %194 = vector.shape_cast %193 : vector<1x8x64xbf16> to vector<8x64xbf16>
      %195 = arith.extf %194 : vector<8x64xbf16> to vector<8x64xf32>
      %196 = vector.shape_cast %1 : vector<64xf32> to vector<1x64xf32>
      %197 = vector.broadcast %196 : vector<1x64xf32> to vector<8x64xf32>
      %198 = arith.mulf %195, %197 : vector<8x64xf32>
      %199 = vector.shape_cast %3 : vector<64xf32> to vector<1x64xf32>
      %200 = vector.broadcast %199 : vector<1x64xf32> to vector<8x64xf32>
      %201 = arith.addf %198, %200 : vector<8x64xf32>
      %cst_169 = arith.constant 0.000000e+00 : f32
      %202 = vector.broadcast %cst_169 : f32 to vector<8x64xf32>
      %203 = arith.maximumf %201, %202 : vector<8x64xf32>
      %204 = arith.truncf %203 : vector<8x64xf32> to vector<8x64xbf16>
      %c1_170 = arith.constant 1 : index
      %c0_171 = arith.constant 0 : index
      %205 = vector.load %arg15[%c1_170, %c0_171] : memref<82x64xbf16, #tpu.memory_space<vmem>>, vector<8x64xbf16>
      tpu.vector_store %arg15[%c1_170, %c0_171], %204 {strides = array<i32>} : memref<82x64xbf16, #tpu.memory_space<vmem>>, vector<8x64xbf16>,
      %c0_172 = arith.constant 0 : index
      %c0_173 = arith.constant 0 : index
      %c0_174 = arith.constant 0 : index
      %206 = vector.load %arg5[%c0_172, %c0_173, %c0_174] : memref<1x8x256xbf16, #tpu.memory_space<vmem>>, vector<1x8x256xbf16>
      %207 = vector.shape_cast %206 : vector<1x8x256xbf16> to vector<8x256xbf16>
      %c1_175 = arith.constant 1 : index
      %c0_176 = arith.constant 0 : index
      %208 = vector.load %arg16[%c1_175, %c0_176] : memref<82x256xbf16, #tpu.memory_space<vmem>>, vector<8x256xbf16>
      tpu.vector_store %arg16[%c1_175, %c0_176], %207 {strides = array<i32>} : memref<82x256xbf16, #tpu.memory_space<vmem>>, vector<8x256xbf16>,
    } else {
    }
    %c0_i32_24 = arith.constant 0 : i32
    %31 = arith.cmpi eq, %arg1, %c0_i32_24 : i32
    %32 = arith.extui %31 : i1 to i32
    %c0_i32_25 = arith.constant 0 : i32
    %33 = arith.cmpi ne, %32, %c0_i32_25 : i32
    scf.if %33 {
      %cst_166 = arith.constant 0.000000e+00 : bf16
      %193 = vector.broadcast %cst_166 : bf16 to vector<8x64xbf16>
      %c1_167 = arith.constant 1 : index
      %c0_168 = arith.constant 0 : index
      %194 = vector.load %arg15[%c1_167, %c0_168] : memref<82x64xbf16, #tpu.memory_space<vmem>>, vector<8x64xbf16>
      tpu.vector_store %arg15[%c1_167, %c0_168], %193 {strides = array<i32>} : memref<82x64xbf16, #tpu.memory_space<vmem>>, vector<8x64xbf16>,
      %cst_169 = arith.constant 0.000000e+00 : bf16
      %195 = vector.broadcast %cst_169 : bf16 to vector<8x256xbf16>
      %c1_170 = arith.constant 1 : index
      %c0_171 = arith.constant 0 : index
      %196 = vector.load %arg16[%c1_170, %c0_171] : memref<82x256xbf16, #tpu.memory_space<vmem>>, vector<8x256xbf16>
      tpu.vector_store %arg16[%c1_170, %c0_171], %195 {strides = array<i32>} : memref<82x256xbf16, #tpu.memory_space<vmem>>, vector<8x256xbf16>,
    } else {
    }
    %c0_i32_26 = arith.constant 0 : i32
    %34 = arith.cmpi slt, %arg1, %c0_i32_26 : i32
    %35 = arith.extui %34 : i1 to i32
    %c0_i32_27 = arith.constant 0 : i32
    %36 = arith.cmpi ne, %35, %c0_i32_27 : i32
    scf.if %36 {
      %c0_166 = arith.constant 0 : index
      %c0_167 = arith.constant 0 : index
      %c0_168 = arith.constant 0 : index
      %193 = vector.load %arg4[%c0_166, %c0_167, %c0_168] : memref<1x8x64xbf16, #tpu.memory_space<vmem>>, vector<1x8x64xbf16>
      %194 = vector.shape_cast %193 : vector<1x8x64xbf16> to vector<8x64xbf16>
      %195 = arith.extf %194 : vector<8x64xbf16> to vector<8x64xf32>
      %196 = vector.shape_cast %1 : vector<64xf32> to vector<1x64xf32>
      %197 = vector.broadcast %196 : vector<1x64xf32> to vector<8x64xf32>
      %198 = arith.mulf %195, %197 : vector<8x64xf32>
      %199 = vector.shape_cast %3 : vector<64xf32> to vector<1x64xf32>
      %200 = vector.broadcast %199 : vector<1x64xf32> to vector<8x64xf32>
      %201 = arith.addf %198, %200 : vector<8x64xf32>
      %cst_169 = arith.constant 0.000000e+00 : f32
      %202 = vector.broadcast %cst_169 : f32 to vector<8x64xf32>
      %203 = arith.maximumf %201, %202 : vector<8x64xf32>
      %204 = arith.truncf %203 : vector<8x64xf32> to vector<8x64xbf16>
      %c73 = arith.constant 73 : index
      %c0_170 = arith.constant 0 : index
      %205 = vector.load %arg15[%c73, %c0_170] : memref<82x64xbf16, #tpu.memory_space<vmem>>, vector<8x64xbf16>
      tpu.vector_store %arg15[%c73, %c0_170], %204 {strides = array<i32>} : memref<82x64xbf16, #tpu.memory_space<vmem>>, vector<8x64xbf16>,
      %c0_171 = arith.constant 0 : index
      %c0_172 = arith.constant 0 : index
      %c0_173 = arith.constant 0 : index
      %206 = vector.load %arg7[%c0_171, %c0_172, %c0_173] : memref<1x8x256xbf16, #tpu.memory_space<vmem>>, vector<1x8x256xbf16>
      %207 = vector.shape_cast %206 : vector<1x8x256xbf16> to vector<8x256xbf16>
      %c73_174 = arith.constant 73 : index
      %c0_175 = arith.constant 0 : index
      %208 = vector.load %arg16[%c73_174, %c0_175] : memref<82x256xbf16, #tpu.memory_space<vmem>>, vector<8x256xbf16>
      tpu.vector_store %arg16[%c73_174, %c0_175], %207 {strides = array<i32>} : memref<82x256xbf16, #tpu.memory_space<vmem>>, vector<8x256xbf16>,
    } else {
    }
    %c0_i32_28 = arith.constant 0 : i32
    %37 = arith.cmpi eq, %arg1, %c0_i32_28 : i32
    %38 = arith.extui %37 : i1 to i32
    %c0_i32_29 = arith.constant 0 : i32
    %39 = arith.cmpi ne, %38, %c0_i32_29 : i32
    scf.if %39 {
      %cst_166 = arith.constant 0.000000e+00 : bf16
      %193 = vector.broadcast %cst_166 : bf16 to vector<8x64xbf16>
      %c73 = arith.constant 73 : index
      %c0_167 = arith.constant 0 : index
      %194 = vector.load %arg15[%c73, %c0_167] : memref<82x64xbf16, #tpu.memory_space<vmem>>, vector<8x64xbf16>
      tpu.vector_store %arg15[%c73, %c0_167], %193 {strides = array<i32>} : memref<82x64xbf16, #tpu.memory_space<vmem>>, vector<8x64xbf16>,
      %cst_168 = arith.constant 0.000000e+00 : bf16
      %195 = vector.broadcast %cst_168 : bf16 to vector<8x256xbf16>
      %c73_169 = arith.constant 73 : index
      %c0_170 = arith.constant 0 : index
      %196 = vector.load %arg16[%c73_169, %c0_170] : memref<82x256xbf16, #tpu.memory_space<vmem>>, vector<8x256xbf16>
      tpu.vector_store %arg16[%c73_169, %c0_170], %195 {strides = array<i32>} : memref<82x256xbf16, #tpu.memory_space<vmem>>, vector<8x256xbf16>,
    } else {
    }
    %40 = tpu.iota {dimensions = array<i32: 0>} : vector<64x1xi32>
    %c8_i32 = arith.constant 8 : i32
    %c0_i32_30 = arith.constant 0 : i32
    %41 = arith.cmpi eq, %c8_i32, %c0_i32_30 : i32
    %c1_i32 = arith.constant 1 : i32
    %42 = arith.select %41, %c1_i32, %c8_i32 : i32
    %43 = vector.broadcast %42 : i32 to vector<64x1xi32>
    %44 = arith.remsi %40, %43 : vector<64x1xi32>
    %c0_i32_31 = arith.constant 0 : i32
    %45 = vector.broadcast %c0_i32_31 : i32 to vector<64x1xi32>
    %46 = arith.cmpi ne, %44, %45 : vector<64x1xi32>
    %c0_i32_32 = arith.constant 0 : i32
    %47 = vector.broadcast %c0_i32_32 : i32 to vector<64x1xi32>
    %48 = arith.cmpi slt, %44, %47 : vector<64x1xi32>
    %c0_i32_33 = arith.constant 0 : i32
    %49 = arith.cmpi slt, %42, %c0_i32_33 : i32
    %50 = vector.broadcast %49 : i1 to vector<64x1xi1>
    %51 = vector.broadcast %50 : vector<64x1xi1> to vector<64x1xi1>
    %52 = arith.xori %48, %51 : vector<64x1xi1>
    %53 = arith.andi %52, %46 : vector<64x1xi1>
    %54 = vector.broadcast %42 : i32 to vector<64x1xi32>
    %55 = arith.addi %44, %54 : vector<64x1xi32>
    %56 = arith.select %53, %55, %44 : vector<64x1xi1>, vector<64x1xi32>
    %c0_i32_34 = arith.constant 0 : i32
    %57 = vector.broadcast %c0_i32_34 : i32 to vector<64x1xi32>
    %58 = arith.cmpi sgt, %56, %57 : vector<64x1xi32>
    %59 = arith.extui %58 : vector<64x1xi1> to vector<64x1xi32>
    %60 = arith.sitofp %59 : vector<64x1xi32> to vector<64x1xf32>
    %61 = arith.truncf %60 : vector<64x1xf32> to vector<64x1xbf16>
    %c7_i32 = arith.constant 7 : i32
    %62 = vector.broadcast %c7_i32 : i32 to vector<64x1xi32>
    %63 = arith.cmpi slt, %56, %62 : vector<64x1xi32>
    %64 = arith.extui %63 : vector<64x1xi1> to vector<64x1xi32>
    %65 = arith.sitofp %64 : vector<64x1xi32> to vector<64x1xf32>
    %66 = arith.truncf %65 : vector<64x1xf32> to vector<64x1xbf16>
    %cst_35 = arith.constant 0.000000e+00 : f32
    %67 = vector.broadcast %cst_35 : f32 to vector<64x256xf32>
    %c0_36 = arith.constant 0 : index
    %c0_37 = arith.constant 0 : index
    %68 = vector.load %arg15[%c0_36, %c0_37] : memref<82x64xbf16, #tpu.memory_space<vmem>>, vector<64x64xbf16>
    %c0_38 = arith.constant 0 : index
    %c0_39 = arith.constant 0 : index
    %69 = vector.load %arg16[%c0_38, %c0_39] : memref<82x256xbf16, #tpu.memory_space<vmem>>, vector<64x256xbf16>
    %70 = vector.broadcast %61 : vector<64x1xbf16> to vector<64x64xbf16>
    %71 = arith.mulf %68, %70 : vector<64x64xbf16>
    %72 = vector.broadcast %61 : vector<64x1xbf16> to vector<64x256xbf16>
    %73 = arith.mulf %69, %72 : vector<64x256xbf16>
    %c0_40 = arith.constant 0 : index
    %c0_41 = arith.constant 0 : index
    %c0_42 = arith.constant 0 : index
    %c0_43 = arith.constant 0 : index
    %74 = vector.load %arg10[%c0_40, %c0_41, %c0_42, %c0_43] : memref<3x3x64x256xbf16, #tpu.memory_space<vmem>>, vector<1x1x64x256xbf16>
    %75 = vector.shape_cast %74 : vector<1x1x64x256xbf16> to vector<64x256xbf16>
    %cst_44 = arith.constant dense<0.000000e+00> : vector<64x256xf32>
    %76 = tpu.matmul %71, %75, %cst_44 {dimension_numbers = #tpu.dot_dimension_numbers<[1], [0], [0], [1], [0, 0, 1, 1], [], []>} : vector<64x64xbf16>, vector<64x256xbf16>, vector<64x256xf32> -> vector<64x256xf32>
    %77 = arith.addf %67, %76 : vector<64x256xf32>
    %c0_45 = arith.constant 0 : index
    %c0_46 = arith.constant 0 : index
    %c0_47 = arith.constant 0 : index
    %c0_48 = arith.constant 0 : index
    %78 = vector.load %arg11[%c0_45, %c0_46, %c0_47, %c0_48] : memref<3x3x256x256xbf16, #tpu.memory_space<vmem>>, vector<1x1x256x256xbf16>
    %79 = vector.shape_cast %78 : vector<1x1x256x256xbf16> to vector<256x256xbf16>
    %cst_49 = arith.constant dense<0.000000e+00> : vector<64x256xf32>
    %80 = tpu.matmul %73, %79, %cst_49 {dimension_numbers = #tpu.dot_dimension_numbers<[1], [0], [0], [1], [0, 0, 1, 1], [], []>} : vector<64x256xbf16>, vector<256x256xbf16>, vector<64x256xf32> -> vector<64x256xf32>
    %81 = arith.addf %77, %80 : vector<64x256xf32>
    %c1 = arith.constant 1 : index
    %c0_50 = arith.constant 0 : index
    %82 = vector.load %arg15[%c1, %c0_50] : memref<82x64xbf16, #tpu.memory_space<vmem>>, vector<64x64xbf16>
    %c1_51 = arith.constant 1 : index
    %c0_52 = arith.constant 0 : index
    %83 = vector.load %arg16[%c1_51, %c0_52] : memref<82x256xbf16, #tpu.memory_space<vmem>>, vector<64x256xbf16>
    %c0_53 = arith.constant 0 : index
    %c1_54 = arith.constant 1 : index
    %c0_55 = arith.constant 0 : index
    %c0_56 = arith.constant 0 : index
    %84 = vector.load %arg10[%c0_53, %c1_54, %c0_55, %c0_56] : memref<3x3x64x256xbf16, #tpu.memory_space<vmem>>, vector<1x1x64x256xbf16>
    %85 = vector.shape_cast %84 : vector<1x1x64x256xbf16> to vector<64x256xbf16>
    %cst_57 = arith.constant dense<0.000000e+00> : vector<64x256xf32>
    %86 = tpu.matmul %82, %85, %cst_57 {dimension_numbers = #tpu.dot_dimension_numbers<[1], [0], [0], [1], [0, 0, 1, 1], [], []>} : vector<64x64xbf16>, vector<64x256xbf16>, vector<64x256xf32> -> vector<64x256xf32>
    %87 = arith.addf %81, %86 : vector<64x256xf32>
    %c0_58 = arith.constant 0 : index
    %c1_59 = arith.constant 1 : index
    %c0_60 = arith.constant 0 : index
    %c0_61 = arith.constant 0 : index
    %88 = vector.load %arg11[%c0_58, %c1_59, %c0_60, %c0_61] : memref<3x3x256x256xbf16, #tpu.memory_space<vmem>>, vector<1x1x256x256xbf16>
    %89 = vector.shape_cast %88 : vector<1x1x256x256xbf16> to vector<256x256xbf16>
    %cst_62 = arith.constant dense<0.000000e+00> : vector<64x256xf32>
    %90 = tpu.matmul %83, %89, %cst_62 {dimension_numbers = #tpu.dot_dimension_numbers<[1], [0], [0], [1], [0, 0, 1, 1], [], []>} : vector<64x256xbf16>, vector<256x256xbf16>, vector<64x256xf32> -> vector<64x256xf32>
    %91 = arith.addf %87, %90 : vector<64x256xf32>
    %c2 = arith.constant 2 : index
    %c0_63 = arith.constant 0 : index
    %92 = vector.load %arg15[%c2, %c0_63] : memref<82x64xbf16, #tpu.memory_space<vmem>>, vector<64x64xbf16>
    %c2_64 = arith.constant 2 : index
    %c0_65 = arith.constant 0 : index
    %93 = vector.load %arg16[%c2_64, %c0_65] : memref<82x256xbf16, #tpu.memory_space<vmem>>, vector<64x256xbf16>
    %94 = vector.broadcast %66 : vector<64x1xbf16> to vector<64x64xbf16>
    %95 = arith.mulf %92, %94 : vector<64x64xbf16>
    %96 = vector.broadcast %66 : vector<64x1xbf16> to vector<64x256xbf16>
    %97 = arith.mulf %93, %96 : vector<64x256xbf16>
    %c0_66 = arith.constant 0 : index
    %c2_67 = arith.constant 2 : index
    %c0_68 = arith.constant 0 : index
    %c0_69 = arith.constant 0 : index
    %98 = vector.load %arg10[%c0_66, %c2_67, %c0_68, %c0_69] : memref<3x3x64x256xbf16, #tpu.memory_space<vmem>>, vector<1x1x64x256xbf16>
    %99 = vector.shape_cast %98 : vector<1x1x64x256xbf16> to vector<64x256xbf16>
    %cst_70 = arith.constant dense<0.000000e+00> : vector<64x256xf32>
    %100 = tpu.matmul %95, %99, %cst_70 {dimension_numbers = #tpu.dot_dimension_numbers<[1], [0], [0], [1], [0, 0, 1, 1], [], []>} : vector<64x64xbf16>, vector<64x256xbf16>, vector<64x256xf32> -> vector<64x256xf32>
    %101 = arith.addf %91, %100 : vector<64x256xf32>
    %c0_71 = arith.constant 0 : index
    %c2_72 = arith.constant 2 : index
    %c0_73 = arith.constant 0 : index
    %c0_74 = arith.constant 0 : index
    %102 = vector.load %arg11[%c0_71, %c2_72, %c0_73, %c0_74] : memref<3x3x256x256xbf16, #tpu.memory_space<vmem>>, vector<1x1x256x256xbf16>
    %103 = vector.shape_cast %102 : vector<1x1x256x256xbf16> to vector<256x256xbf16>
    %cst_75 = arith.constant dense<0.000000e+00> : vector<64x256xf32>
    %104 = tpu.matmul %97, %103, %cst_75 {dimension_numbers = #tpu.dot_dimension_numbers<[1], [0], [0], [1], [0, 0, 1, 1], [], []>} : vector<64x256xbf16>, vector<256x256xbf16>, vector<64x256xf32> -> vector<64x256xf32>
    %105 = arith.addf %101, %104 : vector<64x256xf32>
    %c8 = arith.constant 8 : index
    %c0_76 = arith.constant 0 : index
    %106 = vector.load %arg15[%c8, %c0_76] : memref<82x64xbf16, #tpu.memory_space<vmem>>, vector<64x64xbf16>
    %c8_77 = arith.constant 8 : index
    %c0_78 = arith.constant 0 : index
    %107 = vector.load %arg16[%c8_77, %c0_78] : memref<82x256xbf16, #tpu.memory_space<vmem>>, vector<64x256xbf16>
    %108 = vector.broadcast %61 : vector<64x1xbf16> to vector<64x64xbf16>
    %109 = arith.mulf %106, %108 : vector<64x64xbf16>
    %110 = vector.broadcast %61 : vector<64x1xbf16> to vector<64x256xbf16>
    %111 = arith.mulf %107, %110 : vector<64x256xbf16>
    %c1_79 = arith.constant 1 : index
    %c0_80 = arith.constant 0 : index
    %c0_81 = arith.constant 0 : index
    %c0_82 = arith.constant 0 : index
    %112 = vector.load %arg10[%c1_79, %c0_80, %c0_81, %c0_82] : memref<3x3x64x256xbf16, #tpu.memory_space<vmem>>, vector<1x1x64x256xbf16>
    %113 = vector.shape_cast %112 : vector<1x1x64x256xbf16> to vector<64x256xbf16>
    %cst_83 = arith.constant dense<0.000000e+00> : vector<64x256xf32>
    %114 = tpu.matmul %109, %113, %cst_83 {dimension_numbers = #tpu.dot_dimension_numbers<[1], [0], [0], [1], [0, 0, 1, 1], [], []>} : vector<64x64xbf16>, vector<64x256xbf16>, vector<64x256xf32> -> vector<64x256xf32>
    %115 = arith.addf %105, %114 : vector<64x256xf32>
    %c1_84 = arith.constant 1 : index
    %c0_85 = arith.constant 0 : index
    %c0_86 = arith.constant 0 : index
    %c0_87 = arith.constant 0 : index
    %116 = vector.load %arg11[%c1_84, %c0_85, %c0_86, %c0_87] : memref<3x3x256x256xbf16, #tpu.memory_space<vmem>>, vector<1x1x256x256xbf16>
    %117 = vector.shape_cast %116 : vector<1x1x256x256xbf16> to vector<256x256xbf16>
    %cst_88 = arith.constant dense<0.000000e+00> : vector<64x256xf32>
    %118 = tpu.matmul %111, %117, %cst_88 {dimension_numbers = #tpu.dot_dimension_numbers<[1], [0], [0], [1], [0, 0, 1, 1], [], []>} : vector<64x256xbf16>, vector<256x256xbf16>, vector<64x256xf32> -> vector<64x256xf32>
    %119 = arith.addf %115, %118 : vector<64x256xf32>
    %c9_89 = arith.constant 9 : index
    %c0_90 = arith.constant 0 : index
    %120 = vector.load %arg15[%c9_89, %c0_90] : memref<82x64xbf16, #tpu.memory_space<vmem>>, vector<64x64xbf16>
    %c9_91 = arith.constant 9 : index
    %c0_92 = arith.constant 0 : index
    %121 = vector.load %arg16[%c9_91, %c0_92] : memref<82x256xbf16, #tpu.memory_space<vmem>>, vector<64x256xbf16>
    %c1_93 = arith.constant 1 : index
    %c1_94 = arith.constant 1 : index
    %c0_95 = arith.constant 0 : index
    %c0_96 = arith.constant 0 : index
    %122 = vector.load %arg10[%c1_93, %c1_94, %c0_95, %c0_96] : memref<3x3x64x256xbf16, #tpu.memory_space<vmem>>, vector<1x1x64x256xbf16>
    %123 = vector.shape_cast %122 : vector<1x1x64x256xbf16> to vector<64x256xbf16>
    %cst_97 = arith.constant dense<0.000000e+00> : vector<64x256xf32>
    %124 = tpu.matmul %120, %123, %cst_97 {dimension_numbers = #tpu.dot_dimension_numbers<[1], [0], [0], [1], [0, 0, 1, 1], [], []>} : vector<64x64xbf16>, vector<64x256xbf16>, vector<64x256xf32> -> vector<64x256xf32>
    %125 = arith.addf %119, %124 : vector<64x256xf32>
    %c1_98 = arith.constant 1 : index
    %c1_99 = arith.constant 1 : index
    %c0_100 = arith.constant 0 : index
    %c0_101 = arith.constant 0 : index
    %126 = vector.load %arg11[%c1_98, %c1_99, %c0_100, %c0_101] : memref<3x3x256x256xbf16, #tpu.memory_space<vmem>>, vector<1x1x256x256xbf16>
    %127 = vector.shape_cast %126 : vector<1x1x256x256xbf16> to vector<256x256xbf16>
    %cst_102 = arith.constant dense<0.000000e+00> : vector<64x256xf32>
    %128 = tpu.matmul %121, %127, %cst_102 {dimension_numbers = #tpu.dot_dimension_numbers<[1], [0], [0], [1], [0, 0, 1, 1], [], []>} : vector<64x256xbf16>, vector<256x256xbf16>, vector<64x256xf32> -> vector<64x256xf32>
    %129 = arith.addf %125, %128 : vector<64x256xf32>
    %c10 = arith.constant 10 : index
    %c0_103 = arith.constant 0 : index
    %130 = vector.load %arg15[%c10, %c0_103] : memref<82x64xbf16, #tpu.memory_space<vmem>>, vector<64x64xbf16>
    %c10_104 = arith.constant 10 : index
    %c0_105 = arith.constant 0 : index
    %131 = vector.load %arg16[%c10_104, %c0_105] : memref<82x256xbf16, #tpu.memory_space<vmem>>, vector<64x256xbf16>
    %132 = vector.broadcast %66 : vector<64x1xbf16> to vector<64x64xbf16>
    %133 = arith.mulf %130, %132 : vector<64x64xbf16>
    %134 = vector.broadcast %66 : vector<64x1xbf16> to vector<64x256xbf16>
    %135 = arith.mulf %131, %134 : vector<64x256xbf16>
    %c1_106 = arith.constant 1 : index
    %c2_107 = arith.constant 2 : index
    %c0_108 = arith.constant 0 : index
    %c0_109 = arith.constant 0 : index
    %136 = vector.load %arg10[%c1_106, %c2_107, %c0_108, %c0_109] : memref<3x3x64x256xbf16, #tpu.memory_space<vmem>>, vector<1x1x64x256xbf16>
    %137 = vector.shape_cast %136 : vector<1x1x64x256xbf16> to vector<64x256xbf16>
    %cst_110 = arith.constant dense<0.000000e+00> : vector<64x256xf32>
    %138 = tpu.matmul %133, %137, %cst_110 {dimension_numbers = #tpu.dot_dimension_numbers<[1], [0], [0], [1], [0, 0, 1, 1], [], []>} : vector<64x64xbf16>, vector<64x256xbf16>, vector<64x256xf32> -> vector<64x256xf32>
    %139 = arith.addf %129, %138 : vector<64x256xf32>
    %c1_111 = arith.constant 1 : index
    %c2_112 = arith.constant 2 : index
    %c0_113 = arith.constant 0 : index
    %c0_114 = arith.constant 0 : index
    %140 = vector.load %arg11[%c1_111, %c2_112, %c0_113, %c0_114] : memref<3x3x256x256xbf16, #tpu.memory_space<vmem>>, vector<1x1x256x256xbf16>
    %141 = vector.shape_cast %140 : vector<1x1x256x256xbf16> to vector<256x256xbf16>
    %cst_115 = arith.constant dense<0.000000e+00> : vector<64x256xf32>
    %142 = tpu.matmul %135, %141, %cst_115 {dimension_numbers = #tpu.dot_dimension_numbers<[1], [0], [0], [1], [0, 0, 1, 1], [], []>} : vector<64x256xbf16>, vector<256x256xbf16>, vector<64x256xf32> -> vector<64x256xf32>
    %143 = arith.addf %139, %142 : vector<64x256xf32>
    %c16 = arith.constant 16 : index
    %c0_116 = arith.constant 0 : index
    %144 = vector.load %arg15[%c16, %c0_116] : memref<82x64xbf16, #tpu.memory_space<vmem>>, vector<64x64xbf16>
    %c16_117 = arith.constant 16 : index
    %c0_118 = arith.constant 0 : index
    %145 = vector.load %arg16[%c16_117, %c0_118] : memref<82x256xbf16, #tpu.memory_space<vmem>>, vector<64x256xbf16>
    %146 = vector.broadcast %61 : vector<64x1xbf16> to vector<64x64xbf16>
    %147 = arith.mulf %144, %146 : vector<64x64xbf16>
    %148 = vector.broadcast %61 : vector<64x1xbf16> to vector<64x256xbf16>
    %149 = arith.mulf %145, %148 : vector<64x256xbf16>
    %c2_119 = arith.constant 2 : index
    %c0_120 = arith.constant 0 : index
    %c0_121 = arith.constant 0 : index
    %c0_122 = arith.constant 0 : index
    %150 = vector.load %arg10[%c2_119, %c0_120, %c0_121, %c0_122] : memref<3x3x64x256xbf16, #tpu.memory_space<vmem>>, vector<1x1x64x256xbf16>
    %151 = vector.shape_cast %150 : vector<1x1x64x256xbf16> to vector<64x256xbf16>
    %cst_123 = arith.constant dense<0.000000e+00> : vector<64x256xf32>
    %152 = tpu.matmul %147, %151, %cst_123 {dimension_numbers = #tpu.dot_dimension_numbers<[1], [0], [0], [1], [0, 0, 1, 1], [], []>} : vector<64x64xbf16>, vector<64x256xbf16>, vector<64x256xf32> -> vector<64x256xf32>
    %153 = arith.addf %143, %152 : vector<64x256xf32>
    %c2_124 = arith.constant 2 : index
    %c0_125 = arith.constant 0 : index
    %c0_126 = arith.constant 0 : index
    %c0_127 = arith.constant 0 : index
    %154 = vector.load %arg11[%c2_124, %c0_125, %c0_126, %c0_127] : memref<3x3x256x256xbf16, #tpu.memory_space<vmem>>, vector<1x1x256x256xbf16>
    %155 = vector.shape_cast %154 : vector<1x1x256x256xbf16> to vector<256x256xbf16>
    %cst_128 = arith.constant dense<0.000000e+00> : vector<64x256xf32>
    %156 = tpu.matmul %149, %155, %cst_128 {dimension_numbers = #tpu.dot_dimension_numbers<[1], [0], [0], [1], [0, 0, 1, 1], [], []>} : vector<64x256xbf16>, vector<256x256xbf16>, vector<64x256xf32> -> vector<64x256xf32>
    %157 = arith.addf %153, %156 : vector<64x256xf32>
    %c17 = arith.constant 17 : index
    %c0_129 = arith.constant 0 : index
    %158 = vector.load %arg15[%c17, %c0_129] : memref<82x64xbf16, #tpu.memory_space<vmem>>, vector<64x64xbf16>
    %c17_130 = arith.constant 17 : index
    %c0_131 = arith.constant 0 : index
    %159 = vector.load %arg16[%c17_130, %c0_131] : memref<82x256xbf16, #tpu.memory_space<vmem>>, vector<64x256xbf16>
    %c2_132 = arith.constant 2 : index
    %c1_133 = arith.constant 1 : index
    %c0_134 = arith.constant 0 : index
    %c0_135 = arith.constant 0 : index
    %160 = vector.load %arg10[%c2_132, %c1_133, %c0_134, %c0_135] : memref<3x3x64x256xbf16, #tpu.memory_space<vmem>>, vector<1x1x64x256xbf16>
    %161 = vector.shape_cast %160 : vector<1x1x64x256xbf16> to vector<64x256xbf16>
    %cst_136 = arith.constant dense<0.000000e+00> : vector<64x256xf32>
    %162 = tpu.matmul %158, %161, %cst_136 {dimension_numbers = #tpu.dot_dimension_numbers<[1], [0], [0], [1], [0, 0, 1, 1], [], []>} : vector<64x64xbf16>, vector<64x256xbf16>, vector<64x256xf32> -> vector<64x256xf32>
    %163 = arith.addf %157, %162 : vector<64x256xf32>
    %c2_137 = arith.constant 2 : index
    %c1_138 = arith.constant 1 : index
    %c0_139 = arith.constant 0 : index
    %c0_140 = arith.constant 0 : index
    %164 = vector.load %arg11[%c2_137, %c1_138, %c0_139, %c0_140] : memref<3x3x256x256xbf16, #tpu.memory_space<vmem>>, vector<1x1x256x256xbf16>
    %165 = vector.shape_cast %164 : vector<1x1x256x256xbf16> to vector<256x256xbf16>
    %cst_141 = arith.constant dense<0.000000e+00> : vector<64x256xf32>
    %166 = tpu.matmul %159, %165, %cst_141 {dimension_numbers = #tpu.dot_dimension_numbers<[1], [0], [0], [1], [0, 0, 1, 1], [], []>} : vector<64x256xbf16>, vector<256x256xbf16>, vector<64x256xf32> -> vector<64x256xf32>
    %167 = arith.addf %163, %166 : vector<64x256xf32>
    %c18 = arith.constant 18 : index
    %c0_142 = arith.constant 0 : index
    %168 = vector.load %arg15[%c18, %c0_142] : memref<82x64xbf16, #tpu.memory_space<vmem>>, vector<64x64xbf16>
    %c18_143 = arith.constant 18 : index
    %c0_144 = arith.constant 0 : index
    %169 = vector.load %arg16[%c18_143, %c0_144] : memref<82x256xbf16, #tpu.memory_space<vmem>>, vector<64x256xbf16>
    %170 = vector.broadcast %66 : vector<64x1xbf16> to vector<64x64xbf16>
    %171 = arith.mulf %168, %170 : vector<64x64xbf16>
    %172 = vector.broadcast %66 : vector<64x1xbf16> to vector<64x256xbf16>
    %173 = arith.mulf %169, %172 : vector<64x256xbf16>
    %c2_145 = arith.constant 2 : index
    %c2_146 = arith.constant 2 : index
    %c0_147 = arith.constant 0 : index
    %c0_148 = arith.constant 0 : index
    %174 = vector.load %arg10[%c2_145, %c2_146, %c0_147, %c0_148] : memref<3x3x64x256xbf16, #tpu.memory_space<vmem>>, vector<1x1x64x256xbf16>
    %175 = vector.shape_cast %174 : vector<1x1x64x256xbf16> to vector<64x256xbf16>
    %cst_149 = arith.constant dense<0.000000e+00> : vector<64x256xf32>
    %176 = tpu.matmul %171, %175, %cst_149 {dimension_numbers = #tpu.dot_dimension_numbers<[1], [0], [0], [1], [0, 0, 1, 1], [], []>} : vector<64x64xbf16>, vector<64x256xbf16>, vector<64x256xf32> -> vector<64x256xf32>
    %177 = arith.addf %167, %176 : vector<64x256xf32>
    %c2_150 = arith.constant 2 : index
    %c2_151 = arith.constant 2 : index
    %c0_152 = arith.constant 0 : index
    %c0_153 = arith.constant 0 : index
    %178 = vector.load %arg11[%c2_150, %c2_151, %c0_152, %c0_153] : memref<3x3x256x256xbf16, #tpu.memory_space<vmem>>, vector<1x1x256x256xbf16>
    %179 = vector.shape_cast %178 : vector<1x1x256x256xbf16> to vector<256x256xbf16>
    %cst_154 = arith.constant dense<0.000000e+00> : vector<64x256xf32>
    %180 = tpu.matmul %173, %179, %cst_154 {dimension_numbers = #tpu.dot_dimension_numbers<[1], [0], [0], [1], [0, 0, 1, 1], [], []>} : vector<64x256xbf16>, vector<256x256xbf16>, vector<64x256xf32> -> vector<64x256xf32>
    %181 = arith.addf %177, %180 : vector<64x256xf32>
    %182 = arith.truncf %181 : vector<64x256xf32> to vector<64x256xbf16>
    %c0_155 = arith.constant 0 : index
    %c0_156 = arith.constant 0 : index
    %c0_157 = arith.constant 0 : index
    %183 = vector.load %arg12[%c0_155, %c0_156, %c0_157] : memref<1x64x256xbf16, #tpu.memory_space<vmem>>, vector<1x64x256xbf16>
    %184 = vector.shape_cast %183 : vector<1x64x256xbf16> to vector<64x256xbf16>
    %185 = vector.shape_cast %182 : vector<64x256xbf16> to vector<1x64x256xbf16>
    tpu.vector_store %arg12[%c0_155, %c0_156, %c0_157], %185 {strides = array<i32>} : memref<1x64x256xbf16, #tpu.memory_space<vmem>>, vector<1x64x256xbf16>,
    %cst_158 = arith.constant dense<0.000000e+00> : vector<256xf32>
    %186 = vector.multi_reduction <add>, %181, %cst_158 [0] : vector<64x256xf32> to vector<256xf32>
    %187 = vector.shape_cast %186 : vector<256xf32> to vector<1x1x256xf32>
    %c0_159 = arith.constant 0 : index
    %c0_160 = arith.constant 0 : index
    %c0_161 = arith.constant 0 : index
    %188 = vector.load %arg13[%c0_159, %c0_160, %c0_161] : memref<1x1x256xf32, #tpu.memory_space<vmem>>, vector<1x1x256xf32>
    tpu.vector_store %arg13[%c0_159, %c0_160, %c0_161], %187 {strides = array<i32>} : memref<1x1x256xf32, #tpu.memory_space<vmem>>, vector<1x1x256xf32>,
    %189 = arith.mulf %181, %181 : vector<64x256xf32>
    %cst_162 = arith.constant dense<0.000000e+00> : vector<256xf32>
    %190 = vector.multi_reduction <add>, %189, %cst_162 [0] : vector<64x256xf32> to vector<256xf32>
    %191 = vector.shape_cast %190 : vector<256xf32> to vector<1x1x256xf32>
    %c0_163 = arith.constant 0 : index
    %c0_164 = arith.constant 0 : index
    %c0_165 = arith.constant 0 : index
    %192 = vector.load %arg14[%c0_163, %c0_164, %c0_165] : memref<1x1x256xf32, #tpu.memory_space<vmem>>, vector<1x1x256xf32>
    tpu.vector_store %arg14[%c0_163, %c0_164, %c0_165], %191 {strides = array<i32>} : memref<1x1x256xf32, #tpu.memory_space<vmem>>, vector<1x1x256xf32>,
    return
  }
  func.func @transform_0(%arg0: i32, %arg1: i32) -> (i32, i32, i32) {
    %c8_i32 = arith.constant 8 : i32
    %0 = arith.muli %arg1, %c8_i32 : i32
    %c1_i32 = arith.constant 1 : i32
    %1 = arith.subi %0, %c1_i32 : i32
    %c0_i32 = arith.constant 0 : i32
    %2 = arith.maxsi %1, %c0_i32 : i32
    %c0_i32_0 = arith.constant 0 : i32
    %c0_i32_1 = arith.constant 0 : i32
    return %arg0, %2, %c0_i32_0 : i32, i32, i32
  }
  func.func @transform_1(%arg0: i32, %arg1: i32) -> (i32, i32, i32) {
    %c0_i32 = arith.constant 0 : i32
    %c0_i32_0 = arith.constant 0 : i32
    return %arg0, %arg1, %c0_i32 : i32, i32, i32
  }
  func.func @transform_2(%arg0: i32, %arg1: i32) -> (i32, i32, i32) {
    %c8_i32 = arith.constant 8 : i32
    %0 = arith.muli %arg1, %c8_i32 : i32
    %c8_i32_0 = arith.constant 8 : i32
    %1 = arith.addi %0, %c8_i32_0 : i32
    %c7_i32 = arith.constant 7 : i32
    %2 = arith.minsi %1, %c7_i32 : i32
    %c0_i32 = arith.constant 0 : i32
    %c0_i32_1 = arith.constant 0 : i32
    return %arg0, %2, %c0_i32 : i32, i32, i32
  }
  func.func @transform_3(%arg0: i32, %arg1: i32) -> (i32, i32, i32) {
    %c8_i32 = arith.constant 8 : i32
    %0 = arith.muli %arg1, %c8_i32 : i32
    %c1_i32 = arith.constant 1 : i32
    %1 = arith.subi %0, %c1_i32 : i32
    %c0_i32 = arith.constant 0 : i32
    %2 = arith.maxsi %1, %c0_i32 : i32
    %c0_i32_0 = arith.constant 0 : i32
    %c0_i32_1 = arith.constant 0 : i32
    return %arg0, %2, %c0_i32_0 : i32, i32, i32
  }
  func.func @transform_4(%arg0: i32, %arg1: i32) -> (i32, i32, i32) {
    %c0_i32 = arith.constant 0 : i32
    %c0_i32_0 = arith.constant 0 : i32
    return %arg0, %arg1, %c0_i32 : i32, i32, i32
  }
  func.func @transform_5(%arg0: i32, %arg1: i32) -> (i32, i32, i32) {
    %c8_i32 = arith.constant 8 : i32
    %0 = arith.muli %arg1, %c8_i32 : i32
    %c8_i32_0 = arith.constant 8 : i32
    %1 = arith.addi %0, %c8_i32_0 : i32
    %c7_i32 = arith.constant 7 : i32
    %2 = arith.minsi %1, %c7_i32 : i32
    %c0_i32 = arith.constant 0 : i32
    %c0_i32_1 = arith.constant 0 : i32
    return %arg0, %2, %c0_i32 : i32, i32, i32
  }
  func.func @transform_6(%arg0: i32, %arg1: i32) -> (i32, i32) {
    %c0_i32 = arith.constant 0 : i32
    %c0_i32_0 = arith.constant 0 : i32
    %c0_i32_1 = arith.constant 0 : i32
    return %c0_i32, %c0_i32_0 : i32, i32
  }
  func.func @transform_7(%arg0: i32, %arg1: i32) -> (i32, i32) {
    %c0_i32 = arith.constant 0 : i32
    %c0_i32_0 = arith.constant 0 : i32
    %c0_i32_1 = arith.constant 0 : i32
    return %c0_i32, %c0_i32_0 : i32, i32
  }
  func.func @transform_8(%arg0: i32, %arg1: i32) -> (i32, i32, i32, i32) {
    %c0_i32 = arith.constant 0 : i32
    %c0_i32_0 = arith.constant 0 : i32
    %c0_i32_1 = arith.constant 0 : i32
    %c0_i32_2 = arith.constant 0 : i32
    %c0_i32_3 = arith.constant 0 : i32
    return %c0_i32, %c0_i32_0, %c0_i32_1, %c0_i32_2 : i32, i32, i32, i32
  }
  func.func @transform_9(%arg0: i32, %arg1: i32) -> (i32, i32, i32, i32) {
    %c0_i32 = arith.constant 0 : i32
    %c0_i32_0 = arith.constant 0 : i32
    %c0_i32_1 = arith.constant 0 : i32
    %c0_i32_2 = arith.constant 0 : i32
    %c0_i32_3 = arith.constant 0 : i32
    return %c0_i32, %c0_i32_0, %c0_i32_1, %c0_i32_2 : i32, i32, i32, i32
  }
  func.func @transform_10(%arg0: i32, %arg1: i32) -> (i32, i32, i32) {
    %c0_i32 = arith.constant 0 : i32
    %c0_i32_0 = arith.constant 0 : i32
    return %arg0, %arg1, %c0_i32 : i32, i32, i32
  }
  func.func @transform_11(%arg0: i32, %arg1: i32) -> (i32, i32, i32) {
    %c1_i32 = arith.constant 1 : i32
    %0 = arith.muli %arg0, %c1_i32 : i32
    %1 = arith.addi %0, %arg1 : i32
    %c0_i32 = arith.constant 0 : i32
    %c0_i32_0 = arith.constant 0 : i32
    %c0_i32_1 = arith.constant 0 : i32
    return %1, %c0_i32, %c0_i32_0 : i32, i32, i32
  }
  func.func @transform_12(%arg0: i32, %arg1: i32) -> (i32, i32, i32) {
    %c1_i32 = arith.constant 1 : i32
    %0 = arith.muli %arg0, %c1_i32 : i32
    %1 = arith.addi %0, %arg1 : i32
    %c0_i32 = arith.constant 0 : i32
    %c0_i32_0 = arith.constant 0 : i32
    %c0_i32_1 = arith.constant 0 : i32
    return %1, %c0_i32, %c0_i32_0 : i32, i32, i32
  }
}

module attributes {stable_mosaic.version = 11 : i64} {
  func.func @_bn_relu_outconv_kernel(%arg0: i32, %arg1: memref<128x256xbf16, #tpu.memory_space<vmem>>, %arg2: memref<1x256xf32, #tpu.memory_space<vmem>>, %arg3: memref<1x256xf32, #tpu.memory_space<vmem>>, %arg4: memref<1x256xf32, #tpu.memory_space<vmem>>, %arg5: memref<1x1xf32, #tpu.memory_space<vmem>>, %arg6: memref<128x1xf32, #tpu.memory_space<vmem>>) attributes {dimension_semantics = [#tpu.dimension_semantics<parallel>], iteration_bounds = array<i64: 1>, scalar_prefetch = 0 : i64, scratch_operands = 0 : i64, tpu.core_type = #tpu.core_type<tc>, window_params = [{transform_indices = @transform_0, window_bounds = array<i64: 128, 256>}, {pipeline_mode = #tpu.pipeline_mode<synchronous>, transform_indices = @transform_1, window_bounds = array<i64: 1, 256>}, {pipeline_mode = #tpu.pipeline_mode<synchronous>, transform_indices = @transform_2, window_bounds = array<i64: 1, 256>}, {pipeline_mode = #tpu.pipeline_mode<synchronous>, transform_indices = @transform_3, window_bounds = array<i64: 1, 256>}, {pipeline_mode = #tpu.pipeline_mode<synchronous>, transform_indices = @transform_4, window_bounds = array<i64: 1, 1>}, {transform_indices = @transform_5, window_bounds = array<i64: 128, 1>}]} {
    %c0 = arith.constant 0 : index
    %c0_0 = arith.constant 0 : index
    %0 = vector.load %arg1[%c0, %c0_0] : memref<128x256xbf16, #tpu.memory_space<vmem>>, vector<128x256xbf16>
    %1 = arith.extf %0 : vector<128x256xbf16> to vector<128x256xf32>
    %c0_1 = arith.constant 0 : index
    %c0_2 = arith.constant 0 : index
    %2 = vector.load %arg2[%c0_1, %c0_2] : memref<1x256xf32, #tpu.memory_space<vmem>>, vector<1x256xf32>
    %3 = vector.broadcast %2 : vector<1x256xf32> to vector<128x256xf32>
    %4 = arith.mulf %1, %3 : vector<128x256xf32>
    %c0_3 = arith.constant 0 : index
    %c0_4 = arith.constant 0 : index
    %5 = vector.load %arg3[%c0_3, %c0_4] : memref<1x256xf32, #tpu.memory_space<vmem>>, vector<1x256xf32>
    %6 = vector.broadcast %5 : vector<1x256xf32> to vector<128x256xf32>
    %7 = arith.addf %4, %6 : vector<128x256xf32>
    %cst = arith.constant 0.000000e+00 : f32
    %8 = vector.broadcast %cst : f32 to vector<128x256xf32>
    %9 = arith.maximumf %7, %8 : vector<128x256xf32>
    %c0_5 = arith.constant 0 : index
    %c0_6 = arith.constant 0 : index
    %10 = vector.load %arg4[%c0_5, %c0_6] : memref<1x256xf32, #tpu.memory_space<vmem>>, vector<1x256xf32>
    %11 = vector.broadcast %10 : vector<1x256xf32> to vector<128x256xf32>
    %12 = arith.mulf %9, %11 : vector<128x256xf32>
    %cst_7 = arith.constant dense<0.000000e+00> : vector<128xf32>
    %13 = vector.multi_reduction <add>, %12, %cst_7 [1] : vector<128x256xf32> to vector<128xf32>
    %14 = vector.shape_cast %13 : vector<128xf32> to vector<128x1xf32>
    %c0_8 = arith.constant 0 : index
    %c0_9 = arith.constant 0 : index
    %15 = vector.load %arg5[%c0_8, %c0_9] : memref<1x1xf32, #tpu.memory_space<vmem>>, vector<1x1xf32>
    %16 = vector.broadcast %15 : vector<1x1xf32> to vector<128x1xf32>
    %17 = arith.addf %14, %16 : vector<128x1xf32>
    %c0_10 = arith.constant 0 : index
    %c0_11 = arith.constant 0 : index
    %18 = vector.load %arg6[%c0_10, %c0_11] : memref<128x1xf32, #tpu.memory_space<vmem>>, vector<128x1xf32>
    tpu.vector_store %arg6[%c0_10, %c0_11], %17 {strides = array<i32>} : memref<128x1xf32, #tpu.memory_space<vmem>>, vector<128x1xf32>,
    return
  }
  func.func @transform_0(%arg0: i32) -> (i32, i32) {
    %c0_i32 = arith.constant 0 : i32
    %c0_i32_0 = arith.constant 0 : i32
    return %arg0, %c0_i32 : i32, i32
  }
  func.func @transform_1(%arg0: i32) -> (i32, i32) {
    %c0_i32 = arith.constant 0 : i32
    %c0_i32_0 = arith.constant 0 : i32
    %c0_i32_1 = arith.constant 0 : i32
    return %c0_i32, %c0_i32_0 : i32, i32
  }
  func.func @transform_2(%arg0: i32) -> (i32, i32) {
    %c0_i32 = arith.constant 0 : i32
    %c0_i32_0 = arith.constant 0 : i32
    %c0_i32_1 = arith.constant 0 : i32
    return %c0_i32, %c0_i32_0 : i32, i32
  }
  func.func @transform_3(%arg0: i32) -> (i32, i32) {
    %c0_i32 = arith.constant 0 : i32
    %c0_i32_0 = arith.constant 0 : i32
    %c0_i32_1 = arith.constant 0 : i32
    return %c0_i32, %c0_i32_0 : i32, i32
  }
  func.func @transform_4(%arg0: i32) -> (i32, i32) {
    %c0_i32 = arith.constant 0 : i32
    %c0_i32_0 = arith.constant 0 : i32
    %c0_i32_1 = arith.constant 0 : i32
    return %c0_i32, %c0_i32_0 : i32, i32
  }
  func.func @transform_5(%arg0: i32) -> (i32, i32) {
    %c0_i32 = arith.constant 0 : i32
    %c0_i32_0 = arith.constant 0 : i32
    return %arg0, %c0_i32 : i32, i32
  }
}

</mosaic_0001>

<llo_original>
// kernel: decoder_forward.3
$region0: #{decoder_forward.3}
  #allocation0 [shape = 'u32[]', space=smem, size = 0x4, offset = 0x4, fixed_abs, tag = 'smem constant byte address 0x4 - core index']
  #allocation1 [shape = 'u32[144,128]{1,0:T(1,128)}', space=vmem, size = 0x12000, scoped, tag = 'internal scratch']
  %s0 = inlined_call_operand.vmem [shape: bf16[128,32], index: 0, kind: input, shape index: {}]
  %s1 = inlined_call_operand.vmem [shape: bf16[32,64], index: 1, kind: input, shape index: {}]
  %s2 = inlined_call_operand.vmem [shape: bf16[128,64], index: 2, kind: output, shape index: {0}]
  %s3 = inlined_call_operand.vmem [shape: f32[1,1,64], index: 3, kind: output, shape index: {1}]
  %s4 = inlined_call_operand.vmem [shape: f32[1,1,64], index: 4, kind: output, shape index: {2}]
  %5 = xla_tuple %s2, %s3, %s4
  %s6 = sld [smem:[#allocation0]]
  $region34: #{decoder_forward.3} parent=0
    _
  %s8 = ssub.s32 1, %s6
  %s9 = scalar_select 0, %s8, %s6
  // Predicated region
  $region2: #{decoder_forward.3} parent=0 // pred_check
    _
  $region3: #{decoder_forward.3} parent=0 // pred_check_branch
    %11 = sbr.rel (0) target = $region5
  $region4: #{decoder_forward.3} parent=0 // pred_region
    _
  $region5: #{decoder_forward.3} parent=0 // pred_fallthru
    _
  // Predicated region
  $region6: #{decoder_forward.3} parent=0 // pred_check
    _
  $region7: #{decoder_forward.3} parent=0 // pred_check_branch
    %13 = sbr.rel (0) target = $region9
  $region8: #{decoder_forward.3} parent=0 // pred_region
    _
  $region9: #{decoder_forward.3} parent=0 // pred_fallthru
    _
  %v15 = vld [vmem:[%s0] sm:$0xf]
  %v16 = vld [vmem:[%s0 + $0x4] sm:$0xf]
  %v17 = vld [vmem:[%s0 + $0x8] sm:$0xf]
  %v18 = vld [vmem:[%s0 + $0xc] sm:$0xf]
  %v19 = vld [vmem:[%s0 + $0x10] sm:$0xf]
  %v20 = vld [vmem:[%s0 + $0x14] sm:$0xf]
  %v21 = vld [vmem:[%s0 + $0x18] sm:$0xf]
  %v22 = vld [vmem:[%s0 + $0x1c] sm:$0xf]
  %v23 = vld [vmem:[%s0 + $0x20] sm:$0xf]
  %v24 = vld [vmem:[%s0 + $0x24] sm:$0xf]
  %v25 = vld [vmem:[%s0 + $0x28] sm:$0xf]
  %v26 = vld [vmem:[%s0 + $0x2c] sm:$0xf]
  %v27 = vld [vmem:[%s0 + $0x30] sm:$0xf]
  %v28 = vld [vmem:[%s0 + $0x34] sm:$0xf]
  %v29 = vld [vmem:[%s0 + $0x38] sm:$0xf]
  %v30 = vld [vmem:[%s0 + $0x3c] sm:$0xf]
  %v31 = vld [vmem:[%s1] sm:$0xf]
  %v32 = vld [vmem:[%s1 + $0x4] sm:$0xf]
  %v33 = vld [vmem:[%s1 + $0x8] sm:$0xf]
  %v34 = vld [vmem:[%s1 + $0xc] sm:$0xf]
  %v51 = vunpack.c.l.b16 %v15
  %v52 = vunpack.c.l.b16 %v16
  %v53 = vunpack.c.l.b16 %v17
  %v54 = vunpack.c.l.b16 %v18
  %v55 = vunpack.c.l.b16 %v19
  %v56 = vunpack.c.l.b16 %v20
  %v57 = vunpack.c.l.b16 %v21
  %v58 = vunpack.c.l.b16 %v22
  %v59 = vunpack.c.l.b16 %v23
  %v60 = vunpack.c.l.b16 %v24
  %v61 = vunpack.c.l.b16 %v25
  %v62 = vunpack.c.l.b16 %v26
  %v63 = vunpack.c.l.b16 %v27
  %v64 = vunpack.c.l.b16 %v28
  %v65 = vunpack.c.l.b16 %v29
  %v66 = vunpack.c.l.b16 %v30
  %v67 = vpack.c.b16 %v52, %v51
  %v68 = vpack.c.b16 %v54, %v53
  %v69 = vpack.c.b16 %v56, %v55
  %v70 = vpack.c.b16 %v58, %v57
  %v71 = vpack.c.b16 %v60, %v59
  %v72 = vpack.c.b16 %v62, %v61
  %v73 = vpack.c.b16 %v64, %v63
  %v74 = vpack.c.b16 %v66, %v65
  %v79 = vunpack.c.l.b16 %v31
  %v80 = vunpack.c.l.b16 %v32
  %v81 = vunpack.c.l.b16 %v33
  %v82 = vunpack.c.l.b16 %v34
  %v83 = vpack.c.b16 %v80, %v79
  %v84 = vpack.c.b16 %v82, %v81
  %vm87 = vcmask 261120
  %v89 = vsel %vm87, %v67, 0
  %v92 = vsel %vm87, %v68, 0
  %v95 = vsel %vm87, %v69, 0
  %v98 = vsel %vm87, %v70, 0
  %v101 = vsel %vm87, %v71, 0
  %v104 = vsel %vm87, %v72, 0
  %v107 = vsel %vm87, %v73, 0
  %v110 = vsel %vm87, %v74, 0
  %112 = vmatprep.subr.bf16.mxu0 0
  %113 = vmatpush1.bf16.msra.mxu0 %v83
  %114 = vmatprep.subr.bf16.mxu0 0
  %115 = vmatpush1.bf16.msra.mxu0 %v84
  %116 = vmatprep.subr.bf16.mxu0 0
  %117 = vmatpush1.bf16.msra.mxu0 0
  %118 = vmatprep.subr.bf16.mxu0 0
  %119 = vmatpush1.bf16.msra.mxu0 0
  %120 = vmatprep.subr.bf16.mxu0 0
  %121 = vmatpush1.bf16.msra.mxu0 0
  %122 = vmatprep.subr.bf16.mxu0 0
  %123 = vmatpush1.bf16.msra.mxu0 0
  %124 = vmatprep.subr.bf16.mxu0 0
  %125 = vmatpush1.bf16.msra.mxu0 0
  %126 = vmatprep.subr.bf16.mxu0 0
  %127 = vmatpush1.bf16.msra.mxu0 0
  %128 = vmatprep.subr.bf16.mxu0 0
  %129 = vmatpush1.bf16.msra.mxu0 0
  %130 = vmatprep.subr.bf16.mxu0 0
  %131 = vmatpush1.bf16.msra.mxu0 0
  %132 = vmatprep.subr.bf16.mxu0 0
  %133 = vmatpush1.bf16.msra.mxu0 0
  %134 = vmatprep.subr.bf16.mxu0 0
  %135 = vmatpush1.bf16.msra.mxu0 0
  %136 = vmatprep.subr.bf16.mxu0 0
  %137 = vmatpush1.bf16.msra.mxu0 0
  %138 = vmatprep.subr.bf16.mxu0 0
  %139 = vmatpush1.bf16.msra.mxu0 0
  %140 = vmatprep.subr.bf16.mxu0 0
  %141 = vmatpush1.bf16.msra.mxu0 0
  %142 = vmatprep.subr.bf16.mxu0 0
  %143 = vmatpush1.bf16.msra.mxu0 0
  %144 = vmatprep.mubr.bf16.mxu0 0
  %145 = vmatmul.mubr.bf16.gmra.mrb[0].mxu0 %v89
  %v146 = vpop.f32.mrb[0].mxu0
  %v147 = vadd.f32 0.0, %v146
  %v148 = vpop.f32.mrb[0].mxu0
  %v149 = vpop.f32.mrb[0].mxu0
  %v150 = vadd.f32 0.0, %v149
  %v151 = vpop.f32.mrb[0].mxu0
  %152 = vmatprep.mubr.bf16.mxu0 0
  %153 = vmatmul.mubr.bf16.gmra.mrb[0].mxu0 %v92
  %v154 = vpop.f32.mrb[0].mxu0
  %v155 = vadd.f32 0.0, %v154
  %v156 = vpop.f32.mrb[0].mxu0
  %v157 = vpop.f32.mrb[0].mxu0
  %v158 = vadd.f32 0.0, %v157
  %v159 = vpop.f32.mrb[0].mxu0
  %160 = vmatprep.mubr.bf16.mxu0 0
  %161 = vmatmul.mubr.bf16.gmra.mrb[0].mxu0 %v95
  %v162 = vpop.f32.mrb[0].mxu0
  %v163 = vadd.f32 0.0, %v162
  %v164 = vpop.f32.mrb[0].mxu0
  %v165 = vpop.f32.mrb[0].mxu0
  %v166 = vadd.f32 0.0, %v165
  %v167 = vpop.f32.mrb[0].mxu0
  %168 = vmatprep.mubr.bf16.mxu0 0
  %169 = vmatmul.mubr.bf16.gmra.mrb[0].mxu0 %v98
  %v170 = vpop.f32.mrb[0].mxu0
  %v171 = vadd.f32 0.0, %v170
  %v172 = vpop.f32.mrb[0].mxu0
  %v173 = vpop.f32.mrb[0].mxu0
  %v174 = vadd.f32 0.0, %v173
  %v175 = vpop.f32.mrb[0].mxu0
  %176 = vmatprep.mubr.bf16.mxu0 0
  %177 = vmatmul.mubr.bf16.gmra.mrb[0].mxu0 %v101
  %v178 = vpop.f32.mrb[0].mxu0
  %v179 = vadd.f32 0.0, %v178
  %v180 = vpop.f32.mrb[0].mxu0
  %v181 = vpop.f32.mrb[0].mxu0
  %v182 = vadd.f32 0.0, %v181
  %v183 = vpop.f32.mrb[0].mxu0
  %184 = vmatprep.mubr.bf16.mxu0 0
  %185 = vmatmul.mubr.bf16.gmra.mrb[0].mxu0 %v104
  %v186 = vpop.f32.mrb[0].mxu0
  %v187 = vadd.f32 0.0, %v186
  %v188 = vpop.f32.mrb[0].mxu0
  %v189 = vpop.f32.mrb[0].mxu0
  %v190 = vadd.f32 0.0, %v189
  %v191 = vpop.f32.mrb[0].mxu0
  %192 = vmatprep.mubr.bf16.mxu0 0
  %193 = vmatmul.mubr.bf16.gmra.mrb[0].mxu0 %v107
  %v194 = vpop.f32.mrb[0].mxu0
  %v195 = vadd.f32 0.0, %v194
  %v196 = vpop.f32.mrb[0].mxu0
  %v197 = vpop.f32.mrb[0].mxu0
  %v198 = vadd.f32 0.0, %v197
  %v199 = vpop.f32.mrb[0].mxu0
  %200 = vmatprep.mubr.bf16.mxu0 0
  %201 = vmatmul.mubr.bf16.gmra.mrb[0].mxu0 %v110
  %v202 = vpop.f32.mrb[0].mxu0
  %v203 = vadd.f32 0.0, %v202
  %v204 = vpop.f32.mrb[0].mxu0
  %v205 = vpop.f32.mrb[0].mxu0
  %v206 = vadd.f32 0.0, %v205
  %v207 = vpop.f32.mrb[0].mxu0
  %208 = vdwg.mxu0
  %v209 = vpack.c.bf16 %v150, %v147
  %v210 = vpack.c.bf16 %v158, %v155
  %v211 = vpack.c.bf16 %v166, %v163
  %v212 = vpack.c.bf16 %v174, %v171
  %v213 = vpack.c.bf16 %v182, %v179
  %v214 = vpack.c.bf16 %v190, %v187
  %v215 = vpack.c.bf16 %v198, %v195
  %v216 = vpack.c.bf16 %v206, %v203
  %v225 = vunpack.c.l.b16 %v209
  %v226 = vunpack.c.h.b16 %v209
  %v227 = vunpack.c.l.b16 %v210
  %v228 = vunpack.c.h.b16 %v210
  %v229 = vunpack.c.l.b16 %v211
  %v230 = vunpack.c.h.b16 %v211
  %v231 = vunpack.c.l.b16 %v212
  %v232 = vunpack.c.h.b16 %v212
  %v233 = vunpack.c.l.b16 %v213
  %v234 = vunpack.c.h.b16 %v213
  %v235 = vunpack.c.l.b16 %v214
  %v236 = vunpack.c.h.b16 %v214
  %v237 = vunpack.c.l.b16 %v215
  %v238 = vunpack.c.h.b16 %v215
  %v239 = vunpack.c.l.b16 %v216
  %v240 = vunpack.c.h.b16 %v216
  %v241 = vpack.c.b16 %v225, %v225
  %v242 = vpack.c.b16 %v226, %v226
  %v243 = vpack.c.b16 %v227, %v227
  %v244 = vpack.c.b16 %v228, %v228
  %v245 = vpack.c.b16 %v229, %v229
  %v246 = vpack.c.b16 %v230, %v230
  %v247 = vpack.c.b16 %v231, %v231
  %v248 = vpack.c.b16 %v232, %v232
  %v249 = vpack.c.b16 %v233, %v233
  %v250 = vpack.c.b16 %v234, %v234
  %v251 = vpack.c.b16 %v235, %v235
  %v252 = vpack.c.b16 %v236, %v236
  %v253 = vpack.c.b16 %v237, %v237
  %v254 = vpack.c.b16 %v238, %v238
  %v255 = vpack.c.b16 %v239, %v239
  %v256 = vpack.c.b16 %v240, %v240
  %vm273 = vcmask 519168
  %274 = vst.msk [vmem:[%s2] sm:$0xf] %vm273, %v241
  %275 = vst.msk [vmem:[%s2 + $0x4] sm:$0xf] %vm273, %v242
  %276 = vst.msk [vmem:[%s2 + $0x8] sm:$0xf] %vm273, %v243
  %277 = vst.msk [vmem:[%s2 + $0xc] sm:$0xf] %vm273, %v244
  %278 = vst.msk [vmem:[%s2 + $0x10] sm:$0xf] %vm273, %v245
  %279 = vst.msk [vmem:[%s2 + $0x14] sm:$0xf] %vm273, %v246
  %280 = vst.msk [vmem:[%s2 + $0x18] sm:$0xf] %vm273, %v247
  %281 = vst.msk [vmem:[%s2 + $0x1c] sm:$0xf] %vm273, %v248
  %282 = vst.msk [vmem:[%s2 + $0x20] sm:$0xf] %vm273, %v249
  %283 = vst.msk [vmem:[%s2 + $0x24] sm:$0xf] %vm273, %v250
  %284 = vst.msk [vmem:[%s2 + $0x28] sm:$0xf] %vm273, %v251
  %285 = vst.msk [vmem:[%s2 + $0x2c] sm:$0xf] %vm273, %v252
  %286 = vst.msk [vmem:[%s2 + $0x30] sm:$0xf] %vm273, %v253
  %287 = vst.msk [vmem:[%s2 + $0x34] sm:$0xf] %vm273, %v254
  %288 = vst.msk [vmem:[%s2 + $0x38] sm:$0xf] %vm273, %v255
  %289 = vst.msk [vmem:[%s2 + $0x3c] sm:$0xf] %vm273, %v256
  %vm290 = vcmask 523264
  %v291 = vsel %vm290, %v147, 0.0
  %v292 = vsel %vm290, %v150, 0.0
  %v293 = vadd.f32 %v291, %v292
  %v294 = vsel %vm290, %v155, 0.0
  %v295 = vadd.f32 %v293, %v294
  %v296 = vsel %vm290, %v158, 0.0
  %v297 = vadd.f32 %v295, %v296
  %v298 = vsel %vm290, %v163, 0.0
  %v299 = vadd.f32 %v297, %v298
  %v300 = vsel %vm290, %v166, 0.0
  %v301 = vadd.f32 %v299, %v300
  %v302 = vsel %vm290, %v171, 0.0
  %v303 = vadd.f32 %v301, %v302
  %v304 = vsel %vm290, %v174, 0.0
  %v305 = vadd.f32 %v303, %v304
  %v306 = vsel %vm290, %v179, 0.0
  %v307 = vadd.f32 %v305, %v306
  %v308 = vsel %vm290, %v182, 0.0
  %v309 = vadd.f32 %v307, %v308
  %v310 = vsel %vm290, %v187, 0.0
  %v311 = vadd.f32 %v309, %v310
  %v312 = vsel %vm290, %v190, 0.0
  %v313 = vadd.f32 %v311, %v312
  %v314 = vsel %vm290, %v195, 0.0
  %v315 = vadd.f32 %v313, %v314
  %v316 = vsel %vm290, %v198, 0.0
  %v317 = vadd.f32 %v315, %v316
  %v318 = vsel %vm290, %v203, 0.0
  %v319 = vadd.f32 %v317, %v318
  %v320 = vsel %vm290, %v206, 0.0
  %v321 = vadd.f32 %v319, %v320
  %v322 = vrot.slane %v321, 4
  %v323 = vadd.f32 %v321, %v322
  %v324 = vrot.slane %v323, 2
  %v325 = vadd.f32 %v323, %v324
  %v326 = vrot.slane %v325, 1
  %v327 = vadd.f32 %v325, %v326
  %vm328 = vcmask 516096
  %329 = vst.msk [vmem:[%s3] sm:$0x1] %vm328, %v327
  %v330 = vmul.f32 %v147, %v147
  %v331 = vmul.f32 %v150, %v150
  %v332 = vmul.f32 %v155, %v155
  %v333 = vmul.f32 %v158, %v158
  %v334 = vmul.f32 %v163, %v163
  %v335 = vmul.f32 %v166, %v166
  %v336 = vmul.f32 %v171, %v171
  %v337 = vmul.f32 %v174, %v174
  %v338 = vmul.f32 %v179, %v179
  %v339 = vmul.f32 %v182, %v182
  %v340 = vmul.f32 %v187, %v187
  %v341 = vmul.f32 %v190, %v190
  %v342 = vmul.f32 %v195, %v195
  %v343 = vmul.f32 %v198, %v198
  %v344 = vmul.f32 %v203, %v203
  %v345 = vmul.f32 %v206, %v206
  %v346 = vsel %vm290, %v330, 0.0
  %v347 = vsel %vm290, %v331, 0.0
  %v348 = vadd.f32 %v346, %v347
  %v349 = vsel %vm290, %v332, 0.0
  %v350 = vadd.f32 %v348, %v349
  %v351 = vsel %vm290, %v333, 0.0
  %v352 = vadd.f32 %v350, %v351
  %v353 = vsel %vm290, %v334, 0.0
  %v354 = vadd.f32 %v352, %v353
  %v355 = vsel %vm290, %v335, 0.0
  %v356 = vadd.f32 %v354, %v355
  %v357 = vsel %vm290, %v336, 0.0
  %v358 = vadd.f32 %v356, %v357
  %v359 = vsel %vm290, %v337, 0.0
  %v360 = vadd.f32 %v358, %v359
  %v361 = vsel %vm290, %v338, 0.0
  %v362 = vadd.f32 %v360, %v361
  %v363 = vsel %vm290, %v339, 0.0
  %v364 = vadd.f32 %v362, %v363
  %v365 = vsel %vm290, %v340, 0.0
  %v366 = vadd.f32 %v364, %v365
  %v367 = vsel %vm290, %v341, 0.0
  %v368 = vadd.f32 %v366, %v367
  %v369 = vsel %vm290, %v342, 0.0
  %v370 = vadd.f32 %v368, %v369
  %v371 = vsel %vm290, %v343, 0.0
  %v372 = vadd.f32 %v370, %v371
  %v373 = vsel %vm290, %v344, 0.0
  %v374 = vadd.f32 %v372, %v373
  %v375 = vsel %vm290, %v345, 0.0
  %v376 = vadd.f32 %v374, %v375
  %v377 = vrot.slane %v376, 4
  %v378 = vadd.f32 %v376, %v377
  %v379 = vrot.slane %v378, 2
  %v380 = vadd.f32 %v378, %v379
  %v381 = vrot.slane %v380, 1
  %v382 = vadd.f32 %v380, %v381
  %383 = vst.msk [vmem:[%s4] sm:$0x1] %vm328, %v382
  // Predicated region
  $region10: #{decoder_forward.3} parent=0 // pred_check
    _
  $region11: #{decoder_forward.3} parent=0 // pred_check_branch
    %385 = sbr.rel (0) target = $region13
  $region12: #{decoder_forward.3} parent=0 // pred_region
    _
  $region13: #{decoder_forward.3} parent=0 // pred_fallthru
    _
  // Predicated region
  $region14: #{decoder_forward.3} parent=0 // pred_check
    _
  $region15: #{decoder_forward.3} parent=0 // pred_check_branch
    %387 = sbr.rel (0) target = $region17
  $region16: #{decoder_forward.3} parent=0 // pred_region
    _
  $region17: #{decoder_forward.3} parent=0 // pred_fallthru
    _
  // Predicated region
  $region18: #{decoder_forward.3} parent=0 // pred_check
    _
  $region19: #{decoder_forward.3} parent=0 // pred_check_branch
    %389 = sbr.rel (0) target = $region21
  $region20: #{decoder_forward.3} parent=0 // pred_region
    _
  $region21: #{decoder_forward.3} parent=0 // pred_fallthru
    _
  // Predicated region
  $region22: #{decoder_forward.3} parent=0 // pred_check
    _
  $region23: #{decoder_forward.3} parent=0 // pred_check_branch
    %391 = sbr.rel (0) target = $region25
  $region24: #{decoder_forward.3} parent=0 // pred_region
    _
  $region25: #{decoder_forward.3} parent=0 // pred_fallthru
    _
  // Predicated region
  $region26: #{decoder_forward.3} parent=0 // pred_check
    _
  $region27: #{decoder_forward.3} parent=0 // pred_check_branch
    %393 = sbr.rel (0) target = $region29
  $region28: #{decoder_forward.3} parent=0 // pred_region
    _
  $region29: #{decoder_forward.3} parent=0 // pred_fallthru
    _
  // Predicated region
  $region30: #{decoder_forward.3} parent=0 // pred_check
    _
  $region31: #{decoder_forward.3} parent=0 // pred_check_branch
    %395 = sbr.rel (0) target = $region33
  $region32: #{decoder_forward.3} parent=0 // pred_region
    _
  $region33: #{decoder_forward.3} parent=0 // pred_fallthru
    _

// kernel: decoder_forward.5
$region0: #{decoder_forward.5}
  #allocation0 [shape = 'u32[]', space=smem, size = 0x4, offset = 0x4, fixed_abs, tag = 'smem constant byte address 0x4 - core index']
  #allocation1 [shape = 'u32[144,128]{1,0:T(1,128)}', space=vmem, size = 0x12000, scoped, tag = 'internal scratch']
  #allocation2 [shape = 'f32[1,1]{1,0:T(1,128)S(1)}', space=vmem, size = 0x200, scoped, tag = 'scoped memory for decoder_forward.5']
  %s0 = inlined_call_operand.vmem [shape: bf16[128,256], index: 0, kind: input, shape index: {}]
  %s1 = inlined_call_operand.vmem [shape: f32[1,256], index: 1, kind: input, shape index: {}]
  %s2 = inlined_call_operand.vmem [shape: f32[1,256], index: 2, kind: input, shape index: {}]
  %s3 = inlined_call_operand.vmem [shape: f32[1,256], index: 3, kind: input, shape index: {}]
  %s4 = inlined_call_operand.<no memory space> [shape: f32[1,1], index: 4, kind: input, shape index: {}]
  %s5 = inlined_call_operand.vmem [shape: f32[128,1], index: 5, kind: output, shape index: {}]
  %s6 = sld [smem:[#allocation0]]
  $region30: #{decoder_forward.5} parent=0
    _
  %s8 = ssub.s32 1, %s6
  %s9 = scalar_select 0, %s8, %s6
  %v10 = vstv %s4
  %11 = vst [vmem:[#allocation2] sm:$0x1] %v10
  // Predicated region
  $region2: #{decoder_forward.5} parent=0 // pred_check
    _
  $region3: #{decoder_forward.5} parent=0 // pred_check_branch
    %13 = sbr.rel (0) target = $region5
  $region4: #{decoder_forward.5} parent=0 // pred_region
    _
  $region5: #{decoder_forward.5} parent=0 // pred_fallthru
    _
  // Predicated region
  $region6: #{decoder_forward.5} parent=0 // pred_check
    _
  $region7: #{decoder_forward.5} parent=0 // pred_check_branch
    %15 = sbr.rel (0) target = $region9
  $region8: #{decoder_forward.5} parent=0 // pred_region
    _
  $region9: #{decoder_forward.5} parent=0 // pred_fallthru
    _
  // Predicated region
  $region10: #{decoder_forward.5} parent=0 // pred_check
    _
  $region11: #{decoder_forward.5} parent=0 // pred_check_branch
    %17 = sbr.rel (0) target = $region13
  $region12: #{decoder_forward.5} parent=0 // pred_region
    _
  $region13: #{decoder_forward.5} parent=0 // pred_fallthru
    _
  // Predicated region
  $region14: #{decoder_forward.5} parent=0 // pred_check
    _
  $region15: #{decoder_forward.5} parent=0 // pred_check_branch
    %19 = sbr.rel (0) target = $region17
  $region16: #{decoder_forward.5} parent=0 // pred_region
    _
  $region17: #{decoder_forward.5} parent=0 // pred_fallthru
    _
  // Predicated region
  $region18: #{decoder_forward.5} parent=0 // pred_check
    _
  $region19: #{decoder_forward.5} parent=0 // pred_check_branch
    %21 = sbr.rel (0) target = $region21
  $region20: #{decoder_forward.5} parent=0 // pred_region
    _
  $region21: #{decoder_forward.5} parent=0 // pred_fallthru
    _
  %v22 = vld [vmem:[%s0] sm:$0xff]
  %v23 = vld [vmem:[%s0 + $0x8] sm:$0xff]
  %v24 = vld [vmem:[%s0 + $0x10] sm:$0xff]
  %v25 = vld [vmem:[%s0 + $0x18] sm:$0xff]
  %v26 = vld [vmem:[%s0 + $0x20] sm:$0xff]
  %v27 = vld [vmem:[%s0 + $0x28] sm:$0xff]
  %v28 = vld [vmem:[%s0 + $0x30] sm:$0xff]
  %v29 = vld [vmem:[%s0 + $0x38] sm:$0xff]
  %v30 = vld [vmem:[%s0 + $0x40] sm:$0xff]
  %v31 = vld [vmem:[%s0 + $0x48] sm:$0xff]
  %v32 = vld [vmem:[%s0 + $0x50] sm:$0xff]
  %v33 = vld [vmem:[%s0 + $0x58] sm:$0xff]
  %v34 = vld [vmem:[%s0 + $0x60] sm:$0xff]
  %v35 = vld [vmem:[%s0 + $0x68] sm:$0xff]
  %v36 = vld [vmem:[%s0 + $0x70] sm:$0xff]
  %v37 = vld [vmem:[%s0 + $0x78] sm:$0xff]
  %v38 = vunpack.c.l.bf16 %v22
  %v39 = vunpack.c.h.bf16 %v22
  %v40 = vunpack.c.l.bf16 %v23
  %v41 = vunpack.c.h.bf16 %v23
  %v42 = vunpack.c.l.bf16 %v24
  %v43 = vunpack.c.h.bf16 %v24
  %v44 = vunpack.c.l.bf16 %v25
  %v45 = vunpack.c.h.bf16 %v25
  %v46 = vunpack.c.l.bf16 %v26
  %v47 = vunpack.c.h.bf16 %v26
  %v48 = vunpack.c.l.bf16 %v27
  %v49 = vunpack.c.h.bf16 %v27
  %v50 = vunpack.c.l.bf16 %v28
  %v51 = vunpack.c.h.bf16 %v28
  %v52 = vunpack.c.l.bf16 %v29
  %v53 = vunpack.c.h.bf16 %v29
  %v54 = vunpack.c.l.bf16 %v30
  %v55 = vunpack.c.h.bf16 %v30
  %v56 = vunpack.c.l.bf16 %v31
  %v57 = vunpack.c.h.bf16 %v31
  %v58 = vunpack.c.l.bf16 %v32
  %v59 = vunpack.c.h.bf16 %v32
  %v60 = vunpack.c.l.bf16 %v33
  %v61 = vunpack.c.h.bf16 %v33
  %v62 = vunpack.c.l.bf16 %v34
  %v63 = vunpack.c.h.bf16 %v34
  %v64 = vunpack.c.l.bf16 %v35
  %v65 = vunpack.c.h.bf16 %v35
  %v66 = vunpack.c.l.bf16 %v36
  %v67 = vunpack.c.h.bf16 %v36
  %v68 = vunpack.c.l.bf16 %v37
  %v69 = vunpack.c.h.bf16 %v37
  %v70 = vld [vmem:[%s1] sm:$0x3]
  %v72 = vlaneseq
  %v73 = vshrl.u32 %v72, 7
  %v74 = vsub.s32 0, %v73
  %v75 = vrot.slane %v70, %v74
  %v76 = vlaneseq
  %v77 = vshrl.u32 %v76, 7
  %v78 = vsub.s32 1, %v77
  %v79 = vrot.slane %v70, %v78
  %v82 = vmul.f32 %v38, %v75
  %v83 = vmul.f32 %v39, %v79
  %v84 = vmul.f32 %v40, %v75
  %v85 = vmul.f32 %v41, %v79
  %v86 = vmul.f32 %v42, %v75
  %v87 = vmul.f32 %v43, %v79
  %v88 = vmul.f32 %v44, %v75
  %v89 = vmul.f32 %v45, %v79
  %v90 = vmul.f32 %v46, %v75
  %v91 = vmul.f32 %v47, %v79
  %v92 = vmul.f32 %v48, %v75
  %v93 = vmul.f32 %v49, %v79
  %v94 = vmul.f32 %v50, %v75
  %v95 = vmul.f32 %v51, %v79
  %v96 = vmul.f32 %v52, %v75
  %v97 = vmul.f32 %v53, %v79
  %v98 = vmul.f32 %v54, %v75
  %v99 = vmul.f32 %v55, %v79
  %v100 = vmul.f32 %v56, %v75
  %v101 = vmul.f32 %v57, %v79
  %v102 = vmul.f32 %v58, %v75
  %v103 = vmul.f32 %v59, %v79
  %v104 = vmul.f32 %v60, %v75
  %v105 = vmul.f32 %v61, %v79
  %v106 = vmul.f32 %v62, %v75
  %v107 = vmul.f32 %v63, %v79
  %v108 = vmul.f32 %v64, %v75
  %v109 = vmul.f32 %v65, %v79
  %v110 = vmul.f32 %v66, %v75
  %v111 = vmul.f32 %v67, %v79
  %v112 = vmul.f32 %v68, %v75
  %v113 = vmul.f32 %v69, %v79
  %v114 = vld [vmem:[%s2] sm:$0x3]
  %v116 = vlaneseq
  %v117 = vshrl.u32 %v116, 7
  %v118 = vsub.s32 0, %v117
  %v119 = vrot.slane %v114, %v118
  %v120 = vlaneseq
  %v121 = vshrl.u32 %v120, 7
  %v122 = vsub.s32 1, %v121
  %v123 = vrot.slane %v114, %v122
  %v126 = vadd.f32 %v82, %v119
  %v127 = vadd.f32 %v83, %v123
  %v128 = vadd.f32 %v84, %v119
  %v129 = vadd.f32 %v85, %v123
  %v130 = vadd.f32 %v86, %v119
  %v131 = vadd.f32 %v87, %v123
  %v132 = vadd.f32 %v88, %v119
  %v133 = vadd.f32 %v89, %v123
  %v134 = vadd.f32 %v90, %v119
  %v135 = vadd.f32 %v91, %v123
  %v136 = vadd.f32 %v92, %v119
  %v137 = vadd.f32 %v93, %v123
  %v138 = vadd.f32 %v94, %v119
  %v139 = vadd.f32 %v95, %v123
  %v140 = vadd.f32 %v96, %v119
  %v141 = vadd.f32 %v97, %v123
  %v142 = vadd.f32 %v98, %v119
  %v143 = vadd.f32 %v99, %v123
  %v144 = vadd.f32 %v100, %v119
  %v145 = vadd.f32 %v101, %v123
  %v146 = vadd.f32 %v102, %v119
  %v147 = vadd.f32 %v103, %v123
  %v148 = vadd.f32 %v104, %v119
  %v149 = vadd.f32 %v105, %v123
  %v150 = vadd.f32 %v106, %v119
  %v151 = vadd.f32 %v107, %v123
  %v152 = vadd.f32 %v108, %v119
  %v153 = vadd.f32 %v109, %v123
  %v154 = vadd.f32 %v110, %v119
  %v155 = vadd.f32 %v111, %v123
  %v156 = vadd.f32 %v112, %v119
  %v157 = vadd.f32 %v113, %v123
  %v158 = vmax.f32 %v126, 0.0
  %v159 = vmax.f32 %v127, 0.0
  %v160 = vmax.f32 %v128, 0.0
  %v161 = vmax.f32 %v129, 0.0
  %v162 = vmax.f32 %v130, 0.0
  %v163 = vmax.f32 %v131, 0.0
  %v164 = vmax.f32 %v132, 0.0
  %v165 = vmax.f32 %v133, 0.0
  %v166 = vmax.f32 %v134, 0.0
  %v167 = vmax.f32 %v135, 0.0
  %v168 = vmax.f32 %v136, 0.0
  %v169 = vmax.f32 %v137, 0.0
  %v170 = vmax.f32 %v138, 0.0
  %v171 = vmax.f32 %v139, 0.0
  %v172 = vmax.f32 %v140, 0.0
  %v173 = vmax.f32 %v141, 0.0
  %v174 = vmax.f32 %v142, 0.0
  %v175 = vmax.f32 %v143, 0.0
  %v176 = vmax.f32 %v144, 0.0
  %v177 = vmax.f32 %v145, 0.0
  %v178 = vmax.f32 %v146, 0.0
  %v179 = vmax.f32 %v147, 0.0
  %v180 = vmax.f32 %v148, 0.0
  %v181 = vmax.f32 %v149, 0.0
  %v182 = vmax.f32 %v150, 0.0
  %v183 = vmax.f32 %v151, 0.0
  %v184 = vmax.f32 %v152, 0.0
  %v185 = vmax.f32 %v153, 0.0
  %v186 = vmax.f32 %v154, 0.0
  %v187 = vmax.f32 %v155, 0.0
  %v188 = vmax.f32 %v156, 0.0
  %v189 = vmax.f32 %v157, 0.0
  %v190 = vld [vmem:[%s3] sm:$0x3]
  %v192 = vlaneseq
  %v193 = vshrl.u32 %v192, 7
  %v194 = vsub.s32 0, %v193
  %v195 = vrot.slane %v190, %v194
  %v196 = vlaneseq
  %v197 = vshrl.u32 %v196, 7
  %v198 = vsub.s32 1, %v197
  %v199 = vrot.slane %v190, %v198
  %v202 = vmul.f32 %v158, %v195
  %v203 = vmul.f32 %v159, %v199
  %v204 = vmul.f32 %v160, %v195
  %v205 = vmul.f32 %v161, %v199
  %v206 = vmul.f32 %v162, %v195
  %v207 = vmul.f32 %v163, %v199
  %v208 = vmul.f32 %v164, %v195
  %v209 = vmul.f32 %v165, %v199
  %v210 = vmul.f32 %v166, %v195
  %v211 = vmul.f32 %v167, %v199
  %v212 = vmul.f32 %v168, %v195
  %v213 = vmul.f32 %v169, %v199
  %v214 = vmul.f32 %v170, %v195
  %v215 = vmul.f32 %v171, %v199
  %v216 = vmul.f32 %v172, %v195
  %v217 = vmul.f32 %v173, %v199
  %v218 = vmul.f32 %v174, %v195
  %v219 = vmul.f32 %v175, %v199
  %v220 = vmul.f32 %v176, %v195
  %v221 = vmul.f32 %v177, %v199
  %v222 = vmul.f32 %v178, %v195
  %v223 = vmul.f32 %v179, %v199
  %v224 = vmul.f32 %v180, %v195
  %v225 = vmul.f32 %v181, %v199
  %v226 = vmul.f32 %v182, %v195
  %v227 = vmul.f32 %v183, %v199
  %v228 = vmul.f32 %v184, %v195
  %v229 = vmul.f32 %v185, %v199
  %v230 = vmul.f32 %v186, %v195
  %v231 = vmul.f32 %v187, %v199
  %v232 = vmul.f32 %v188, %v195
  %v233 = vmul.f32 %v189, %v199
  %v234 = vadd.f32 %v202, %v203
  %235 = vadd.xlane.f32.xlu0 %v234
  %v236 = vpop.xlane.xlu0 %235
  %v237 = vadd.f32 %v204, %v205
  %238 = vadd.xlane.f32.xlu0 %v237
  %v239 = vpop.xlane.xlu0 %238
  %v240 = vadd.f32 %v206, %v207
  %241 = vadd.xlane.f32.xlu0 %v240
  %v242 = vpop.xlane.xlu0 %241
  %v243 = vadd.f32 %v208, %v209
  %244 = vadd.xlane.f32.xlu0 %v243
  %v245 = vpop.xlane.xlu0 %244
  %v246 = vadd.f32 %v210, %v211
  %247 = vadd.xlane.f32.xlu0 %v246
  %v248 = vpop.xlane.xlu0 %247
  %v249 = vadd.f32 %v212, %v213
  %250 = vadd.xlane.f32.xlu0 %v249
  %v251 = vpop.xlane.xlu0 %250
  %v252 = vadd.f32 %v214, %v215
  %253 = vadd.xlane.f32.xlu0 %v252
  %v254 = vpop.xlane.xlu0 %253
  %v255 = vadd.f32 %v216, %v217
  %256 = vadd.xlane.f32.xlu0 %v255
  %v257 = vpop.xlane.xlu0 %256
  %v258 = vadd.f32 %v218, %v219
  %259 = vadd.xlane.f32.xlu0 %v258
  %v260 = vpop.xlane.xlu0 %259
  %v261 = vadd.f32 %v220, %v221
  %262 = vadd.xlane.f32.xlu0 %v261
  %v263 = vpop.xlane.xlu0 %262
  %v264 = vadd.f32 %v222, %v223
  %265 = vadd.xlane.f32.xlu0 %v264
  %v266 = vpop.xlane.xlu0 %265
  %v267 = vadd.f32 %v224, %v225
  %268 = vadd.xlane.f32.xlu0 %v267
  %v269 = vpop.xlane.xlu0 %268
  %v270 = vadd.f32 %v226, %v227
  %271 = vadd.xlane.f32.xlu0 %v270
  %v272 = vpop.xlane.xlu0 %271
  %v273 = vadd.f32 %v228, %v229
  %274 = vadd.xlane.f32.xlu0 %v273
  %v275 = vpop.xlane.xlu0 %274
  %v276 = vadd.f32 %v230, %v231
  %277 = vadd.xlane.f32.xlu0 %v276
  %v278 = vpop.xlane.xlu0 %277
  %v279 = vadd.f32 %v232, %v233
  %280 = vadd.xlane.f32.xlu0 %v279
  %v281 = vpop.xlane.xlu0 %280
  %v282 = vld [vmem:[#allocation2] sm:$0x1]
  %v284 = vlaneseq
  %v285 = vshrl.u32 %v284, 7
  %v286 = vsub.s32 0, %v285
  %v287 = vrot.slane %v282, %v286
  %v289 = vadd.f32 %v236, %v287
  %v290 = vadd.f32 %v239, %v287
  %v291 = vadd.f32 %v242, %v287
  %v292 = vadd.f32 %v245, %v287
  %v293 = vadd.f32 %v248, %v287
  %v294 = vadd.f32 %v251, %v287
  %v295 = vadd.f32 %v254, %v287
  %v296 = vadd.f32 %v257, %v287
  %v297 = vadd.f32 %v260, %v287
  %v298 = vadd.f32 %v263, %v287
  %v299 = vadd.f32 %v266, %v287
  %v300 = vadd.f32 %v269, %v287
  %v301 = vadd.f32 %v272, %v287
  %v302 = vadd.f32 %v275, %v287
  %v303 = vadd.f32 %v278, %v287
  %v304 = vadd.f32 %v281, %v287
  %vm305 = vcmask 7168
  %306 = vst.msk [vmem:[%s5] sm:$0xff] %vm305, %v289
  %307 = vst.msk [vmem:[%s5 + $0x8] sm:$0xff] %vm305, %v290
  %308 = vst.msk [vmem:[%s5 + $0x10] sm:$0xff] %vm305, %v291
  %309 = vst.msk [vmem:[%s5 + $0x18] sm:$0xff] %vm305, %v292
  %310 = vst.msk [vmem:[%s5 + $0x20] sm:$0xff] %vm305, %v293
  %311 = vst.msk [vmem:[%s5 + $0x28] sm:$0xff] %vm305, %v294
  %312 = vst.msk [vmem:[%s5 + $0x30] sm:$0xff] %vm305, %v295
  %313 = vst.msk [vmem:[%s5 + $0x38] sm:$0xff] %vm305, %v296
  %314 = vst.msk [vmem:[%s5 + $0x40] sm:$0xff] %vm305, %v297
  %315 = vst.msk [vmem:[%s5 + $0x48] sm:$0xff] %vm305, %v298
  %316 = vst.msk [vmem:[%s5 + $0x50] sm:$0xff] %vm305, %v299
  %317 = vst.msk [vmem:[%s5 + $0x58] sm:$0xff] %vm305, %v300
  %318 = vst.msk [vmem:[%s5 + $0x60] sm:$0xff] %vm305, %v301
  %319 = vst.msk [vmem:[%s5 + $0x68] sm:$0xff] %vm305, %v302
  %320 = vst.msk [vmem:[%s5 + $0x70] sm:$0xff] %vm305, %v303
  %321 = vst.msk [vmem:[%s5 + $0x78] sm:$0xff] %vm305, %v304
  // Predicated region
  $region22: #{decoder_forward.5} parent=0 // pred_check
    _
  $region23: #{decoder_forward.5} parent=0 // pred_check_branch
    %323 = sbr.rel (0) target = $region25
  $region24: #{decoder_forward.5} parent=0 // pred_region
    _
  $region25: #{decoder_forward.5} parent=0 // pred_fallthru
    _
  // Predicated region
  $region26: #{decoder_forward.5} parent=0 // pred_check
    _
  $region27: #{decoder_forward.5} parent=0 // pred_check_branch
    %325 = sbr.rel (0) target = $region29
  $region28: #{decoder_forward.5} parent=0 // pred_region
    _
  $region29: #{decoder_forward.5} parent=0 // pred_fallthru
    _

// kernel: decoder_forward.4
$region0: #{decoder_forward.4}
  #allocation0 [shape = 'u32[]', space=smem, size = 0x4, offset = 0x4, fixed_abs, tag = 'smem constant byte address 0x4 - core index']
  #allocation1 [shape = 'u32[144,128]{1,0:T(1,128)}', space=vmem, size = 0x12000, scoped, tag = 'internal scratch']
  #allocation2 [shape = 'bf16[82,64]{1,0:T(8,128)(2,1)}', space=vmem, size = 0x5800, scoped, tag = 'scratch operand']
  #allocation3 [shape = 'bf16[82,256]{1,0:T(8,128)(2,1)}', space=vmem, size = 0xb000, scoped, tag = 'scratch operand']
  %s0 = inlined_call_operand.vmem [shape: bf16[2,64,64], index: 0, kind: input, shape index: {}, may-alias: {0,1,2}]
  %s1 = inlined_call_operand.vmem [shape: bf16[2,64,64], index: 1, kind: input, shape index: {}, may-alias: {0,1,2}]
  %s2 = inlined_call_operand.vmem [shape: bf16[2,64,64], index: 2, kind: input, shape index: {}, may-alias: {0,1,2}]
  %s3 = inlined_call_operand.vmem [shape: bf16[2,64,256], index: 3, kind: input, shape index: {}, may-alias: {3,4,5}]
  %s4 = inlined_call_operand.vmem [shape: bf16[2,64,256], index: 4, kind: input, shape index: {}, may-alias: {3,4,5}]
  %s5 = inlined_call_operand.vmem [shape: bf16[2,64,256], index: 5, kind: input, shape index: {}, may-alias: {3,4,5}]
  %s6 = inlined_call_operand.vmem [shape: f32[1,64], index: 6, kind: input, shape index: {}]
  %s7 = inlined_call_operand.vmem [shape: f32[1,64], index: 7, kind: input, shape index: {}]
  %s8 = inlined_call_operand.vmem [shape: bf16[3,3,64,256], index: 8, kind: input, shape index: {}]
  %s9 = inlined_call_operand.vmem [shape: bf16[3,3,256,256], index: 9, kind: input, shape index: {}]
  %s10 = inlined_call_operand.vmem [shape: bf16[2,64,256], index: 10, kind: output, shape index: {0}]
  %s11 = inlined_call_operand.vmem [shape: f32[2,1,256], index: 11, kind: output, shape index: {1}]
  %s12 = inlined_call_operand.vmem [shape: f32[2,1,256], index: 12, kind: output, shape index: {2}]
  %13 = xla_tuple %s10, %s11, %s12
  %s14 = sld [smem:[#allocation0]]
  $region105: #{decoder_forward.4} parent=0
    _
  %s16 = ssub.s32 1, %s14
  %s17 = scalar_select 0, %s16, %s14
  loop: start=0, step=1, limit=4
  $region2: #{decoder_forward.4} parent=0 // loop_pre_header
    _
  $region3: #{decoder_forward.4} parent=0 // loop_header
    %s19 = sphi 0, %s23
    %p20 = scmp.ge.s32.totalorder %s19, 4
    %s26 = sphi 0, %s38
    %s27 = sphi 0, %s34
    %s28 = sphi 0, %s26
    %s29 = sphi 0, %s27
    %s30 = sphi 0, %s28
    %s31 = sphi 0, %s29
    %s51 = sphi 0, %s53
    %s54 = sphi 0, %s51
    %s55 = sphi 0, %s54
    %s71 = sphi 0, %s55
    %s79 = sphi 0, %s81
    %s82 = sphi 0, %s79
    %s83 = sphi 0, %s82
    %s99 = sphi 0, %s83
    %s115 = sphi 0, %s117
    %s118 = sphi 0, %s115
    %s119 = sphi 0, %s118
    %s135 = sphi 0, %s119
    %s151 = sphi 0, %s153
    %s154 = sphi 0, %s151
    %s155 = sphi 0, %s154
    %s171 = sphi 0, %s155
    %s179 = sphi 0, %s181
    %s182 = sphi 0, %s179
    %s183 = sphi 0, %s182
    %s199 = sphi 0, %s183
    %s215 = sphi 0, %s217
    %s218 = sphi 0, %s215
    %s219 = sphi 0, %s218
    %s235 = sphi 0, %s219
    %s239 = sphi 0, %s239
    %s241 = sphi 0, %s239
    %s242 = sphi 0, %s241
    %s256 = sphi 0, %s242
    %s260 = sphi 0, %s260
    %s262 = sphi 0, %s260
    %s263 = sphi 0, %s262
    %s277 = sphi 0, %s263
    %s281 = sphi 0, %s281
    %s283 = sphi 0, %s281
    %s284 = sphi 0, %s283
    %s298 = sphi 0, %s284
    %s302 = sphi 0, %s302
    %s304 = sphi 0, %s302
    %s305 = sphi 0, %s304
    %s319 = sphi 0, %s305
    %s327 = sphi 0, %s329
    %s330 = sphi 0, %s327
    %s331 = sphi 0, %s330
    %s347 = sphi 0, %s331
    %s355 = sphi 0, %s357
    %s358 = sphi 0, %s355
    %s359 = sphi 0, %s358
    %s375 = sphi 0, %s359
    %s383 = sphi 0, %s385
    %s386 = sphi 0, %s383
    %s387 = sphi 0, %s386
    %s403 = sphi 0, %s387
  $region4: #{decoder_forward.4} parent=0 // loop_header_branch
    %22 = sbr.rel (%p20) target = $region8
  $region5: #{decoder_forward.4} parent=0 // loop_body
    %s24 = ssub.s32 %s19, 1
    %s25 = ssub.s32 %s19, 2
    %s32 = sadd.s32 1, %s27
    %p33 = scmp.ge.s32.totalorder %s32, 1
    %s34 = scalar_select %p33, 0, %s32
    %s35 = sadd.s32 1, %s26
    %s36 = scalar_select %p33, %s35, %s26
    %p37 = scmp.ge.s32.totalorder %s36, 2
    %s38 = scalar_select %p37, 0, %s36
    %s39 = smul.u32 %s27, 8
    %s40 = ssub.s32 %s39, 1
    %p41 = scmp.gt.s32.totalorder %s40, 0
    %s42 = scalar_select %p41, %s40, 0
    %s43 = smul.u32 %s34, 8
    %s44 = ssub.s32 %s43, 1
    %p45 = scmp.gt.s32.totalorder %s44, 0
    %s46 = scalar_select %p45, %s44, 0
    %s47 = ssub.s32 %s26, %s38
    %s48 = ssub.s32 %s42, %s46
    %s49 = sor.u32 %s47, %s48
    %p50 = scmp.eq.s32.totalorder %s49, 0
    %s52 = sadd.s32 %s51, 1
    %s53 = scalar_select %p50, %s51, %s52
    %p56 = pneg %p50
    %p57 = scmp.eq.s32.totalorder %s19, 1
    %p58 = por %p56, %p57
    %p59 = scmp.ne.s32.totalorder %s51, %s54
    %p60 = scmp.eq.s32.totalorder %s19, 0
    %p61 = por %p59, %p60
    %p62 = scmp.ne.s32.totalorder %s51, %s54
    %p63 = scmp.eq.s32.totalorder %s24, 1
    %p64 = por %p62, %p63
    %p65 = scmp.ne.s32.totalorder %s54, %s55
    %p66 = scmp.eq.s32.totalorder %s24, 0
    %p67 = por %p65, %p66
    %p68 = scmp.ne.s32.totalorder %s54, %s55
    %p69 = scmp.eq.s32.totalorder %s25, 1
    %p70 = por %p68, %p69
    %p72 = scmp.ne.s32.totalorder %s55, %s71
    %p73 = scmp.eq.s32.totalorder %s25, 0
    %p74 = por %p72, %p73
    %s75 = ssub.s32 %s26, %s38
    %s76 = ssub.s32 %s27, %s34
    %s77 = sor.u32 %s75, %s76
    %p78 = scmp.eq.s32.totalorder %s77, 0
    %s80 = sadd.s32 %s79, 1
    %s81 = scalar_select %p78, %s79, %s80
    %p84 = pneg %p78
    %p85 = scmp.eq.s32.totalorder %s19, 1
    %p86 = por %p84, %p85
    %p87 = scmp.ne.s32.totalorder %s79, %s82
    %p88 = scmp.eq.s32.totalorder %s19, 0
    %p89 = por %p87, %p88
    %p90 = scmp.ne.s32.totalorder %s79, %s82
    %p91 = scmp.eq.s32.totalorder %s24, 1
    %p92 = por %p90, %p91
    %p93 = scmp.ne.s32.totalorder %s82, %s83
    %p94 = scmp.eq.s32.totalorder %s24, 0
    %p95 = por %p93, %p94
    %p96 = scmp.ne.s32.totalorder %s82, %s83
    %p97 = scmp.eq.s32.totalorder %s25, 1
    %p98 = por %p96, %p97
    %p100 = scmp.ne.s32.totalorder %s83, %s99
    %p101 = scmp.eq.s32.totalorder %s25, 0
    %p102 = por %p100, %p101
    %s103 = smul.u32 %s27, 8
    %s104 = sadd.s32 %s103, 8
    %p105 = scmp.lt.s32.totalorder %s104, 7
    %s106 = scalar_select %p105, %s104, 7
    %s107 = smul.u32 %s34, 8
    %s108 = sadd.s32 %s107, 8
    %p109 = scmp.lt.s32.totalorder %s108, 7
    %s110 = scalar_select %p109, %s108, 7
    %s111 = ssub.s32 %s26, %s38
    %s112 = ssub.s32 %s106, %s110
    %s113 = sor.u32 %s111, %s112
    %p114 = scmp.eq.s32.totalorder %s113, 0
    %s116 = sadd.s32 %s115, 1
    %s117 = scalar_select %p114, %s115, %s116
    %p120 = pneg %p114
    %p121 = scmp.eq.s32.totalorder %s19, 1
    %p122 = por %p120, %p121
    %p123 = scmp.ne.s32.totalorder %s115, %s118
    %p124 = scmp.eq.s32.totalorder %s19, 0
    %p125 = por %p123, %p124
    %p126 = scmp.ne.s32.totalorder %s115, %s118
    %p127 = scmp.eq.s32.totalorder %s24, 1
    %p128 = por %p126, %p127
    %p129 = scmp.ne.s32.totalorder %s118, %s119
    %p130 = scmp.eq.s32.totalorder %s24, 0
    %p131 = por %p129, %p130
    %p132 = scmp.ne.s32.totalorder %s118, %s119
    %p133 = scmp.eq.s32.totalorder %s25, 1
    %p134 = por %p132, %p133
    %p136 = scmp.ne.s32.totalorder %s119, %s135
    %p137 = scmp.eq.s32.totalorder %s25, 0
    %p138 = por %p136, %p137
    %s139 = smul.u32 %s27, 8
    %s140 = ssub.s32 %s139, 1
    %p141 = scmp.gt.s32.totalorder %s140, 0
    %s142 = scalar_select %p141, %s140, 0
    %s143 = smul.u32 %s34, 8
    %s144 = ssub.s32 %s143, 1
    %p145 = scmp.gt.s32.totalorder %s144, 0
    %s146 = scalar_select %p145, %s144, 0
    %s147 = ssub.s32 %s26, %s38
    %s148 = ssub.s32 %s142, %s146
    %s149 = sor.u32 %s147, %s148
    %p150 = scmp.eq.s32.totalorder %s149, 0
    %s152 = sadd.s32 %s151, 1
    %s153 = scalar_select %p150, %s151, %s152
    %p156 = pneg %p150
    %p157 = scmp.eq.s32.totalorder %s19, 1
    %p158 = por %p156, %p157
    %p159 = scmp.ne.s32.totalorder %s151, %s154
    %p160 = scmp.eq.s32.totalorder %s19, 0
    %p161 = por %p159, %p160
    %p162 = scmp.ne.s32.totalorder %s151, %s154
    %p163 = scmp.eq.s32.totalorder %s24, 1
    %p164 = por %p162, %p163
    %p165 = scmp.ne.s32.totalorder %s154, %s155
    %p166 = scmp.eq.s32.totalorder %s24, 0
    %p167 = por %p165, %p166
    %p168 = scmp.ne.s32.totalorder %s154, %s155
    %p169 = scmp.eq.s32.totalorder %s25, 1
    %p170 = por %p168, %p169
    %p172 = scmp.ne.s32.totalorder %s155, %s171
    %p173 = scmp.eq.s32.totalorder %s25, 0
    %p174 = por %p172, %p173
    %s175 = ssub.s32 %s26, %s38
    %s176 = ssub.s32 %s27, %s34
    %s177 = sor.u32 %s175, %s176
    %p178 = scmp.eq.s32.totalorder %s177, 0
    %s180 = sadd.s32 %s179, 1
    %s181 = scalar_select %p178, %s179, %s180
    %p184 = pneg %p178
    %p185 = scmp.eq.s32.totalorder %s19, 1
    %p186 = por %p184, %p185
    %p187 = scmp.ne.s32.totalorder %s179, %s182
    %p188 = scmp.eq.s32.totalorder %s19, 0
    %p189 = por %p187, %p188
    %p190 = scmp.ne.s32.totalorder %s179, %s182
    %p191 = scmp.eq.s32.totalorder %s24, 1
    %p192 = por %p190, %p191
    %p193 = scmp.ne.s32.totalorder %s182, %s183
    %p194 = scmp.eq.s32.totalorder %s24, 0
    %p195 = por %p193, %p194
    %p196 = scmp.ne.s32.totalorder %s182, %s183
    %p197 = scmp.eq.s32.totalorder %s25, 1
    %p198 = por %p196, %p197
    %p200 = scmp.ne.s32.totalorder %s183, %s199
    %p201 = scmp.eq.s32.totalorder %s25, 0
    %p202 = por %p200, %p201
    %s203 = smul.u32 %s27, 8
    %s204 = sadd.s32 %s203, 8
    %p205 = scmp.lt.s32.totalorder %s204, 7
    %s206 = scalar_select %p205, %s204, 7
    %s207 = smul.u32 %s34, 8
    %s208 = sadd.s32 %s207, 8
    %p209 = scmp.lt.s32.totalorder %s208, 7
    %s210 = scalar_select %p209, %s208, 7
    %s211 = ssub.s32 %s26, %s38
    %s212 = ssub.s32 %s206, %s210
    %s213 = sor.u32 %s211, %s212
    %p214 = scmp.eq.s32.totalorder %s213, 0
    %s216 = sadd.s32 %s215, 1
    %s217 = scalar_select %p214, %s215, %s216
    %p220 = pneg %p214
    %p221 = scmp.eq.s32.totalorder %s19, 1
    %p222 = por %p220, %p221
    %p223 = scmp.ne.s32.totalorder %s215, %s218
    %p224 = scmp.eq.s32.totalorder %s19, 0
    %p225 = por %p223, %p224
    %p226 = scmp.ne.s32.totalorder %s215, %s218
    %p227 = scmp.eq.s32.totalorder %s24, 1
    %p228 = por %p226, %p227
    %p229 = scmp.ne.s32.totalorder %s218, %s219
    %p230 = scmp.eq.s32.totalorder %s24, 0
    %p231 = por %p229, %p230
    %p232 = scmp.ne.s32.totalorder %s218, %s219
    %p233 = scmp.eq.s32.totalorder %s25, 1
    %p234 = por %p232, %p233
    %p236 = scmp.ne.s32.totalorder %s219, %s235
    %p237 = scmp.eq.s32.totalorder %s25, 0
    %p238 = por %p236, %p237
    %s240 = sadd.s32 %s239, 1
    %p243 = scmp.eq.s32.totalorder %s19, 1
    %p244 = scmp.ne.s32.totalorder %s239, %s241
    %p245 = scmp.eq.s32.totalorder %s19, 0
    %p246 = por %p244, %p245
    %p247 = scmp.ne.s32.totalorder %s239, %s241
    %p248 = scmp.eq.s32.totalorder %s24, 1
    %p249 = por %p247, %p248
    %p250 = scmp.ne.s32.totalorder %s241, %s242
    %p251 = scmp.eq.s32.totalorder %s24, 0
    %p252 = por %p250, %p251
    %p253 = scmp.ne.s32.totalorder %s241, %s242
    %p254 = scmp.eq.s32.totalorder %s25, 1
    %p255 = por %p253, %p254
    %p257 = scmp.ne.s32.totalorder %s242, %s256
    %p258 = scmp.eq.s32.totalorder %s25, 0
    %p259 = por %p257, %p258
    %s261 = sadd.s32 %s260, 1
    %p264 = scmp.eq.s32.totalorder %s19, 1
    %p265 = scmp.ne.s32.totalorder %s260, %s262
    %p266 = scmp.eq.s32.totalorder %s19, 0
    %p267 = por %p265, %p266
    %p268 = scmp.ne.s32.totalorder %s260, %s262
    %p269 = scmp.eq.s32.totalorder %s24, 1
    %p270 = por %p268, %p269
    %p271 = scmp.ne.s32.totalorder %s262, %s263
    %p272 = scmp.eq.s32.totalorder %s24, 0
    %p273 = por %p271, %p272
    %p274 = scmp.ne.s32.totalorder %s262, %s263
    %p275 = scmp.eq.s32.totalorder %s25, 1
    %p276 = por %p274, %p275
    %p278 = scmp.ne.s32.totalorder %s263, %s277
    %p279 = scmp.eq.s32.totalorder %s25, 0
    %p280 = por %p278, %p279
    %s282 = sadd.s32 %s281, 1
    %p285 = scmp.eq.s32.totalorder %s19, 1
    %p286 = scmp.ne.s32.totalorder %s281, %s283
    %p287 = scmp.eq.s32.totalorder %s19, 0
    %p288 = por %p286, %p287
    %p289 = scmp.ne.s32.totalorder %s281, %s283
    %p290 = scmp.eq.s32.totalorder %s24, 1
    %p291 = por %p289, %p290
    %p292 = scmp.ne.s32.totalorder %s283, %s284
    %p293 = scmp.eq.s32.totalorder %s24, 0
    %p294 = por %p292, %p293
    %p295 = scmp.ne.s32.totalorder %s283, %s284
    %p296 = scmp.eq.s32.totalorder %s25, 1
    %p297 = por %p295, %p296
    %p299 = scmp.ne.s32.totalorder %s284, %s298
    %p300 = scmp.eq.s32.totalorder %s25, 0
    %p301 = por %p299, %p300
    %s303 = sadd.s32 %s302, 1
    %p306 = scmp.eq.s32.totalorder %s19, 1
    %p307 = scmp.ne.s32.totalorder %s302, %s304
    %p308 = scmp.eq.s32.totalorder %s19, 0
    %p309 = por %p307, %p308
    %p310 = scmp.ne.s32.totalorder %s302, %s304
    %p311 = scmp.eq.s32.totalorder %s24, 1
    %p312 = por %p310, %p311
    %p313 = scmp.ne.s32.totalorder %s304, %s305
    %p314 = scmp.eq.s32.totalorder %s24, 0
    %p315 = por %p313, %p314
    %p316 = scmp.ne.s32.totalorder %s304, %s305
    %p317 = scmp.eq.s32.totalorder %s25, 1
    %p318 = por %p316, %p317
    %p320 = scmp.ne.s32.totalorder %s305, %s319
    %p321 = scmp.eq.s32.totalorder %s25, 0
    %p322 = por %p320, %p321
    %s323 = ssub.s32 %s26, %s38
    %s324 = ssub.s32 %s27, %s34
    %s325 = sor.u32 %s323, %s324
    %p326 = scmp.eq.s32.totalorder %s325, 0
    %s328 = sadd.s32 %s327, 1
    %s329 = scalar_select %p326, %s327, %s328
    %p332 = pneg %p326
    %p333 = scmp.eq.s32.totalorder %s19, 1
    %p334 = por %p332, %p333
    %p335 = scmp.ne.s32.totalorder %s327, %s330
    %p336 = scmp.eq.s32.totalorder %s19, 0
    %p337 = por %p335, %p336
    %p338 = scmp.ne.s32.totalorder %s327, %s330
    %p339 = scmp.eq.s32.totalorder %s24, 1
    %p340 = por %p338, %p339
    %p341 = scmp.ne.s32.totalorder %s330, %s331
    %p342 = scmp.eq.s32.totalorder %s24, 0
    %p343 = por %p341, %p342
    %p344 = scmp.ne.s32.totalorder %s330, %s331
    %p345 = scmp.eq.s32.totalorder %s25, 1
    %p346 = por %p344, %p345
    %p348 = scmp.ne.s32.totalorder %s331, %s347
    %p349 = scmp.eq.s32.totalorder %s25, 0
    %p350 = por %p348, %p349
    %s351 = sadd.s32 %s26, %s27
    %s352 = sadd.s32 %s38, %s34
    %s353 = ssub.s32 %s351, %s352
    %p354 = scmp.eq.s32.totalorder %s353, 0
    %s356 = sadd.s32 %s355, 1
    %s357 = scalar_select %p354, %s355, %s356
    %p360 = pneg %p354
    %p361 = scmp.eq.s32.totalorder %s19, 1
    %p362 = por %p360, %p361
    %p363 = scmp.ne.s32.totalorder %s355, %s358
    %p364 = scmp.eq.s32.totalorder %s19, 0
    %p365 = por %p363, %p364
    %p366 = scmp.ne.s32.totalorder %s355, %s358
    %p367 = scmp.eq.s32.totalorder %s24, 1
    %p368 = por %p366, %p367
    %p369 = scmp.ne.s32.totalorder %s358, %s359
    %p370 = scmp.eq.s32.totalorder %s24, 0
    %p371 = por %p369, %p370
    %p372 = scmp.ne.s32.totalorder %s358, %s359
    %p373 = scmp.eq.s32.totalorder %s25, 1
    %p374 = por %p372, %p373
    %p376 = scmp.ne.s32.totalorder %s359, %s375
    %p377 = scmp.eq.s32.totalorder %s25, 0
    %p378 = por %p376, %p377
    %s379 = sadd.s32 %s26, %s27
    %s380 = sadd.s32 %s38, %s34
    %s381 = ssub.s32 %s379, %s380
    %p382 = scmp.eq.s32.totalorder %s381, 0
    %s384 = sadd.s32 %s383, 1
    %s385 = scalar_select %p382, %s383, %s384
    %p388 = pneg %p382
    %p389 = scmp.eq.s32.totalorder %s19, 1
    %p390 = por %p388, %p389
    %p391 = scmp.ne.s32.totalorder %s383, %s386
    %p392 = scmp.eq.s32.totalorder %s19, 0
    %p393 = por %p391, %p392
    %p394 = scmp.ne.s32.totalorder %s383, %s386
    %p395 = scmp.eq.s32.totalorder %s24, 1
    %p396 = por %p394, %p395
    %p397 = scmp.ne.s32.totalorder %s386, %s387
    %p398 = scmp.eq.s32.totalorder %s24, 0
    %p399 = por %p397, %p398
    %p400 = scmp.ne.s32.totalorder %s386, %s387
    %p401 = scmp.eq.s32.totalorder %s25, 1
    %p402 = por %p400, %p401
    %p404 = scmp.ne.s32.totalorder %s387, %s403
    %p405 = scmp.eq.s32.totalorder %s25, 0
    %p406 = por %p404, %p405
    %p407 = scmp.le.s32.totalorder 1, %s19
    %p408 = scmp.lt.s32.totalorder %s19, 3
    %p409 = pnand %p407, %p408
    %p410 = pneg %p409
    // Predicated region
    $region9: #{decoder_forward.4} parent=5 // pred_check
      _
    $region10: #{decoder_forward.4} parent=5 // pred_check_branch
      %412 = sbr.rel (%p409) target = $region12
    $region11: #{decoder_forward.4} parent=5 // pred_region
      %s413 = ssub.s32 %s19, 1
      // Predicated region
      $region13: #{decoder_forward.4} parent=11 // pred_check
        %p414 = pneg %p252
      $region14: #{decoder_forward.4} parent=11 // pred_check_branch
        %416 = sbr.rel (%p414) target = $region16
      $region15: #{decoder_forward.4} parent=11 // pred_region
        _
      $region16: #{decoder_forward.4} parent=11 // pred_fallthru
        _
      // Predicated region
      $region17: #{decoder_forward.4} parent=11 // pred_check
        %p417 = pneg %p273
      $region18: #{decoder_forward.4} parent=11 // pred_check_branch
        %419 = sbr.rel (%p417) target = $region20
      $region19: #{decoder_forward.4} parent=11 // pred_region
        _
      $region20: #{decoder_forward.4} parent=11 // pred_fallthru
        _
      // Predicated region
      $region21: #{decoder_forward.4} parent=11 // pred_check
        %p420 = pneg %p294
      $region22: #{decoder_forward.4} parent=11 // pred_check_branch
        %422 = sbr.rel (%p420) target = $region24
      $region23: #{decoder_forward.4} parent=11 // pred_region
        _
      $region24: #{decoder_forward.4} parent=11 // pred_fallthru
        _
      // Predicated region
      $region25: #{decoder_forward.4} parent=11 // pred_check
        %p423 = pneg %p315
      $region26: #{decoder_forward.4} parent=11 // pred_check_branch
        %425 = sbr.rel (%p423) target = $region28
      $region27: #{decoder_forward.4} parent=11 // pred_region
        _
      $region28: #{decoder_forward.4} parent=11 // pred_fallthru
        _
    $region12: #{decoder_forward.4} parent=5 // pred_fallthru
      _
    %p426 = scmp.lt.s32.totalorder %s19, 2
    // Predicated region
    $region29: #{decoder_forward.4} parent=5 // pred_check
      %p427 = pneg %p426
    $region30: #{decoder_forward.4} parent=5 // pred_check_branch
      %429 = sbr.rel (%p427) target = $region32
    $region31: #{decoder_forward.4} parent=5 // pred_region
      // Predicated region
      $region33: #{decoder_forward.4} parent=31 // pred_check
        %p430 = pneg %p61
      $region34: #{decoder_forward.4} parent=31 // pred_check_branch
        %432 = sbr.rel (%p430) target = $region36
      $region35: #{decoder_forward.4} parent=31 // pred_region
        %s433 = smul.u32 %s27, 8
        %s434 = ssub.s32 %s433, 1
        %p435 = scmp.gt.s32.totalorder %s434, 0
        %s436 = scalar_select %p435, %s434, 0
        %p437 = scmp.lt.s32.totalorder %s26, 1
        %s438 = scalar_select %p437, %s26, 1
        %p439 = scmp.lt.s32.totalorder %s436, 7
        %s440 = scalar_select %p439, %s436, 7
        %s441 = smul.addr %s438, 8
        %s442 = sadd.s32 %s440, %s441
        %s443 = smul.addr %s442, 4
        %s444 = scalar_lea.vmem %s0, %s443
        %s445 = smul.u32 %s27, 8
        %s446 = ssub.s32 %s445, 1
        %p447 = scmp.gt.s32.totalorder %s446, 0
        %s448 = scalar_select %p447, %s446, 0
      $region36: #{decoder_forward.4} parent=31 // pred_fallthru
        _
      // Predicated region
      $region37: #{decoder_forward.4} parent=31 // pred_check
        %p449 = pneg %p89
      $region38: #{decoder_forward.4} parent=31 // pred_check_branch
        %451 = sbr.rel (%p449) target = $region40
      $region39: #{decoder_forward.4} parent=31 // pred_region
        %s452 = smul.u32 8, %s27
        %p453 = scmp.lt.s32.totalorder %s26, 1
        %s454 = scalar_select %p453, %s26, 1
        %p455 = scmp.lt.s32.totalorder %s452, 7
        %s456 = scalar_select %p455, %s452, 7
        %s457 = smul.addr %s454, 8
        %s458 = sadd.s32 %s456, %s457
        %s459 = smul.addr %s458, 4
        %s460 = scalar_lea.vmem %s1, %s459
        %s461 = smul.u32 8, %s27
      $region40: #{decoder_forward.4} parent=31 // pred_fallthru
        _
      // Predicated region
      $region41: #{decoder_forward.4} parent=31 // pred_check
        %p462 = pneg %p125
      $region42: #{decoder_forward.4} parent=31 // pred_check_branch
        %464 = sbr.rel (%p462) target = $region44
      $region43: #{decoder_forward.4} parent=31 // pred_region
        %s465 = smul.u32 %s27, 8
        %s466 = sadd.s32 %s465, 8
        %p467 = scmp.lt.s32.totalorder %s466, 7
        %s468 = scalar_select %p467, %s466, 7
        %p469 = scmp.lt.s32.totalorder %s26, 1
        %s470 = scalar_select %p469, %s26, 1
        %p471 = scmp.lt.s32.totalorder %s468, 7
        %s472 = scalar_select %p471, %s468, 7
        %s473 = smul.addr %s470, 8
        %s474 = sadd.s32 %s472, %s473
        %s475 = smul.addr %s474, 4
        %s476 = scalar_lea.vmem %s2, %s475
        %s477 = smul.u32 %s27, 8
        %s478 = sadd.s32 %s477, 8
        %p479 = scmp.lt.s32.totalorder %s478, 7
        %s480 = scalar_select %p479, %s478, 7
      $region44: #{decoder_forward.4} parent=31 // pred_fallthru
        _
      // Predicated region
      $region45: #{decoder_forward.4} parent=31 // pred_check
        %p481 = pneg %p161
      $region46: #{decoder_forward.4} parent=31 // pred_check_branch
        %483 = sbr.rel (%p481) target = $region48
      $region47: #{decoder_forward.4} parent=31 // pred_region
        %s484 = smul.u32 %s27, 8
        %s485 = ssub.s32 %s484, 1
        %p486 = scmp.gt.s32.totalorder %s485, 0
        %s487 = scalar_select %p486, %s485, 0
        %p488 = scmp.lt.s32.totalorder %s26, 1
        %s489 = scalar_select %p488, %s26, 1
        %p490 = scmp.lt.s32.totalorder %s487, 7
        %s491 = scalar_select %p490, %s487, 7
        %s492 = smul.addr %s491, 2
        %s493 = smul.addr %s489, 16
        %s494 = sadd.s32 %s492, %s493
        %s495 = smul.addr %s494, 4
        %s496 = scalar_lea.vmem %s3, %s495
        %s497 = smul.u32 %s27, 8
        %s498 = ssub.s32 %s497, 1
        %p499 = scmp.gt.s32.totalorder %s498, 0
        %s500 = scalar_select %p499, %s498, 0
      $region48: #{decoder_forward.4} parent=31 // pred_fallthru
        _
      // Predicated region
      $region49: #{decoder_forward.4} parent=31 // pred_check
        %p501 = pneg %p189
      $region50: #{decoder_forward.4} parent=31 // pred_check_branch
        %503 = sbr.rel (%p501) target = $region52
      $region51: #{decoder_forward.4} parent=31 // pred_region
        %s504 = smul.u32 8, %s27
        %p505 = scmp.lt.s32.totalorder %s26, 1
        %s506 = scalar_select %p505, %s26, 1
        %p507 = scmp.lt.s32.totalorder %s504, 7
        %s508 = scalar_select %p507, %s504, 7
        %s509 = smul.addr %s508, 2
        %s510 = smul.addr %s506, 16
        %s511 = sadd.s32 %s509, %s510
        %s512 = smul.addr %s511, 4
        %s513 = scalar_lea.vmem %s4, %s512
        %s514 = smul.u32 8, %s27
      $region52: #{decoder_forward.4} parent=31 // pred_fallthru
        _
      // Predicated region
      $region53: #{decoder_forward.4} parent=31 // pred_check
        %p515 = pneg %p225
      $region54: #{decoder_forward.4} parent=31 // pred_check_branch
        %517 = sbr.rel (%p515) target = $region56
      $region55: #{decoder_forward.4} parent=31 // pred_region
        %s518 = smul.u32 %s27, 8
        %s519 = sadd.s32 %s518, 8
        %p520 = scmp.lt.s32.totalorder %s519, 7
        %s521 = scalar_select %p520, %s519, 7
        %p522 = scmp.lt.s32.totalorder %s26, 1
        %s523 = scalar_select %p522, %s26, 1
        %p524 = scmp.lt.s32.totalorder %s521, 7
        %s525 = scalar_select %p524, %s521, 7
        %s526 = smul.addr %s525, 2
        %s527 = smul.addr %s523, 16
        %s528 = sadd.s32 %s526, %s527
        %s529 = smul.addr %s528, 4
        %s530 = scalar_lea.vmem %s5, %s529
        %s531 = smul.u32 %s27, 8
        %s532 = sadd.s32 %s531, 8
        %p533 = scmp.lt.s32.totalorder %s532, 7
        %s534 = scalar_select %p533, %s532, 7
      $region56: #{decoder_forward.4} parent=31 // pred_fallthru
        _
    $region32: #{decoder_forward.4} parent=5 // pred_fallthru
      _
    %p535 = scmp.le.s32.totalorder 1, %s19
    %p536 = scmp.lt.s32.totalorder %s19, 3
    %p537 = pnand %p535, %p536
    %p538 = pneg %p537
    // Predicated region
    $region57: #{decoder_forward.4} parent=5 // pred_check
      _
    $region58: #{decoder_forward.4} parent=5 // pred_check_branch
      %540 = sbr.rel (%p537) target = $region60
    $region59: #{decoder_forward.4} parent=5 // pred_region
      %s541 = ssub.s32 %s19, 1
      %s542 = smul.u32 %s29, 8
      %s543 = ssub.s32 %s542, 1
      %p544 = scmp.gt.s32.totalorder %s543, 0
      %s545 = scalar_select %p544, %s543, 0
      %p546 = scmp.lt.s32.totalorder %s28, 1
      %s547 = scalar_select %p546, %s28, 1
      %p548 = scmp.lt.s32.totalorder %s545, 7
      %s549 = scalar_select %p548, %s545, 7
      %s550 = smul.addr %s547, 8
      %s551 = sadd.s32 %s549, %s550
      %s552 = smul.addr %s551, 4
      %s553 = scalar_lea.vmem %s0, %s552
      %p554 = pneg %p67
      %p555 = pneg %p64
      %s556 = smul.u32 8, %s29
      %p557 = scmp.lt.s32.totalorder %s28, 1
      %s558 = scalar_select %p557, %s28, 1
      %p559 = scmp.lt.s32.totalorder %s556, 7
      %s560 = scalar_select %p559, %s556, 7
      %s561 = smul.addr %s558, 8
      %s562 = sadd.s32 %s560, %s561
      %s563 = smul.addr %s562, 4
      %s564 = scalar_lea.vmem %s1, %s563
      %p565 = pneg %p95
      %p566 = pneg %p92
      %s567 = smul.u32 %s29, 8
      %s568 = sadd.s32 %s567, 8
      %p569 = scmp.lt.s32.totalorder %s568, 7
      %s570 = scalar_select %p569, %s568, 7
      %p571 = scmp.lt.s32.totalorder %s28, 1
      %s572 = scalar_select %p571, %s28, 1
      %p573 = scmp.lt.s32.totalorder %s570, 7
      %s574 = scalar_select %p573, %s570, 7
      %s575 = smul.addr %s572, 8
      %s576 = sadd.s32 %s574, %s575
      %s577 = smul.addr %s576, 4
      %s578 = scalar_lea.vmem %s2, %s577
      %p579 = pneg %p131
      %p580 = pneg %p128
      %s581 = smul.u32 %s29, 8
      %s582 = ssub.s32 %s581, 1
      %p583 = scmp.gt.s32.totalorder %s582, 0
      %s584 = scalar_select %p583, %s582, 0
      %p585 = scmp.lt.s32.totalorder %s28, 1
      %s586 = scalar_select %p585, %s28, 1
      %p587 = scmp.lt.s32.totalorder %s584, 7
      %s588 = scalar_select %p587, %s584, 7
      %s589 = smul.addr %s588, 2
      %s590 = smul.addr %s586, 16
      %s591 = sadd.s32 %s589, %s590
      %s592 = smul.addr %s591, 4
      %s593 = scalar_lea.vmem %s3, %s592
      %p594 = pneg %p167
      %p595 = pneg %p164
      %s596 = smul.u32 8, %s29
      %p597 = scmp.lt.s32.totalorder %s28, 1
      %s598 = scalar_select %p597, %s28, 1
      %p599 = scmp.lt.s32.totalorder %s596, 7
      %s600 = scalar_select %p599, %s596, 7
      %s601 = smul.addr %s600, 2
      %s602 = smul.addr %s598, 16
      %s603 = sadd.s32 %s601, %s602
      %s604 = smul.addr %s603, 4
      %s605 = scalar_lea.vmem %s4, %s604
      %p606 = pneg %p195
      %p607 = pneg %p192
      %s608 = smul.u32 %s29, 8
      %s609 = sadd.s32 %s608, 8
      %p610 = scmp.lt.s32.totalorder %s609, 7
      %s611 = scalar_select %p610, %s609, 7
      %p612 = scmp.lt.s32.totalorder %s28, 1
      %s613 = scalar_select %p612, %s28, 1
      %p614 = scmp.lt.s32.totalorder %s611, 7
      %s615 = scalar_select %p614, %s611, 7
      %s616 = smul.addr %s615, 2
      %s617 = smul.addr %s613, 16
      %s618 = sadd.s32 %s616, %s617
      %s619 = smul.addr %s618, 4
      %s620 = scalar_lea.vmem %s5, %s619
      %p621 = pneg %p231
      %p622 = pneg %p228
      %p623 = pneg %p252
      %p624 = pneg %p249
      %p625 = pneg %p273
      %p626 = pneg %p270
      %p627 = pneg %p294
      %p628 = pneg %p291
      %p629 = pneg %p315
      %p630 = pneg %p312
      %p631 = pneg %p343
      %p632 = pneg %p340
      %s633 = smul.u32 8, %s29
      %p634 = scmp.lt.s32.totalorder %s28, 1
      %s635 = scalar_select %p634, %s28, 1
      %p636 = scmp.lt.s32.totalorder %s633, 7
      %s637 = scalar_select %p636, %s633, 7
      %s638 = smul.addr %s637, 2
      %s639 = smul.addr %s635, 16
      %s640 = sadd.s32 %s638, %s639
      %s641 = smul.addr %s640, 4
      %s642 = scalar_lea.vmem %s10, %s641
      %p643 = pneg %p371
      %p644 = pneg %p368
      %s645 = sadd.s32 %s28, %s29
      %p646 = scmp.lt.s32.totalorder %s645, 1
      %s647 = scalar_select %p646, %s645, 1
      %s648 = smul.addr %s647, 2
      %s649 = scalar_lea.vmem %s11, %s648
      %p650 = pneg %p399
      %p651 = pneg %p396
      %s652 = sadd.s32 %s28, %s29
      %p653 = scmp.lt.s32.totalorder %s652, 1
      %s654 = scalar_select %p653, %s652, 1
      %s655 = smul.addr %s654, 2
      %s656 = scalar_lea.vmem %s12, %s655
      %s657 = smul.u32 %s29, 8
      %s658 = ssub.s32 %s657, 1
      %p659 = scmp.gt.s32.totalorder %s658, 0
      %s660 = scalar_select %p659, %s658, 0
      %p661 = scmp.lt.s32.totalorder %s28, 1
      %s662 = scalar_select %p661, %s28, 1
      %p663 = scmp.lt.s32.totalorder %s660, 7
      %s664 = scalar_select %p663, %s660, 7
      %s665 = smul.addr %s662, 8
      %s666 = sadd.s32 %s664, %s665
      %s667 = smul.addr %s666, 4
      %s668 = scalar_lea.vmem %s0, %s667
      %s669 = smul.u32 %s29, 8
      %s670 = ssub.s32 %s669, 1
      %p671 = scmp.gt.s32.totalorder %s670, 0
      %s672 = scalar_select %p671, %s670, 0
      %s673 = smul.u32 8, %s29
      %p674 = scmp.lt.s32.totalorder %s28, 1
      %s675 = scalar_select %p674, %s28, 1
      %p676 = scmp.lt.s32.totalorder %s673, 7
      %s677 = scalar_select %p676, %s673, 7
      %s678 = smul.addr %s675, 8
      %s679 = sadd.s32 %s677, %s678
      %s680 = smul.addr %s679, 4
      %s681 = scalar_lea.vmem %s1, %s680
      %s682 = smul.u32 8, %s29
      %s683 = smul.u32 %s29, 8
      %s684 = sadd.s32 %s683, 8
      %p685 = scmp.lt.s32.totalorder %s684, 7
      %s686 = scalar_select %p685, %s684, 7
      %p687 = scmp.lt.s32.totalorder %s28, 1
      %s688 = scalar_select %p687, %s28, 1
      %p689 = scmp.lt.s32.totalorder %s686, 7
      %s690 = scalar_select %p689, %s686, 7
      %s691 = smul.addr %s688, 8
      %s692 = sadd.s32 %s690, %s691
      %s693 = smul.addr %s692, 4
      %s694 = scalar_lea.vmem %s2, %s693
      %s695 = smul.u32 %s29, 8
      %s696 = sadd.s32 %s695, 8
      %p697 = scmp.lt.s32.totalorder %s696, 7
      %s698 = scalar_select %p697, %s696, 7
      %s699 = smul.u32 %s29, 8
      %s700 = ssub.s32 %s699, 1
      %p701 = scmp.gt.s32.totalorder %s700, 0
      %s702 = scalar_select %p701, %s700, 0
      %p703 = scmp.lt.s32.totalorder %s28, 1
      %s704 = scalar_select %p703, %s28, 1
      %p705 = scmp.lt.s32.totalorder %s702, 7
      %s706 = scalar_select %p705, %s702, 7
      %s707 = smul.addr %s706, 2
      %s708 = smul.addr %s704, 16
      %s709 = sadd.s32 %s707, %s708
      %s710 = smul.addr %s709, 4
      %s711 = scalar_lea.vmem %s3, %s710
      %s712 = smul.u32 %s29, 8
      %s713 = ssub.s32 %s712, 1
      %p714 = scmp.gt.s32.totalorder %s713, 0
      %s715 = scalar_select %p714, %s713, 0
      %s716 = smul.u32 8, %s29
      %p717 = scmp.lt.s32.totalorder %s28, 1
      %s718 = scalar_select %p717, %s28, 1
      %p719 = scmp.lt.s32.totalorder %s716, 7
      %s720 = scalar_select %p719, %s716, 7
      %s721 = smul.addr %s720, 2
      %s722 = smul.addr %s718, 16
      %s723 = sadd.s32 %s721, %s722
      %s724 = smul.addr %s723, 4
      %s725 = scalar_lea.vmem %s4, %s724
      %s726 = smul.u32 8, %s29
      %s727 = smul.u32 %s29, 8
      %s728 = sadd.s32 %s727, 8
      %p729 = scmp.lt.s32.totalorder %s728, 7
      %s730 = scalar_select %p729, %s728, 7
      %p731 = scmp.lt.s32.totalorder %s28, 1
      %s732 = scalar_select %p731, %s28, 1
      %p733 = scmp.lt.s32.totalorder %s730, 7
      %s734 = scalar_select %p733, %s730, 7
      %s735 = smul.addr %s734, 2
      %s736 = smul.addr %s732, 16
      %s737 = sadd.s32 %s735, %s736
      %s738 = smul.addr %s737, 4
      %s739 = scalar_lea.vmem %s5, %s738
      %s740 = smul.u32 %s29, 8
      %s741 = sadd.s32 %s740, 8
      %p742 = scmp.lt.s32.totalorder %s741, 7
      %s743 = scalar_select %p742, %s741, 7
      %s744 = smul.u32 8, %s29
      %p745 = scmp.lt.s32.totalorder %s28, 1
      %s746 = scalar_select %p745, %s28, 1
      %p747 = scmp.lt.s32.totalorder %s744, 7
      %s748 = scalar_select %p747, %s744, 7
      %s749 = smul.addr %s748, 2
      %s750 = smul.addr %s746, 16
      %s751 = sadd.s32 %s749, %s750
      %s752 = smul.addr %s751, 4
      %s753 = scalar_lea.vmem %s10, %s752
      %s754 = smul.u32 8, %s29
      %s755 = sadd.s32 %s28, %s29
      %p756 = scmp.lt.s32.totalorder %s755, 1
      %s757 = scalar_select %p756, %s755, 1
      %s758 = smul.addr %s757, 2
      %s759 = scalar_lea.vmem %s11, %s758
      %s760 = sadd.s32 %s28, %s29
      %s761 = sadd.s32 %s28, %s29
      %p762 = scmp.lt.s32.totalorder %s761, 1
      %s763 = scalar_select %p762, %s761, 1
      %s764 = smul.addr %s763, 2
      %s765 = scalar_lea.vmem %s12, %s764
      %s766 = sadd.s32 %s28, %s29
      %v768 = vld [vmem:[%s6] sm:$0x1]
      %v769 = vld [vmem:[%s7] sm:$0x1]
      %vm770 = vcmask 516096
      %vm771 = vsmask.f32 256
      %vm772 = vmand %vm770, %vm771
      %v773 = vld [vmem:[#allocation2] sm:$0x1]
      %v774 = vsel %vm772, 0, %v773
      %775 = vst [vmem:[#allocation2] sm:$0x1] %v774
      %vm776 = vcmask 1040384
      %vm777 = vmand %vm776, %vm771
      %vm778 = vcmask 1044484
      %vm779 = vsmask.f32 4352
      %vm780 = vmand %vm778, %vm779
      %vm781 = vmor %vm780, %vm777
      %v782 = vld [vmem:[#allocation3] sm:$0x11]
      %v783 = vsel %vm781, 0, %v782
      %784 = vst [vmem:[#allocation3] sm:$0x11] %v783
      %vm785 = vsmask.f32 7938
      %vm786 = vmand %vm770, %vm785
      %v787 = vld [vmem:[#allocation2 + $0x28] sm:$0x1]
      %v788 = vsel %vm786, 0, %v787
      %789 = vst [vmem:[#allocation2 + $0x28] sm:$0x1] %v788
      %vm790 = vmand %vm776, %vm785
      %vm791 = vsmask.f32 7954
      %vm792 = vmand %vm778, %vm791
      %vm793 = vmor %vm792, %vm790
      %v794 = vld [vmem:[#allocation3 + $0x50] sm:$0x11]
      %v795 = vsel %vm793, 0, %v794
      %796 = vst [vmem:[#allocation3 + $0x50] sm:$0x11] %v795
      %v797 = vld [vmem:[%s681] sm:$0xf]
      %v798 = vld [vmem:[%s681 + $0x4] sm:$0xf]
      %v799 = vld [vmem:[%s681 + $0x8] sm:$0xf]
      %v800 = vld [vmem:[%s681 + $0xc] sm:$0xf]
      %v801 = vld [vmem:[%s681 + $0x10] sm:$0xf]
      %v802 = vld [vmem:[%s681 + $0x14] sm:$0xf]
      %v803 = vld [vmem:[%s681 + $0x18] sm:$0xf]
      %v804 = vld [vmem:[%s681 + $0x1c] sm:$0xf]
      %v805 = vunpack.c.l.bf16 %v797
      %v806 = vunpack.c.l.bf16 %v798
      %v807 = vunpack.c.l.bf16 %v799
      %v808 = vunpack.c.l.bf16 %v800
      %v809 = vunpack.c.l.bf16 %v801
      %v810 = vunpack.c.l.bf16 %v802
      %v811 = vunpack.c.l.bf16 %v803
      %v812 = vunpack.c.l.bf16 %v804
      %v814 = vlaneseq
      %v815 = vshrl.u32 %v814, 7
      %v816 = vsub.s32 0, %v815
      %v817 = vrot.slane %v768, %v816
      %v819 = vmul.f32 %v805, %v817
      %v820 = vmul.f32 %v806, %v817
      %v821 = vmul.f32 %v807, %v817
      %v822 = vmul.f32 %v808, %v817
      %v823 = vmul.f32 %v809, %v817
      %v824 = vmul.f32 %v810, %v817
      %v825 = vmul.f32 %v811, %v817
      %v826 = vmul.f32 %v812, %v817
      %v828 = vlaneseq
      %v829 = vshrl.u32 %v828, 7
      %v830 = vsub.s32 0, %v829
      %v831 = vrot.slane %v769, %v830
      %v833 = vadd.f32 %v819, %v831
      %v834 = vadd.f32 %v820, %v831
      %v835 = vadd.f32 %v821, %v831
      %v836 = vadd.f32 %v822, %v831
      %v837 = vadd.f32 %v823, %v831
      %v838 = vadd.f32 %v824, %v831
      %v839 = vadd.f32 %v825, %v831
      %v840 = vadd.f32 %v826, %v831
      %v841 = vmax.f32 %v833, 0.0
      %v842 = vmax.f32 %v834, 0.0
      %v843 = vmax.f32 %v835, 0.0
      %v844 = vmax.f32 %v836, 0.0
      %v845 = vmax.f32 %v837, 0.0
      %v846 = vmax.f32 %v838, 0.0
      %v847 = vmax.f32 %v839, 0.0
      %v848 = vmax.f32 %v840, 0.0
      %v849 = vpack.c.bf16 %v842, %v841
      %v850 = vpack.c.bf16 %v844, %v843
      %v851 = vpack.c.bf16 %v846, %v845
      %v852 = vpack.c.bf16 %v848, %v847
      %v857 = vunpack.c.l.b16 %v849
      %v858 = vunpack.c.h.b16 %v849
      %v859 = vunpack.c.l.b16 %v850
      %v860 = vunpack.c.h.b16 %v850
      %v861 = vunpack.c.l.b16 %v851
      %v862 = vunpack.c.h.b16 %v851
      %v863 = vunpack.c.l.b16 %v852
      %v864 = vunpack.c.h.b16 %v852
      %v865 = vpack.c.b16 %v857, %v857
      %v866 = vpack.c.b16 %v858, %v858
      %v867 = vpack.c.b16 %v859, %v859
      %v868 = vpack.c.b16 %v860, %v860
      %v869 = vpack.c.b16 %v861, %v861
      %v870 = vpack.c.b16 %v862, %v862
      %v871 = vpack.c.b16 %v863, %v863
      %v872 = vpack.c.b16 %v864, %v864
      %vm873 = vsmask.f32 4368
      %vm874 = vmor %vm771, %vm873
      %v876 = vshrl.u32 %v865, 16
      %v878 = vrot.slane %v876, 7
      %v879 = vshll.u32 %v865, 16
      %v881 = vor.u32 %v878, %v879
      %v882 = vrot.slane %v878, 4
      %v884 = vshrl.u32 %v866, 16
      %v886 = vrot.slane %v884, 7
      %v887 = vshll.u32 %v866, 16
      %v889 = vor.u32 %v886, %v887
      %v890 = vsel %vm874, %v882, %v889
      %v891 = vrot.slane %v886, 4
      %v893 = vshrl.u32 %v867, 16
      %v895 = vrot.slane %v893, 7
      %v896 = vshll.u32 %v867, 16
      %v898 = vor.u32 %v895, %v896
      %v899 = vsel %vm874, %v891, %v898
      %v900 = vrot.slane %v895, 4
      %v902 = vshrl.u32 %v868, 16
      %v904 = vrot.slane %v902, 7
      %v905 = vshll.u32 %v868, 16
      %v907 = vor.u32 %v904, %v905
      %v908 = vsel %vm874, %v900, %v907
      %v909 = vrot.slane %v904, 4
      %v911 = vshrl.u32 %v869, 16
      %v913 = vrot.slane %v911, 7
      %v914 = vshll.u32 %v869, 16
      %v916 = vor.u32 %v913, %v914
      %v917 = vsel %vm874, %v909, %v916
      %v918 = vrot.slane %v913, 4
      %v920 = vshrl.u32 %v870, 16
      %v922 = vrot.slane %v920, 7
      %v923 = vshll.u32 %v870, 16
      %v925 = vor.u32 %v922, %v923
      %v926 = vsel %vm874, %v918, %v925
      %v927 = vrot.slane %v922, 4
      %v929 = vshrl.u32 %v871, 16
      %v931 = vrot.slane %v929, 7
      %v932 = vshll.u32 %v871, 16
      %v934 = vor.u32 %v931, %v932
      %v935 = vsel %vm874, %v927, %v934
      %v936 = vrot.slane %v931, 4
      %v938 = vshrl.u32 %v872, 16
      %v940 = vrot.slane %v938, 7
      %v941 = vshll.u32 %v872, 16
      %v943 = vor.u32 %v940, %v941
      %v944 = vsel %vm874, %v936, %v943
      %v945 = vrot.slane %v940, 4
      %vm955 = vcmask 519168
      %vm956 = vmand %vm955, %vm785
      %v957 = vld [vmem:[#allocation2 + $0x4] sm:$0xf]
      %v958 = vsel %vm956, %v881, %v957
      %959 = vst [vmem:[#allocation2 + $0x4] sm:$0xf] %v958
      %vm960 = vcmask 519168
      %961 = vst.msk [vmem:[#allocation2 + $0x8] sm:$0xf] %vm960, %v890
      %962 = vst.msk [vmem:[#allocation2 + $0xc] sm:$0xf] %vm960, %v899
      %963 = vst.msk [vmem:[#allocation2 + $0x10] sm:$0xf] %vm960, %v908
      %964 = vst.msk [vmem:[#allocation2 + $0x14] sm:$0xf] %vm960, %v917
      %965 = vst.msk [vmem:[#allocation2 + $0x18] sm:$0xf] %vm960, %v926
      %966 = vst.msk [vmem:[#allocation2 + $0x1c] sm:$0xf] %vm960, %v935
      %967 = vst.msk [vmem:[#allocation2 + $0x20] sm:$0xf] %vm960, %v944
      %v968 = vld [vmem:[#allocation2 + $0x24] sm:$0x1]
      %v969 = vsel %vm772, %v945, %v968
      %970 = vst [vmem:[#allocation2 + $0x24] sm:$0x1] %v969
      %v971 = vld [vmem:[%s725] sm:$0xff]
      %v972 = vld [vmem:[%s725 + $0x8] sm:$0xff]
      %v973 = vld [vmem:[%s725 + $0x10] sm:$0xff]
      %v974 = vld [vmem:[%s725 + $0x18] sm:$0xff]
      %v975 = vld [vmem:[%s725 + $0x20] sm:$0xff]
      %v976 = vld [vmem:[%s725 + $0x28] sm:$0xff]
      %v977 = vld [vmem:[%s725 + $0x30] sm:$0xff]
      %v978 = vld [vmem:[%s725 + $0x38] sm:$0xff]
      %v980 = vshrl.u32 %v971, 16
      %v982 = vrot.slane %v980, 7
      %v983 = vshll.u32 %v971, 16
      %v985 = vor.u32 %v982, %v983
      %v986 = vrot.slane %v982, 4
      %v988 = vshrl.u32 %v972, 16
      %v990 = vrot.slane %v988, 7
      %v991 = vshll.u32 %v972, 16
      %v993 = vor.u32 %v990, %v991
      %v994 = vsel %vm874, %v986, %v993
      %v995 = vrot.slane %v990, 4
      %v997 = vshrl.u32 %v973, 16
      %v999 = vrot.slane %v997, 7
      %v1000 = vshll.u32 %v973, 16
      %v1002 = vor.u32 %v999, %v1000
      %v1003 = vsel %vm874, %v995, %v1002
      %v1004 = vrot.slane %v999, 4
      %v1006 = vshrl.u32 %v974, 16
      %v1008 = vrot.slane %v1006, 7
      %v1009 = vshll.u32 %v974, 16
      %v1011 = vor.u32 %v1008, %v1009
      %v1012 = vsel %vm874, %v1004, %v1011
      %v1013 = vrot.slane %v1008, 4
      %v1015 = vshrl.u32 %v975, 16
      %v1017 = vrot.slane %v1015, 7
      %v1018 = vshll.u32 %v975, 16
      %v1020 = vor.u32 %v1017, %v1018
      %v1021 = vsel %vm874, %v1013, %v1020
      %v1022 = vrot.slane %v1017, 4
      %v1024 = vshrl.u32 %v976, 16
      %v1026 = vrot.slane %v1024, 7
      %v1027 = vshll.u32 %v976, 16
      %v1029 = vor.u32 %v1026, %v1027
      %v1030 = vsel %vm874, %v1022, %v1029
      %v1031 = vrot.slane %v1026, 4
      %v1033 = vshrl.u32 %v977, 16
      %v1035 = vrot.slane %v1033, 7
      %v1036 = vshll.u32 %v977, 16
      %v1038 = vor.u32 %v1035, %v1036
      %v1039 = vsel %vm874, %v1031, %v1038
      %v1040 = vrot.slane %v1035, 4
      %v1042 = vshrl.u32 %v978, 16
      %v1044 = vrot.slane %v1042, 7
      %v1045 = vshll.u32 %v978, 16
      %v1047 = vor.u32 %v1044, %v1045
      %v1048 = vsel %vm874, %v1040, %v1047
      %v1049 = vrot.slane %v1044, 4
      %vm1059 = vcmask 1043456
      %vm1060 = vmand %vm1059, %vm785
      %vm1061 = vcmask 1047556
      %vm1062 = vmand %vm1061, %vm791
      %vm1063 = vmor %vm1062, %vm1060
      %v1064 = vld [vmem:[#allocation3 + $0x8] sm:$0xff]
      %v1065 = vsel %vm1063, %v985, %v1064
      %1066 = vst [vmem:[#allocation3 + $0x8] sm:$0xff] %v1065
      %1067 = vst [vmem:[#allocation3 + $0x10] sm:$0xff] %v994
      %1068 = vst [vmem:[#allocation3 + $0x18] sm:$0xff] %v1003
      %1069 = vst [vmem:[#allocation3 + $0x20] sm:$0xff] %v1012
      %1070 = vst [vmem:[#allocation3 + $0x28] sm:$0xff] %v1021
      %1071 = vst [vmem:[#allocation3 + $0x30] sm:$0xff] %v1030
      %1072 = vst [vmem:[#allocation3 + $0x38] sm:$0xff] %v1039
      %1073 = vst [vmem:[#allocation3 + $0x40] sm:$0xff] %v1048
      %v1074 = vld [vmem:[#allocation3 + $0x48] sm:$0x11]
      %v1075 = vsel %vm781, %v1049, %v1074
      %1076 = vst [vmem:[#allocation3 + $0x48] sm:$0x11] %v1075
      %p1077 = scmp.gt.s32.totalorder %s29, 0
      // Predicated region
      $region61: #{decoder_forward.4} parent=59 // pred_check
        %p1078 = pneg %p1077
      $region62: #{decoder_forward.4} parent=59 // pred_check_branch
        %1080 = sbr.rel (%p1078) target = $region64
      $region63: #{decoder_forward.4} parent=59 // pred_region
        %v1081 = vld [vmem:[%s668] sm:$0xf]
        %v1082 = vunpack.c.l.bf16 %v1081
        %v1083 = vmul.f32 %v1082, %v817
        %v1084 = vadd.f32 %v1083, %v831
        %v1085 = vmax.f32 %v1084, 0.0
        %v1086 = vpack.c.bf16 %v1085, %v1085
        %v1088 = vunpack.c.l.b16 %v1086
        %v1089 = vpack.c.b16 %v1088, %v1088
        %v1091 = vshrl.u32 %v1089, 16
        %v1093 = vrot.slane %v1091, 7
        %v1094 = vshll.u32 %v1089, 16
        %v1096 = vor.u32 %v1093, %v1094
        %v1097 = vrot.slane %v1093, 4
        %v1100 = vld [vmem:[#allocation2] sm:$0xf]
        %v1101 = vsel %vm956, %v1096, %v1100
        %1102 = vst [vmem:[#allocation2] sm:$0xf] %v1101
        %v1103 = vld [vmem:[#allocation2 + $0x4] sm:$0x1]
        %v1104 = vsel %vm772, %v1097, %v1103
        %1105 = vst [vmem:[#allocation2 + $0x4] sm:$0x1] %v1104
        %v1106 = vld [vmem:[%s711] sm:$0xff]
        %v1108 = vshrl.u32 %v1106, 16
        %v1110 = vrot.slane %v1108, 7
        %v1111 = vshll.u32 %v1106, 16
        %v1113 = vor.u32 %v1110, %v1111
        %v1114 = vrot.slane %v1110, 4
        %v1117 = vld [vmem:[#allocation3] sm:$0xff]
        %v1118 = vsel %vm1063, %v1113, %v1117
        %1119 = vst [vmem:[#allocation3] sm:$0xff] %v1118
        %v1120 = vld [vmem:[#allocation3 + $0x8] sm:$0x11]
        %v1121 = vsel %vm781, %v1114, %v1120
        %1122 = vst [vmem:[#allocation3 + $0x8] sm:$0x11] %v1121
      $region64: #{decoder_forward.4} parent=59 // pred_fallthru
        _
      %p1123 = scmp.eq.s32.totalorder %s29, 0
      // Predicated region
      $region65: #{decoder_forward.4} parent=59 // pred_check
        %p1124 = pneg %p1123
      $region66: #{decoder_forward.4} parent=59 // pred_check_branch
        %1126 = sbr.rel (%p1124) target = $region68
      $region67: #{decoder_forward.4} parent=59 // pred_region
        %v1127 = vld [vmem:[#allocation2] sm:$0xf]
        %v1128 = vsel %vm956, 0, %v1127
        %1129 = vst [vmem:[#allocation2] sm:$0xf] %v1128
        %v1130 = vld [vmem:[#allocation2 + $0x4] sm:$0x1]
        %v1131 = vsel %vm772, 0, %v1130
        %1132 = vst [vmem:[#allocation2 + $0x4] sm:$0x1] %v1131
        %v1133 = vld [vmem:[#allocation3] sm:$0xff]
        %v1134 = vsel %vm1063, 0, %v1133
        %1135 = vst [vmem:[#allocation3] sm:$0xff] %v1134
        %v1136 = vld [vmem:[#allocation3 + $0x8] sm:$0x11]
        %v1137 = vsel %vm781, 0, %v1136
        %1138 = vst [vmem:[#allocation3 + $0x8] sm:$0x11] %v1137
      $region68: #{decoder_forward.4} parent=59 // pred_fallthru
        _
      %p1139 = scmp.lt.s32.totalorder %s29, 0
      // Predicated region
      $region69: #{decoder_forward.4} parent=59 // pred_check
        %p1140 = pneg %p1139
      $region70: #{decoder_forward.4} parent=59 // pred_check_branch
        %1142 = sbr.rel (%p1140) target = $region72
      $region71: #{decoder_forward.4} parent=59 // pred_region
        %v1143 = vld [vmem:[%s694] sm:$0xf]
        %v1144 = vunpack.c.l.bf16 %v1143
        %v1145 = vmul.f32 %v1144, %v817
        %v1146 = vadd.f32 %v1145, %v831
        %v1147 = vmax.f32 %v1146, 0.0
        %v1148 = vpack.c.bf16 %v1147, %v1147
        %v1150 = vunpack.c.l.b16 %v1148
        %v1151 = vpack.c.b16 %v1150, %v1150
        %v1153 = vshrl.u32 %v1151, 16
        %v1155 = vrot.slane %v1153, 7
        %v1156 = vshll.u32 %v1151, 16
        %v1158 = vor.u32 %v1155, %v1156
        %v1159 = vrot.slane %v1155, 4
        %v1162 = vld [vmem:[#allocation2 + $0x24] sm:$0xf]
        %v1163 = vsel %vm956, %v1158, %v1162
        %1164 = vst [vmem:[#allocation2 + $0x24] sm:$0xf] %v1163
        %v1165 = vld [vmem:[#allocation2 + $0x28] sm:$0x1]
        %v1166 = vsel %vm772, %v1159, %v1165
        %1167 = vst [vmem:[#allocation2 + $0x28] sm:$0x1] %v1166
        %v1168 = vld [vmem:[%s739] sm:$0xff]
        %v1170 = vshrl.u32 %v1168, 16
        %v1172 = vrot.slane %v1170, 7
        %v1173 = vshll.u32 %v1168, 16
        %v1175 = vor.u32 %v1172, %v1173
        %v1176 = vrot.slane %v1172, 4
        %v1179 = vld [vmem:[#allocation3 + $0x48] sm:$0xff]
        %v1180 = vsel %vm1063, %v1175, %v1179
        %1181 = vst [vmem:[#allocation3 + $0x48] sm:$0xff] %v1180
        %v1182 = vld [vmem:[#allocation3 + $0x50] sm:$0x11]
        %v1183 = vsel %vm781, %v1176, %v1182
        %1184 = vst [vmem:[#allocation3 + $0x50] sm:$0x11] %v1183
      $region72: #{decoder_forward.4} parent=59 // pred_fallthru
        _
      // Predicated region
      $region73: #{decoder_forward.4} parent=59 // pred_check
        %p1185 = pneg %p1123
      $region74: #{decoder_forward.4} parent=59 // pred_check_branch
        %1187 = sbr.rel (%p1185) target = $region76
      $region75: #{decoder_forward.4} parent=59 // pred_region
        %v1188 = vld [vmem:[#allocation2 + $0x24] sm:$0xf]
        %v1189 = vsel %vm956, 0, %v1188
        %1190 = vst [vmem:[#allocation2 + $0x24] sm:$0xf] %v1189
        %v1191 = vld [vmem:[#allocation2 + $0x28] sm:$0x1]
        %v1192 = vsel %vm772, 0, %v1191
        %1193 = vst [vmem:[#allocation2 + $0x28] sm:$0x1] %v1192
        %v1194 = vld [vmem:[#allocation3 + $0x48] sm:$0xff]
        %v1195 = vsel %vm1063, 0, %v1194
        %1196 = vst [vmem:[#allocation3 + $0x48] sm:$0xff] %v1195
        %v1197 = vld [vmem:[#allocation3 + $0x50] sm:$0x11]
        %v1198 = vsel %vm781, 0, %v1197
        %1199 = vst [vmem:[#allocation3 + $0x50] sm:$0x11] %v1198
      $region76: #{decoder_forward.4} parent=59 // pred_fallthru
        _
      %v1200 = vlaneseq
      %v1201 = vshrl.u32 %v1200, 7
      %v1202 = vadd.s32 %v1201, 8
      %v1203 = vadd.s32 %v1201, 16
      %v1204 = vadd.s32 %v1201, 24
      %v1205 = vadd.s32 %v1201, 32
      %v1206 = vadd.s32 %v1201, 40
      %v1207 = vadd.s32 %v1201, 48
      %v1208 = vadd.s32 %v1201, 56
      %vm1209 = vcmp.lt.s32.totalorder %v1201, 0
      %v1210 = vsub.s32 0, %v1201
      %v1211 = vsel %vm1209, %v1210, %v1201
      %v1212 = vshrl.u32 %v1211, 3
      %v1213 = vand.u32 %v1211, 7
      %v1214 = vsub.s32 0, %v1213
      %v1215 = vsel %vm1209, %v1214, %v1213
      %vm1216 = vcmp.lt.s32.totalorder %v1202, 0
      %v1217 = vsub.s32 0, %v1202
      %v1218 = vsel %vm1216, %v1217, %v1202
      %v1219 = vshrl.u32 %v1218, 3
      %v1220 = vand.u32 %v1218, 7
      %v1221 = vsub.s32 0, %v1220
      %v1222 = vsel %vm1216, %v1221, %v1220
      %vm1223 = vcmp.lt.s32.totalorder %v1203, 0
      %v1224 = vsub.s32 0, %v1203
      %v1225 = vsel %vm1223, %v1224, %v1203
      %v1226 = vshrl.u32 %v1225, 3
      %v1227 = vand.u32 %v1225, 7
      %v1228 = vsub.s32 0, %v1227
      %v1229 = vsel %vm1223, %v1228, %v1227
      %vm1230 = vcmp.lt.s32.totalorder %v1204, 0
      %v1231 = vsub.s32 0, %v1204
      %v1232 = vsel %vm1230, %v1231, %v1204
      %v1233 = vshrl.u32 %v1232, 3
      %v1234 = vand.u32 %v1232, 7
      %v1235 = vsub.s32 0, %v1234
      %v1236 = vsel %vm1230, %v1235, %v1234
      %vm1237 = vcmp.lt.s32.totalorder %v1205, 0
      %v1238 = vsub.s32 0, %v1205
      %v1239 = vsel %vm1237, %v1238, %v1205
      %v1240 = vshrl.u32 %v1239, 3
      %v1241 = vand.u32 %v1239, 7
      %v1242 = vsub.s32 0, %v1241
      %v1243 = vsel %vm1237, %v1242, %v1241
      %vm1244 = vcmp.lt.s32.totalorder %v1206, 0
      %v1245 = vsub.s32 0, %v1206
      %v1246 = vsel %vm1244, %v1245, %v1206
      %v1247 = vshrl.u32 %v1246, 3
      %v1248 = vand.u32 %v1246, 7
      %v1249 = vsub.s32 0, %v1248
      %v1250 = vsel %vm1244, %v1249, %v1248
      %vm1251 = vcmp.lt.s32.totalorder %v1207, 0
      %v1252 = vsub.s32 0, %v1207
      %v1253 = vsel %vm1251, %v1252, %v1207
      %v1254 = vshrl.u32 %v1253, 3
      %v1255 = vand.u32 %v1253, 7
      %v1256 = vsub.s32 0, %v1255
      %v1257 = vsel %vm1251, %v1256, %v1255
      %vm1258 = vcmp.lt.s32.totalorder %v1208, 0
      %v1259 = vsub.s32 0, %v1208
      %v1260 = vsel %vm1258, %v1259, %v1208
      %v1261 = vshrl.u32 %v1260, 3
      %v1262 = vand.u32 %v1260, 7
      %v1263 = vsub.s32 0, %v1262
      %v1264 = vsel %vm1258, %v1263, %v1262
      %vm1265 = vcmp.ne.s32.totalorder %v1215, 0
      %vm1266 = vcmp.ne.s32.totalorder %v1222, 0
      %vm1267 = vcmp.ne.s32.totalorder %v1229, 0
      %vm1268 = vcmp.ne.s32.totalorder %v1236, 0
      %vm1269 = vcmp.ne.s32.totalorder %v1243, 0
      %vm1270 = vcmp.ne.s32.totalorder %v1250, 0
      %vm1271 = vcmp.ne.s32.totalorder %v1257, 0
      %vm1272 = vcmp.ne.s32.totalorder %v1264, 0
      %vm1273 = vcmp.lt.s32.totalorder %v1215, 0
      %vm1274 = vcmp.lt.s32.totalorder %v1222, 0
      %vm1275 = vcmp.lt.s32.totalorder %v1229, 0
      %vm1276 = vcmp.lt.s32.totalorder %v1236, 0
      %vm1277 = vcmp.lt.s32.totalorder %v1243, 0
      %vm1278 = vcmp.lt.s32.totalorder %v1250, 0
      %vm1279 = vcmp.lt.s32.totalorder %v1257, 0
      %vm1280 = vcmp.lt.s32.totalorder %v1264, 0
      %vm1281 = vmand %vm1273, %vm1265
      %vm1282 = vmand %vm1274, %vm1266
      %vm1283 = vmand %vm1275, %vm1267
      %vm1284 = vmand %vm1276, %vm1268
      %vm1285 = vmand %vm1277, %vm1269
      %vm1286 = vmand %vm1278, %vm1270
      %vm1287 = vmand %vm1279, %vm1271
      %vm1288 = vmand %vm1280, %vm1272
      %v1289 = vadd.s32 %v1215, 8
      %v1290 = vadd.s32 %v1222, 8
      %v1291 = vadd.s32 %v1229, 8
      %v1292 = vadd.s32 %v1236, 8
      %v1293 = vadd.s32 %v1243, 8
      %v1294 = vadd.s32 %v1250, 8
      %v1295 = vadd.s32 %v1257, 8
      %v1296 = vadd.s32 %v1264, 8
      %v1297 = vsel %vm1281, %v1289, %v1215
      %v1298 = vsel %vm1282, %v1290, %v1222
      %v1299 = vsel %vm1283, %v1291, %v1229
      %v1300 = vsel %vm1284, %v1292, %v1236
      %v1301 = vsel %vm1285, %v1293, %v1243
      %v1302 = vsel %vm1286, %v1294, %v1250
      %v1303 = vsel %vm1287, %v1295, %v1257
      %v1304 = vsel %vm1288, %v1296, %v1264
      %vm1305 = vcmp.gt.s32.totalorder %v1297, 0
      %vm1306 = vcmp.gt.s32.totalorder %v1298, 0
      %vm1307 = vcmp.gt.s32.totalorder %v1299, 0
      %vm1308 = vcmp.gt.s32.totalorder %v1300, 0
      %vm1309 = vcmp.gt.s32.totalorder %v1301, 0
      %vm1310 = vcmp.gt.s32.totalorder %v1302, 0
      %vm1311 = vcmp.gt.s32.totalorder %v1303, 0
      %vm1312 = vcmp.gt.s32.totalorder %v1304, 0
      %v1313 = vsel %vm1305, 1, 0
      %v1314 = vsel %vm1306, 1, 0
      %v1315 = vsel %vm1307, 1, 0
      %v1316 = vsel %vm1308, 1, 0
      %v1317 = vsel %vm1309, 1, 0
      %v1318 = vsel %vm1310, 1, 0
      %v1319 = vsel %vm1311, 1, 0
      %v1320 = vsel %vm1312, 1, 0
      %v1321 = vcvt.s32.f32 %v1313
      %v1322 = vcvt.s32.f32 %v1314
      %v1323 = vcvt.s32.f32 %v1315
      %v1324 = vcvt.s32.f32 %v1316
      %v1325 = vcvt.s32.f32 %v1317
      %v1326 = vcvt.s32.f32 %v1318
      %v1327 = vcvt.s32.f32 %v1319
      %v1328 = vcvt.s32.f32 %v1320
      %v1329 = vpack.c.bf16 %v1322, %v1321
      %v1330 = vpack.c.bf16 %v1324, %v1323
      %v1331 = vpack.c.bf16 %v1326, %v1325
      %v1332 = vpack.c.bf16 %v1328, %v1327
      %vm1333 = vcmp.lt.s32.totalorder %v1297, 7
      %vm1334 = vcmp.lt.s32.totalorder %v1298, 7
      %vm1335 = vcmp.lt.s32.totalorder %v1299, 7
      %vm1336 = vcmp.lt.s32.totalorder %v1300, 7
      %vm1337 = vcmp.lt.s32.totalorder %v1301, 7
      %vm1338 = vcmp.lt.s32.totalorder %v1302, 7
      %vm1339 = vcmp.lt.s32.totalorder %v1303, 7
      %vm1340 = vcmp.lt.s32.totalorder %v1304, 7
      %v1341 = vsel %vm1333, 1, 0
      %v1342 = vsel %vm1334, 1, 0
      %v1343 = vsel %vm1335, 1, 0
      %v1344 = vsel %vm1336, 1, 0
      %v1345 = vsel %vm1337, 1, 0
      %v1346 = vsel %vm1338, 1, 0
      %v1347 = vsel %vm1339, 1, 0
      %v1348 = vsel %vm1340, 1, 0
      %v1349 = vcvt.s32.f32 %v1341
      %v1350 = vcvt.s32.f32 %v1342
      %v1351 = vcvt.s32.f32 %v1343
      %v1352 = vcvt.s32.f32 %v1344
      %v1353 = vcvt.s32.f32 %v1345
      %v1354 = vcvt.s32.f32 %v1346
      %v1355 = vcvt.s32.f32 %v1347
      %v1356 = vcvt.s32.f32 %v1348
      %v1357 = vpack.c.bf16 %v1350, %v1349
      %v1358 = vpack.c.bf16 %v1352, %v1351
      %v1359 = vpack.c.bf16 %v1354, %v1353
      %v1360 = vpack.c.bf16 %v1356, %v1355
      %v1361 = vld [vmem:[#allocation2] sm:$0xf]
      %v1362 = vld [vmem:[#allocation2 + $0x4] sm:$0xf]
      %v1363 = vld [vmem:[#allocation2 + $0x8] sm:$0xf]
      %v1364 = vld [vmem:[#allocation2 + $0xc] sm:$0xf]
      %v1365 = vld [vmem:[#allocation2 + $0x10] sm:$0xf]
      %v1366 = vld [vmem:[#allocation2 + $0x14] sm:$0xf]
      %v1367 = vld [vmem:[#allocation2 + $0x18] sm:$0xf]
      %v1368 = vld [vmem:[#allocation2 + $0x1c] sm:$0xf]
      %v1369 = vld [vmem:[#allocation3] sm:$0xff]
      %v1370 = vld [vmem:[#allocation3 + $0x8] sm:$0xff]
      %v1371 = vld [vmem:[#allocation3 + $0x10] sm:$0xff]
      %v1372 = vld [vmem:[#allocation3 + $0x18] sm:$0xff]
      %v1373 = vld [vmem:[#allocation3 + $0x20] sm:$0xff]
      %v1374 = vld [vmem:[#allocation3 + $0x28] sm:$0xff]
      %v1375 = vld [vmem:[#allocation3 + $0x30] sm:$0xff]
      %v1376 = vld [vmem:[#allocation3 + $0x38] sm:$0xff]
      %v1382 = vunpack.c.l.s4 839922192
      %v1383 = vunpack.c.0.s8 %v1382
      %v1384 = vlaneseq
      %v1385 = vshrl.u32 %v1384, 7
      %v1386 = vsub.s32 %v1383, %v1385
      %v1387 = vrot.slane %v1329, %v1386
      %v1389 = vunpack.c.l.s4 1985246804
      %v1390 = vunpack.c.0.s8 %v1389
      %v1391 = vlaneseq
      %v1392 = vshrl.u32 %v1391, 7
      %v1393 = vsub.s32 %v1390, %v1392
      %v1394 = vrot.slane %v1329, %v1393
      %v1396 = vunpack.c.l.s4 839922192
      %v1397 = vunpack.c.0.s8 %v1396
      %v1398 = vlaneseq
      %v1399 = vshrl.u32 %v1398, 7
      %v1400 = vsub.s32 %v1397, %v1399
      %v1401 = vrot.slane %v1330, %v1400
      %v1403 = vunpack.c.l.s4 1985246804
      %v1404 = vunpack.c.0.s8 %v1403
      %v1405 = vlaneseq
      %v1406 = vshrl.u32 %v1405, 7
      %v1407 = vsub.s32 %v1404, %v1406
      %v1408 = vrot.slane %v1330, %v1407
      %v1410 = vunpack.c.l.s4 839922192
      %v1411 = vunpack.c.0.s8 %v1410
      %v1412 = vlaneseq
      %v1413 = vshrl.u32 %v1412, 7
      %v1414 = vsub.s32 %v1411, %v1413
      %v1415 = vrot.slane %v1331, %v1414
      %v1417 = vunpack.c.l.s4 1985246804
      %v1418 = vunpack.c.0.s8 %v1417
      %v1419 = vlaneseq
      %v1420 = vshrl.u32 %v1419, 7
      %v1421 = vsub.s32 %v1418, %v1420
      %v1422 = vrot.slane %v1331, %v1421
      %v1424 = vunpack.c.l.s4 839922192
      %v1425 = vunpack.c.0.s8 %v1424
      %v1426 = vlaneseq
      %v1427 = vshrl.u32 %v1426, 7
      %v1428 = vsub.s32 %v1425, %v1427
      %v1429 = vrot.slane %v1332, %v1428
      %v1431 = vunpack.c.l.s4 1985246804
      %v1432 = vunpack.c.0.s8 %v1431
      %v1433 = vlaneseq
      %v1434 = vshrl.u32 %v1433, 7
      %v1435 = vsub.s32 %v1432, %v1434
      %v1436 = vrot.slane %v1332, %v1435
      %v1445 = vmul.bf16 %v1361, %v1387
      %v1446 = vmul.bf16 %v1362, %v1394
      %v1447 = vmul.bf16 %v1363, %v1401
      %v1448 = vmul.bf16 %v1364, %v1408
      %v1449 = vmul.bf16 %v1365, %v1415
      %v1450 = vmul.bf16 %v1366, %v1422
      %v1451 = vmul.bf16 %v1367, %v1429
      %v1452 = vmul.bf16 %v1368, %v1436
      %v1453 = vmul.bf16 %v1369, %v1387
      %v1454 = vmul.bf16 %v1370, %v1394
      %v1455 = vmul.bf16 %v1371, %v1401
      %v1456 = vmul.bf16 %v1372, %v1408
      %v1457 = vmul.bf16 %v1373, %v1415
      %v1458 = vmul.bf16 %v1374, %v1422
      %v1459 = vmul.bf16 %v1375, %v1429
      %v1460 = vmul.bf16 %v1376, %v1436
      %v1461 = vld [vmem:[%s8] sm:$0xff]
      %v1462 = vld [vmem:[%s8 + $0x8] sm:$0xff]
      %v1463 = vld [vmem:[%s8 + $0x10] sm:$0xff]
      %v1464 = vld [vmem:[%s8 + $0x18] sm:$0xff]
      %v1465 = vld [vmem:[%s8 + $0x20] sm:$0xff]
      %v1466 = vld [vmem:[%s8 + $0x28] sm:$0xff]
      %v1467 = vld [vmem:[%s8 + $0x30] sm:$0xff]
      %v1468 = vld [vmem:[%s8 + $0x38] sm:$0xff]
      %v1469 = vld [vmem:[%s9] sm:$0xff]
      %v1470 = vld [vmem:[%s9 + $0x8] sm:$0xff]
      %v1471 = vld [vmem:[%s9 + $0x10] sm:$0xff]
      %v1472 = vld [vmem:[%s9 + $0x18] sm:$0xff]
      %v1473 = vld [vmem:[%s9 + $0x20] sm:$0xff]
      %v1474 = vld [vmem:[%s9 + $0x28] sm:$0xff]
      %v1475 = vld [vmem:[%s9 + $0x30] sm:$0xff]
      %v1476 = vld [vmem:[%s9 + $0x38] sm:$0xff]
      %v1477 = vld [vmem:[%s9 + $0x40] sm:$0xff]
      %v1478 = vld [vmem:[%s9 + $0x48] sm:$0xff]
      %v1479 = vld [vmem:[%s9 + $0x50] sm:$0xff]
      %v1480 = vld [vmem:[%s9 + $0x58] sm:$0xff]
      %v1481 = vld [vmem:[%s9 + $0x60] sm:$0xff]
      %v1482 = vld [vmem:[%s9 + $0x68] sm:$0xff]
      %v1483 = vld [vmem:[%s9 + $0x70] sm:$0xff]
      %v1484 = vld [vmem:[%s9 + $0x78] sm:$0xff]
      %v1485 = vld [vmem:[%s9 + $0x80] sm:$0xff]
      %v1486 = vld [vmem:[%s9 + $0x88] sm:$0xff]
      %v1487 = vld [vmem:[%s9 + $0x90] sm:$0xff]
      %v1488 = vld [vmem:[%s9 + $0x98] sm:$0xff]
      %v1489 = vld [vmem:[%s9 + $0xa0] sm:$0xff]
      %v1490 = vld [vmem:[%s9 + $0xa8] sm:$0xff]
      %v1491 = vld [vmem:[%s9 + $0xb0] sm:$0xff]
      %v1492 = vld [vmem:[%s9 + $0xb8] sm:$0xff]
      %v1493 = vld [vmem:[%s9 + $0xc0] sm:$0xff]
      %v1494 = vld [vmem:[%s9 + $0xc8] sm:$0xff]
      %v1495 = vld [vmem:[%s9 + $0xd0] sm:$0xff]
      %v1496 = vld [vmem:[%s9 + $0xd8] sm:$0xff]
      %v1497 = vld [vmem:[%s9 + $0xe0] sm:$0xff]
      %v1498 = vld [vmem:[%s9 + $0xe8] sm:$0xff]
      %v1499 = vld [vmem:[%s9 + $0xf0] sm:$0xff]
      %v1500 = vld [vmem:[%s9 + $0xf8] sm:$0xff]
      %v1509 = vunpack.c.l.b16 %v1453
      %v1510 = vunpack.c.h.b16 %v1453
      %v1511 = vunpack.c.l.b16 %v1454
      %v1512 = vunpack.c.h.b16 %v1454
      %v1513 = vunpack.c.l.b16 %v1455
      %v1514 = vunpack.c.h.b16 %v1455
      %v1515 = vunpack.c.l.b16 %v1456
      %v1516 = vunpack.c.h.b16 %v1456
      %v1517 = vunpack.c.l.b16 %v1457
      %v1518 = vunpack.c.h.b16 %v1457
      %v1519 = vunpack.c.l.b16 %v1458
      %v1520 = vunpack.c.h.b16 %v1458
      %v1521 = vunpack.c.l.b16 %v1459
      %v1522 = vunpack.c.h.b16 %v1459
      %v1523 = vunpack.c.l.b16 %v1460
      %v1524 = vunpack.c.h.b16 %v1460
      %v1525 = vpack.c.b16 %v1511, %v1509
      %v1526 = vpack.c.b16 %v1512, %v1510
      %v1527 = vpack.c.b16 %v1515, %v1513
      %v1528 = vpack.c.b16 %v1516, %v1514
      %v1529 = vpack.c.b16 %v1519, %v1517
      %v1530 = vpack.c.b16 %v1520, %v1518
      %v1531 = vpack.c.b16 %v1523, %v1521
      %v1532 = vpack.c.b16 %v1524, %v1522
      %v1573 = vunpack.c.l.b16 %v1469
      %v1574 = vunpack.c.h.b16 %v1469
      %v1575 = vunpack.c.l.b16 %v1470
      %v1576 = vunpack.c.h.b16 %v1470
      %v1577 = vunpack.c.l.b16 %v1471
      %v1578 = vunpack.c.h.b16 %v1471
      %v1579 = vunpack.c.l.b16 %v1472
      %v1580 = vunpack.c.h.b16 %v1472
      %v1581 = vunpack.c.l.b16 %v1473
      %v1582 = vunpack.c.h.b16 %v1473
      %v1583 = vunpack.c.l.b16 %v1474
      %v1584 = vunpack.c.h.b16 %v1474
      %v1585 = vunpack.c.l.b16 %v1475
      %v1586 = vunpack.c.h.b16 %v1475
      %v1587 = vunpack.c.l.b16 %v1476
      %v1588 = vunpack.c.h.b16 %v1476
      %v1589 = vunpack.c.l.b16 %v1477
      %v1590 = vunpack.c.h.b16 %v1477
      %v1591 = vunpack.c.l.b16 %v1478
      %v1592 = vunpack.c.h.b16 %v1478
      %v1593 = vunpack.c.l.b16 %v1479
      %v1594 = vunpack.c.h.b16 %v1479
      %v1595 = vunpack.c.l.b16 %v1480
      %v1596 = vunpack.c.h.b16 %v1480
      %v1597 = vunpack.c.l.b16 %v1481
      %v1598 = vunpack.c.h.b16 %v1481
      %v1599 = vunpack.c.l.b16 %v1482
      %v1600 = vunpack.c.h.b16 %v1482
      %v1601 = vunpack.c.l.b16 %v1483
      %v1602 = vunpack.c.h.b16 %v1483
      %v1603 = vunpack.c.l.b16 %v1484
      %v1604 = vunpack.c.h.b16 %v1484
      %v1605 = vunpack.c.l.b16 %v1485
      %v1606 = vunpack.c.h.b16 %v1485
      %v1607 = vunpack.c.l.b16 %v1486
      %v1608 = vunpack.c.h.b16 %v1486
      %v1609 = vunpack.c.l.b16 %v1487
      %v1610 = vunpack.c.h.b16 %v1487
      %v1611 = vunpack.c.l.b16 %v1488
      %v1612 = vunpack.c.h.b16 %v1488
      %v1613 = vunpack.c.l.b16 %v1489
      %v1614 = vunpack.c.h.b16 %v1489
      %v1615 = vunpack.c.l.b16 %v1490
      %v1616 = vunpack.c.h.b16 %v1490
      %v1617 = vunpack.c.l.b16 %v1491
      %v1618 = vunpack.c.h.b16 %v1491
      %v1619 = vunpack.c.l.b16 %v1492
      %v1620 = vunpack.c.h.b16 %v1492
      %v1621 = vunpack.c.l.b16 %v1493
      %v1622 = vunpack.c.h.b16 %v1493
      %v1623 = vunpack.c.l.b16 %v1494
      %v1624 = vunpack.c.h.b16 %v1494
      %v1625 = vunpack.c.l.b16 %v1495
      %v1626 = vunpack.c.h.b16 %v1495
      %v1627 = vunpack.c.l.b16 %v1496
      %v1628 = vunpack.c.h.b16 %v1496
      %v1629 = vunpack.c.l.b16 %v1497
      %v1630 = vunpack.c.h.b16 %v1497
      %v1631 = vunpack.c.l.b16 %v1498
      %v1632 = vunpack.c.h.b16 %v1498
      %v1633 = vunpack.c.l.b16 %v1499
      %v1634 = vunpack.c.h.b16 %v1499
      %v1635 = vunpack.c.l.b16 %v1500
      %v1636 = vunpack.c.h.b16 %v1500
      %v1637 = vpack.c.b16 %v1575, %v1573
      %v1638 = vpack.c.b16 %v1576, %v1574
      %v1639 = vpack.c.b16 %v1579, %v1577
      %v1640 = vpack.c.b16 %v1580, %v1578
      %v1641 = vpack.c.b16 %v1583, %v1581
      %v1642 = vpack.c.b16 %v1584, %v1582
      %v1643 = vpack.c.b16 %v1587, %v1585
      %v1644 = vpack.c.b16 %v1588, %v1586
      %v1645 = vpack.c.b16 %v1591, %v1589
      %v1646 = vpack.c.b16 %v1592, %v1590
      %v1647 = vpack.c.b16 %v1595, %v1593
      %v1648 = vpack.c.b16 %v1596, %v1594
      %v1649 = vpack.c.b16 %v1599, %v1597
      %v1650 = vpack.c.b16 %v1600, %v1598
      %v1651 = vpack.c.b16 %v1603, %v1601
      %v1652 = vpack.c.b16 %v1604, %v1602
      %v1653 = vpack.c.b16 %v1607, %v1605
      %v1654 = vpack.c.b16 %v1608, %v1606
      %v1655 = vpack.c.b16 %v1611, %v1609
      %v1656 = vpack.c.b16 %v1612, %v1610
      %v1657 = vpack.c.b16 %v1615, %v1613
      %v1658 = vpack.c.b16 %v1616, %v1614
      %v1659 = vpack.c.b16 %v1619, %v1617
      %v1660 = vpack.c.b16 %v1620, %v1618
      %v1661 = vpack.c.b16 %v1623, %v1621
      %v1662 = vpack.c.b16 %v1624, %v1622
      %v1663 = vpack.c.b16 %v1627, %v1625
      %v1664 = vpack.c.b16 %v1628, %v1626
      %v1665 = vpack.c.b16 %v1631, %v1629
      %v1666 = vpack.c.b16 %v1632, %v1630
      %v1667 = vpack.c.b16 %v1635, %v1633
      %v1668 = vpack.c.b16 %v1636, %v1634
      %1701 = vmatprep.subr.bf16.mxu0 %v1638
      %1702 = vmatpush1.bf16.msra.mxu0 %v1637
      %1703 = vmatprep.subr.bf16.mxu0 %v1640
      %1704 = vmatpush1.bf16.msra.mxu0 %v1639
      %1705 = vmatprep.subr.bf16.mxu0 %v1642
      %1706 = vmatpush1.bf16.msra.mxu0 %v1641
      %1707 = vmatprep.subr.bf16.mxu0 %v1644
      %1708 = vmatpush1.bf16.msra.mxu0 %v1643
      %1709 = vmatprep.subr.bf16.mxu0 %v1646
      %1710 = vmatpush1.bf16.msra.mxu0 %v1645
      %1711 = vmatprep.subr.bf16.mxu0 %v1648
      %1712 = vmatpush1.bf16.msra.mxu0 %v1647
      %1713 = vmatprep.subr.bf16.mxu0 %v1650
      %1714 = vmatpush1.bf16.msra.mxu0 %v1649
      %1715 = vmatprep.subr.bf16.mxu0 %v1652
      %1716 = vmatpush1.bf16.msra.mxu0 %v1651
      %1717 = vmatprep.subr.bf16.mxu0 %v1654
      %1718 = vmatpush1.bf16.msra.mxu0 %v1653
      %1719 = vmatprep.subr.bf16.mxu0 %v1656
      %1720 = vmatpush1.bf16.msra.mxu0 %v1655
      %1721 = vmatprep.subr.bf16.mxu0 %v1658
      %1722 = vmatpush1.bf16.msra.mxu0 %v1657
      %1723 = vmatprep.subr.bf16.mxu0 %v1660
      %1724 = vmatpush1.bf16.msra.mxu0 %v1659
      %1725 = vmatprep.subr.bf16.mxu0 %v1662
      %1726 = vmatpush1.bf16.msra.mxu0 %v1661
      %1727 = vmatprep.subr.bf16.mxu0 %v1664
      %1728 = vmatpush1.bf16.msra.mxu0 %v1663
      %1729 = vmatprep.subr.bf16.mxu0 %v1666
      %1730 = vmatpush1.bf16.msra.mxu0 %v1665
      %1731 = vmatprep.subr.bf16.mxu0 %v1668
      %1732 = vmatpush1.bf16.msra.mxu0 %v1667
      %1733 = vmatprep.mubr.bf16.mxu0 %v1526
      %1734 = vmatmul.mubr.bf16.gmra.mrb[0].mxu0 %v1525
      %v1735 = vpop.f32.mrb[0].mxu0
      %v1736 = vadd.f32 0.0, %v1735
      %v1737 = vpop.f32.mrb[0].mxu0
      %v1738 = vadd.f32 0.0, %v1737
      %v1739 = vpop.f32.mrb[0].mxu0
      %v1740 = vadd.f32 0.0, %v1739
      %v1741 = vpop.f32.mrb[0].mxu0
      %v1742 = vadd.f32 0.0, %v1741
      %1743 = vmatprep.mubr.bf16.mxu0 %v1528
      %1744 = vmatmul.mubr.bf16.gmra.mrb[0].mxu0 %v1527
      %v1745 = vpop.f32.mrb[0].mxu0
      %v1746 = vadd.f32 0.0, %v1745
      %v1747 = vpop.f32.mrb[0].mxu0
      %v1748 = vadd.f32 0.0, %v1747
      %v1749 = vpop.f32.mrb[0].mxu0
      %v1750 = vadd.f32 0.0, %v1749
      %v1751 = vpop.f32.mrb[0].mxu0
      %v1752 = vadd.f32 0.0, %v1751
      %1753 = vmatprep.mubr.bf16.mxu0 %v1530
      %1754 = vmatmul.mubr.bf16.gmra.mrb[0].mxu0 %v1529
      %v1755 = vpop.f32.mrb[0].mxu0
      %v1756 = vadd.f32 0.0, %v1755
      %v1757 = vpop.f32.mrb[0].mxu0
      %v1758 = vadd.f32 0.0, %v1757
      %v1759 = vpop.f32.mrb[0].mxu0
      %v1760 = vadd.f32 0.0, %v1759
      %v1761 = vpop.f32.mrb[0].mxu0
      %v1762 = vadd.f32 0.0, %v1761
      %1763 = vmatprep.mubr.bf16.mxu0 %v1532
      %1764 = vmatmul.mubr.bf16.gmra.mrb[0].mxu0 %v1531
      %v1765 = vpop.f32.mrb[0].mxu0
      %v1766 = vadd.f32 0.0, %v1765
      %v1767 = vpop.f32.mrb[0].mxu0
      %v1768 = vadd.f32 0.0, %v1767
      %v1769 = vpop.f32.mrb[0].mxu0
      %v1770 = vadd.f32 0.0, %v1769
      %v1771 = vpop.f32.mrb[0].mxu0
      %v1772 = vadd.f32 0.0, %v1771
      %1773 = vdwg.mxu0
      %v1782 = vunpack.c.l.b16 %v1445
      %v1783 = vunpack.c.l.b16 %v1446
      %v1784 = vunpack.c.l.b16 %v1447
      %v1785 = vunpack.c.l.b16 %v1448
      %v1786 = vunpack.c.l.b16 %v1449
      %v1787 = vunpack.c.l.b16 %v1450
      %v1788 = vunpack.c.l.b16 %v1451
      %v1789 = vunpack.c.l.b16 %v1452
      %v1790 = vpack.c.b16 %v1783, %v1782
      %v1791 = vpack.c.b16 %v1785, %v1784
      %v1792 = vpack.c.b16 %v1787, %v1786
      %v1793 = vpack.c.b16 %v1789, %v1788
      %v1802 = vunpack.c.l.b16 %v1461
      %v1803 = vunpack.c.h.b16 %v1461
      %v1804 = vunpack.c.l.b16 %v1462
      %v1805 = vunpack.c.h.b16 %v1462
      %v1806 = vunpack.c.l.b16 %v1463
      %v1807 = vunpack.c.h.b16 %v1463
      %v1808 = vunpack.c.l.b16 %v1464
      %v1809 = vunpack.c.h.b16 %v1464
      %v1810 = vunpack.c.l.b16 %v1465
      %v1811 = vunpack.c.h.b16 %v1465
      %v1812 = vunpack.c.l.b16 %v1466
      %v1813 = vunpack.c.h.b16 %v1466
      %v1814 = vunpack.c.l.b16 %v1467
      %v1815 = vunpack.c.h.b16 %v1467
      %v1816 = vunpack.c.l.b16 %v1468
      %v1817 = vunpack.c.h.b16 %v1468
      %v1818 = vpack.c.b16 %v1804, %v1802
      %v1819 = vpack.c.b16 %v1805, %v1803
      %v1820 = vpack.c.b16 %v1808, %v1806
      %v1821 = vpack.c.b16 %v1809, %v1807
      %v1822 = vpack.c.b16 %v1812, %v1810
      %v1823 = vpack.c.b16 %v1813, %v1811
      %v1824 = vpack.c.b16 %v1816, %v1814
      %v1825 = vpack.c.b16 %v1817, %v1815
      %vm1834 = vcmask 523264
      %v1836 = vsel %vm1834, %v1790, 0
      %v1839 = vsel %vm1834, %v1791, 0
      %v1842 = vsel %vm1834, %v1792, 0
      %v1845 = vsel %vm1834, %v1793, 0
      %1847 = vmatprep.subr.bf16.mxu0 %v1819
      %1848 = vmatpush1.bf16.msra.mxu0 %v1818
      %1849 = vmatprep.subr.bf16.mxu0 %v1821
      %1850 = vmatpush1.bf16.msra.mxu0 %v1820
      %1851 = vmatprep.subr.bf16.mxu0 %v1823
      %1852 = vmatpush1.bf16.msra.mxu0 %v1822
      %1853 = vmatprep.subr.bf16.mxu0 %v1825
      %1854 = vmatpush1.bf16.msra.mxu0 %v1824
      %1855 = vmatprep.subr.bf16.mxu0 0
      %1856 = vmatpush1.bf16.msra.mxu0 0
      %1857 = vmatprep.subr.bf16.mxu0 0
      %1858 = vmatpush1.bf16.msra.mxu0 0
      %1859 = vmatprep.subr.bf16.mxu0 0
      %1860 = vmatpush1.bf16.msra.mxu0 0
      %1861 = vmatprep.subr.bf16.mxu0 0
      %1862 = vmatpush1.bf16.msra.mxu0 0
      %1863 = vmatprep.subr.bf16.mxu0 0
      %1864 = vmatpush1.bf16.msra.mxu0 0
      %1865 = vmatprep.subr.bf16.mxu0 0
      %1866 = vmatpush1.bf16.msra.mxu0 0
      %1867 = vmatprep.subr.bf16.mxu0 0
      %1868 = vmatpush1.bf16.msra.mxu0 0
      %1869 = vmatprep.subr.bf16.mxu0 0
      %1870 = vmatpush1.bf16.msra.mxu0 0
      %1871 = vmatprep.subr.bf16.mxu0 0
      %1872 = vmatpush1.bf16.msra.mxu0 0
      %1873 = vmatprep.subr.bf16.mxu0 0
      %1874 = vmatpush1.bf16.msra.mxu0 0
      %1875 = vmatprep.subr.bf16.mxu0 0
      %1876 = vmatpush1.bf16.msra.mxu0 0
      %1877 = vmatprep.subr.bf16.mxu0 0
      %1878 = vmatpush1.bf16.msra.mxu0 0
      %1879 = vmatprep.mubr.bf16.mxu0 0
      %1880 = vmatmul.mubr.bf16.gmra.mrb[0].mxu0 %v1836
      %v1881 = vpop.f32.mrb[0].mxu0
      %v1882 = vadd.f32 %v1736, %v1881
      %v1883 = vpop.f32.mrb[0].mxu0
      %v1884 = vadd.f32 %v1738, %v1883
      %v1885 = vpop.f32.mrb[0].mxu0
      %v1886 = vadd.f32 %v1740, %v1885
      %v1887 = vpop.f32.mrb[0].mxu0
      %v1888 = vadd.f32 %v1742, %v1887
      %1889 = vmatprep.mubr.bf16.mxu0 0
      %1890 = vmatmul.mubr.bf16.gmra.mrb[0].mxu0 %v1839
      %v1891 = vpop.f32.mrb[0].mxu0
      %v1892 = vadd.f32 %v1746, %v1891
      %v1893 = vpop.f32.mrb[0].mxu0
      %v1894 = vadd.f32 %v1748, %v1893
      %v1895 = vpop.f32.mrb[0].mxu0
      %v1896 = vadd.f32 %v1750, %v1895
      %v1897 = vpop.f32.mrb[0].mxu0
      %v1898 = vadd.f32 %v1752, %v1897
      %1899 = vmatprep.mubr.bf16.mxu0 0
      %1900 = vmatmul.mubr.bf16.gmra.mrb[0].mxu0 %v1842
      %v1901 = vpop.f32.mrb[0].mxu0
      %v1902 = vadd.f32 %v1756, %v1901
      %v1903 = vpop.f32.mrb[0].mxu0
      %v1904 = vadd.f32 %v1758, %v1903
      %v1905 = vpop.f32.mrb[0].mxu0
      %v1906 = vadd.f32 %v1760, %v1905
      %v1907 = vpop.f32.mrb[0].mxu0
      %v1908 = vadd.f32 %v1762, %v1907
      %1909 = vmatprep.mubr.bf16.mxu0 0
      %1910 = vmatmul.mubr.bf16.gmra.mrb[0].mxu0 %v1845
      %v1911 = vpop.f32.mrb[0].mxu0
      %v1912 = vadd.f32 %v1766, %v1911
      %v1913 = vpop.f32.mrb[0].mxu0
      %v1914 = vadd.f32 %v1768, %v1913
      %v1915 = vpop.f32.mrb[0].mxu0
      %v1916 = vadd.f32 %v1770, %v1915
      %v1917 = vpop.f32.mrb[0].mxu0
      %v1918 = vadd.f32 %v1772, %v1917
      %1919 = vdwg.mxu0
      %v1920 = vld [vmem:[#allocation2] sm:$0xf]
      %v1921 = vld [vmem:[#allocation2 + $0x4] sm:$0xf]
      %v1922 = vld [vmem:[#allocation2 + $0x8] sm:$0xf]
      %v1923 = vld [vmem:[#allocation2 + $0xc] sm:$0xf]
      %v1924 = vld [vmem:[#allocation2 + $0x10] sm:$0xf]
      %v1925 = vld [vmem:[#allocation2 + $0x14] sm:$0xf]
      %v1926 = vld [vmem:[#allocation2 + $0x18] sm:$0xf]
      %v1927 = vld [vmem:[#allocation2 + $0x1c] sm:$0xf]
      %v1928 = vld [vmem:[#allocation2 + $0x20] sm:$0x1]
      %v1929 = vld [vmem:[#allocation3] sm:$0xff]
      %v1930 = vld [vmem:[#allocation3 + $0x8] sm:$0xff]
      %v1931 = vld [vmem:[#allocation3 + $0x10] sm:$0xff]
      %v1932 = vld [vmem:[#allocation3 + $0x18] sm:$0xff]
      %v1933 = vld [vmem:[#allocation3 + $0x20] sm:$0xff]
      %v1934 = vld [vmem:[#allocation3 + $0x28] sm:$0xff]
      %v1935 = vld [vmem:[#allocation3 + $0x30] sm:$0xff]
      %v1936 = vld [vmem:[#allocation3 + $0x38] sm:$0xff]
      %v1937 = vld [vmem:[#allocation3 + $0x40] sm:$0x11]
      %s1938 = scalar_lea.vmem %s8, 64
      %v1939 = vld [vmem:[%s1938] sm:$0xff]
      %v1940 = vld [vmem:[%s1938 + $0x8] sm:$0xff]
      %v1941 = vld [vmem:[%s1938 + $0x10] sm:$0xff]
      %v1942 = vld [vmem:[%s1938 + $0x18] sm:$0xff]
      %v1943 = vld [vmem:[%s1938 + $0x20] sm:$0xff]
      %v1944 = vld [vmem:[%s1938 + $0x28] sm:$0xff]
      %v1945 = vld [vmem:[%s1938 + $0x30] sm:$0xff]
      %v1946 = vld [vmem:[%s1938 + $0x38] sm:$0xff]
      %v1956 = vunpack.c.l.b16 %v1920
      %v1957 = vunpack.c.l.b16 %v1921
      %v1958 = vunpack.c.l.b16 %v1922
      %v1959 = vunpack.c.l.b16 %v1923
      %v1960 = vunpack.c.l.b16 %v1924
      %v1961 = vunpack.c.l.b16 %v1925
      %v1962 = vunpack.c.l.b16 %v1926
      %v1963 = vunpack.c.l.b16 %v1927
      %v1964 = vunpack.c.l.b16 %v1928
      %v1965 = vpack.c.b16 %v1957, %v1956
      %v1966 = vpack.c.b16 %v1959, %v1958
      %v1967 = vpack.c.b16 %v1961, %v1960
      %v1968 = vpack.c.b16 %v1963, %v1962
      %v1969 = vpack.c.b16 %v1964, %v1964
      %vm1970 = vsmask.f32 7424
      %v1972 = vshrl.u32 %v1965, 16
      %v1974 = vshll.u32 %v1965, 16
      %v1976 = vrot.slane %v1974, 1
      %v1977 = vor.u32 %v1972, %v1976
      %v1979 = vshll.u32 %v1966, 16
      %v1981 = vrot.slane %v1979, 1
      %v1982 = vsel %vm1970, %v1977, %v1981
      %v1983 = vshrl.u32 %v1966, 16
      %v1985 = vor.u32 %v1983, %v1981
      %v1987 = vshll.u32 %v1967, 16
      %v1989 = vrot.slane %v1987, 1
      %v1990 = vsel %vm1970, %v1985, %v1989
      %v1991 = vshrl.u32 %v1967, 16
      %v1993 = vor.u32 %v1991, %v1989
      %v1995 = vshll.u32 %v1968, 16
      %v1997 = vrot.slane %v1995, 1
      %v1998 = vsel %vm1970, %v1993, %v1997
      %v1999 = vshrl.u32 %v1968, 16
      %v2001 = vor.u32 %v1999, %v1997
      %v2003 = vshll.u32 %v1969, 16
      %v2005 = vrot.slane %v2003, 1
      %v2006 = vsel %vm1970, %v2001, %v2005
      %v2015 = vunpack.c.l.b16 %v1939
      %v2016 = vunpack.c.h.b16 %v1939
      %v2017 = vunpack.c.l.b16 %v1940
      %v2018 = vunpack.c.h.b16 %v1940
      %v2019 = vunpack.c.l.b16 %v1941
      %v2020 = vunpack.c.h.b16 %v1941
      %v2021 = vunpack.c.l.b16 %v1942
      %v2022 = vunpack.c.h.b16 %v1942
      %v2023 = vunpack.c.l.b16 %v1943
      %v2024 = vunpack.c.h.b16 %v1943
      %v2025 = vunpack.c.l.b16 %v1944
      %v2026 = vunpack.c.h.b16 %v1944
      %v2027 = vunpack.c.l.b16 %v1945
      %v2028 = vunpack.c.h.b16 %v1945
      %v2029 = vunpack.c.l.b16 %v1946
      %v2030 = vunpack.c.h.b16 %v1946
      %v2031 = vpack.c.b16 %v2017, %v2015
      %v2032 = vpack.c.b16 %v2018, %v2016
      %v2033 = vpack.c.b16 %v2021, %v2019
      %v2034 = vpack.c.b16 %v2022, %v2020
      %v2035 = vpack.c.b16 %v2025, %v2023
      %v2036 = vpack.c.b16 %v2026, %v2024
      %v2037 = vpack.c.b16 %v2029, %v2027
      %v2038 = vpack.c.b16 %v2030, %v2028
      %v2048 = vsel %vm1834, %v1982, 0
      %v2051 = vsel %vm1834, %v1990, 0
      %v2054 = vsel %vm1834, %v1998, 0
      %v2057 = vsel %vm1834, %v2006, 0
      %2059 = vmatprep.subr.bf16.mxu0 %v2032
      %2060 = vmatpush1.bf16.msra.mxu0 %v2031
      %2061 = vmatprep.subr.bf16.mxu0 %v2034
      %2062 = vmatpush1.bf16.msra.mxu0 %v2033
      %2063 = vmatprep.subr.bf16.mxu0 %v2036
      %2064 = vmatpush1.bf16.msra.mxu0 %v2035
      %2065 = vmatprep.subr.bf16.mxu0 %v2038
      %2066 = vmatpush1.bf16.msra.mxu0 %v2037
      %2067 = vmatprep.subr.bf16.mxu0 0
      %2068 = vmatpush1.bf16.msra.mxu0 0
      %2069 = vmatprep.subr.bf16.mxu0 0
      %2070 = vmatpush1.bf16.msra.mxu0 0
      %2071 = vmatprep.subr.bf16.mxu0 0
      %2072 = vmatpush1.bf16.msra.mxu0 0
      %2073 = vmatprep.subr.bf16.mxu0 0
      %2074 = vmatpush1.bf16.msra.mxu0 0
      %2075 = vmatprep.subr.bf16.mxu0 0
      %2076 = vmatpush1.bf16.msra.mxu0 0
      %2077 = vmatprep.subr.bf16.mxu0 0
      %2078 = vmatpush1.bf16.msra.mxu0 0
      %2079 = vmatprep.subr.bf16.mxu0 0
      %2080 = vmatpush1.bf16.msra.mxu0 0
      %2081 = vmatprep.subr.bf16.mxu0 0
      %2082 = vmatpush1.bf16.msra.mxu0 0
      %2083 = vmatprep.subr.bf16.mxu0 0
      %2084 = vmatpush1.bf16.msra.mxu0 0
      %2085 = vmatprep.subr.bf16.mxu0 0
      %2086 = vmatpush1.bf16.msra.mxu0 0
      %2087 = vmatprep.subr.bf16.mxu0 0
      %2088 = vmatpush1.bf16.msra.mxu0 0
      %2089 = vmatprep.subr.bf16.mxu0 0
      %2090 = vmatpush1.bf16.msra.mxu0 0
      %2091 = vmatprep.mubr.bf16.mxu0 0
      %2092 = vmatmul.mubr.bf16.gmra.mrb[0].mxu0 %v2048
      %v2093 = vpop.f32.mrb[0].mxu0
      %v2094 = vadd.f32 0.0, %v2093
      %v2095 = vpop.f32.mrb[0].mxu0
      %v2096 = vadd.f32 0.0, %v2095
      %v2097 = vpop.f32.mrb[0].mxu0
      %v2098 = vadd.f32 0.0, %v2097
      %v2099 = vpop.f32.mrb[0].mxu0
      %v2100 = vadd.f32 0.0, %v2099
      %2101 = vmatprep.mubr.bf16.mxu0 0
      %2102 = vmatmul.mubr.bf16.gmra.mrb[0].mxu0 %v2051
      %v2103 = vpop.f32.mrb[0].mxu0
      %v2104 = vadd.f32 0.0, %v2103
      %v2105 = vpop.f32.mrb[0].mxu0
      %v2106 = vadd.f32 0.0, %v2105
      %v2107 = vpop.f32.mrb[0].mxu0
      %v2108 = vadd.f32 0.0, %v2107
      %v2109 = vpop.f32.mrb[0].mxu0
      %v2110 = vadd.f32 0.0, %v2109
      %2111 = vmatprep.mubr.bf16.mxu0 0
      %2112 = vmatmul.mubr.bf16.gmra.mrb[0].mxu0 %v2054
      %v2113 = vpop.f32.mrb[0].mxu0
      %v2114 = vadd.f32 0.0, %v2113
      %v2115 = vpop.f32.mrb[0].mxu0
      %v2116 = vadd.f32 0.0, %v2115
      %v2117 = vpop.f32.mrb[0].mxu0
      %v2118 = vadd.f32 0.0, %v2117
      %v2119 = vpop.f32.mrb[0].mxu0
      %v2120 = vadd.f32 0.0, %v2119
      %2121 = vmatprep.mubr.bf16.mxu0 0
      %2122 = vmatmul.mubr.bf16.gmra.mrb[0].mxu0 %v2057
      %v2123 = vpop.f32.mrb[0].mxu0
      %v2124 = vadd.f32 0.0, %v2123
      %v2125 = vpop.f32.mrb[0].mxu0
      %v2126 = vadd.f32 0.0, %v2125
      %v2127 = vpop.f32.mrb[0].mxu0
      %v2128 = vadd.f32 0.0, %v2127
      %v2129 = vpop.f32.mrb[0].mxu0
      %v2130 = vadd.f32 0.0, %v2129
      %2131 = vdwg.mxu0
      %v2132 = vadd.f32 %v1882, %v2094
      %v2133 = vadd.f32 %v1884, %v2096
      %v2134 = vadd.f32 %v1886, %v2098
      %v2135 = vadd.f32 %v1888, %v2100
      %v2136 = vadd.f32 %v1892, %v2104
      %v2137 = vadd.f32 %v1894, %v2106
      %v2138 = vadd.f32 %v1896, %v2108
      %v2139 = vadd.f32 %v1898, %v2110
      %v2140 = vadd.f32 %v1902, %v2114
      %v2141 = vadd.f32 %v1904, %v2116
      %v2142 = vadd.f32 %v1906, %v2118
      %v2143 = vadd.f32 %v1908, %v2120
      %v2144 = vadd.f32 %v1912, %v2124
      %v2145 = vadd.f32 %v1914, %v2126
      %v2146 = vadd.f32 %v1916, %v2128
      %v2147 = vadd.f32 %v1918, %v2130
      %s2148 = scalar_lea.vmem %s9, 256
      %v2149 = vld [vmem:[%s2148] sm:$0xff]
      %v2150 = vld [vmem:[%s2148 + $0x8] sm:$0xff]
      %v2151 = vld [vmem:[%s2148 + $0x10] sm:$0xff]
      %v2152 = vld [vmem:[%s2148 + $0x18] sm:$0xff]
      %v2153 = vld [vmem:[%s2148 + $0x20] sm:$0xff]
      %v2154 = vld [vmem:[%s2148 + $0x28] sm:$0xff]
      %v2155 = vld [vmem:[%s2148 + $0x30] sm:$0xff]
      %v2156 = vld [vmem:[%s2148 + $0x38] sm:$0xff]
      %v2157 = vld [vmem:[%s2148 + $0x40] sm:$0xff]
      %v2158 = vld [vmem:[%s2148 + $0x48] sm:$0xff]
      %v2159 = vld [vmem:[%s2148 + $0x50] sm:$0xff]
      %v2160 = vld [vmem:[%s2148 + $0x58] sm:$0xff]
      %v2161 = vld [vmem:[%s2148 + $0x60] sm:$0xff]
      %v2162 = vld [vmem:[%s2148 + $0x68] sm:$0xff]
      %v2163 = vld [vmem:[%s2148 + $0x70] sm:$0xff]
      %v2164 = vld [vmem:[%s2148 + $0x78] sm:$0xff]
      %v2165 = vld [vmem:[%s2148 + $0x80] sm:$0xff]
      %v2166 = vld [vmem:[%s2148 + $0x88] sm:$0xff]
      %v2167 = vld [vmem:[%s2148 + $0x90] sm:$0xff]
      %v2168 = vld [vmem:[%s2148 + $0x98] sm:$0xff]
      %v2169 = vld [vmem:[%s2148 + $0xa0] sm:$0xff]
      %v2170 = vld [vmem:[%s2148 + $0xa8] sm:$0xff]
      %v2171 = vld [vmem:[%s2148 + $0xb0] sm:$0xff]
      %v2172 = vld [vmem:[%s2148 + $0xb8] sm:$0xff]
      %v2173 = vld [vmem:[%s2148 + $0xc0] sm:$0xff]
      %v2174 = vld [vmem:[%s2148 + $0xc8] sm:$0xff]
      %v2175 = vld [vmem:[%s2148 + $0xd0] sm:$0xff]
      %v2176 = vld [vmem:[%s2148 + $0xd8] sm:$0xff]
      %v2177 = vld [vmem:[%s2148 + $0xe0] sm:$0xff]
      %v2178 = vld [vmem:[%s2148 + $0xe8] sm:$0xff]
      %v2179 = vld [vmem:[%s2148 + $0xf0] sm:$0xff]
      %v2180 = vld [vmem:[%s2148 + $0xf8] sm:$0xff]
      %v2190 = vunpack.c.l.b16 %v1929
      %v2191 = vunpack.c.h.b16 %v1929
      %v2192 = vunpack.c.l.b16 %v1930
      %v2193 = vunpack.c.h.b16 %v1930
      %v2194 = vunpack.c.l.b16 %v1931
      %v2195 = vunpack.c.h.b16 %v1931
      %v2196 = vunpack.c.l.b16 %v1932
      %v2197 = vunpack.c.h.b16 %v1932
      %v2198 = vunpack.c.l.b16 %v1933
      %v2199 = vunpack.c.h.b16 %v1933
      %v2200 = vunpack.c.l.b16 %v1934
      %v2201 = vunpack.c.h.b16 %v1934
      %v2202 = vunpack.c.l.b16 %v1935
      %v2203 = vunpack.c.h.b16 %v1935
      %v2204 = vunpack.c.l.b16 %v1936
      %v2205 = vunpack.c.h.b16 %v1936
      %v2206 = vunpack.c.l.b16 %v1937
      %v2207 = vunpack.c.h.b16 %v1937
      %v2208 = vpack.c.b16 %v2192, %v2190
      %v2209 = vpack.c.b16 %v2193, %v2191
      %v2210 = vpack.c.b16 %v2196, %v2194
      %v2211 = vpack.c.b16 %v2197, %v2195
      %v2212 = vpack.c.b16 %v2200, %v2198
      %v2213 = vpack.c.b16 %v2201, %v2199
      %v2214 = vpack.c.b16 %v2204, %v2202
      %v2215 = vpack.c.b16 %v2205, %v2203
      %v2216 = vpack.c.b16 %v2206, %v2206
      %v2217 = vpack.c.b16 %v2207, %v2207
      %v2219 = vshrl.u32 %v2208, 16
      %v2221 = vshll.u32 %v2208, 16
      %v2223 = vrot.slane %v2221, 1
      %v2224 = vor.u32 %v2219, %v2223
      %v2226 = vshll.u32 %v2210, 16
      %v2228 = vrot.slane %v2226, 1
      %v2229 = vsel %vm1970, %v2224, %v2228
      %v2231 = vshrl.u32 %v2209, 16
      %v2233 = vshll.u32 %v2209, 16
      %v2235 = vrot.slane %v2233, 1
      %v2236 = vor.u32 %v2231, %v2235
      %v2238 = vshll.u32 %v2211, 16
      %v2240 = vrot.slane %v2238, 1
      %v2241 = vsel %vm1970, %v2236, %v2240
      %v2242 = vshrl.u32 %v2210, 16
      %v2244 = vor.u32 %v2242, %v2228
      %v2246 = vshll.u32 %v2212, 16
      %v2248 = vrot.slane %v2246, 1
      %v2249 = vsel %vm1970, %v2244, %v2248
      %v2250 = vshrl.u32 %v2211, 16
      %v2252 = vor.u32 %v2250, %v2240
      %v2254 = vshll.u32 %v2213, 16
      %v2256 = vrot.slane %v2254, 1
      %v2257 = vsel %vm1970, %v2252, %v2256
      %v2258 = vshrl.u32 %v2212, 16
      %v2260 = vor.u32 %v2258, %v2248
      %v2262 = vshll.u32 %v2214, 16
      %v2264 = vrot.slane %v2262, 1
      %v2265 = vsel %vm1970, %v2260, %v2264
      %v2266 = vshrl.u32 %v2213, 16
      %v2268 = vor.u32 %v2266, %v2256
      %v2270 = vshll.u32 %v2215, 16
      %v2272 = vrot.slane %v2270, 1
      %v2273 = vsel %vm1970, %v2268, %v2272
      %v2274 = vshrl.u32 %v2214, 16
      %v2276 = vor.u32 %v2274, %v2264
      %v2278 = vshll.u32 %v2216, 16
      %v2280 = vrot.slane %v2278, 1
      %v2281 = vsel %vm1970, %v2276, %v2280
      %v2282 = vshrl.u32 %v2215, 16
      %v2284 = vor.u32 %v2282, %v2272
      %v2286 = vshll.u32 %v2217, 16
      %v2288 = vrot.slane %v2286, 1
      %v2289 = vsel %vm1970, %v2284, %v2288
      %v2330 = vunpack.c.l.b16 %v2149
      %v2331 = vunpack.c.h.b16 %v2149
      %v2332 = vunpack.c.l.b16 %v2150
      %v2333 = vunpack.c.h.b16 %v2150
      %v2334 = vunpack.c.l.b16 %v2151
      %v2335 = vunpack.c.h.b16 %v2151
      %v2336 = vunpack.c.l.b16 %v2152
      %v2337 = vunpack.c.h.b16 %v2152
      %v2338 = vunpack.c.l.b16 %v2153
      %v2339 = vunpack.c.h.b16 %v2153
      %v2340 = vunpack.c.l.b16 %v2154
      %v2341 = vunpack.c.h.b16 %v2154
      %v2342 = vunpack.c.l.b16 %v2155
      %v2343 = vunpack.c.h.b16 %v2155
      %v2344 = vunpack.c.l.b16 %v2156
      %v2345 = vunpack.c.h.b16 %v2156
      %v2346 = vunpack.c.l.b16 %v2157
      %v2347 = vunpack.c.h.b16 %v2157
      %v2348 = vunpack.c.l.b16 %v2158
      %v2349 = vunpack.c.h.b16 %v2158
      %v2350 = vunpack.c.l.b16 %v2159
      %v2351 = vunpack.c.h.b16 %v2159
      %v2352 = vunpack.c.l.b16 %v2160
      %v2353 = vunpack.c.h.b16 %v2160
      %v2354 = vunpack.c.l.b16 %v2161
      %v2355 = vunpack.c.h.b16 %v2161
      %v2356 = vunpack.c.l.b16 %v2162
      %v2357 = vunpack.c.h.b16 %v2162
      %v2358 = vunpack.c.l.b16 %v2163
      %v2359 = vunpack.c.h.b16 %v2163
      %v2360 = vunpack.c.l.b16 %v2164
      %v2361 = vunpack.c.h.b16 %v2164
      %v2362 = vunpack.c.l.b16 %v2165
      %v2363 = vunpack.c.h.b16 %v2165
      %v2364 = vunpack.c.l.b16 %v2166
      %v2365 = vunpack.c.h.b16 %v2166
      %v2366 = vunpack.c.l.b16 %v2167
      %v2367 = vunpack.c.h.b16 %v2167
      %v2368 = vunpack.c.l.b16 %v2168
      %v2369 = vunpack.c.h.b16 %v2168
      %v2370 = vunpack.c.l.b16 %v2169
      %v2371 = vunpack.c.h.b16 %v2169
      %v2372 = vunpack.c.l.b16 %v2170
      %v2373 = vunpack.c.h.b16 %v2170
      %v2374 = vunpack.c.l.b16 %v2171
      %v2375 = vunpack.c.h.b16 %v2171
      %v2376 = vunpack.c.l.b16 %v2172
      %v2377 = vunpack.c.h.b16 %v2172
      %v2378 = vunpack.c.l.b16 %v2173
      %v2379 = vunpack.c.h.b16 %v2173
      %v2380 = vunpack.c.l.b16 %v2174
      %v2381 = vunpack.c.h.b16 %v2174
      %v2382 = vunpack.c.l.b16 %v2175
      %v2383 = vunpack.c.h.b16 %v2175
      %v2384 = vunpack.c.l.b16 %v2176
      %v2385 = vunpack.c.h.b16 %v2176
      %v2386 = vunpack.c.l.b16 %v2177
      %v2387 = vunpack.c.h.b16 %v2177
      %v2388 = vunpack.c.l.b16 %v2178
      %v2389 = vunpack.c.h.b16 %v2178
      %v2390 = vunpack.c.l.b16 %v2179
      %v2391 = vunpack.c.h.b16 %v2179
      %v2392 = vunpack.c.l.b16 %v2180
      %v2393 = vunpack.c.h.b16 %v2180
      %v2394 = vpack.c.b16 %v2332, %v2330
      %v2395 = vpack.c.b16 %v2333, %v2331
      %v2396 = vpack.c.b16 %v2336, %v2334
      %v2397 = vpack.c.b16 %v2337, %v2335
      %v2398 = vpack.c.b16 %v2340, %v2338
      %v2399 = vpack.c.b16 %v2341, %v2339
      %v2400 = vpack.c.b16 %v2344, %v2342
      %v2401 = vpack.c.b16 %v2345, %v2343
      %v2402 = vpack.c.b16 %v2348, %v2346
      %v2403 = vpack.c.b16 %v2349, %v2347
      %v2404 = vpack.c.b16 %v2352, %v2350
      %v2405 = vpack.c.b16 %v2353, %v2351
      %v2406 = vpack.c.b16 %v2356, %v2354
      %v2407 = vpack.c.b16 %v2357, %v2355
      %v2408 = vpack.c.b16 %v2360, %v2358
      %v2409 = vpack.c.b16 %v2361, %v2359
      %v2410 = vpack.c.b16 %v2364, %v2362
      %v2411 = vpack.c.b16 %v2365, %v2363
      %v2412 = vpack.c.b16 %v2368, %v2366
      %v2413 = vpack.c.b16 %v2369, %v2367
      %v2414 = vpack.c.b16 %v2372, %v2370
      %v2415 = vpack.c.b16 %v2373, %v2371
      %v2416 = vpack.c.b16 %v2376, %v2374
      %v2417 = vpack.c.b16 %v2377, %v2375
      %v2418 = vpack.c.b16 %v2380, %v2378
      %v2419 = vpack.c.b16 %v2381, %v2379
      %v2420 = vpack.c.b16 %v2384, %v2382
      %v2421 = vpack.c.b16 %v2385, %v2383
      %v2422 = vpack.c.b16 %v2388, %v2386
      %v2423 = vpack.c.b16 %v2389, %v2387
      %v2424 = vpack.c.b16 %v2392, %v2390
      %v2425 = vpack.c.b16 %v2393, %v2391
      %2458 = vmatprep.subr.bf16.mxu0 %v2395
      %2459 = vmatpush1.bf16.msra.mxu0 %v2394
      %2460 = vmatprep.subr.bf16.mxu0 %v2397
      %2461 = vmatpush1.bf16.msra.mxu0 %v2396
      %2462 = vmatprep.subr.bf16.mxu0 %v2399
      %2463 = vmatpush1.bf16.msra.mxu0 %v2398
      %2464 = vmatprep.subr.bf16.mxu0 %v2401
      %2465 = vmatpush1.bf16.msra.mxu0 %v2400
      %2466 = vmatprep.subr.bf16.mxu0 %v2403
      %2467 = vmatpush1.bf16.msra.mxu0 %v2402
      %2468 = vmatprep.subr.bf16.mxu0 %v2405
      %2469 = vmatpush1.bf16.msra.mxu0 %v2404
      %2470 = vmatprep.subr.bf16.mxu0 %v2407
      %2471 = vmatpush1.bf16.msra.mxu0 %v2406
      %2472 = vmatprep.subr.bf16.mxu0 %v2409
      %2473 = vmatpush1.bf16.msra.mxu0 %v2408
      %2474 = vmatprep.subr.bf16.mxu0 %v2411
      %2475 = vmatpush1.bf16.msra.mxu0 %v2410
      %2476 = vmatprep.subr.bf16.mxu0 %v2413
      %2477 = vmatpush1.bf16.msra.mxu0 %v2412
      %2478 = vmatprep.subr.bf16.mxu0 %v2415
      %2479 = vmatpush1.bf16.msra.mxu0 %v2414
      %2480 = vmatprep.subr.bf16.mxu0 %v2417
      %2481 = vmatpush1.bf16.msra.mxu0 %v2416
      %2482 = vmatprep.subr.bf16.mxu0 %v2419
      %2483 = vmatpush1.bf16.msra.mxu0 %v2418
      %2484 = vmatprep.subr.bf16.mxu0 %v2421
      %2485 = vmatpush1.bf16.msra.mxu0 %v2420
      %2486 = vmatprep.subr.bf16.mxu0 %v2423
      %2487 = vmatpush1.bf16.msra.mxu0 %v2422
      %2488 = vmatprep.subr.bf16.mxu0 %v2425
      %2489 = vmatpush1.bf16.msra.mxu0 %v2424
      %2490 = vmatprep.mubr.bf16.mxu0 %v2241
      %2491 = vmatmul.mubr.bf16.gmra.mrb[0].mxu0 %v2229
      %v2492 = vpop.f32.mrb[0].mxu0
      %v2493 = vadd.f32 0.0, %v2492
      %v2494 = vpop.f32.mrb[0].mxu0
      %v2495 = vadd.f32 0.0, %v2494
      %v2496 = vpop.f32.mrb[0].mxu0
      %v2497 = vadd.f32 0.0, %v2496
      %v2498 = vpop.f32.mrb[0].mxu0
      %v2499 = vadd.f32 0.0, %v2498
      %2500 = vmatprep.mubr.bf16.mxu0 %v2257
      %2501 = vmatmul.mubr.bf16.gmra.mrb[0].mxu0 %v2249
      %v2502 = vpop.f32.mrb[0].mxu0
      %v2503 = vadd.f32 0.0, %v2502
      %v2504 = vpop.f32.mrb[0].mxu0
      %v2505 = vadd.f32 0.0, %v2504
      %v2506 = vpop.f32.mrb[0].mxu0
      %v2507 = vadd.f32 0.0, %v2506
      %v2508 = vpop.f32.mrb[0].mxu0
      %v2509 = vadd.f32 0.0, %v2508
      %2510 = vmatprep.mubr.bf16.mxu0 %v2273
      %2511 = vmatmul.mubr.bf16.gmra.mrb[0].mxu0 %v2265
      %v2512 = vpop.f32.mrb[0].mxu0
      %v2513 = vadd.f32 0.0, %v2512
      %v2514 = vpop.f32.mrb[0].mxu0
      %v2515 = vadd.f32 0.0, %v2514
      %v2516 = vpop.f32.mrb[0].mxu0
      %v2517 = vadd.f32 0.0, %v2516
      %v2518 = vpop.f32.mrb[0].mxu0
      %v2519 = vadd.f32 0.0, %v2518
      %2520 = vmatprep.mubr.bf16.mxu0 %v2289
      %2521 = vmatmul.mubr.bf16.gmra.mrb[0].mxu0 %v2281
      %v2522 = vpop.f32.mrb[0].mxu0
      %v2523 = vadd.f32 0.0, %v2522
      %v2524 = vpop.f32.mrb[0].mxu0
      %v2525 = vadd.f32 0.0, %v2524
      %v2526 = vpop.f32.mrb[0].mxu0
      %v2527 = vadd.f32 0.0, %v2526
      %v2528 = vpop.f32.mrb[0].mxu0
      %v2529 = vadd.f32 0.0, %v2528
      %2530 = vdwg.mxu0
      %v2531 = vadd.f32 %v2132, %v2493
      %v2532 = vadd.f32 %v2133, %v2495
      %v2533 = vadd.f32 %v2134, %v2497
      %v2534 = vadd.f32 %v2135, %v2499
      %v2535 = vadd.f32 %v2136, %v2503
      %v2536 = vadd.f32 %v2137, %v2505
      %v2537 = vadd.f32 %v2138, %v2507
      %v2538 = vadd.f32 %v2139, %v2509
      %v2539 = vadd.f32 %v2140, %v2513
      %v2540 = vadd.f32 %v2141, %v2515
      %v2541 = vadd.f32 %v2142, %v2517
      %v2542 = vadd.f32 %v2143, %v2519
      %v2543 = vadd.f32 %v2144, %v2523
      %v2544 = vadd.f32 %v2145, %v2525
      %v2545 = vadd.f32 %v2146, %v2527
      %v2546 = vadd.f32 %v2147, %v2529
      %v2547 = vld [vmem:[#allocation2] sm:$0xe]
      %v2548 = vld [vmem:[#allocation3] sm:$0xee]
      %v2554 = vunpack.c.l.s4 839922192
      %v2555 = vunpack.c.0.s8 %v2554
      %v2556 = vlaneseq
      %v2557 = vshrl.u32 %v2556, 7
      %v2558 = vsub.s32 %v2555, %v2557
      %v2559 = vrot.slane %v1357, %v2558
      %v2561 = vunpack.c.l.s4 1985246804
      %v2562 = vunpack.c.0.s8 %v2561
      %v2563 = vlaneseq
      %v2564 = vshrl.u32 %v2563, 7
      %v2565 = vsub.s32 %v2562, %v2564
      %v2566 = vrot.slane %v1357, %v2565
      %v2568 = vunpack.c.l.s4 839922192
      %v2569 = vunpack.c.0.s8 %v2568
      %v2570 = vlaneseq
      %v2571 = vshrl.u32 %v2570, 7
      %v2572 = vsub.s32 %v2569, %v2571
      %v2573 = vrot.slane %v1358, %v2572
      %v2575 = vunpack.c.l.s4 1985246804
      %v2576 = vunpack.c.0.s8 %v2575
      %v2577 = vlaneseq
      %v2578 = vshrl.u32 %v2577, 7
      %v2579 = vsub.s32 %v2576, %v2578
      %v2580 = vrot.slane %v1358, %v2579
      %v2582 = vunpack.c.l.s4 839922192
      %v2583 = vunpack.c.0.s8 %v2582
      %v2584 = vlaneseq
      %v2585 = vshrl.u32 %v2584, 7
      %v2586 = vsub.s32 %v2583, %v2585
      %v2587 = vrot.slane %v1359, %v2586
      %v2589 = vunpack.c.l.s4 1985246804
      %v2590 = vunpack.c.0.s8 %v2589
      %v2591 = vlaneseq
      %v2592 = vshrl.u32 %v2591, 7
      %v2593 = vsub.s32 %v2590, %v2592
      %v2594 = vrot.slane %v1359, %v2593
      %v2596 = vunpack.c.l.s4 839922192
      %v2597 = vunpack.c.0.s8 %v2596
      %v2598 = vlaneseq
      %v2599 = vshrl.u32 %v2598, 7
      %v2600 = vsub.s32 %v2597, %v2599
      %v2601 = vrot.slane %v1360, %v2600
      %v2603 = vunpack.c.l.s4 1985246804
      %v2604 = vunpack.c.0.s8 %v2603
      %v2605 = vlaneseq
      %v2606 = vshrl.u32 %v2605, 7
      %v2607 = vsub.s32 %v2604, %v2606
      %v2608 = vrot.slane %v1360, %v2607
      %vm2609 = vmor %vm776, %vm778
      %v2610 = vrot.slane %v2559, 7
      %v2611 = vrot.slane %v2610, 4
      %v2612 = vrot.slane %v2566, 7
      %v2613 = vsel %vm2609, %v2611, %v2612
      %v2614 = vrot.slane %v2612, 4
      %v2615 = vrot.slane %v2573, 7
      %v2616 = vsel %vm2609, %v2614, %v2615
      %v2617 = vrot.slane %v2615, 4
      %v2618 = vrot.slane %v2580, 7
      %v2619 = vsel %vm2609, %v2617, %v2618
      %v2620 = vrot.slane %v2618, 4
      %v2621 = vrot.slane %v2587, 7
      %v2622 = vsel %vm2609, %v2620, %v2621
      %v2623 = vrot.slane %v2621, 4
      %v2624 = vrot.slane %v2594, 7
      %v2625 = vsel %vm2609, %v2623, %v2624
      %v2626 = vrot.slane %v2624, 4
      %v2627 = vrot.slane %v2601, 7
      %v2628 = vsel %vm2609, %v2626, %v2627
      %v2629 = vrot.slane %v2627, 4
      %v2630 = vrot.slane %v2608, 7
      %v2631 = vsel %vm2609, %v2629, %v2630
      %v2632 = vrot.slane %v2630, 4
      %v2642 = vmul.bf16 %v2547, %v2610
      %v2643 = vmul.bf16 %v1921, %v2613
      %v2644 = vmul.bf16 %v1922, %v2616
      %v2645 = vmul.bf16 %v1923, %v2619
      %v2646 = vmul.bf16 %v1924, %v2622
      %v2647 = vmul.bf16 %v1925, %v2625
      %v2648 = vmul.bf16 %v1926, %v2628
      %v2649 = vmul.bf16 %v1927, %v2631
      %v2650 = vmul.bf16 %v1928, %v2632
      %v2651 = vmul.bf16 %v2548, %v2610
      %v2652 = vmul.bf16 %v1930, %v2613
      %v2653 = vmul.bf16 %v1931, %v2616
      %v2654 = vmul.bf16 %v1932, %v2619
      %v2655 = vmul.bf16 %v1933, %v2622
      %v2656 = vmul.bf16 %v1934, %v2625
      %v2657 = vmul.bf16 %v1935, %v2628
      %v2658 = vmul.bf16 %v1936, %v2631
      %v2659 = vmul.bf16 %v1937, %v2632
      %s2660 = scalar_lea.vmem %s8, 128
      %v2661 = vld [vmem:[%s2660] sm:$0xff]
      %v2662 = vld [vmem:[%s2660 + $0x8] sm:$0xff]
      %v2663 = vld [vmem:[%s2660 + $0x10] sm:$0xff]
      %v2664 = vld [vmem:[%s2660 + $0x18] sm:$0xff]
      %v2665 = vld [vmem:[%s2660 + $0x20] sm:$0xff]
      %v2666 = vld [vmem:[%s2660 + $0x28] sm:$0xff]
      %v2667 = vld [vmem:[%s2660 + $0x30] sm:$0xff]
      %v2668 = vld [vmem:[%s2660 + $0x38] sm:$0xff]
      %v2678 = vunpack.c.l.b16 %v2642
      %v2679 = vunpack.c.l.b16 %v2643
      %v2680 = vunpack.c.l.b16 %v2644
      %v2681 = vunpack.c.l.b16 %v2645
      %v2682 = vunpack.c.l.b16 %v2646
      %v2683 = vunpack.c.l.b16 %v2647
      %v2684 = vunpack.c.l.b16 %v2648
      %v2685 = vunpack.c.l.b16 %v2649
      %v2686 = vunpack.c.l.b16 %v2650
      %v2687 = vpack.c.b16 %v2679, %v2678
      %v2688 = vpack.c.b16 %v2681, %v2680
      %v2689 = vpack.c.b16 %v2683, %v2682
      %v2690 = vpack.c.b16 %v2685, %v2684
      %v2691 = vpack.c.b16 %v2686, %v2686
      %vm2692 = vcmask 1046528
      %v2693 = vrot.slane %v2687, 1
      %v2694 = vrot.slane %v2688, 1
      %v2695 = vsel %vm2692, %v2693, %v2694
      %v2696 = vrot.slane %v2689, 1
      %v2697 = vsel %vm2692, %v2694, %v2696
      %v2698 = vrot.slane %v2690, 1
      %v2699 = vsel %vm2692, %v2696, %v2698
      %v2700 = vrot.slane %v2691, 1
      %v2701 = vsel %vm2692, %v2698, %v2700
      %v2710 = vunpack.c.l.b16 %v2661
      %v2711 = vunpack.c.h.b16 %v2661
      %v2712 = vunpack.c.l.b16 %v2662
      %v2713 = vunpack.c.h.b16 %v2662
      %v2714 = vunpack.c.l.b16 %v2663
      %v2715 = vunpack.c.h.b16 %v2663
      %v2716 = vunpack.c.l.b16 %v2664
      %v2717 = vunpack.c.h.b16 %v2664
      %v2718 = vunpack.c.l.b16 %v2665
      %v2719 = vunpack.c.h.b16 %v2665
      %v2720 = vunpack.c.l.b16 %v2666
      %v2721 = vunpack.c.h.b16 %v2666
      %v2722 = vunpack.c.l.b16 %v2667
      %v2723 = vunpack.c.h.b16 %v2667
      %v2724 = vunpack.c.l.b16 %v2668
      %v2725 = vunpack.c.h.b16 %v2668
      %v2726 = vpack.c.b16 %v2712, %v2710
      %v2727 = vpack.c.b16 %v2713, %v2711
      %v2728 = vpack.c.b16 %v2716, %v2714
      %v2729 = vpack.c.b16 %v2717, %v2715
      %v2730 = vpack.c.b16 %v2720, %v2718
      %v2731 = vpack.c.b16 %v2721, %v2719
      %v2732 = vpack.c.b16 %v2724, %v2722
      %v2733 = vpack.c.b16 %v2725, %v2723
      %v2743 = vsel %vm1834, %v2695, 0
      %v2746 = vsel %vm1834, %v2697, 0
      %v2749 = vsel %vm1834, %v2699, 0
      %v2752 = vsel %vm1834, %v2701, 0
      %2754 = vmatprep.subr.bf16.mxu0 %v2727
      %2755 = vmatpush1.bf16.msra.mxu0 %v2726
      %2756 = vmatprep.subr.bf16.mxu0 %v2729
      %2757 = vmatpush1.bf16.msra.mxu0 %v2728
      %2758 = vmatprep.subr.bf16.mxu0 %v2731
      %2759 = vmatpush1.bf16.msra.mxu0 %v2730
      %2760 = vmatprep.subr.bf16.mxu0 %v2733
      %2761 = vmatpush1.bf16.msra.mxu0 %v2732
      %2762 = vmatprep.subr.bf16.mxu0 0
      %2763 = vmatpush1.bf16.msra.mxu0 0
      %2764 = vmatprep.subr.bf16.mxu0 0
      %2765 = vmatpush1.bf16.msra.mxu0 0
      %2766 = vmatprep.subr.bf16.mxu0 0
      %2767 = vmatpush1.bf16.msra.mxu0 0
      %2768 = vmatprep.subr.bf16.mxu0 0
      %2769 = vmatpush1.bf16.msra.mxu0 0
      %2770 = vmatprep.subr.bf16.mxu0 0
      %2771 = vmatpush1.bf16.msra.mxu0 0
      %2772 = vmatprep.subr.bf16.mxu0 0
      %2773 = vmatpush1.bf16.msra.mxu0 0
      %2774 = vmatprep.subr.bf16.mxu0 0
      %2775 = vmatpush1.bf16.msra.mxu0 0
      %2776 = vmatprep.subr.bf16.mxu0 0
      %2777 = vmatpush1.bf16.msra.mxu0 0
      %2778 = vmatprep.subr.bf16.mxu0 0
      %2779 = vmatpush1.bf16.msra.mxu0 0
      %2780 = vmatprep.subr.bf16.mxu0 0
      %2781 = vmatpush1.bf16.msra.mxu0 0
      %2782 = vmatprep.subr.bf16.mxu0 0
      %2783 = vmatpush1.bf16.msra.mxu0 0
      %2784 = vmatprep.subr.bf16.mxu0 0
      %2785 = vmatpush1.bf16.msra.mxu0 0
      %2786 = vmatprep.mubr.bf16.mxu0 0
      %2787 = vmatmul.mubr.bf16.gmra.mrb[0].mxu0 %v2743
      %v2788 = vpop.f32.mrb[0].mxu0
      %v2789 = vadd.f32 0.0, %v2788
      %v2790 = vpop.f32.mrb[0].mxu0
      %v2791 = vadd.f32 0.0, %v2790
      %v2792 = vpop.f32.mrb[0].mxu0
      %v2793 = vadd.f32 0.0, %v2792
      %v2794 = vpop.f32.mrb[0].mxu0
      %v2795 = vadd.f32 0.0, %v2794
      %2796 = vmatprep.mubr.bf16.mxu0 0
      %2797 = vmatmul.mubr.bf16.gmra.mrb[0].mxu0 %v2746
      %v2798 = vpop.f32.mrb[0].mxu0
      %v2799 = vadd.f32 0.0, %v2798
      %v2800 = vpop.f32.mrb[0].mxu0
      %v2801 = vadd.f32 0.0, %v2800
      %v2802 = vpop.f32.mrb[0].mxu0
      %v2803 = vadd.f32 0.0, %v2802
      %v2804 = vpop.f32.mrb[0].mxu0
      %v2805 = vadd.f32 0.0, %v2804
      %2806 = vmatprep.mubr.bf16.mxu0 0
      %2807 = vmatmul.mubr.bf16.gmra.mrb[0].mxu0 %v2749
      %v2808 = vpop.f32.mrb[0].mxu0
      %v2809 = vadd.f32 0.0, %v2808
      %v2810 = vpop.f32.mrb[0].mxu0
      %v2811 = vadd.f32 0.0, %v2810
      %v2812 = vpop.f32.mrb[0].mxu0
      %v2813 = vadd.f32 0.0, %v2812
      %v2814 = vpop.f32.mrb[0].mxu0
      %v2815 = vadd.f32 0.0, %v2814
      %2816 = vmatprep.mubr.bf16.mxu0 0
      %2817 = vmatmul.mubr.bf16.gmra.mrb[0].mxu0 %v2752
      %v2818 = vpop.f32.mrb[0].mxu0
      %v2819 = vadd.f32 0.0, %v2818
      %v2820 = vpop.f32.mrb[0].mxu0
      %v2821 = vadd.f32 0.0, %v2820
      %v2822 = vpop.f32.mrb[0].mxu0
      %v2823 = vadd.f32 0.0, %v2822
      %v2824 = vpop.f32.mrb[0].mxu0
      %v2825 = vadd.f32 0.0, %v2824
      %2826 = vdwg.mxu0
      %v2827 = vadd.f32 %v2531, %v2789
      %v2828 = vadd.f32 %v2532, %v2791
      %v2829 = vadd.f32 %v2533, %v2793
      %v2830 = vadd.f32 %v2534, %v2795
      %v2831 = vadd.f32 %v2535, %v2799
      %v2832 = vadd.f32 %v2536, %v2801
      %v2833 = vadd.f32 %v2537, %v2803
      %v2834 = vadd.f32 %v2538, %v2805
      %v2835 = vadd.f32 %v2539, %v2809
      %v2836 = vadd.f32 %v2540, %v2811
      %v2837 = vadd.f32 %v2541, %v2813
      %v2838 = vadd.f32 %v2542, %v2815
      %v2839 = vadd.f32 %v2543, %v2819
      %v2840 = vadd.f32 %v2544, %v2821
      %v2841 = vadd.f32 %v2545, %v2823
      %v2842 = vadd.f32 %v2546, %v2825
      %s2843 = scalar_lea.vmem %s9, 512
      %v2844 = vld [vmem:[%s2843] sm:$0xff]
      %v2845 = vld [vmem:[%s2843 + $0x8] sm:$0xff]
      %v2846 = vld [vmem:[%s2843 + $0x10] sm:$0xff]
      %v2847 = vld [vmem:[%s2843 + $0x18] sm:$0xff]
      %v2848 = vld [vmem:[%s2843 + $0x20] sm:$0xff]
      %v2849 = vld [vmem:[%s2843 + $0x28] sm:$0xff]
      %v2850 = vld [vmem:[%s2843 + $0x30] sm:$0xff]
      %v2851 = vld [vmem:[%s2843 + $0x38] sm:$0xff]
      %v2852 = vld [vmem:[%s2843 + $0x40] sm:$0xff]
      %v2853 = vld [vmem:[%s2843 + $0x48] sm:$0xff]
      %v2854 = vld [vmem:[%s2843 + $0x50] sm:$0xff]
      %v2855 = vld [vmem:[%s2843 + $0x58] sm:$0xff]
      %v2856 = vld [vmem:[%s2843 + $0x60] sm:$0xff]
      %v2857 = vld [vmem:[%s2843 + $0x68] sm:$0xff]
      %v2858 = vld [vmem:[%s2843 + $0x70] sm:$0xff]
      %v2859 = vld [vmem:[%s2843 + $0x78] sm:$0xff]
      %v2860 = vld [vmem:[%s2843 + $0x80] sm:$0xff]
      %v2861 = vld [vmem:[%s2843 + $0x88] sm:$0xff]
      %v2862 = vld [vmem:[%s2843 + $0x90] sm:$0xff]
      %v2863 = vld [vmem:[%s2843 + $0x98] sm:$0xff]
      %v2864 = vld [vmem:[%s2843 + $0xa0] sm:$0xff]
      %v2865 = vld [vmem:[%s2843 + $0xa8] sm:$0xff]
      %v2866 = vld [vmem:[%s2843 + $0xb0] sm:$0xff]
      %v2867 = vld [vmem:[%s2843 + $0xb8] sm:$0xff]
      %v2868 = vld [vmem:[%s2843 + $0xc0] sm:$0xff]
      %v2869 = vld [vmem:[%s2843 + $0xc8] sm:$0xff]
      %v2870 = vld [vmem:[%s2843 + $0xd0] sm:$0xff]
      %v2871 = vld [vmem:[%s2843 + $0xd8] sm:$0xff]
      %v2872 = vld [vmem:[%s2843 + $0xe0] sm:$0xff]
      %v2873 = vld [vmem:[%s2843 + $0xe8] sm:$0xff]
      %v2874 = vld [vmem:[%s2843 + $0xf0] sm:$0xff]
      %v2875 = vld [vmem:[%s2843 + $0xf8] sm:$0xff]
      %v2885 = vunpack.c.l.b16 %v2651
      %v2886 = vunpack.c.h.b16 %v2651
      %v2887 = vunpack.c.l.b16 %v2652
      %v2888 = vunpack.c.h.b16 %v2652
      %v2889 = vunpack.c.l.b16 %v2653
      %v2890 = vunpack.c.h.b16 %v2653
      %v2891 = vunpack.c.l.b16 %v2654
      %v2892 = vunpack.c.h.b16 %v2654
      %v2893 = vunpack.c.l.b16 %v2655
      %v2894 = vunpack.c.h.b16 %v2655
      %v2895 = vunpack.c.l.b16 %v2656
      %v2896 = vunpack.c.h.b16 %v2656
      %v2897 = vunpack.c.l.b16 %v2657
      %v2898 = vunpack.c.h.b16 %v2657
      %v2899 = vunpack.c.l.b16 %v2658
      %v2900 = vunpack.c.h.b16 %v2658
      %v2901 = vunpack.c.l.b16 %v2659
      %v2902 = vunpack.c.h.b16 %v2659
      %v2903 = vpack.c.b16 %v2887, %v2885
      %v2904 = vpack.c.b16 %v2888, %v2886
      %v2905 = vpack.c.b16 %v2891, %v2889
      %v2906 = vpack.c.b16 %v2892, %v2890
      %v2907 = vpack.c.b16 %v2895, %v2893
      %v2908 = vpack.c.b16 %v2896, %v2894
      %v2909 = vpack.c.b16 %v2899, %v2897
      %v2910 = vpack.c.b16 %v2900, %v2898
      %v2911 = vpack.c.b16 %v2901, %v2901
      %v2912 = vpack.c.b16 %v2902, %v2902
      %v2913 = vrot.slane %v2903, 1
      %v2914 = vrot.slane %v2905, 1
      %v2915 = vsel %vm2692, %v2913, %v2914
      %v2916 = vrot.slane %v2904, 1
      %v2917 = vrot.slane %v2906, 1
      %v2918 = vsel %vm2692, %v2916, %v2917
      %v2919 = vrot.slane %v2907, 1
      %v2920 = vsel %vm2692, %v2914, %v2919
      %v2921 = vrot.slane %v2908, 1
      %v2922 = vsel %vm2692, %v2917, %v2921
      %v2923 = vrot.slane %v2909, 1
      %v2924 = vsel %vm2692, %v2919, %v2923
      %v2925 = vrot.slane %v2910, 1
      %v2926 = vsel %vm2692, %v2921, %v2925
      %v2927 = vrot.slane %v2911, 1
      %v2928 = vsel %vm2692, %v2923, %v2927
      %v2929 = vrot.slane %v2912, 1
      %v2930 = vsel %vm2692, %v2925, %v2929
      %v2971 = vunpack.c.l.b16 %v2844
      %v2972 = vunpack.c.h.b16 %v2844
      %v2973 = vunpack.c.l.b16 %v2845
      %v2974 = vunpack.c.h.b16 %v2845
      %v2975 = vunpack.c.l.b16 %v2846
      %v2976 = vunpack.c.h.b16 %v2846
      %v2977 = vunpack.c.l.b16 %v2847
      %v2978 = vunpack.c.h.b16 %v2847
      %v2979 = vunpack.c.l.b16 %v2848
      %v2980 = vunpack.c.h.b16 %v2848
      %v2981 = vunpack.c.l.b16 %v2849
      %v2982 = vunpack.c.h.b16 %v2849
      %v2983 = vunpack.c.l.b16 %v2850
      %v2984 = vunpack.c.h.b16 %v2850
      %v2985 = vunpack.c.l.b16 %v2851
      %v2986 = vunpack.c.h.b16 %v2851
      %v2987 = vunpack.c.l.b16 %v2852
      %v2988 = vunpack.c.h.b16 %v2852
      %v2989 = vunpack.c.l.b16 %v2853
      %v2990 = vunpack.c.h.b16 %v2853
      %v2991 = vunpack.c.l.b16 %v2854
      %v2992 = vunpack.c.h.b16 %v2854
      %v2993 = vunpack.c.l.b16 %v2855
      %v2994 = vunpack.c.h.b16 %v2855
      %v2995 = vunpack.c.l.b16 %v2856
      %v2996 = vunpack.c.h.b16 %v2856
      %v2997 = vunpack.c.l.b16 %v2857
      %v2998 = vunpack.c.h.b16 %v2857
      %v2999 = vunpack.c.l.b16 %v2858
      %v3000 = vunpack.c.h.b16 %v2858
      %v3001 = vunpack.c.l.b16 %v2859
      %v3002 = vunpack.c.h.b16 %v2859
      %v3003 = vunpack.c.l.b16 %v2860
      %v3004 = vunpack.c.h.b16 %v2860
      %v3005 = vunpack.c.l.b16 %v2861
      %v3006 = vunpack.c.h.b16 %v2861
      %v3007 = vunpack.c.l.b16 %v2862
      %v3008 = vunpack.c.h.b16 %v2862
      %v3009 = vunpack.c.l.b16 %v2863
      %v3010 = vunpack.c.h.b16 %v2863
      %v3011 = vunpack.c.l.b16 %v2864
      %v3012 = vunpack.c.h.b16 %v2864
      %v3013 = vunpack.c.l.b16 %v2865
      %v3014 = vunpack.c.h.b16 %v2865
      %v3015 = vunpack.c.l.b16 %v2866
      %v3016 = vunpack.c.h.b16 %v2866
      %v3017 = vunpack.c.l.b16 %v2867
      %v3018 = vunpack.c.h.b16 %v2867
      %v3019 = vunpack.c.l.b16 %v2868
      %v3020 = vunpack.c.h.b16 %v2868
      %v3021 = vunpack.c.l.b16 %v2869
      %v3022 = vunpack.c.h.b16 %v2869
      %v3023 = vunpack.c.l.b16 %v2870
      %v3024 = vunpack.c.h.b16 %v2870
      %v3025 = vunpack.c.l.b16 %v2871
      %v3026 = vunpack.c.h.b16 %v2871
      %v3027 = vunpack.c.l.b16 %v2872
      %v3028 = vunpack.c.h.b16 %v2872
      %v3029 = vunpack.c.l.b16 %v2873
      %v3030 = vunpack.c.h.b16 %v2873
      %v3031 = vunpack.c.l.b16 %v2874
      %v3032 = vunpack.c.h.b16 %v2874
      %v3033 = vunpack.c.l.b16 %v2875
      %v3034 = vunpack.c.h.b16 %v2875
      %v3035 = vpack.c.b16 %v2973, %v2971
      %v3036 = vpack.c.b16 %v2974, %v2972
      %v3037 = vpack.c.b16 %v2977, %v2975
      %v3038 = vpack.c.b16 %v2978, %v2976
      %v3039 = vpack.c.b16 %v2981, %v2979
      %v3040 = vpack.c.b16 %v2982, %v2980
      %v3041 = vpack.c.b16 %v2985, %v2983
      %v3042 = vpack.c.b16 %v2986, %v2984
      %v3043 = vpack.c.b16 %v2989, %v2987
      %v3044 = vpack.c.b16 %v2990, %v2988
      %v3045 = vpack.c.b16 %v2993, %v2991
      %v3046 = vpack.c.b16 %v2994, %v2992
      %v3047 = vpack.c.b16 %v2997, %v2995
      %v3048 = vpack.c.b16 %v2998, %v2996
      %v3049 = vpack.c.b16 %v3001, %v2999
      %v3050 = vpack.c.b16 %v3002, %v3000
      %v3051 = vpack.c.b16 %v3005, %v3003
      %v3052 = vpack.c.b16 %v3006, %v3004
      %v3053 = vpack.c.b16 %v3009, %v3007
      %v3054 = vpack.c.b16 %v3010, %v3008
      %v3055 = vpack.c.b16 %v3013, %v3011
      %v3056 = vpack.c.b16 %v3014, %v3012
      %v3057 = vpack.c.b16 %v3017, %v3015
      %v3058 = vpack.c.b16 %v3018, %v3016
      %v3059 = vpack.c.b16 %v3021, %v3019
      %v3060 = vpack.c.b16 %v3022, %v3020
      %v3061 = vpack.c.b16 %v3025, %v3023
      %v3062 = vpack.c.b16 %v3026, %v3024
      %v3063 = vpack.c.b16 %v3029, %v3027
      %v3064 = vpack.c.b16 %v3030, %v3028
      %v3065 = vpack.c.b16 %v3033, %v3031
      %v3066 = vpack.c.b16 %v3034, %v3032
      %3099 = vmatprep.subr.bf16.mxu0 %v3036
      %3100 = vmatpush1.bf16.msra.mxu0 %v3035
      %3101 = vmatprep.subr.bf16.mxu0 %v3038
      %3102 = vmatpush1.bf16.msra.mxu0 %v3037
      %3103 = vmatprep.subr.bf16.mxu0 %v3040
      %3104 = vmatpush1.bf16.msra.mxu0 %v3039
      %3105 = vmatprep.subr.bf16.mxu0 %v3042
      %3106 = vmatpush1.bf16.msra.mxu0 %v3041
      %3107 = vmatprep.subr.bf16.mxu0 %v3044
      %3108 = vmatpush1.bf16.msra.mxu0 %v3043
      %3109 = vmatprep.subr.bf16.mxu0 %v3046
      %3110 = vmatpush1.bf16.msra.mxu0 %v3045
      %3111 = vmatprep.subr.bf16.mxu0 %v3048
      %3112 = vmatpush1.bf16.msra.mxu0 %v3047
      %3113 = vmatprep.subr.bf16.mxu0 %v3050
      %3114 = vmatpush1.bf16.msra.mxu0 %v3049
      %3115 = vmatprep.subr.bf16.mxu0 %v3052
      %3116 = vmatpush1.bf16.msra.mxu0 %v3051
      %3117 = vmatprep.subr.bf16.mxu0 %v3054
      %3118 = vmatpush1.bf16.msra.mxu0 %v3053
      %3119 = vmatprep.subr.bf16.mxu0 %v3056
      %3120 = vmatpush1.bf16.msra.mxu0 %v3055
      %3121 = vmatprep.subr.bf16.mxu0 %v3058
      %3122 = vmatpush1.bf16.msra.mxu0 %v3057
      %3123 = vmatprep.subr.bf16.mxu0 %v3060
      %3124 = vmatpush1.bf16.msra.mxu0 %v3059
      %3125 = vmatprep.subr.bf16.mxu0 %v3062
      %3126 = vmatpush1.bf16.msra.mxu0 %v3061
      %3127 = vmatprep.subr.bf16.mxu0 %v3064
      %3128 = vmatpush1.bf16.msra.mxu0 %v3063
      %3129 = vmatprep.subr.bf16.mxu0 %v3066
      %3130 = vmatpush1.bf16.msra.mxu0 %v3065
      %3131 = vmatprep.mubr.bf16.mxu0 %v2918
      %3132 = vmatmul.mubr.bf16.gmra.mrb[0].mxu0 %v2915
      %v3133 = vpop.f32.mrb[0].mxu0
      %v3134 = vadd.f32 0.0, %v3133
      %v3135 = vpop.f32.mrb[0].mxu0
      %v3136 = vadd.f32 0.0, %v3135
      %v3137 = vpop.f32.mrb[0].mxu0
      %v3138 = vadd.f32 0.0, %v3137
      %v3139 = vpop.f32.mrb[0].mxu0
      %v3140 = vadd.f32 0.0, %v3139
      %3141 = vmatprep.mubr.bf16.mxu0 %v2922
      %3142 = vmatmul.mubr.bf16.gmra.mrb[0].mxu0 %v2920
      %v3143 = vpop.f32.mrb[0].mxu0
      %v3144 = vadd.f32 0.0, %v3143
      %v3145 = vpop.f32.mrb[0].mxu0
      %v3146 = vadd.f32 0.0, %v3145
      %v3147 = vpop.f32.mrb[0].mxu0
      %v3148 = vadd.f32 0.0, %v3147
      %v3149 = vpop.f32.mrb[0].mxu0
      %v3150 = vadd.f32 0.0, %v3149
      %3151 = vmatprep.mubr.bf16.mxu0 %v2926
      %3152 = vmatmul.mubr.bf16.gmra.mrb[0].mxu0 %v2924
      %v3153 = vpop.f32.mrb[0].mxu0
      %v3154 = vadd.f32 0.0, %v3153
      %v3155 = vpop.f32.mrb[0].mxu0
      %v3156 = vadd.f32 0.0, %v3155
      %v3157 = vpop.f32.mrb[0].mxu0
      %v3158 = vadd.f32 0.0, %v3157
      %v3159 = vpop.f32.mrb[0].mxu0
      %v3160 = vadd.f32 0.0, %v3159
      %3161 = vmatprep.mubr.bf16.mxu0 %v2930
      %3162 = vmatmul.mubr.bf16.gmra.mrb[0].mxu0 %v2928
      %v3163 = vpop.f32.mrb[0].mxu0
      %v3164 = vadd.f32 0.0, %v3163
      %v3165 = vpop.f32.mrb[0].mxu0
      %v3166 = vadd.f32 0.0, %v3165
      %v3167 = vpop.f32.mrb[0].mxu0
      %v3168 = vadd.f32 0.0, %v3167
      %v3169 = vpop.f32.mrb[0].mxu0
      %v3170 = vadd.f32 0.0, %v3169
      %3171 = vdwg.mxu0
      %v3172 = vadd.f32 %v2827, %v3134
      %v3173 = vadd.f32 %v2828, %v3136
      %v3174 = vadd.f32 %v2829, %v3138
      %v3175 = vadd.f32 %v2830, %v3140
      %v3176 = vadd.f32 %v2831, %v3144
      %v3177 = vadd.f32 %v2832, %v3146
      %v3178 = vadd.f32 %v2833, %v3148
      %v3179 = vadd.f32 %v2834, %v3150
      %v3180 = vadd.f32 %v2835, %v3154
      %v3181 = vadd.f32 %v2836, %v3156
      %v3182 = vadd.f32 %v2837, %v3158
      %v3183 = vadd.f32 %v2838, %v3160
      %v3184 = vadd.f32 %v2839, %v3164
      %v3185 = vadd.f32 %v2840, %v3166
      %v3186 = vadd.f32 %v2841, %v3168
      %v3187 = vadd.f32 %v2842, %v3170
      %v3188 = vld [vmem:[#allocation2 + $0x20] sm:$0xf]
      %v3189 = vld [vmem:[#allocation3 + $0x40] sm:$0xff]
      %v3190 = vmul.bf16 %v1921, %v1387
      %v3191 = vmul.bf16 %v1922, %v1394
      %v3192 = vmul.bf16 %v1923, %v1401
      %v3193 = vmul.bf16 %v1924, %v1408
      %v3194 = vmul.bf16 %v1925, %v1415
      %v3195 = vmul.bf16 %v1926, %v1422
      %v3196 = vmul.bf16 %v1927, %v1429
      %v3197 = vmul.bf16 %v3188, %v1436
      %v3198 = vmul.bf16 %v1930, %v1387
      %v3199 = vmul.bf16 %v1931, %v1394
      %v3200 = vmul.bf16 %v1932, %v1401
      %v3201 = vmul.bf16 %v1933, %v1408
      %v3202 = vmul.bf16 %v1934, %v1415
      %v3203 = vmul.bf16 %v1935, %v1422
      %v3204 = vmul.bf16 %v1936, %v1429
      %v3205 = vmul.bf16 %v3189, %v1436
      %s3206 = scalar_lea.vmem %s8, 192
      %v3207 = vld [vmem:[%s3206] sm:$0xff]
      %v3208 = vld [vmem:[%s3206 + $0x8] sm:$0xff]
      %v3209 = vld [vmem:[%s3206 + $0x10] sm:$0xff]
      %v3210 = vld [vmem:[%s3206 + $0x18] sm:$0xff]
      %v3211 = vld [vmem:[%s3206 + $0x20] sm:$0xff]
      %v3212 = vld [vmem:[%s3206 + $0x28] sm:$0xff]
      %v3213 = vld [vmem:[%s3206 + $0x30] sm:$0xff]
      %v3214 = vld [vmem:[%s3206 + $0x38] sm:$0xff]
      %v3223 = vunpack.c.l.b16 %v3190
      %v3224 = vunpack.c.l.b16 %v3191
      %v3225 = vunpack.c.l.b16 %v3192
      %v3226 = vunpack.c.l.b16 %v3193
      %v3227 = vunpack.c.l.b16 %v3194
      %v3228 = vunpack.c.l.b16 %v3195
      %v3229 = vunpack.c.l.b16 %v3196
      %v3230 = vunpack.c.l.b16 %v3197
      %v3231 = vpack.c.b16 %v3224, %v3223
      %v3232 = vpack.c.b16 %v3226, %v3225
      %v3233 = vpack.c.b16 %v3228, %v3227
      %v3234 = vpack.c.b16 %v3230, %v3229
      %v3243 = vunpack.c.l.b16 %v3207
      %v3244 = vunpack.c.h.b16 %v3207
      %v3245 = vunpack.c.l.b16 %v3208
      %v3246 = vunpack.c.h.b16 %v3208
      %v3247 = vunpack.c.l.b16 %v3209
      %v3248 = vunpack.c.h.b16 %v3209
      %v3249 = vunpack.c.l.b16 %v3210
      %v3250 = vunpack.c.h.b16 %v3210
      %v3251 = vunpack.c.l.b16 %v3211
      %v3252 = vunpack.c.h.b16 %v3211
      %v3253 = vunpack.c.l.b16 %v3212
      %v3254 = vunpack.c.h.b16 %v3212
      %v3255 = vunpack.c.l.b16 %v3213
      %v3256 = vunpack.c.h.b16 %v3213
      %v3257 = vunpack.c.l.b16 %v3214
      %v3258 = vunpack.c.h.b16 %v3214
      %v3259 = vpack.c.b16 %v3245, %v3243
      %v3260 = vpack.c.b16 %v3246, %v3244
      %v3261 = vpack.c.b16 %v3249, %v3247
      %v3262 = vpack.c.b16 %v3250, %v3248
      %v3263 = vpack.c.b16 %v3253, %v3251
      %v3264 = vpack.c.b16 %v3254, %v3252
      %v3265 = vpack.c.b16 %v3257, %v3255
      %v3266 = vpack.c.b16 %v3258, %v3256
      %v3276 = vsel %vm1834, %v3231, 0
      %v3279 = vsel %vm1834, %v3232, 0
      %v3282 = vsel %vm1834, %v3233, 0
      %v3285 = vsel %vm1834, %v3234, 0
      %3287 = vmatprep.subr.bf16.mxu0 %v3260
      %3288 = vmatpush1.bf16.msra.mxu0 %v3259
      %3289 = vmatprep.subr.bf16.mxu0 %v3262
      %3290 = vmatpush1.bf16.msra.mxu0 %v3261
      %3291 = vmatprep.subr.bf16.mxu0 %v3264
      %3292 = vmatpush1.bf16.msra.mxu0 %v3263
      %3293 = vmatprep.subr.bf16.mxu0 %v3266
      %3294 = vmatpush1.bf16.msra.mxu0 %v3265
      %3295 = vmatprep.subr.bf16.mxu0 0
      %3296 = vmatpush1.bf16.msra.mxu0 0
      %3297 = vmatprep.subr.bf16.mxu0 0
      %3298 = vmatpush1.bf16.msra.mxu0 0
      %3299 = vmatprep.subr.bf16.mxu0 0
      %3300 = vmatpush1.bf16.msra.mxu0 0
      %3301 = vmatprep.subr.bf16.mxu0 0
      %3302 = vmatpush1.bf16.msra.mxu0 0
      %3303 = vmatprep.subr.bf16.mxu0 0
      %3304 = vmatpush1.bf16.msra.mxu0 0
      %3305 = vmatprep.subr.bf16.mxu0 0
      %3306 = vmatpush1.bf16.msra.mxu0 0
      %3307 = vmatprep.subr.bf16.mxu0 0
      %3308 = vmatpush1.bf16.msra.mxu0 0
      %3309 = vmatprep.subr.bf16.mxu0 0
      %3310 = vmatpush1.bf16.msra.mxu0 0
      %3311 = vmatprep.subr.bf16.mxu0 0
      %3312 = vmatpush1.bf16.msra.mxu0 0
      %3313 = vmatprep.subr.bf16.mxu0 0
      %3314 = vmatpush1.bf16.msra.mxu0 0
      %3315 = vmatprep.subr.bf16.mxu0 0
      %3316 = vmatpush1.bf16.msra.mxu0 0
      %3317 = vmatprep.subr.bf16.mxu0 0
      %3318 = vmatpush1.bf16.msra.mxu0 0
      %3319 = vmatprep.mubr.bf16.mxu0 0
      %3320 = vmatmul.mubr.bf16.gmra.mrb[0].mxu0 %v3276
      %v3321 = vpop.f32.mrb[0].mxu0
      %v3322 = vadd.f32 0.0, %v3321
      %v3323 = vpop.f32.mrb[0].mxu0
      %v3324 = vadd.f32 0.0, %v3323
      %v3325 = vpop.f32.mrb[0].mxu0
      %v3326 = vadd.f32 0.0, %v3325
      %v3327 = vpop.f32.mrb[0].mxu0
      %v3328 = vadd.f32 0.0, %v3327
      %3329 = vmatprep.mubr.bf16.mxu0 0
      %3330 = vmatmul.mubr.bf16.gmra.mrb[0].mxu0 %v3279
      %v3331 = vpop.f32.mrb[0].mxu0
      %v3332 = vadd.f32 0.0, %v3331
      %v3333 = vpop.f32.mrb[0].mxu0
      %v3334 = vadd.f32 0.0, %v3333
      %v3335 = vpop.f32.mrb[0].mxu0
      %v3336 = vadd.f32 0.0, %v3335
      %v3337 = vpop.f32.mrb[0].mxu0
      %v3338 = vadd.f32 0.0, %v3337
      %3339 = vmatprep.mubr.bf16.mxu0 0
      %3340 = vmatmul.mubr.bf16.gmra.mrb[0].mxu0 %v3282
      %v3341 = vpop.f32.mrb[0].mxu0
      %v3342 = vadd.f32 0.0, %v3341
      %v3343 = vpop.f32.mrb[0].mxu0
      %v3344 = vadd.f32 0.0, %v3343
      %v3345 = vpop.f32.mrb[0].mxu0
      %v3346 = vadd.f32 0.0, %v3345
      %v3347 = vpop.f32.mrb[0].mxu0
      %v3348 = vadd.f32 0.0, %v3347
      %3349 = vmatprep.mubr.bf16.mxu0 0
      %3350 = vmatmul.mubr.bf16.gmra.mrb[0].mxu0 %v3285
      %v3351 = vpop.f32.mrb[0].mxu0
      %v3352 = vadd.f32 0.0, %v3351
      %v3353 = vpop.f32.mrb[0].mxu0
      %v3354 = vadd.f32 0.0, %v3353
      %v3355 = vpop.f32.mrb[0].mxu0
      %v3356 = vadd.f32 0.0, %v3355
      %v3357 = vpop.f32.mrb[0].mxu0
      %v3358 = vadd.f32 0.0, %v3357
      %3359 = vdwg.mxu0
      %v3360 = vadd.f32 %v3172, %v3322
      %v3361 = vadd.f32 %v3173, %v3324
      %v3362 = vadd.f32 %v3174, %v3326
      %v3363 = vadd.f32 %v3175, %v3328
      %v3364 = vadd.f32 %v3176, %v3332
      %v3365 = vadd.f32 %v3177, %v3334
      %v3366 = vadd.f32 %v3178, %v3336
      %v3367 = vadd.f32 %v3179, %v3338
      %v3368 = vadd.f32 %v3180, %v3342
      %v3369 = vadd.f32 %v3181, %v3344
      %v3370 = vadd.f32 %v3182, %v3346
      %v3371 = vadd.f32 %v3183, %v3348
      %v3372 = vadd.f32 %v3184, %v3352
      %v3373 = vadd.f32 %v3185, %v3354
      %v3374 = vadd.f32 %v3186, %v3356
      %v3375 = vadd.f32 %v3187, %v3358
      %s3376 = scalar_lea.vmem %s9, 768
      %v3377 = vld [vmem:[%s3376] sm:$0xff]
      %v3378 = vld [vmem:[%s3376 + $0x8] sm:$0xff]
      %v3379 = vld [vmem:[%s3376 + $0x10] sm:$0xff]
      %v3380 = vld [vmem:[%s3376 + $0x18] sm:$0xff]
      %v3381 = vld [vmem:[%s3376 + $0x20] sm:$0xff]
      %v3382 = vld [vmem:[%s3376 + $0x28] sm:$0xff]
      %v3383 = vld [vmem:[%s3376 + $0x30] sm:$0xff]
      %v3384 = vld [vmem:[%s3376 + $0x38] sm:$0xff]
      %v3385 = vld [vmem:[%s3376 + $0x40] sm:$0xff]
      %v3386 = vld [vmem:[%s3376 + $0x48] sm:$0xff]
      %v3387 = vld [vmem:[%s3376 + $0x50] sm:$0xff]
      %v3388 = vld [vmem:[%s3376 + $0x58] sm:$0xff]
      %v3389 = vld [vmem:[%s3376 + $0x60] sm:$0xff]
      %v3390 = vld [vmem:[%s3376 + $0x68] sm:$0xff]
      %v3391 = vld [vmem:[%s3376 + $0x70] sm:$0xff]
      %v3392 = vld [vmem:[%s3376 + $0x78] sm:$0xff]
      %v3393 = vld [vmem:[%s3376 + $0x80] sm:$0xff]
      %v3394 = vld [vmem:[%s3376 + $0x88] sm:$0xff]
      %v3395 = vld [vmem:[%s3376 + $0x90] sm:$0xff]
      %v3396 = vld [vmem:[%s3376 + $0x98] sm:$0xff]
      %v3397 = vld [vmem:[%s3376 + $0xa0] sm:$0xff]
      %v3398 = vld [vmem:[%s3376 + $0xa8] sm:$0xff]
      %v3399 = vld [vmem:[%s3376 + $0xb0] sm:$0xff]
      %v3400 = vld [vmem:[%s3376 + $0xb8] sm:$0xff]
      %v3401 = vld [vmem:[%s3376 + $0xc0] sm:$0xff]
      %v3402 = vld [vmem:[%s3376 + $0xc8] sm:$0xff]
      %v3403 = vld [vmem:[%s3376 + $0xd0] sm:$0xff]
      %v3404 = vld [vmem:[%s3376 + $0xd8] sm:$0xff]
      %v3405 = vld [vmem:[%s3376 + $0xe0] sm:$0xff]
      %v3406 = vld [vmem:[%s3376 + $0xe8] sm:$0xff]
      %v3407 = vld [vmem:[%s3376 + $0xf0] sm:$0xff]
      %v3408 = vld [vmem:[%s3376 + $0xf8] sm:$0xff]
      %v3417 = vunpack.c.l.b16 %v3198
      %v3418 = vunpack.c.h.b16 %v3198
      %v3419 = vunpack.c.l.b16 %v3199
      %v3420 = vunpack.c.h.b16 %v3199
      %v3421 = vunpack.c.l.b16 %v3200
      %v3422 = vunpack.c.h.b16 %v3200
      %v3423 = vunpack.c.l.b16 %v3201
      %v3424 = vunpack.c.h.b16 %v3201
      %v3425 = vunpack.c.l.b16 %v3202
      %v3426 = vunpack.c.h.b16 %v3202
      %v3427 = vunpack.c.l.b16 %v3203
      %v3428 = vunpack.c.h.b16 %v3203
      %v3429 = vunpack.c.l.b16 %v3204
      %v3430 = vunpack.c.h.b16 %v3204
      %v3431 = vunpack.c.l.b16 %v3205
      %v3432 = vunpack.c.h.b16 %v3205
      %v3433 = vpack.c.b16 %v3419, %v3417
      %v3434 = vpack.c.b16 %v3420, %v3418
      %v3435 = vpack.c.b16 %v3423, %v3421
      %v3436 = vpack.c.b16 %v3424, %v3422
      %v3437 = vpack.c.b16 %v3427, %v3425
      %v3438 = vpack.c.b16 %v3428, %v3426
      %v3439 = vpack.c.b16 %v3431, %v3429
      %v3440 = vpack.c.b16 %v3432, %v3430
      %v3481 = vunpack.c.l.b16 %v3377
      %v3482 = vunpack.c.h.b16 %v3377
      %v3483 = vunpack.c.l.b16 %v3378
      %v3484 = vunpack.c.h.b16 %v3378
      %v3485 = vunpack.c.l.b16 %v3379
      %v3486 = vunpack.c.h.b16 %v3379
      %v3487 = vunpack.c.l.b16 %v3380
      %v3488 = vunpack.c.h.b16 %v3380
      %v3489 = vunpack.c.l.b16 %v3381
      %v3490 = vunpack.c.h.b16 %v3381
      %v3491 = vunpack.c.l.b16 %v3382
      %v3492 = vunpack.c.h.b16 %v3382
      %v3493 = vunpack.c.l.b16 %v3383
      %v3494 = vunpack.c.h.b16 %v3383
      %v3495 = vunpack.c.l.b16 %v3384
      %v3496 = vunpack.c.h.b16 %v3384
      %v3497 = vunpack.c.l.b16 %v3385
      %v3498 = vunpack.c.h.b16 %v3385
      %v3499 = vunpack.c.l.b16 %v3386
      %v3500 = vunpack.c.h.b16 %v3386
      %v3501 = vunpack.c.l.b16 %v3387
      %v3502 = vunpack.c.h.b16 %v3387
      %v3503 = vunpack.c.l.b16 %v3388
      %v3504 = vunpack.c.h.b16 %v3388
      %v3505 = vunpack.c.l.b16 %v3389
      %v3506 = vunpack.c.h.b16 %v3389
      %v3507 = vunpack.c.l.b16 %v3390
      %v3508 = vunpack.c.h.b16 %v3390
      %v3509 = vunpack.c.l.b16 %v3391
      %v3510 = vunpack.c.h.b16 %v3391
      %v3511 = vunpack.c.l.b16 %v3392
      %v3512 = vunpack.c.h.b16 %v3392
      %v3513 = vunpack.c.l.b16 %v3393
      %v3514 = vunpack.c.h.b16 %v3393
      %v3515 = vunpack.c.l.b16 %v3394
      %v3516 = vunpack.c.h.b16 %v3394
      %v3517 = vunpack.c.l.b16 %v3395
      %v3518 = vunpack.c.h.b16 %v3395
      %v3519 = vunpack.c.l.b16 %v3396
      %v3520 = vunpack.c.h.b16 %v3396
      %v3521 = vunpack.c.l.b16 %v3397
      %v3522 = vunpack.c.h.b16 %v3397
      %v3523 = vunpack.c.l.b16 %v3398
      %v3524 = vunpack.c.h.b16 %v3398
      %v3525 = vunpack.c.l.b16 %v3399
      %v3526 = vunpack.c.h.b16 %v3399
      %v3527 = vunpack.c.l.b16 %v3400
      %v3528 = vunpack.c.h.b16 %v3400
      %v3529 = vunpack.c.l.b16 %v3401
      %v3530 = vunpack.c.h.b16 %v3401
      %v3531 = vunpack.c.l.b16 %v3402
      %v3532 = vunpack.c.h.b16 %v3402
      %v3533 = vunpack.c.l.b16 %v3403
      %v3534 = vunpack.c.h.b16 %v3403
      %v3535 = vunpack.c.l.b16 %v3404
      %v3536 = vunpack.c.h.b16 %v3404
      %v3537 = vunpack.c.l.b16 %v3405
      %v3538 = vunpack.c.h.b16 %v3405
      %v3539 = vunpack.c.l.b16 %v3406
      %v3540 = vunpack.c.h.b16 %v3406
      %v3541 = vunpack.c.l.b16 %v3407
      %v3542 = vunpack.c.h.b16 %v3407
      %v3543 = vunpack.c.l.b16 %v3408
      %v3544 = vunpack.c.h.b16 %v3408
      %v3545 = vpack.c.b16 %v3483, %v3481
      %v3546 = vpack.c.b16 %v3484, %v3482
      %v3547 = vpack.c.b16 %v3487, %v3485
      %v3548 = vpack.c.b16 %v3488, %v3486
      %v3549 = vpack.c.b16 %v3491, %v3489
      %v3550 = vpack.c.b16 %v3492, %v3490
      %v3551 = vpack.c.b16 %v3495, %v3493
      %v3552 = vpack.c.b16 %v3496, %v3494
      %v3553 = vpack.c.b16 %v3499, %v3497
      %v3554 = vpack.c.b16 %v3500, %v3498
      %v3555 = vpack.c.b16 %v3503, %v3501
      %v3556 = vpack.c.b16 %v3504, %v3502
      %v3557 = vpack.c.b16 %v3507, %v3505
      %v3558 = vpack.c.b16 %v3508, %v3506
      %v3559 = vpack.c.b16 %v3511, %v3509
      %v3560 = vpack.c.b16 %v3512, %v3510
      %v3561 = vpack.c.b16 %v3515, %v3513
      %v3562 = vpack.c.b16 %v3516, %v3514
      %v3563 = vpack.c.b16 %v3519, %v3517
      %v3564 = vpack.c.b16 %v3520, %v3518
      %v3565 = vpack.c.b16 %v3523, %v3521
      %v3566 = vpack.c.b16 %v3524, %v3522
      %v3567 = vpack.c.b16 %v3527, %v3525
      %v3568 = vpack.c.b16 %v3528, %v3526
      %v3569 = vpack.c.b16 %v3531, %v3529
      %v3570 = vpack.c.b16 %v3532, %v3530
      %v3571 = vpack.c.b16 %v3535, %v3533
      %v3572 = vpack.c.b16 %v3536, %v3534
      %v3573 = vpack.c.b16 %v3539, %v3537
      %v3574 = vpack.c.b16 %v3540, %v3538
      %v3575 = vpack.c.b16 %v3543, %v3541
      %v3576 = vpack.c.b16 %v3544, %v3542
      %3609 = vmatprep.subr.bf16.mxu0 %v3546
      %3610 = vmatpush1.bf16.msra.mxu0 %v3545
      %3611 = vmatprep.subr.bf16.mxu0 %v3548
      %3612 = vmatpush1.bf16.msra.mxu0 %v3547
      %3613 = vmatprep.subr.bf16.mxu0 %v3550
      %3614 = vmatpush1.bf16.msra.mxu0 %v3549
      %3615 = vmatprep.subr.bf16.mxu0 %v3552
      %3616 = vmatpush1.bf16.msra.mxu0 %v3551
      %3617 = vmatprep.subr.bf16.mxu0 %v3554
      %3618 = vmatpush1.bf16.msra.mxu0 %v3553
      %3619 = vmatprep.subr.bf16.mxu0 %v3556
      %3620 = vmatpush1.bf16.msra.mxu0 %v3555
      %3621 = vmatprep.subr.bf16.mxu0 %v3558
      %3622 = vmatpush1.bf16.msra.mxu0 %v3557
      %3623 = vmatprep.subr.bf16.mxu0 %v3560
      %3624 = vmatpush1.bf16.msra.mxu0 %v3559
      %3625 = vmatprep.subr.bf16.mxu0 %v3562
      %3626 = vmatpush1.bf16.msra.mxu0 %v3561
      %3627 = vmatprep.subr.bf16.mxu0 %v3564
      %3628 = vmatpush1.bf16.msra.mxu0 %v3563
      %3629 = vmatprep.subr.bf16.mxu0 %v3566
      %3630 = vmatpush1.bf16.msra.mxu0 %v3565
      %3631 = vmatprep.subr.bf16.mxu0 %v3568
      %3632 = vmatpush1.bf16.msra.mxu0 %v3567
      %3633 = vmatprep.subr.bf16.mxu0 %v3570
      %3634 = vmatpush1.bf16.msra.mxu0 %v3569
      %3635 = vmatprep.subr.bf16.mxu0 %v3572
      %3636 = vmatpush1.bf16.msra.mxu0 %v3571
      %3637 = vmatprep.subr.bf16.mxu0 %v3574
      %3638 = vmatpush1.bf16.msra.mxu0 %v3573
      %3639 = vmatprep.subr.bf16.mxu0 %v3576
      %3640 = vmatpush1.bf16.msra.mxu0 %v3575
      %3641 = vmatprep.mubr.bf16.mxu0 %v3434
      %3642 = vmatmul.mubr.bf16.gmra.mrb[0].mxu0 %v3433
      %v3643 = vpop.f32.mrb[0].mxu0
      %v3644 = vadd.f32 0.0, %v3643
      %v3645 = vpop.f32.mrb[0].mxu0
      %v3646 = vadd.f32 0.0, %v3645
      %v3647 = vpop.f32.mrb[0].mxu0
      %v3648 = vadd.f32 0.0, %v3647
      %v3649 = vpop.f32.mrb[0].mxu0
      %v3650 = vadd.f32 0.0, %v3649
      %3651 = vmatprep.mubr.bf16.mxu0 %v3436
      %3652 = vmatmul.mubr.bf16.gmra.mrb[0].mxu0 %v3435
      %v3653 = vpop.f32.mrb[0].mxu0
      %v3654 = vadd.f32 0.0, %v3653
      %v3655 = vpop.f32.mrb[0].mxu0
      %v3656 = vadd.f32 0.0, %v3655
      %v3657 = vpop.f32.mrb[0].mxu0
      %v3658 = vadd.f32 0.0, %v3657
      %v3659 = vpop.f32.mrb[0].mxu0
      %v3660 = vadd.f32 0.0, %v3659
      %3661 = vmatprep.mubr.bf16.mxu0 %v3438
      %3662 = vmatmul.mubr.bf16.gmra.mrb[0].mxu0 %v3437
      %v3663 = vpop.f32.mrb[0].mxu0
      %v3664 = vadd.f32 0.0, %v3663
      %v3665 = vpop.f32.mrb[0].mxu0
      %v3666 = vadd.f32 0.0, %v3665
      %v3667 = vpop.f32.mrb[0].mxu0
      %v3668 = vadd.f32 0.0, %v3667
      %v3669 = vpop.f32.mrb[0].mxu0
      %v3670 = vadd.f32 0.0, %v3669
      %3671 = vmatprep.mubr.bf16.mxu0 %v3440
      %3672 = vmatmul.mubr.bf16.gmra.mrb[0].mxu0 %v3439
      %v3673 = vpop.f32.mrb[0].mxu0
      %v3674 = vadd.f32 0.0, %v3673
      %v3675 = vpop.f32.mrb[0].mxu0
      %v3676 = vadd.f32 0.0, %v3675
      %v3677 = vpop.f32.mrb[0].mxu0
      %v3678 = vadd.f32 0.0, %v3677
      %v3679 = vpop.f32.mrb[0].mxu0
      %v3680 = vadd.f32 0.0, %v3679
      %3681 = vdwg.mxu0
      %v3682 = vadd.f32 %v3360, %v3644
      %v3683 = vadd.f32 %v3361, %v3646
      %v3684 = vadd.f32 %v3362, %v3648
      %v3685 = vadd.f32 %v3363, %v3650
      %v3686 = vadd.f32 %v3364, %v3654
      %v3687 = vadd.f32 %v3365, %v3656
      %v3688 = vadd.f32 %v3366, %v3658
      %v3689 = vadd.f32 %v3367, %v3660
      %v3690 = vadd.f32 %v3368, %v3664
      %v3691 = vadd.f32 %v3369, %v3666
      %v3692 = vadd.f32 %v3370, %v3668
      %v3693 = vadd.f32 %v3371, %v3670
      %v3694 = vadd.f32 %v3372, %v3674
      %v3695 = vadd.f32 %v3373, %v3676
      %v3696 = vadd.f32 %v3374, %v3678
      %v3697 = vadd.f32 %v3375, %v3680
      %v3698 = vld [vmem:[#allocation2 + $0x4] sm:$0xf]
      %v3699 = vld [vmem:[#allocation2 + $0x8] sm:$0xf]
      %v3700 = vld [vmem:[#allocation2 + $0xc] sm:$0xf]
      %v3701 = vld [vmem:[#allocation2 + $0x10] sm:$0xf]
      %v3702 = vld [vmem:[#allocation2 + $0x14] sm:$0xf]
      %v3703 = vld [vmem:[#allocation2 + $0x18] sm:$0xf]
      %v3704 = vld [vmem:[#allocation2 + $0x1c] sm:$0xf]
      %v3705 = vld [vmem:[#allocation2 + $0x20] sm:$0xf]
      %v3706 = vld [vmem:[#allocation2 + $0x24] sm:$0x1]
      %v3707 = vld [vmem:[#allocation3 + $0x8] sm:$0xff]
      %v3708 = vld [vmem:[#allocation3 + $0x10] sm:$0xff]
      %v3709 = vld [vmem:[#allocation3 + $0x18] sm:$0xff]
      %v3710 = vld [vmem:[#allocation3 + $0x20] sm:$0xff]
      %v3711 = vld [vmem:[#allocation3 + $0x28] sm:$0xff]
      %v3712 = vld [vmem:[#allocation3 + $0x30] sm:$0xff]
      %v3713 = vld [vmem:[#allocation3 + $0x38] sm:$0xff]
      %v3714 = vld [vmem:[#allocation3 + $0x40] sm:$0xff]
      %v3715 = vld [vmem:[#allocation3 + $0x48] sm:$0x11]
      %s3716 = scalar_lea.vmem %s8, 256
      %v3717 = vld [vmem:[%s3716] sm:$0xff]
      %v3718 = vld [vmem:[%s3716 + $0x8] sm:$0xff]
      %v3719 = vld [vmem:[%s3716 + $0x10] sm:$0xff]
      %v3720 = vld [vmem:[%s3716 + $0x18] sm:$0xff]
      %v3721 = vld [vmem:[%s3716 + $0x20] sm:$0xff]
      %v3722 = vld [vmem:[%s3716 + $0x28] sm:$0xff]
      %v3723 = vld [vmem:[%s3716 + $0x30] sm:$0xff]
      %v3724 = vld [vmem:[%s3716 + $0x38] sm:$0xff]
      %v3734 = vunpack.c.l.b16 %v3698
      %v3735 = vunpack.c.l.b16 %v3699
      %v3736 = vunpack.c.l.b16 %v3700
      %v3737 = vunpack.c.l.b16 %v3701
      %v3738 = vunpack.c.l.b16 %v3702
      %v3739 = vunpack.c.l.b16 %v3703
      %v3740 = vunpack.c.l.b16 %v3704
      %v3741 = vunpack.c.l.b16 %v3705
      %v3742 = vunpack.c.l.b16 %v3706
      %v3743 = vpack.c.b16 %v3735, %v3734
      %v3744 = vpack.c.b16 %v3737, %v3736
      %v3745 = vpack.c.b16 %v3739, %v3738
      %v3746 = vpack.c.b16 %v3741, %v3740
      %v3747 = vpack.c.b16 %v3742, %v3742
      %v3749 = vshrl.u32 %v3743, 16
      %v3751 = vshll.u32 %v3743, 16
      %v3753 = vrot.slane %v3751, 1
      %v3754 = vor.u32 %v3749, %v3753
      %v3756 = vshll.u32 %v3744, 16
      %v3758 = vrot.slane %v3756, 1
      %v3759 = vsel %vm1970, %v3754, %v3758
      %v3760 = vshrl.u32 %v3744, 16
      %v3762 = vor.u32 %v3760, %v3758
      %v3764 = vshll.u32 %v3745, 16
      %v3766 = vrot.slane %v3764, 1
      %v3767 = vsel %vm1970, %v3762, %v3766
      %v3768 = vshrl.u32 %v3745, 16
      %v3770 = vor.u32 %v3768, %v3766
      %v3772 = vshll.u32 %v3746, 16
      %v3774 = vrot.slane %v3772, 1
      %v3775 = vsel %vm1970, %v3770, %v3774
      %v3776 = vshrl.u32 %v3746, 16
      %v3778 = vor.u32 %v3776, %v3774
      %v3780 = vshll.u32 %v3747, 16
      %v3782 = vrot.slane %v3780, 1
      %v3783 = vsel %vm1970, %v3778, %v3782
      %v3792 = vunpack.c.l.b16 %v3717
      %v3793 = vunpack.c.h.b16 %v3717
      %v3794 = vunpack.c.l.b16 %v3718
      %v3795 = vunpack.c.h.b16 %v3718
      %v3796 = vunpack.c.l.b16 %v3719
      %v3797 = vunpack.c.h.b16 %v3719
      %v3798 = vunpack.c.l.b16 %v3720
      %v3799 = vunpack.c.h.b16 %v3720
      %v3800 = vunpack.c.l.b16 %v3721
      %v3801 = vunpack.c.h.b16 %v3721
      %v3802 = vunpack.c.l.b16 %v3722
      %v3803 = vunpack.c.h.b16 %v3722
      %v3804 = vunpack.c.l.b16 %v3723
      %v3805 = vunpack.c.h.b16 %v3723
      %v3806 = vunpack.c.l.b16 %v3724
      %v3807 = vunpack.c.h.b16 %v3724
      %v3808 = vpack.c.b16 %v3794, %v3792
      %v3809 = vpack.c.b16 %v3795, %v3793
      %v3810 = vpack.c.b16 %v3798, %v3796
      %v3811 = vpack.c.b16 %v3799, %v3797
      %v3812 = vpack.c.b16 %v3802, %v3800
      %v3813 = vpack.c.b16 %v3803, %v3801
      %v3814 = vpack.c.b16 %v3806, %v3804
      %v3815 = vpack.c.b16 %v3807, %v3805
      %v3825 = vsel %vm1834, %v3759, 0
      %v3828 = vsel %vm1834, %v3767, 0
      %v3831 = vsel %vm1834, %v3775, 0
      %v3834 = vsel %vm1834, %v3783, 0
      %3836 = vmatprep.subr.bf16.mxu0 %v3809
      %3837 = vmatpush1.bf16.msra.mxu0 %v3808
      %3838 = vmatprep.subr.bf16.mxu0 %v3811
      %3839 = vmatpush1.bf16.msra.mxu0 %v3810
      %3840 = vmatprep.subr.bf16.mxu0 %v3813
      %3841 = vmatpush1.bf16.msra.mxu0 %v3812
      %3842 = vmatprep.subr.bf16.mxu0 %v3815
      %3843 = vmatpush1.bf16.msra.mxu0 %v3814
      %3844 = vmatprep.subr.bf16.mxu0 0
      %3845 = vmatpush1.bf16.msra.mxu0 0
      %3846 = vmatprep.subr.bf16.mxu0 0
      %3847 = vmatpush1.bf16.msra.mxu0 0
      %3848 = vmatprep.subr.bf16.mxu0 0
      %3849 = vmatpush1.bf16.msra.mxu0 0
      %3850 = vmatprep.subr.bf16.mxu0 0
      %3851 = vmatpush1.bf16.msra.mxu0 0
      %3852 = vmatprep.subr.bf16.mxu0 0
      %3853 = vmatpush1.bf16.msra.mxu0 0
      %3854 = vmatprep.subr.bf16.mxu0 0
      %3855 = vmatpush1.bf16.msra.mxu0 0
      %3856 = vmatprep.subr.bf16.mxu0 0
      %3857 = vmatpush1.bf16.msra.mxu0 0
      %3858 = vmatprep.subr.bf16.mxu0 0
      %3859 = vmatpush1.bf16.msra.mxu0 0
      %3860 = vmatprep.subr.bf16.mxu0 0
      %3861 = vmatpush1.bf16.msra.mxu0 0
      %3862 = vmatprep.subr.bf16.mxu0 0
      %3863 = vmatpush1.bf16.msra.mxu0 0
      %3864 = vmatprep.subr.bf16.mxu0 0
      %3865 = vmatpush1.bf16.msra.mxu0 0
      %3866 = vmatprep.subr.bf16.mxu0 0
      %3867 = vmatpush1.bf16.msra.mxu0 0
      %3868 = vmatprep.mubr.bf16.mxu0 0
      %3869 = vmatmul.mubr.bf16.gmra.mrb[0].mxu0 %v3825
      %v3870 = vpop.f32.mrb[0].mxu0
      %v3871 = vadd.f32 0.0, %v3870
      %v3872 = vpop.f32.mrb[0].mxu0
      %v3873 = vadd.f32 0.0, %v3872
      %v3874 = vpop.f32.mrb[0].mxu0
      %v3875 = vadd.f32 0.0, %v3874
      %v3876 = vpop.f32.mrb[0].mxu0
      %v3877 = vadd.f32 0.0, %v3876
      %3878 = vmatprep.mubr.bf16.mxu0 0
      %3879 = vmatmul.mubr.bf16.gmra.mrb[0].mxu0 %v3828
      %v3880 = vpop.f32.mrb[0].mxu0
      %v3881 = vadd.f32 0.0, %v3880
      %v3882 = vpop.f32.mrb[0].mxu0
      %v3883 = vadd.f32 0.0, %v3882
      %v3884 = vpop.f32.mrb[0].mxu0
      %v3885 = vadd.f32 0.0, %v3884
      %v3886 = vpop.f32.mrb[0].mxu0
      %v3887 = vadd.f32 0.0, %v3886
      %3888 = vmatprep.mubr.bf16.mxu0 0
      %3889 = vmatmul.mubr.bf16.gmra.mrb[0].mxu0 %v3831
      %v3890 = vpop.f32.mrb[0].mxu0
      %v3891 = vadd.f32 0.0, %v3890
      %v3892 = vpop.f32.mrb[0].mxu0
      %v3893 = vadd.f32 0.0, %v3892
      %v3894 = vpop.f32.mrb[0].mxu0
      %v3895 = vadd.f32 0.0, %v3894
      %v3896 = vpop.f32.mrb[0].mxu0
      %v3897 = vadd.f32 0.0, %v3896
      %3898 = vmatprep.mubr.bf16.mxu0 0
      %3899 = vmatmul.mubr.bf16.gmra.mrb[0].mxu0 %v3834
      %v3900 = vpop.f32.mrb[0].mxu0
      %v3901 = vadd.f32 0.0, %v3900
      %v3902 = vpop.f32.mrb[0].mxu0
      %v3903 = vadd.f32 0.0, %v3902
      %v3904 = vpop.f32.mrb[0].mxu0
      %v3905 = vadd.f32 0.0, %v3904
      %v3906 = vpop.f32.mrb[0].mxu0
      %v3907 = vadd.f32 0.0, %v3906
      %3908 = vdwg.mxu0
      %v3909 = vadd.f32 %v3682, %v3871
      %v3910 = vadd.f32 %v3683, %v3873
      %v3911 = vadd.f32 %v3684, %v3875
      %v3912 = vadd.f32 %v3685, %v3877
      %v3913 = vadd.f32 %v3686, %v3881
      %v3914 = vadd.f32 %v3687, %v3883
      %v3915 = vadd.f32 %v3688, %v3885
      %v3916 = vadd.f32 %v3689, %v3887
      %v3917 = vadd.f32 %v3690, %v3891
      %v3918 = vadd.f32 %v3691, %v3893
      %v3919 = vadd.f32 %v3692, %v3895
      %v3920 = vadd.f32 %v3693, %v3897
      %v3921 = vadd.f32 %v3694, %v3901
      %v3922 = vadd.f32 %v3695, %v3903
      %v3923 = vadd.f32 %v3696, %v3905
      %v3924 = vadd.f32 %v3697, %v3907
      %s3925 = scalar_lea.vmem %s9, 1024
      %v3926 = vld [vmem:[%s3925] sm:$0xff]
      %v3927 = vld [vmem:[%s3925 + $0x8] sm:$0xff]
      %v3928 = vld [vmem:[%s3925 + $0x10] sm:$0xff]
      %v3929 = vld [vmem:[%s3925 + $0x18] sm:$0xff]
      %v3930 = vld [vmem:[%s3925 + $0x20] sm:$0xff]
      %v3931 = vld [vmem:[%s3925 + $0x28] sm:$0xff]
      %v3932 = vld [vmem:[%s3925 + $0x30] sm:$0xff]
      %v3933 = vld [vmem:[%s3925 + $0x38] sm:$0xff]
      %v3934 = vld [vmem:[%s3925 + $0x40] sm:$0xff]
      %v3935 = vld [vmem:[%s3925 + $0x48] sm:$0xff]
      %v3936 = vld [vmem:[%s3925 + $0x50] sm:$0xff]
      %v3937 = vld [vmem:[%s3925 + $0x58] sm:$0xff]
      %v3938 = vld [vmem:[%s3925 + $0x60] sm:$0xff]
      %v3939 = vld [vmem:[%s3925 + $0x68] sm:$0xff]
      %v3940 = vld [vmem:[%s3925 + $0x70] sm:$0xff]
      %v3941 = vld [vmem:[%s3925 + $0x78] sm:$0xff]
      %v3942 = vld [vmem:[%s3925 + $0x80] sm:$0xff]
      %v3943 = vld [vmem:[%s3925 + $0x88] sm:$0xff]
      %v3944 = vld [vmem:[%s3925 + $0x90] sm:$0xff]
      %v3945 = vld [vmem:[%s3925 + $0x98] sm:$0xff]
      %v3946 = vld [vmem:[%s3925 + $0xa0] sm:$0xff]
      %v3947 = vld [vmem:[%s3925 + $0xa8] sm:$0xff]
      %v3948 = vld [vmem:[%s3925 + $0xb0] sm:$0xff]
      %v3949 = vld [vmem:[%s3925 + $0xb8] sm:$0xff]
      %v3950 = vld [vmem:[%s3925 + $0xc0] sm:$0xff]
      %v3951 = vld [vmem:[%s3925 + $0xc8] sm:$0xff]
      %v3952 = vld [vmem:[%s3925 + $0xd0] sm:$0xff]
      %v3953 = vld [vmem:[%s3925 + $0xd8] sm:$0xff]
      %v3954 = vld [vmem:[%s3925 + $0xe0] sm:$0xff]
      %v3955 = vld [vmem:[%s3925 + $0xe8] sm:$0xff]
      %v3956 = vld [vmem:[%s3925 + $0xf0] sm:$0xff]
      %v3957 = vld [vmem:[%s3925 + $0xf8] sm:$0xff]
      %v3967 = vunpack.c.l.b16 %v3707
      %v3968 = vunpack.c.h.b16 %v3707
      %v3969 = vunpack.c.l.b16 %v3708
      %v3970 = vunpack.c.h.b16 %v3708
      %v3971 = vunpack.c.l.b16 %v3709
      %v3972 = vunpack.c.h.b16 %v3709
      %v3973 = vunpack.c.l.b16 %v3710
      %v3974 = vunpack.c.h.b16 %v3710
      %v3975 = vunpack.c.l.b16 %v3711
      %v3976 = vunpack.c.h.b16 %v3711
      %v3977 = vunpack.c.l.b16 %v3712
      %v3978 = vunpack.c.h.b16 %v3712
      %v3979 = vunpack.c.l.b16 %v3713
      %v3980 = vunpack.c.h.b16 %v3713
      %v3981 = vunpack.c.l.b16 %v3714
      %v3982 = vunpack.c.h.b16 %v3714
      %v3983 = vunpack.c.l.b16 %v3715
      %v3984 = vunpack.c.h.b16 %v3715
      %v3985 = vpack.c.b16 %v3969, %v3967
      %v3986 = vpack.c.b16 %v3970, %v3968
      %v3987 = vpack.c.b16 %v3973, %v3971
      %v3988 = vpack.c.b16 %v3974, %v3972
      %v3989 = vpack.c.b16 %v3977, %v3975
      %v3990 = vpack.c.b16 %v3978, %v3976
      %v3991 = vpack.c.b16 %v3981, %v3979
      %v3992 = vpack.c.b16 %v3982, %v3980
      %v3993 = vpack.c.b16 %v3983, %v3983
      %v3994 = vpack.c.b16 %v3984, %v3984
      %v3996 = vshrl.u32 %v3985, 16
      %v3998 = vshll.u32 %v3985, 16
      %v4000 = vrot.slane %v3998, 1
      %v4001 = vor.u32 %v3996, %v4000
      %v4003 = vshll.u32 %v3987, 16
      %v4005 = vrot.slane %v4003, 1
      %v4006 = vsel %vm1970, %v4001, %v4005
      %v4008 = vshrl.u32 %v3986, 16
      %v4010 = vshll.u32 %v3986, 16
      %v4012 = vrot.slane %v4010, 1
      %v4013 = vor.u32 %v4008, %v4012
      %v4015 = vshll.u32 %v3988, 16
      %v4017 = vrot.slane %v4015, 1
      %v4018 = vsel %vm1970, %v4013, %v4017
      %v4019 = vshrl.u32 %v3987, 16
      %v4021 = vor.u32 %v4019, %v4005
      %v4023 = vshll.u32 %v3989, 16
      %v4025 = vrot.slane %v4023, 1
      %v4026 = vsel %vm1970, %v4021, %v4025
      %v4027 = vshrl.u32 %v3988, 16
      %v4029 = vor.u32 %v4027, %v4017
      %v4031 = vshll.u32 %v3990, 16
      %v4033 = vrot.slane %v4031, 1
      %v4034 = vsel %vm1970, %v4029, %v4033
      %v4035 = vshrl.u32 %v3989, 16
      %v4037 = vor.u32 %v4035, %v4025
      %v4039 = vshll.u32 %v3991, 16
      %v4041 = vrot.slane %v4039, 1
      %v4042 = vsel %vm1970, %v4037, %v4041
      %v4043 = vshrl.u32 %v3990, 16
      %v4045 = vor.u32 %v4043, %v4033
      %v4047 = vshll.u32 %v3992, 16
      %v4049 = vrot.slane %v4047, 1
      %v4050 = vsel %vm1970, %v4045, %v4049
      %v4051 = vshrl.u32 %v3991, 16
      %v4053 = vor.u32 %v4051, %v4041
      %v4055 = vshll.u32 %v3993, 16
      %v4057 = vrot.slane %v4055, 1
      %v4058 = vsel %vm1970, %v4053, %v4057
      %v4059 = vshrl.u32 %v3992, 16
      %v4061 = vor.u32 %v4059, %v4049
      %v4063 = vshll.u32 %v3994, 16
      %v4065 = vrot.slane %v4063, 1
      %v4066 = vsel %vm1970, %v4061, %v4065
      %v4107 = vunpack.c.l.b16 %v3926
      %v4108 = vunpack.c.h.b16 %v3926
      %v4109 = vunpack.c.l.b16 %v3927
      %v4110 = vunpack.c.h.b16 %v3927
      %v4111 = vunpack.c.l.b16 %v3928
      %v4112 = vunpack.c.h.b16 %v3928
      %v4113 = vunpack.c.l.b16 %v3929
      %v4114 = vunpack.c.h.b16 %v3929
      %v4115 = vunpack.c.l.b16 %v3930
      %v4116 = vunpack.c.h.b16 %v3930
      %v4117 = vunpack.c.l.b16 %v3931
      %v4118 = vunpack.c.h.b16 %v3931
      %v4119 = vunpack.c.l.b16 %v3932
      %v4120 = vunpack.c.h.b16 %v3932
      %v4121 = vunpack.c.l.b16 %v3933
      %v4122 = vunpack.c.h.b16 %v3933
      %v4123 = vunpack.c.l.b16 %v3934
      %v4124 = vunpack.c.h.b16 %v3934
      %v4125 = vunpack.c.l.b16 %v3935
      %v4126 = vunpack.c.h.b16 %v3935
      %v4127 = vunpack.c.l.b16 %v3936
      %v4128 = vunpack.c.h.b16 %v3936
      %v4129 = vunpack.c.l.b16 %v3937
      %v4130 = vunpack.c.h.b16 %v3937
      %v4131 = vunpack.c.l.b16 %v3938
      %v4132 = vunpack.c.h.b16 %v3938
      %v4133 = vunpack.c.l.b16 %v3939
      %v4134 = vunpack.c.h.b16 %v3939
      %v4135 = vunpack.c.l.b16 %v3940
      %v4136 = vunpack.c.h.b16 %v3940
      %v4137 = vunpack.c.l.b16 %v3941
      %v4138 = vunpack.c.h.b16 %v3941
      %v4139 = vunpack.c.l.b16 %v3942
      %v4140 = vunpack.c.h.b16 %v3942
      %v4141 = vunpack.c.l.b16 %v3943
      %v4142 = vunpack.c.h.b16 %v3943
      %v4143 = vunpack.c.l.b16 %v3944
      %v4144 = vunpack.c.h.b16 %v3944
      %v4145 = vunpack.c.l.b16 %v3945
      %v4146 = vunpack.c.h.b16 %v3945
      %v4147 = vunpack.c.l.b16 %v3946
      %v4148 = vunpack.c.h.b16 %v3946
      %v4149 = vunpack.c.l.b16 %v3947
      %v4150 = vunpack.c.h.b16 %v3947
      %v4151 = vunpack.c.l.b16 %v3948
      %v4152 = vunpack.c.h.b16 %v3948
      %v4153 = vunpack.c.l.b16 %v3949
      %v4154 = vunpack.c.h.b16 %v3949
      %v4155 = vunpack.c.l.b16 %v3950
      %v4156 = vunpack.c.h.b16 %v3950
      %v4157 = vunpack.c.l.b16 %v3951
      %v4158 = vunpack.c.h.b16 %v3951
      %v4159 = vunpack.c.l.b16 %v3952
      %v4160 = vunpack.c.h.b16 %v3952
      %v4161 = vunpack.c.l.b16 %v3953
      %v4162 = vunpack.c.h.b16 %v3953
      %v4163 = vunpack.c.l.b16 %v3954
      %v4164 = vunpack.c.h.b16 %v3954
      %v4165 = vunpack.c.l.b16 %v3955
      %v4166 = vunpack.c.h.b16 %v3955
      %v4167 = vunpack.c.l.b16 %v3956
      %v4168 = vunpack.c.h.b16 %v3956
      %v4169 = vunpack.c.l.b16 %v3957
      %v4170 = vunpack.c.h.b16 %v3957
      %v4171 = vpack.c.b16 %v4109, %v4107
      %v4172 = vpack.c.b16 %v4110, %v4108
      %v4173 = vpack.c.b16 %v4113, %v4111
      %v4174 = vpack.c.b16 %v4114, %v4112
      %v4175 = vpack.c.b16 %v4117, %v4115
      %v4176 = vpack.c.b16 %v4118, %v4116
      %v4177 = vpack.c.b16 %v4121, %v4119
      %v4178 = vpack.c.b16 %v4122, %v4120
      %v4179 = vpack.c.b16 %v4125, %v4123
      %v4180 = vpack.c.b16 %v4126, %v4124
      %v4181 = vpack.c.b16 %v4129, %v4127
      %v4182 = vpack.c.b16 %v4130, %v4128
      %v4183 = vpack.c.b16 %v4133, %v4131
      %v4184 = vpack.c.b16 %v4134, %v4132
      %v4185 = vpack.c.b16 %v4137, %v4135
      %v4186 = vpack.c.b16 %v4138, %v4136
      %v4187 = vpack.c.b16 %v4141, %v4139
      %v4188 = vpack.c.b16 %v4142, %v4140
      %v4189 = vpack.c.b16 %v4145, %v4143
      %v4190 = vpack.c.b16 %v4146, %v4144
      %v4191 = vpack.c.b16 %v4149, %v4147
      %v4192 = vpack.c.b16 %v4150, %v4148
      %v4193 = vpack.c.b16 %v4153, %v4151
      %v4194 = vpack.c.b16 %v4154, %v4152
      %v4195 = vpack.c.b16 %v4157, %v4155
      %v4196 = vpack.c.b16 %v4158, %v4156
      %v4197 = vpack.c.b16 %v4161, %v4159
      %v4198 = vpack.c.b16 %v4162, %v4160
      %v4199 = vpack.c.b16 %v4165, %v4163
      %v4200 = vpack.c.b16 %v4166, %v4164
      %v4201 = vpack.c.b16 %v4169, %v4167
      %v4202 = vpack.c.b16 %v4170, %v4168
      %4235 = vmatprep.subr.bf16.mxu0 %v4172
      %4236 = vmatpush1.bf16.msra.mxu0 %v4171
      %4237 = vmatprep.subr.bf16.mxu0 %v4174
      %4238 = vmatpush1.bf16.msra.mxu0 %v4173
      %4239 = vmatprep.subr.bf16.mxu0 %v4176
      %4240 = vmatpush1.bf16.msra.mxu0 %v4175
      %4241 = vmatprep.subr.bf16.mxu0 %v4178
      %4242 = vmatpush1.bf16.msra.mxu0 %v4177
      %4243 = vmatprep.subr.bf16.mxu0 %v4180
      %4244 = vmatpush1.bf16.msra.mxu0 %v4179
      %4245 = vmatprep.subr.bf16.mxu0 %v4182
      %4246 = vmatpush1.bf16.msra.mxu0 %v4181
      %4247 = vmatprep.subr.bf16.mxu0 %v4184
      %4248 = vmatpush1.bf16.msra.mxu0 %v4183
      %4249 = vmatprep.subr.bf16.mxu0 %v4186
      %4250 = vmatpush1.bf16.msra.mxu0 %v4185
      %4251 = vmatprep.subr.bf16.mxu0 %v4188
      %4252 = vmatpush1.bf16.msra.mxu0 %v4187
      %4253 = vmatprep.subr.bf16.mxu0 %v4190
      %4254 = vmatpush1.bf16.msra.mxu0 %v4189
      %4255 = vmatprep.subr.bf16.mxu0 %v4192
      %4256 = vmatpush1.bf16.msra.mxu0 %v4191
      %4257 = vmatprep.subr.bf16.mxu0 %v4194
      %4258 = vmatpush1.bf16.msra.mxu0 %v4193
      %4259 = vmatprep.subr.bf16.mxu0 %v4196
      %4260 = vmatpush1.bf16.msra.mxu0 %v4195
      %4261 = vmatprep.subr.bf16.mxu0 %v4198
      %4262 = vmatpush1.bf16.msra.mxu0 %v4197
      %4263 = vmatprep.subr.bf16.mxu0 %v4200
      %4264 = vmatpush1.bf16.msra.mxu0 %v4199
      %4265 = vmatprep.subr.bf16.mxu0 %v4202
      %4266 = vmatpush1.bf16.msra.mxu0 %v4201
      %4267 = vmatprep.mubr.bf16.mxu0 %v4018
      %4268 = vmatmul.mubr.bf16.gmra.mrb[0].mxu0 %v4006
      %v4269 = vpop.f32.mrb[0].mxu0
      %v4270 = vadd.f32 0.0, %v4269
      %v4271 = vpop.f32.mrb[0].mxu0
      %v4272 = vadd.f32 0.0, %v4271
      %v4273 = vpop.f32.mrb[0].mxu0
      %v4274 = vadd.f32 0.0, %v4273
      %v4275 = vpop.f32.mrb[0].mxu0
      %v4276 = vadd.f32 0.0, %v4275
      %4277 = vmatprep.mubr.bf16.mxu0 %v4034
      %4278 = vmatmul.mubr.bf16.gmra.mrb[0].mxu0 %v4026
      %v4279 = vpop.f32.mrb[0].mxu0
      %v4280 = vadd.f32 0.0, %v4279
      %v4281 = vpop.f32.mrb[0].mxu0
      %v4282 = vadd.f32 0.0, %v4281
      %v4283 = vpop.f32.mrb[0].mxu0
      %v4284 = vadd.f32 0.0, %v4283
      %v4285 = vpop.f32.mrb[0].mxu0
      %v4286 = vadd.f32 0.0, %v4285
      %4287 = vmatprep.mubr.bf16.mxu0 %v4050
      %4288 = vmatmul.mubr.bf16.gmra.mrb[0].mxu0 %v4042
      %v4289 = vpop.f32.mrb[0].mxu0
      %v4290 = vadd.f32 0.0, %v4289
      %v4291 = vpop.f32.mrb[0].mxu0
      %v4292 = vadd.f32 0.0, %v4291
      %v4293 = vpop.f32.mrb[0].mxu0
      %v4294 = vadd.f32 0.0, %v4293
      %v4295 = vpop.f32.mrb[0].mxu0
      %v4296 = vadd.f32 0.0, %v4295
      %4297 = vmatprep.mubr.bf16.mxu0 %v4066
      %4298 = vmatmul.mubr.bf16.gmra.mrb[0].mxu0 %v4058
      %v4299 = vpop.f32.mrb[0].mxu0
      %v4300 = vadd.f32 0.0, %v4299
      %v4301 = vpop.f32.mrb[0].mxu0
      %v4302 = vadd.f32 0.0, %v4301
      %v4303 = vpop.f32.mrb[0].mxu0
      %v4304 = vadd.f32 0.0, %v4303
      %v4305 = vpop.f32.mrb[0].mxu0
      %v4306 = vadd.f32 0.0, %v4305
      %4307 = vdwg.mxu0
      %v4308 = vadd.f32 %v3909, %v4270
      %v4309 = vadd.f32 %v3910, %v4272
      %v4310 = vadd.f32 %v3911, %v4274
      %v4311 = vadd.f32 %v3912, %v4276
      %v4312 = vadd.f32 %v3913, %v4280
      %v4313 = vadd.f32 %v3914, %v4282
      %v4314 = vadd.f32 %v3915, %v4284
      %v4315 = vadd.f32 %v3916, %v4286
      %v4316 = vadd.f32 %v3917, %v4290
      %v4317 = vadd.f32 %v3918, %v4292
      %v4318 = vadd.f32 %v3919, %v4294
      %v4319 = vadd.f32 %v3920, %v4296
      %v4320 = vadd.f32 %v3921, %v4300
      %v4321 = vadd.f32 %v3922, %v4302
      %v4322 = vadd.f32 %v3923, %v4304
      %v4323 = vadd.f32 %v3924, %v4306
      %v4324 = vld [vmem:[#allocation2 + $0x4] sm:$0xe]
      %v4325 = vld [vmem:[#allocation3 + $0x8] sm:$0xee]
      %v4326 = vmul.bf16 %v4324, %v2610
      %v4327 = vmul.bf16 %v3699, %v2613
      %v4328 = vmul.bf16 %v3700, %v2616
      %v4329 = vmul.bf16 %v3701, %v2619
      %v4330 = vmul.bf16 %v3702, %v2622
      %v4331 = vmul.bf16 %v3703, %v2625
      %v4332 = vmul.bf16 %v3704, %v2628
      %v4333 = vmul.bf16 %v3705, %v2631
      %v4334 = vmul.bf16 %v3706, %v2632
      %v4335 = vmul.bf16 %v4325, %v2610
      %v4336 = vmul.bf16 %v3708, %v2613
      %v4337 = vmul.bf16 %v3709, %v2616
      %v4338 = vmul.bf16 %v3710, %v2619
      %v4339 = vmul.bf16 %v3711, %v2622
      %v4340 = vmul.bf16 %v3712, %v2625
      %v4341 = vmul.bf16 %v3713, %v2628
      %v4342 = vmul.bf16 %v3714, %v2631
      %v4343 = vmul.bf16 %v3715, %v2632
      %s4344 = scalar_lea.vmem %s8, 320
      %v4345 = vld [vmem:[%s4344] sm:$0xff]
      %v4346 = vld [vmem:[%s4344 + $0x8] sm:$0xff]
      %v4347 = vld [vmem:[%s4344 + $0x10] sm:$0xff]
      %v4348 = vld [vmem:[%s4344 + $0x18] sm:$0xff]
      %v4349 = vld [vmem:[%s4344 + $0x20] sm:$0xff]
      %v4350 = vld [vmem:[%s4344 + $0x28] sm:$0xff]
      %v4351 = vld [vmem:[%s4344 + $0x30] sm:$0xff]
      %v4352 = vld [vmem:[%s4344 + $0x38] sm:$0xff]
      %v4362 = vunpack.c.l.b16 %v4326
      %v4363 = vunpack.c.l.b16 %v4327
      %v4364 = vunpack.c.l.b16 %v4328
      %v4365 = vunpack.c.l.b16 %v4329
      %v4366 = vunpack.c.l.b16 %v4330
      %v4367 = vunpack.c.l.b16 %v4331
      %v4368 = vunpack.c.l.b16 %v4332
      %v4369 = vunpack.c.l.b16 %v4333
      %v4370 = vunpack.c.l.b16 %v4334
      %v4371 = vpack.c.b16 %v4363, %v4362
      %v4372 = vpack.c.b16 %v4365, %v4364
      %v4373 = vpack.c.b16 %v4367, %v4366
      %v4374 = vpack.c.b16 %v4369, %v4368
      %v4375 = vpack.c.b16 %v4370, %v4370
      %v4376 = vrot.slane %v4371, 1
      %v4377 = vrot.slane %v4372, 1
      %v4378 = vsel %vm2692, %v4376, %v4377
      %v4379 = vrot.slane %v4373, 1
      %v4380 = vsel %vm2692, %v4377, %v4379
      %v4381 = vrot.slane %v4374, 1
      %v4382 = vsel %vm2692, %v4379, %v4381
      %v4383 = vrot.slane %v4375, 1
      %v4384 = vsel %vm2692, %v4381, %v4383
      %v4393 = vunpack.c.l.b16 %v4345
      %v4394 = vunpack.c.h.b16 %v4345
      %v4395 = vunpack.c.l.b16 %v4346
      %v4396 = vunpack.c.h.b16 %v4346
      %v4397 = vunpack.c.l.b16 %v4347
      %v4398 = vunpack.c.h.b16 %v4347
      %v4399 = vunpack.c.l.b16 %v4348
      %v4400 = vunpack.c.h.b16 %v4348
      %v4401 = vunpack.c.l.b16 %v4349
      %v4402 = vunpack.c.h.b16 %v4349
      %v4403 = vunpack.c.l.b16 %v4350
      %v4404 = vunpack.c.h.b16 %v4350
      %v4405 = vunpack.c.l.b16 %v4351
      %v4406 = vunpack.c.h.b16 %v4351
      %v4407 = vunpack.c.l.b16 %v4352
      %v4408 = vunpack.c.h.b16 %v4352
      %v4409 = vpack.c.b16 %v4395, %v4393
      %v4410 = vpack.c.b16 %v4396, %v4394
      %v4411 = vpack.c.b16 %v4399, %v4397
      %v4412 = vpack.c.b16 %v4400, %v4398
      %v4413 = vpack.c.b16 %v4403, %v4401
      %v4414 = vpack.c.b16 %v4404, %v4402
      %v4415 = vpack.c.b16 %v4407, %v4405
      %v4416 = vpack.c.b16 %v4408, %v4406
      %v4426 = vsel %vm1834, %v4378, 0
      %v4429 = vsel %vm1834, %v4380, 0
      %v4432 = vsel %vm1834, %v4382, 0
      %v4435 = vsel %vm1834, %v4384, 0
      %4437 = vmatprep.subr.bf16.mxu0 %v4410
      %4438 = vmatpush1.bf16.msra.mxu0 %v4409
      %4439 = vmatprep.subr.bf16.mxu0 %v4412
      %4440 = vmatpush1.bf16.msra.mxu0 %v4411
      %4441 = vmatprep.subr.bf16.mxu0 %v4414
      %4442 = vmatpush1.bf16.msra.mxu0 %v4413
      %4443 = vmatprep.subr.bf16.mxu0 %v4416
      %4444 = vmatpush1.bf16.msra.mxu0 %v4415
      %4445 = vmatprep.subr.bf16.mxu0 0
      %4446 = vmatpush1.bf16.msra.mxu0 0
      %4447 = vmatprep.subr.bf16.mxu0 0
      %4448 = vmatpush1.bf16.msra.mxu0 0
      %4449 = vmatprep.subr.bf16.mxu0 0
      %4450 = vmatpush1.bf16.msra.mxu0 0
      %4451 = vmatprep.subr.bf16.mxu0 0
      %4452 = vmatpush1.bf16.msra.mxu0 0
      %4453 = vmatprep.subr.bf16.mxu0 0
      %4454 = vmatpush1.bf16.msra.mxu0 0
      %4455 = vmatprep.subr.bf16.mxu0 0
      %4456 = vmatpush1.bf16.msra.mxu0 0
      %4457 = vmatprep.subr.bf16.mxu0 0
      %4458 = vmatpush1.bf16.msra.mxu0 0
      %4459 = vmatprep.subr.bf16.mxu0 0
      %4460 = vmatpush1.bf16.msra.mxu0 0
      %4461 = vmatprep.subr.bf16.mxu0 0
      %4462 = vmatpush1.bf16.msra.mxu0 0
      %4463 = vmatprep.subr.bf16.mxu0 0
      %4464 = vmatpush1.bf16.msra.mxu0 0
      %4465 = vmatprep.subr.bf16.mxu0 0
      %4466 = vmatpush1.bf16.msra.mxu0 0
      %4467 = vmatprep.subr.bf16.mxu0 0
      %4468 = vmatpush1.bf16.msra.mxu0 0
      %4469 = vmatprep.mubr.bf16.mxu0 0
      %4470 = vmatmul.mubr.bf16.gmra.mrb[0].mxu0 %v4426
      %v4471 = vpop.f32.mrb[0].mxu0
      %v4472 = vadd.f32 0.0, %v4471
      %v4473 = vpop.f32.mrb[0].mxu0
      %v4474 = vadd.f32 0.0, %v4473
      %v4475 = vpop.f32.mrb[0].mxu0
      %v4476 = vadd.f32 0.0, %v4475
      %v4477 = vpop.f32.mrb[0].mxu0
      %v4478 = vadd.f32 0.0, %v4477
      %4479 = vmatprep.mubr.bf16.mxu0 0
      %4480 = vmatmul.mubr.bf16.gmra.mrb[0].mxu0 %v4429
      %v4481 = vpop.f32.mrb[0].mxu0
      %v4482 = vadd.f32 0.0, %v4481
      %v4483 = vpop.f32.mrb[0].mxu0
      %v4484 = vadd.f32 0.0, %v4483
      %v4485 = vpop.f32.mrb[0].mxu0
      %v4486 = vadd.f32 0.0, %v4485
      %v4487 = vpop.f32.mrb[0].mxu0
      %v4488 = vadd.f32 0.0, %v4487
      %4489 = vmatprep.mubr.bf16.mxu0 0
      %4490 = vmatmul.mubr.bf16.gmra.mrb[0].mxu0 %v4432
      %v4491 = vpop.f32.mrb[0].mxu0
      %v4492 = vadd.f32 0.0, %v4491
      %v4493 = vpop.f32.mrb[0].mxu0
      %v4494 = vadd.f32 0.0, %v4493
      %v4495 = vpop.f32.mrb[0].mxu0
      %v4496 = vadd.f32 0.0, %v4495
      %v4497 = vpop.f32.mrb[0].mxu0
      %v4498 = vadd.f32 0.0, %v4497
      %4499 = vmatprep.mubr.bf16.mxu0 0
      %4500 = vmatmul.mubr.bf16.gmra.mrb[0].mxu0 %v4435
      %v4501 = vpop.f32.mrb[0].mxu0
      %v4502 = vadd.f32 0.0, %v4501
      %v4503 = vpop.f32.mrb[0].mxu0
      %v4504 = vadd.f32 0.0, %v4503
      %v4505 = vpop.f32.mrb[0].mxu0
      %v4506 = vadd.f32 0.0, %v4505
      %v4507 = vpop.f32.mrb[0].mxu0
      %v4508 = vadd.f32 0.0, %v4507
      %4509 = vdwg.mxu0
      %v4510 = vadd.f32 %v4308, %v4472
      %v4511 = vadd.f32 %v4309, %v4474
      %v4512 = vadd.f32 %v4310, %v4476
      %v4513 = vadd.f32 %v4311, %v4478
      %v4514 = vadd.f32 %v4312, %v4482
      %v4515 = vadd.f32 %v4313, %v4484
      %v4516 = vadd.f32 %v4314, %v4486
      %v4517 = vadd.f32 %v4315, %v4488
      %v4518 = vadd.f32 %v4316, %v4492
      %v4519 = vadd.f32 %v4317, %v4494
      %v4520 = vadd.f32 %v4318, %v4496
      %v4521 = vadd.f32 %v4319, %v4498
      %v4522 = vadd.f32 %v4320, %v4502
      %v4523 = vadd.f32 %v4321, %v4504
      %v4524 = vadd.f32 %v4322, %v4506
      %v4525 = vadd.f32 %v4323, %v4508
      %s4526 = scalar_lea.vmem %s9, 1280
      %v4527 = vld [vmem:[%s4526] sm:$0xff]
      %v4528 = vld [vmem:[%s4526 + $0x8] sm:$0xff]
      %v4529 = vld [vmem:[%s4526 + $0x10] sm:$0xff]
      %v4530 = vld [vmem:[%s4526 + $0x18] sm:$0xff]
      %v4531 = vld [vmem:[%s4526 + $0x20] sm:$0xff]
      %v4532 = vld [vmem:[%s4526 + $0x28] sm:$0xff]
      %v4533 = vld [vmem:[%s4526 + $0x30] sm:$0xff]
      %v4534 = vld [vmem:[%s4526 + $0x38] sm:$0xff]
      %v4535 = vld [vmem:[%s4526 + $0x40] sm:$0xff]
      %v4536 = vld [vmem:[%s4526 + $0x48] sm:$0xff]
      %v4537 = vld [vmem:[%s4526 + $0x50] sm:$0xff]
      %v4538 = vld [vmem:[%s4526 + $0x58] sm:$0xff]
      %v4539 = vld [vmem:[%s4526 + $0x60] sm:$0xff]
      %v4540 = vld [vmem:[%s4526 + $0x68] sm:$0xff]
      %v4541 = vld [vmem:[%s4526 + $0x70] sm:$0xff]
      %v4542 = vld [vmem:[%s4526 + $0x78] sm:$0xff]
      %v4543 = vld [vmem:[%s4526 + $0x80] sm:$0xff]
      %v4544 = vld [vmem:[%s4526 + $0x88] sm:$0xff]
      %v4545 = vld [vmem:[%s4526 + $0x90] sm:$0xff]
      %v4546 = vld [vmem:[%s4526 + $0x98] sm:$0xff]
      %v4547 = vld [vmem:[%s4526 + $0xa0] sm:$0xff]
      %v4548 = vld [vmem:[%s4526 + $0xa8] sm:$0xff]
      %v4549 = vld [vmem:[%s4526 + $0xb0] sm:$0xff]
      %v4550 = vld [vmem:[%s4526 + $0xb8] sm:$0xff]
      %v4551 = vld [vmem:[%s4526 + $0xc0] sm:$0xff]
      %v4552 = vld [vmem:[%s4526 + $0xc8] sm:$0xff]
      %v4553 = vld [vmem:[%s4526 + $0xd0] sm:$0xff]
      %v4554 = vld [vmem:[%s4526 + $0xd8] sm:$0xff]
      %v4555 = vld [vmem:[%s4526 + $0xe0] sm:$0xff]
      %v4556 = vld [vmem:[%s4526 + $0xe8] sm:$0xff]
      %v4557 = vld [vmem:[%s4526 + $0xf0] sm:$0xff]
      %v4558 = vld [vmem:[%s4526 + $0xf8] sm:$0xff]
      %v4568 = vunpack.c.l.b16 %v4335
      %v4569 = vunpack.c.h.b16 %v4335
      %v4570 = vunpack.c.l.b16 %v4336
      %v4571 = vunpack.c.h.b16 %v4336
      %v4572 = vunpack.c.l.b16 %v4337
      %v4573 = vunpack.c.h.b16 %v4337
      %v4574 = vunpack.c.l.b16 %v4338
      %v4575 = vunpack.c.h.b16 %v4338
      %v4576 = vunpack.c.l.b16 %v4339
      %v4577 = vunpack.c.h.b16 %v4339
      %v4578 = vunpack.c.l.b16 %v4340
      %v4579 = vunpack.c.h.b16 %v4340
      %v4580 = vunpack.c.l.b16 %v4341
      %v4581 = vunpack.c.h.b16 %v4341
      %v4582 = vunpack.c.l.b16 %v4342
      %v4583 = vunpack.c.h.b16 %v4342
      %v4584 = vunpack.c.l.b16 %v4343
      %v4585 = vunpack.c.h.b16 %v4343
      %v4586 = vpack.c.b16 %v4570, %v4568
      %v4587 = vpack.c.b16 %v4571, %v4569
      %v4588 = vpack.c.b16 %v4574, %v4572
      %v4589 = vpack.c.b16 %v4575, %v4573
      %v4590 = vpack.c.b16 %v4578, %v4576
      %v4591 = vpack.c.b16 %v4579, %v4577
      %v4592 = vpack.c.b16 %v4582, %v4580
      %v4593 = vpack.c.b16 %v4583, %v4581
      %v4594 = vpack.c.b16 %v4584, %v4584
      %v4595 = vpack.c.b16 %v4585, %v4585
      %v4596 = vrot.slane %v4586, 1
      %v4597 = vrot.slane %v4588, 1
      %v4598 = vsel %vm2692, %v4596, %v4597
      %v4599 = vrot.slane %v4587, 1
      %v4600 = vrot.slane %v4589, 1
      %v4601 = vsel %vm2692, %v4599, %v4600
      %v4602 = vrot.slane %v4590, 1
      %v4603 = vsel %vm2692, %v4597, %v4602
      %v4604 = vrot.slane %v4591, 1
      %v4605 = vsel %vm2692, %v4600, %v4604
      %v4606 = vrot.slane %v4592, 1
      %v4607 = vsel %vm2692, %v4602, %v4606
      %v4608 = vrot.slane %v4593, 1
      %v4609 = vsel %vm2692, %v4604, %v4608
      %v4610 = vrot.slane %v4594, 1
      %v4611 = vsel %vm2692, %v4606, %v4610
      %v4612 = vrot.slane %v4595, 1
      %v4613 = vsel %vm2692, %v4608, %v4612
      %v4654 = vunpack.c.l.b16 %v4527
      %v4655 = vunpack.c.h.b16 %v4527
      %v4656 = vunpack.c.l.b16 %v4528
      %v4657 = vunpack.c.h.b16 %v4528
      %v4658 = vunpack.c.l.b16 %v4529
      %v4659 = vunpack.c.h.b16 %v4529
      %v4660 = vunpack.c.l.b16 %v4530
      %v4661 = vunpack.c.h.b16 %v4530
      %v4662 = vunpack.c.l.b16 %v4531
      %v4663 = vunpack.c.h.b16 %v4531
      %v4664 = vunpack.c.l.b16 %v4532
      %v4665 = vunpack.c.h.b16 %v4532
      %v4666 = vunpack.c.l.b16 %v4533
      %v4667 = vunpack.c.h.b16 %v4533
      %v4668 = vunpack.c.l.b16 %v4534
      %v4669 = vunpack.c.h.b16 %v4534
      %v4670 = vunpack.c.l.b16 %v4535
      %v4671 = vunpack.c.h.b16 %v4535
      %v4672 = vunpack.c.l.b16 %v4536
      %v4673 = vunpack.c.h.b16 %v4536
      %v4674 = vunpack.c.l.b16 %v4537
      %v4675 = vunpack.c.h.b16 %v4537
      %v4676 = vunpack.c.l.b16 %v4538
      %v4677 = vunpack.c.h.b16 %v4538
      %v4678 = vunpack.c.l.b16 %v4539
      %v4679 = vunpack.c.h.b16 %v4539
      %v4680 = vunpack.c.l.b16 %v4540
      %v4681 = vunpack.c.h.b16 %v4540
      %v4682 = vunpack.c.l.b16 %v4541
      %v4683 = vunpack.c.h.b16 %v4541
      %v4684 = vunpack.c.l.b16 %v4542
      %v4685 = vunpack.c.h.b16 %v4542
      %v4686 = vunpack.c.l.b16 %v4543
      %v4687 = vunpack.c.h.b16 %v4543
      %v4688 = vunpack.c.l.b16 %v4544
      %v4689 = vunpack.c.h.b16 %v4544
      %v4690 = vunpack.c.l.b16 %v4545
      %v4691 = vunpack.c.h.b16 %v4545
      %v4692 = vunpack.c.l.b16 %v4546
      %v4693 = vunpack.c.h.b16 %v4546
      %v4694 = vunpack.c.l.b16 %v4547
      %v4695 = vunpack.c.h.b16 %v4547
      %v4696 = vunpack.c.l.b16 %v4548
      %v4697 = vunpack.c.h.b16 %v4548
      %v4698 = vunpack.c.l.b16 %v4549
      %v4699 = vunpack.c.h.b16 %v4549
      %v4700 = vunpack.c.l.b16 %v4550
      %v4701 = vunpack.c.h.b16 %v4550
      %v4702 = vunpack.c.l.b16 %v4551
      %v4703 = vunpack.c.h.b16 %v4551
      %v4704 = vunpack.c.l.b16 %v4552
      %v4705 = vunpack.c.h.b16 %v4552
      %v4706 = vunpack.c.l.b16 %v4553
      %v4707 = vunpack.c.h.b16 %v4553
      %v4708 = vunpack.c.l.b16 %v4554
      %v4709 = vunpack.c.h.b16 %v4554
      %v4710 = vunpack.c.l.b16 %v4555
      %v4711 = vunpack.c.h.b16 %v4555
      %v4712 = vunpack.c.l.b16 %v4556
      %v4713 = vunpack.c.h.b16 %v4556
      %v4714 = vunpack.c.l.b16 %v4557
      %v4715 = vunpack.c.h.b16 %v4557
      %v4716 = vunpack.c.l.b16 %v4558
      %v4717 = vunpack.c.h.b16 %v4558
      %v4718 = vpack.c.b16 %v4656, %v4654
      %v4719 = vpack.c.b16 %v4657, %v4655
      %v4720 = vpack.c.b16 %v4660, %v4658
      %v4721 = vpack.c.b16 %v4661, %v4659
      %v4722 = vpack.c.b16 %v4664, %v4662
      %v4723 = vpack.c.b16 %v4665, %v4663
      %v4724 = vpack.c.b16 %v4668, %v4666
      %v4725 = vpack.c.b16 %v4669, %v4667
      %v4726 = vpack.c.b16 %v4672, %v4670
      %v4727 = vpack.c.b16 %v4673, %v4671
      %v4728 = vpack.c.b16 %v4676, %v4674
      %v4729 = vpack.c.b16 %v4677, %v4675
      %v4730 = vpack.c.b16 %v4680, %v4678
      %v4731 = vpack.c.b16 %v4681, %v4679
      %v4732 = vpack.c.b16 %v4684, %v4682
      %v4733 = vpack.c.b16 %v4685, %v4683
      %v4734 = vpack.c.b16 %v4688, %v4686
      %v4735 = vpack.c.b16 %v4689, %v4687
      %v4736 = vpack.c.b16 %v4692, %v4690
      %v4737 = vpack.c.b16 %v4693, %v4691
      %v4738 = vpack.c.b16 %v4696, %v4694
      %v4739 = vpack.c.b16 %v4697, %v4695
      %v4740 = vpack.c.b16 %v4700, %v4698
      %v4741 = vpack.c.b16 %v4701, %v4699
      %v4742 = vpack.c.b16 %v4704, %v4702
      %v4743 = vpack.c.b16 %v4705, %v4703
      %v4744 = vpack.c.b16 %v4708, %v4706
      %v4745 = vpack.c.b16 %v4709, %v4707
      %v4746 = vpack.c.b16 %v4712, %v4710
      %v4747 = vpack.c.b16 %v4713, %v4711
      %v4748 = vpack.c.b16 %v4716, %v4714
      %v4749 = vpack.c.b16 %v4717, %v4715
      %4782 = vmatprep.subr.bf16.mxu0 %v4719
      %4783 = vmatpush1.bf16.msra.mxu0 %v4718
      %4784 = vmatprep.subr.bf16.mxu0 %v4721
      %4785 = vmatpush1.bf16.msra.mxu0 %v4720
      %4786 = vmatprep.subr.bf16.mxu0 %v4723
      %4787 = vmatpush1.bf16.msra.mxu0 %v4722
      %4788 = vmatprep.subr.bf16.mxu0 %v4725
      %4789 = vmatpush1.bf16.msra.mxu0 %v4724
      %4790 = vmatprep.subr.bf16.mxu0 %v4727
      %4791 = vmatpush1.bf16.msra.mxu0 %v4726
      %4792 = vmatprep.subr.bf16.mxu0 %v4729
      %4793 = vmatpush1.bf16.msra.mxu0 %v4728
      %4794 = vmatprep.subr.bf16.mxu0 %v4731
      %4795 = vmatpush1.bf16.msra.mxu0 %v4730
      %4796 = vmatprep.subr.bf16.mxu0 %v4733
      %4797 = vmatpush1.bf16.msra.mxu0 %v4732
      %4798 = vmatprep.subr.bf16.mxu0 %v4735
      %4799 = vmatpush1.bf16.msra.mxu0 %v4734
      %4800 = vmatprep.subr.bf16.mxu0 %v4737
      %4801 = vmatpush1.bf16.msra.mxu0 %v4736
      %4802 = vmatprep.subr.bf16.mxu0 %v4739
      %4803 = vmatpush1.bf16.msra.mxu0 %v4738
      %4804 = vmatprep.subr.bf16.mxu0 %v4741
      %4805 = vmatpush1.bf16.msra.mxu0 %v4740
      %4806 = vmatprep.subr.bf16.mxu0 %v4743
      %4807 = vmatpush1.bf16.msra.mxu0 %v4742
      %4808 = vmatprep.subr.bf16.mxu0 %v4745
      %4809 = vmatpush1.bf16.msra.mxu0 %v4744
      %4810 = vmatprep.subr.bf16.mxu0 %v4747
      %4811 = vmatpush1.bf16.msra.mxu0 %v4746
      %4812 = vmatprep.subr.bf16.mxu0 %v4749
      %4813 = vmatpush1.bf16.msra.mxu0 %v4748
      %4814 = vmatprep.mubr.bf16.mxu0 %v4601
      %4815 = vmatmul.mubr.bf16.gmra.mrb[0].mxu0 %v4598
      %v4816 = vpop.f32.mrb[0].mxu0
      %v4817 = vadd.f32 0.0, %v4816
      %v4818 = vpop.f32.mrb[0].mxu0
      %v4819 = vadd.f32 0.0, %v4818
      %v4820 = vpop.f32.mrb[0].mxu0
      %v4821 = vadd.f32 0.0, %v4820
      %v4822 = vpop.f32.mrb[0].mxu0
      %v4823 = vadd.f32 0.0, %v4822
      %4824 = vmatprep.mubr.bf16.mxu0 %v4605
      %4825 = vmatmul.mubr.bf16.gmra.mrb[0].mxu0 %v4603
      %v4826 = vpop.f32.mrb[0].mxu0
      %v4827 = vadd.f32 0.0, %v4826
      %v4828 = vpop.f32.mrb[0].mxu0
      %v4829 = vadd.f32 0.0, %v4828
      %v4830 = vpop.f32.mrb[0].mxu0
      %v4831 = vadd.f32 0.0, %v4830
      %v4832 = vpop.f32.mrb[0].mxu0
      %v4833 = vadd.f32 0.0, %v4832
      %4834 = vmatprep.mubr.bf16.mxu0 %v4609
      %4835 = vmatmul.mubr.bf16.gmra.mrb[0].mxu0 %v4607
      %v4836 = vpop.f32.mrb[0].mxu0
      %v4837 = vadd.f32 0.0, %v4836
      %v4838 = vpop.f32.mrb[0].mxu0
      %v4839 = vadd.f32 0.0, %v4838
      %v4840 = vpop.f32.mrb[0].mxu0
      %v4841 = vadd.f32 0.0, %v4840
      %v4842 = vpop.f32.mrb[0].mxu0
      %v4843 = vadd.f32 0.0, %v4842
      %4844 = vmatprep.mubr.bf16.mxu0 %v4613
      %4845 = vmatmul.mubr.bf16.gmra.mrb[0].mxu0 %v4611
      %v4846 = vpop.f32.mrb[0].mxu0
      %v4847 = vadd.f32 0.0, %v4846
      %v4848 = vpop.f32.mrb[0].mxu0
      %v4849 = vadd.f32 0.0, %v4848
      %v4850 = vpop.f32.mrb[0].mxu0
      %v4851 = vadd.f32 0.0, %v4850
      %v4852 = vpop.f32.mrb[0].mxu0
      %v4853 = vadd.f32 0.0, %v4852
      %4854 = vdwg.mxu0
      %v4855 = vadd.f32 %v4510, %v4817
      %v4856 = vadd.f32 %v4511, %v4819
      %v4857 = vadd.f32 %v4512, %v4821
      %v4858 = vadd.f32 %v4513, %v4823
      %v4859 = vadd.f32 %v4514, %v4827
      %v4860 = vadd.f32 %v4515, %v4829
      %v4861 = vadd.f32 %v4516, %v4831
      %v4862 = vadd.f32 %v4517, %v4833
      %v4863 = vadd.f32 %v4518, %v4837
      %v4864 = vadd.f32 %v4519, %v4839
      %v4865 = vadd.f32 %v4520, %v4841
      %v4866 = vadd.f32 %v4521, %v4843
      %v4867 = vadd.f32 %v4522, %v4847
      %v4868 = vadd.f32 %v4523, %v4849
      %v4869 = vadd.f32 %v4524, %v4851
      %v4870 = vadd.f32 %v4525, %v4853
      %v4871 = vld [vmem:[#allocation2 + $0x24] sm:$0xf]
      %v4872 = vld [vmem:[#allocation3 + $0x48] sm:$0xff]
      %v4873 = vmul.bf16 %v3699, %v1387
      %v4874 = vmul.bf16 %v3700, %v1394
      %v4875 = vmul.bf16 %v3701, %v1401
      %v4876 = vmul.bf16 %v3702, %v1408
      %v4877 = vmul.bf16 %v3703, %v1415
      %v4878 = vmul.bf16 %v3704, %v1422
      %v4879 = vmul.bf16 %v3705, %v1429
      %v4880 = vmul.bf16 %v4871, %v1436
      %v4881 = vmul.bf16 %v3708, %v1387
      %v4882 = vmul.bf16 %v3709, %v1394
      %v4883 = vmul.bf16 %v3710, %v1401
      %v4884 = vmul.bf16 %v3711, %v1408
      %v4885 = vmul.bf16 %v3712, %v1415
      %v4886 = vmul.bf16 %v3713, %v1422
      %v4887 = vmul.bf16 %v3714, %v1429
      %v4888 = vmul.bf16 %v4872, %v1436
      %s4889 = scalar_lea.vmem %s8, 384
      %v4890 = vld [vmem:[%s4889] sm:$0xff]
      %v4891 = vld [vmem:[%s4889 + $0x8] sm:$0xff]
      %v4892 = vld [vmem:[%s4889 + $0x10] sm:$0xff]
      %v4893 = vld [vmem:[%s4889 + $0x18] sm:$0xff]
      %v4894 = vld [vmem:[%s4889 + $0x20] sm:$0xff]
      %v4895 = vld [vmem:[%s4889 + $0x28] sm:$0xff]
      %v4896 = vld [vmem:[%s4889 + $0x30] sm:$0xff]
      %v4897 = vld [vmem:[%s4889 + $0x38] sm:$0xff]
      %v4906 = vunpack.c.l.b16 %v4873
      %v4907 = vunpack.c.l.b16 %v4874
      %v4908 = vunpack.c.l.b16 %v4875
      %v4909 = vunpack.c.l.b16 %v4876
      %v4910 = vunpack.c.l.b16 %v4877
      %v4911 = vunpack.c.l.b16 %v4878
      %v4912 = vunpack.c.l.b16 %v4879
      %v4913 = vunpack.c.l.b16 %v4880
      %v4914 = vpack.c.b16 %v4907, %v4906
      %v4915 = vpack.c.b16 %v4909, %v4908
      %v4916 = vpack.c.b16 %v4911, %v4910
      %v4917 = vpack.c.b16 %v4913, %v4912
      %v4926 = vunpack.c.l.b16 %v4890
      %v4927 = vunpack.c.h.b16 %v4890
      %v4928 = vunpack.c.l.b16 %v4891
      %v4929 = vunpack.c.h.b16 %v4891
      %v4930 = vunpack.c.l.b16 %v4892
      %v4931 = vunpack.c.h.b16 %v4892
      %v4932 = vunpack.c.l.b16 %v4893
      %v4933 = vunpack.c.h.b16 %v4893
      %v4934 = vunpack.c.l.b16 %v4894
      %v4935 = vunpack.c.h.b16 %v4894
      %v4936 = vunpack.c.l.b16 %v4895
      %v4937 = vunpack.c.h.b16 %v4895
      %v4938 = vunpack.c.l.b16 %v4896
      %v4939 = vunpack.c.h.b16 %v4896
      %v4940 = vunpack.c.l.b16 %v4897
      %v4941 = vunpack.c.h.b16 %v4897
      %v4942 = vpack.c.b16 %v4928, %v4926
      %v4943 = vpack.c.b16 %v4929, %v4927
      %v4944 = vpack.c.b16 %v4932, %v4930
      %v4945 = vpack.c.b16 %v4933, %v4931
      %v4946 = vpack.c.b16 %v4936, %v4934
      %v4947 = vpack.c.b16 %v4937, %v4935
      %v4948 = vpack.c.b16 %v4940, %v4938
      %v4949 = vpack.c.b16 %v4941, %v4939
      %v4959 = vsel %vm1834, %v4914, 0
      %v4962 = vsel %vm1834, %v4915, 0
      %v4965 = vsel %vm1834, %v4916, 0
      %v4968 = vsel %vm1834, %v4917, 0
      %4970 = vmatprep.subr.bf16.mxu0 %v4943
      %4971 = vmatpush1.bf16.msra.mxu0 %v4942
      %4972 = vmatprep.subr.bf16.mxu0 %v4945
      %4973 = vmatpush1.bf16.msra.mxu0 %v4944
      %4974 = vmatprep.subr.bf16.mxu0 %v4947
      %4975 = vmatpush1.bf16.msra.mxu0 %v4946
      %4976 = vmatprep.subr.bf16.mxu0 %v4949
      %4977 = vmatpush1.bf16.msra.mxu0 %v4948
      %4978 = vmatprep.subr.bf16.mxu0 0
      %4979 = vmatpush1.bf16.msra.mxu0 0
      %4980 = vmatprep.subr.bf16.mxu0 0
      %4981 = vmatpush1.bf16.msra.mxu0 0
      %4982 = vmatprep.subr.bf16.mxu0 0
      %4983 = vmatpush1.bf16.msra.mxu0 0
      %4984 = vmatprep.subr.bf16.mxu0 0
      %4985 = vmatpush1.bf16.msra.mxu0 0
      %4986 = vmatprep.subr.bf16.mxu0 0
      %4987 = vmatpush1.bf16.msra.mxu0 0
      %4988 = vmatprep.subr.bf16.mxu0 0
      %4989 = vmatpush1.bf16.msra.mxu0 0
      %4990 = vmatprep.subr.bf16.mxu0 0
      %4991 = vmatpush1.bf16.msra.mxu0 0
      %4992 = vmatprep.subr.bf16.mxu0 0
      %4993 = vmatpush1.bf16.msra.mxu0 0
      %4994 = vmatprep.subr.bf16.mxu0 0
      %4995 = vmatpush1.bf16.msra.mxu0 0
      %4996 = vmatprep.subr.bf16.mxu0 0
      %4997 = vmatpush1.bf16.msra.mxu0 0
      %4998 = vmatprep.subr.bf16.mxu0 0
      %4999 = vmatpush1.bf16.msra.mxu0 0
      %5000 = vmatprep.subr.bf16.mxu0 0
      %5001 = vmatpush1.bf16.msra.mxu0 0
      %5002 = vmatprep.mubr.bf16.mxu0 0
      %5003 = vmatmul.mubr.bf16.gmra.mrb[0].mxu0 %v4959
      %v5004 = vpop.f32.mrb[0].mxu0
      %v5005 = vadd.f32 0.0, %v5004
      %v5006 = vpop.f32.mrb[0].mxu0
      %v5007 = vadd.f32 0.0, %v5006
      %v5008 = vpop.f32.mrb[0].mxu0
      %v5009 = vadd.f32 0.0, %v5008
      %v5010 = vpop.f32.mrb[0].mxu0
      %v5011 = vadd.f32 0.0, %v5010
      %5012 = vmatprep.mubr.bf16.mxu0 0
      %5013 = vmatmul.mubr.bf16.gmra.mrb[0].mxu0 %v4962
      %v5014 = vpop.f32.mrb[0].mxu0
      %v5015 = vadd.f32 0.0, %v5014
      %v5016 = vpop.f32.mrb[0].mxu0
      %v5017 = vadd.f32 0.0, %v5016
      %v5018 = vpop.f32.mrb[0].mxu0
      %v5019 = vadd.f32 0.0, %v5018
      %v5020 = vpop.f32.mrb[0].mxu0
      %v5021 = vadd.f32 0.0, %v5020
      %5022 = vmatprep.mubr.bf16.mxu0 0
      %5023 = vmatmul.mubr.bf16.gmra.mrb[0].mxu0 %v4965
      %v5024 = vpop.f32.mrb[0].mxu0
      %v5025 = vadd.f32 0.0, %v5024
      %v5026 = vpop.f32.mrb[0].mxu0
      %v5027 = vadd.f32 0.0, %v5026
      %v5028 = vpop.f32.mrb[0].mxu0
      %v5029 = vadd.f32 0.0, %v5028
      %v5030 = vpop.f32.mrb[0].mxu0
      %v5031 = vadd.f32 0.0, %v5030
      %5032 = vmatprep.mubr.bf16.mxu0 0
      %5033 = vmatmul.mubr.bf16.gmra.mrb[0].mxu0 %v4968
      %v5034 = vpop.f32.mrb[0].mxu0
      %v5035 = vadd.f32 0.0, %v5034
      %v5036 = vpop.f32.mrb[0].mxu0
      %v5037 = vadd.f32 0.0, %v5036
      %v5038 = vpop.f32.mrb[0].mxu0
      %v5039 = vadd.f32 0.0, %v5038
      %v5040 = vpop.f32.mrb[0].mxu0
      %v5041 = vadd.f32 0.0, %v5040
      %5042 = vdwg.mxu0
      %v5043 = vadd.f32 %v4855, %v5005
      %v5044 = vadd.f32 %v4856, %v5007
      %v5045 = vadd.f32 %v4857, %v5009
      %v5046 = vadd.f32 %v4858, %v5011
      %v5047 = vadd.f32 %v4859, %v5015
      %v5048 = vadd.f32 %v4860, %v5017
      %v5049 = vadd.f32 %v4861, %v5019
      %v5050 = vadd.f32 %v4862, %v5021
      %v5051 = vadd.f32 %v4863, %v5025
      %v5052 = vadd.f32 %v4864, %v5027
      %v5053 = vadd.f32 %v4865, %v5029
      %v5054 = vadd.f32 %v4866, %v5031
      %v5055 = vadd.f32 %v4867, %v5035
      %v5056 = vadd.f32 %v4868, %v5037
      %v5057 = vadd.f32 %v4869, %v5039
      %v5058 = vadd.f32 %v4870, %v5041
      %s5059 = scalar_lea.vmem %s9, 1536
      %v5060 = vld [vmem:[%s5059] sm:$0xff]
      %v5061 = vld [vmem:[%s5059 + $0x8] sm:$0xff]
      %v5062 = vld [vmem:[%s5059 + $0x10] sm:$0xff]
      %v5063 = vld [vmem:[%s5059 + $0x18] sm:$0xff]
      %v5064 = vld [vmem:[%s5059 + $0x20] sm:$0xff]
      %v5065 = vld [vmem:[%s5059 + $0x28] sm:$0xff]
      %v5066 = vld [vmem:[%s5059 + $0x30] sm:$0xff]
      %v5067 = vld [vmem:[%s5059 + $0x38] sm:$0xff]
      %v5068 = vld [vmem:[%s5059 + $0x40] sm:$0xff]
      %v5069 = vld [vmem:[%s5059 + $0x48] sm:$0xff]
      %v5070 = vld [vmem:[%s5059 + $0x50] sm:$0xff]
      %v5071 = vld [vmem:[%s5059 + $0x58] sm:$0xff]
      %v5072 = vld [vmem:[%s5059 + $0x60] sm:$0xff]
      %v5073 = vld [vmem:[%s5059 + $0x68] sm:$0xff]
      %v5074 = vld [vmem:[%s5059 + $0x70] sm:$0xff]
      %v5075 = vld [vmem:[%s5059 + $0x78] sm:$0xff]
      %v5076 = vld [vmem:[%s5059 + $0x80] sm:$0xff]
      %v5077 = vld [vmem:[%s5059 + $0x88] sm:$0xff]
      %v5078 = vld [vmem:[%s5059 + $0x90] sm:$0xff]
      %v5079 = vld [vmem:[%s5059 + $0x98] sm:$0xff]
      %v5080 = vld [vmem:[%s5059 + $0xa0] sm:$0xff]
      %v5081 = vld [vmem:[%s5059 + $0xa8] sm:$0xff]
      %v5082 = vld [vmem:[%s5059 + $0xb0] sm:$0xff]
      %v5083 = vld [vmem:[%s5059 + $0xb8] sm:$0xff]
      %v5084 = vld [vmem:[%s5059 + $0xc0] sm:$0xff]
      %v5085 = vld [vmem:[%s5059 + $0xc8] sm:$0xff]
      %v5086 = vld [vmem:[%s5059 + $0xd0] sm:$0xff]
      %v5087 = vld [vmem:[%s5059 + $0xd8] sm:$0xff]
      %v5088 = vld [vmem:[%s5059 + $0xe0] sm:$0xff]
      %v5089 = vld [vmem:[%s5059 + $0xe8] sm:$0xff]
      %v5090 = vld [vmem:[%s5059 + $0xf0] sm:$0xff]
      %v5091 = vld [vmem:[%s5059 + $0xf8] sm:$0xff]
      %v5100 = vunpack.c.l.b16 %v4881
      %v5101 = vunpack.c.h.b16 %v4881
      %v5102 = vunpack.c.l.b16 %v4882
      %v5103 = vunpack.c.h.b16 %v4882
      %v5104 = vunpack.c.l.b16 %v4883
      %v5105 = vunpack.c.h.b16 %v4883
      %v5106 = vunpack.c.l.b16 %v4884
      %v5107 = vunpack.c.h.b16 %v4884
      %v5108 = vunpack.c.l.b16 %v4885
      %v5109 = vunpack.c.h.b16 %v4885
      %v5110 = vunpack.c.l.b16 %v4886
      %v5111 = vunpack.c.h.b16 %v4886
      %v5112 = vunpack.c.l.b16 %v4887
      %v5113 = vunpack.c.h.b16 %v4887
      %v5114 = vunpack.c.l.b16 %v4888
      %v5115 = vunpack.c.h.b16 %v4888
      %v5116 = vpack.c.b16 %v5102, %v5100
      %v5117 = vpack.c.b16 %v5103, %v5101
      %v5118 = vpack.c.b16 %v5106, %v5104
      %v5119 = vpack.c.b16 %v5107, %v5105
      %v5120 = vpack.c.b16 %v5110, %v5108
      %v5121 = vpack.c.b16 %v5111, %v5109
      %v5122 = vpack.c.b16 %v5114, %v5112
      %v5123 = vpack.c.b16 %v5115, %v5113
      %v5164 = vunpack.c.l.b16 %v5060
      %v5165 = vunpack.c.h.b16 %v5060
      %v5166 = vunpack.c.l.b16 %v5061
      %v5167 = vunpack.c.h.b16 %v5061
      %v5168 = vunpack.c.l.b16 %v5062
      %v5169 = vunpack.c.h.b16 %v5062
      %v5170 = vunpack.c.l.b16 %v5063
      %v5171 = vunpack.c.h.b16 %v5063
      %v5172 = vunpack.c.l.b16 %v5064
      %v5173 = vunpack.c.h.b16 %v5064
      %v5174 = vunpack.c.l.b16 %v5065
      %v5175 = vunpack.c.h.b16 %v5065
      %v5176 = vunpack.c.l.b16 %v5066
      %v5177 = vunpack.c.h.b16 %v5066
      %v5178 = vunpack.c.l.b16 %v5067
      %v5179 = vunpack.c.h.b16 %v5067
      %v5180 = vunpack.c.l.b16 %v5068
      %v5181 = vunpack.c.h.b16 %v5068
      %v5182 = vunpack.c.l.b16 %v5069
      %v5183 = vunpack.c.h.b16 %v5069
      %v5184 = vunpack.c.l.b16 %v5070
      %v5185 = vunpack.c.h.b16 %v5070
      %v5186 = vunpack.c.l.b16 %v5071
      %v5187 = vunpack.c.h.b16 %v5071
      %v5188 = vunpack.c.l.b16 %v5072
      %v5189 = vunpack.c.h.b16 %v5072
      %v5190 = vunpack.c.l.b16 %v5073
      %v5191 = vunpack.c.h.b16 %v5073
      %v5192 = vunpack.c.l.b16 %v5074
      %v5193 = vunpack.c.h.b16 %v5074
      %v5194 = vunpack.c.l.b16 %v5075
      %v5195 = vunpack.c.h.b16 %v5075
      %v5196 = vunpack.c.l.b16 %v5076
      %v5197 = vunpack.c.h.b16 %v5076
      %v5198 = vunpack.c.l.b16 %v5077
      %v5199 = vunpack.c.h.b16 %v5077
      %v5200 = vunpack.c.l.b16 %v5078
      %v5201 = vunpack.c.h.b16 %v5078
      %v5202 = vunpack.c.l.b16 %v5079
      %v5203 = vunpack.c.h.b16 %v5079
      %v5204 = vunpack.c.l.b16 %v5080
      %v5205 = vunpack.c.h.b16 %v5080
      %v5206 = vunpack.c.l.b16 %v5081
      %v5207 = vunpack.c.h.b16 %v5081
      %v5208 = vunpack.c.l.b16 %v5082
      %v5209 = vunpack.c.h.b16 %v5082
      %v5210 = vunpack.c.l.b16 %v5083
      %v5211 = vunpack.c.h.b16 %v5083
      %v5212 = vunpack.c.l.b16 %v5084
      %v5213 = vunpack.c.h.b16 %v5084
      %v5214 = vunpack.c.l.b16 %v5085
      %v5215 = vunpack.c.h.b16 %v5085
      %v5216 = vunpack.c.l.b16 %v5086
      %v5217 = vunpack.c.h.b16 %v5086
      %v5218 = vunpack.c.l.b16 %v5087
      %v5219 = vunpack.c.h.b16 %v5087
      %v5220 = vunpack.c.l.b16 %v5088
      %v5221 = vunpack.c.h.b16 %v5088
      %v5222 = vunpack.c.l.b16 %v5089
      %v5223 = vunpack.c.h.b16 %v5089
      %v5224 = vunpack.c.l.b16 %v5090
      %v5225 = vunpack.c.h.b16 %v5090
      %v5226 = vunpack.c.l.b16 %v5091
      %v5227 = vunpack.c.h.b16 %v5091
      %v5228 = vpack.c.b16 %v5166, %v5164
      %v5229 = vpack.c.b16 %v5167, %v5165
      %v5230 = vpack.c.b16 %v5170, %v5168
      %v5231 = vpack.c.b16 %v5171, %v5169
      %v5232 = vpack.c.b16 %v5174, %v5172
      %v5233 = vpack.c.b16 %v5175, %v5173
      %v5234 = vpack.c.b16 %v5178, %v5176
      %v5235 = vpack.c.b16 %v5179, %v5177
      %v5236 = vpack.c.b16 %v5182, %v5180
      %v5237 = vpack.c.b16 %v5183, %v5181
      %v5238 = vpack.c.b16 %v5186, %v5184
      %v5239 = vpack.c.b16 %v5187, %v5185
      %v5240 = vpack.c.b16 %v5190, %v5188
      %v5241 = vpack.c.b16 %v5191, %v5189
      %v5242 = vpack.c.b16 %v5194, %v5192
      %v5243 = vpack.c.b16 %v5195, %v5193
      %v5244 = vpack.c.b16 %v5198, %v5196
      %v5245 = vpack.c.b16 %v5199, %v5197
      %v5246 = vpack.c.b16 %v5202, %v5200
      %v5247 = vpack.c.b16 %v5203, %v5201
      %v5248 = vpack.c.b16 %v5206, %v5204
      %v5249 = vpack.c.b16 %v5207, %v5205
      %v5250 = vpack.c.b16 %v5210, %v5208
      %v5251 = vpack.c.b16 %v5211, %v5209
      %v5252 = vpack.c.b16 %v5214, %v5212
      %v5253 = vpack.c.b16 %v5215, %v5213
      %v5254 = vpack.c.b16 %v5218, %v5216
      %v5255 = vpack.c.b16 %v5219, %v5217
      %v5256 = vpack.c.b16 %v5222, %v5220
      %v5257 = vpack.c.b16 %v5223, %v5221
      %v5258 = vpack.c.b16 %v5226, %v5224
      %v5259 = vpack.c.b16 %v5227, %v5225
      %5292 = vmatprep.subr.bf16.mxu0 %v5229
      %5293 = vmatpush1.bf16.msra.mxu0 %v5228
      %5294 = vmatprep.subr.bf16.mxu0 %v5231
      %5295 = vmatpush1.bf16.msra.mxu0 %v5230
      %5296 = vmatprep.subr.bf16.mxu0 %v5233
      %5297 = vmatpush1.bf16.msra.mxu0 %v5232
      %5298 = vmatprep.subr.bf16.mxu0 %v5235
      %5299 = vmatpush1.bf16.msra.mxu0 %v5234
      %5300 = vmatprep.subr.bf16.mxu0 %v5237
      %5301 = vmatpush1.bf16.msra.mxu0 %v5236
      %5302 = vmatprep.subr.bf16.mxu0 %v5239
      %5303 = vmatpush1.bf16.msra.mxu0 %v5238
      %5304 = vmatprep.subr.bf16.mxu0 %v5241
      %5305 = vmatpush1.bf16.msra.mxu0 %v5240
      %5306 = vmatprep.subr.bf16.mxu0 %v5243
      %5307 = vmatpush1.bf16.msra.mxu0 %v5242
      %5308 = vmatprep.subr.bf16.mxu0 %v5245
      %5309 = vmatpush1.bf16.msra.mxu0 %v5244
      %5310 = vmatprep.subr.bf16.mxu0 %v5247
      %5311 = vmatpush1.bf16.msra.mxu0 %v5246
      %5312 = vmatprep.subr.bf16.mxu0 %v5249
      %5313 = vmatpush1.bf16.msra.mxu0 %v5248
      %5314 = vmatprep.subr.bf16.mxu0 %v5251
      %5315 = vmatpush1.bf16.msra.mxu0 %v5250
      %5316 = vmatprep.subr.bf16.mxu0 %v5253
      %5317 = vmatpush1.bf16.msra.mxu0 %v5252
      %5318 = vmatprep.subr.bf16.mxu0 %v5255
      %5319 = vmatpush1.bf16.msra.mxu0 %v5254
      %5320 = vmatprep.subr.bf16.mxu0 %v5257
      %5321 = vmatpush1.bf16.msra.mxu0 %v5256
      %5322 = vmatprep.subr.bf16.mxu0 %v5259
      %5323 = vmatpush1.bf16.msra.mxu0 %v5258
      %5324 = vmatprep.mubr.bf16.mxu0 %v5117
      %5325 = vmatmul.mubr.bf16.gmra.mrb[0].mxu0 %v5116
      %v5326 = vpop.f32.mrb[0].mxu0
      %v5327 = vadd.f32 0.0, %v5326
      %v5328 = vpop.f32.mrb[0].mxu0
      %v5329 = vadd.f32 0.0, %v5328
      %v5330 = vpop.f32.mrb[0].mxu0
      %v5331 = vadd.f32 0.0, %v5330
      %v5332 = vpop.f32.mrb[0].mxu0
      %v5333 = vadd.f32 0.0, %v5332
      %5334 = vmatprep.mubr.bf16.mxu0 %v5119
      %5335 = vmatmul.mubr.bf16.gmra.mrb[0].mxu0 %v5118
      %v5336 = vpop.f32.mrb[0].mxu0
      %v5337 = vadd.f32 0.0, %v5336
      %v5338 = vpop.f32.mrb[0].mxu0
      %v5339 = vadd.f32 0.0, %v5338
      %v5340 = vpop.f32.mrb[0].mxu0
      %v5341 = vadd.f32 0.0, %v5340
      %v5342 = vpop.f32.mrb[0].mxu0
      %v5343 = vadd.f32 0.0, %v5342
      %5344 = vmatprep.mubr.bf16.mxu0 %v5121
      %5345 = vmatmul.mubr.bf16.gmra.mrb[0].mxu0 %v5120
      %v5346 = vpop.f32.mrb[0].mxu0
      %v5347 = vadd.f32 0.0, %v5346
      %v5348 = vpop.f32.mrb[0].mxu0
      %v5349 = vadd.f32 0.0, %v5348
      %v5350 = vpop.f32.mrb[0].mxu0
      %v5351 = vadd.f32 0.0, %v5350
      %v5352 = vpop.f32.mrb[0].mxu0
      %v5353 = vadd.f32 0.0, %v5352
      %5354 = vmatprep.mubr.bf16.mxu0 %v5123
      %5355 = vmatmul.mubr.bf16.gmra.mrb[0].mxu0 %v5122
      %v5356 = vpop.f32.mrb[0].mxu0
      %v5357 = vadd.f32 0.0, %v5356
      %v5358 = vpop.f32.mrb[0].mxu0
      %v5359 = vadd.f32 0.0, %v5358
      %v5360 = vpop.f32.mrb[0].mxu0
      %v5361 = vadd.f32 0.0, %v5360
      %v5362 = vpop.f32.mrb[0].mxu0
      %v5363 = vadd.f32 0.0, %v5362
      %5364 = vdwg.mxu0
      %v5365 = vadd.f32 %v5043, %v5327
      %v5366 = vadd.f32 %v5044, %v5329
      %v5367 = vadd.f32 %v5045, %v5331
      %v5368 = vadd.f32 %v5046, %v5333
      %v5369 = vadd.f32 %v5047, %v5337
      %v5370 = vadd.f32 %v5048, %v5339
      %v5371 = vadd.f32 %v5049, %v5341
      %v5372 = vadd.f32 %v5050, %v5343
      %v5373 = vadd.f32 %v5051, %v5347
      %v5374 = vadd.f32 %v5052, %v5349
      %v5375 = vadd.f32 %v5053, %v5351
      %v5376 = vadd.f32 %v5054, %v5353
      %v5377 = vadd.f32 %v5055, %v5357
      %v5378 = vadd.f32 %v5056, %v5359
      %v5379 = vadd.f32 %v5057, %v5361
      %v5380 = vadd.f32 %v5058, %v5363
      %v5381 = vld [vmem:[#allocation2 + $0x8] sm:$0xf]
      %v5382 = vld [vmem:[#allocation2 + $0xc] sm:$0xf]
      %v5383 = vld [vmem:[#allocation2 + $0x10] sm:$0xf]
      %v5384 = vld [vmem:[#allocation2 + $0x14] sm:$0xf]
      %v5385 = vld [vmem:[#allocation2 + $0x18] sm:$0xf]
      %v5386 = vld [vmem:[#allocation2 + $0x1c] sm:$0xf]
      %v5387 = vld [vmem:[#allocation2 + $0x20] sm:$0xf]
      %v5388 = vld [vmem:[#allocation2 + $0x24] sm:$0xf]
      %v5389 = vld [vmem:[#allocation2 + $0x28] sm:$0x1]
      %v5390 = vld [vmem:[#allocation3 + $0x10] sm:$0xff]
      %v5391 = vld [vmem:[#allocation3 + $0x18] sm:$0xff]
      %v5392 = vld [vmem:[#allocation3 + $0x20] sm:$0xff]
      %v5393 = vld [vmem:[#allocation3 + $0x28] sm:$0xff]
      %v5394 = vld [vmem:[#allocation3 + $0x30] sm:$0xff]
      %v5395 = vld [vmem:[#allocation3 + $0x38] sm:$0xff]
      %v5396 = vld [vmem:[#allocation3 + $0x40] sm:$0xff]
      %v5397 = vld [vmem:[#allocation3 + $0x48] sm:$0xff]
      %v5398 = vld [vmem:[#allocation3 + $0x50] sm:$0x11]
      %s5399 = scalar_lea.vmem %s8, 448
      %v5400 = vld [vmem:[%s5399] sm:$0xff]
      %v5401 = vld [vmem:[%s5399 + $0x8] sm:$0xff]
      %v5402 = vld [vmem:[%s5399 + $0x10] sm:$0xff]
      %v5403 = vld [vmem:[%s5399 + $0x18] sm:$0xff]
      %v5404 = vld [vmem:[%s5399 + $0x20] sm:$0xff]
      %v5405 = vld [vmem:[%s5399 + $0x28] sm:$0xff]
      %v5406 = vld [vmem:[%s5399 + $0x30] sm:$0xff]
      %v5407 = vld [vmem:[%s5399 + $0x38] sm:$0xff]
      %v5417 = vunpack.c.l.b16 %v5381
      %v5418 = vunpack.c.l.b16 %v5382
      %v5419 = vunpack.c.l.b16 %v5383
      %v5420 = vunpack.c.l.b16 %v5384
      %v5421 = vunpack.c.l.b16 %v5385
      %v5422 = vunpack.c.l.b16 %v5386
      %v5423 = vunpack.c.l.b16 %v5387
      %v5424 = vunpack.c.l.b16 %v5388
      %v5425 = vunpack.c.l.b16 %v5389
      %v5426 = vpack.c.b16 %v5418, %v5417
      %v5427 = vpack.c.b16 %v5420, %v5419
      %v5428 = vpack.c.b16 %v5422, %v5421
      %v5429 = vpack.c.b16 %v5424, %v5423
      %v5430 = vpack.c.b16 %v5425, %v5425
      %v5432 = vshrl.u32 %v5426, 16
      %v5434 = vshll.u32 %v5426, 16
      %v5436 = vrot.slane %v5434, 1
      %v5437 = vor.u32 %v5432, %v5436
      %v5439 = vshll.u32 %v5427, 16
      %v5441 = vrot.slane %v5439, 1
      %v5442 = vsel %vm1970, %v5437, %v5441
      %v5443 = vshrl.u32 %v5427, 16
      %v5445 = vor.u32 %v5443, %v5441
      %v5447 = vshll.u32 %v5428, 16
      %v5449 = vrot.slane %v5447, 1
      %v5450 = vsel %vm1970, %v5445, %v5449
      %v5451 = vshrl.u32 %v5428, 16
      %v5453 = vor.u32 %v5451, %v5449
      %v5455 = vshll.u32 %v5429, 16
      %v5457 = vrot.slane %v5455, 1
      %v5458 = vsel %vm1970, %v5453, %v5457
      %v5459 = vshrl.u32 %v5429, 16
      %v5461 = vor.u32 %v5459, %v5457
      %v5463 = vshll.u32 %v5430, 16
      %v5465 = vrot.slane %v5463, 1
      %v5466 = vsel %vm1970, %v5461, %v5465
      %v5475 = vunpack.c.l.b16 %v5400
      %v5476 = vunpack.c.h.b16 %v5400
      %v5477 = vunpack.c.l.b16 %v5401
      %v5478 = vunpack.c.h.b16 %v5401
      %v5479 = vunpack.c.l.b16 %v5402
      %v5480 = vunpack.c.h.b16 %v5402
      %v5481 = vunpack.c.l.b16 %v5403
      %v5482 = vunpack.c.h.b16 %v5403
      %v5483 = vunpack.c.l.b16 %v5404
      %v5484 = vunpack.c.h.b16 %v5404
      %v5485 = vunpack.c.l.b16 %v5405
      %v5486 = vunpack.c.h.b16 %v5405
      %v5487 = vunpack.c.l.b16 %v5406
      %v5488 = vunpack.c.h.b16 %v5406
      %v5489 = vunpack.c.l.b16 %v5407
      %v5490 = vunpack.c.h.b16 %v5407
      %v5491 = vpack.c.b16 %v5477, %v5475
      %v5492 = vpack.c.b16 %v5478, %v5476
      %v5493 = vpack.c.b16 %v5481, %v5479
      %v5494 = vpack.c.b16 %v5482, %v5480
      %v5495 = vpack.c.b16 %v5485, %v5483
      %v5496 = vpack.c.b16 %v5486, %v5484
      %v5497 = vpack.c.b16 %v5489, %v5487
      %v5498 = vpack.c.b16 %v5490, %v5488
      %v5508 = vsel %vm1834, %v5442, 0
      %v5511 = vsel %vm1834, %v5450, 0
      %v5514 = vsel %vm1834, %v5458, 0
      %v5517 = vsel %vm1834, %v5466, 0
      %5519 = vmatprep.subr.bf16.mxu0 %v5492
      %5520 = vmatpush1.bf16.msra.mxu0 %v5491
      %5521 = vmatprep.subr.bf16.mxu0 %v5494
      %5522 = vmatpush1.bf16.msra.mxu0 %v5493
      %5523 = vmatprep.subr.bf16.mxu0 %v5496
      %5524 = vmatpush1.bf16.msra.mxu0 %v5495
      %5525 = vmatprep.subr.bf16.mxu0 %v5498
      %5526 = vmatpush1.bf16.msra.mxu0 %v5497
      %5527 = vmatprep.subr.bf16.mxu0 0
      %5528 = vmatpush1.bf16.msra.mxu0 0
      %5529 = vmatprep.subr.bf16.mxu0 0
      %5530 = vmatpush1.bf16.msra.mxu0 0
      %5531 = vmatprep.subr.bf16.mxu0 0
      %5532 = vmatpush1.bf16.msra.mxu0 0
      %5533 = vmatprep.subr.bf16.mxu0 0
      %5534 = vmatpush1.bf16.msra.mxu0 0
      %5535 = vmatprep.subr.bf16.mxu0 0
      %5536 = vmatpush1.bf16.msra.mxu0 0
      %5537 = vmatprep.subr.bf16.mxu0 0
      %5538 = vmatpush1.bf16.msra.mxu0 0
      %5539 = vmatprep.subr.bf16.mxu0 0
      %5540 = vmatpush1.bf16.msra.mxu0 0
      %5541 = vmatprep.subr.bf16.mxu0 0
      %5542 = vmatpush1.bf16.msra.mxu0 0
      %5543 = vmatprep.subr.bf16.mxu0 0
      %5544 = vmatpush1.bf16.msra.mxu0 0
      %5545 = vmatprep.subr.bf16.mxu0 0
      %5546 = vmatpush1.bf16.msra.mxu0 0
      %5547 = vmatprep.subr.bf16.mxu0 0
      %5548 = vmatpush1.bf16.msra.mxu0 0
      %5549 = vmatprep.subr.bf16.mxu0 0
      %5550 = vmatpush1.bf16.msra.mxu0 0
      %5551 = vmatprep.mubr.bf16.mxu0 0
      %5552 = vmatmul.mubr.bf16.gmra.mrb[0].mxu0 %v5508
      %v5553 = vpop.f32.mrb[0].mxu0
      %v5554 = vadd.f32 0.0, %v5553
      %v5555 = vpop.f32.mrb[0].mxu0
      %v5556 = vadd.f32 0.0, %v5555
      %v5557 = vpop.f32.mrb[0].mxu0
      %v5558 = vadd.f32 0.0, %v5557
      %v5559 = vpop.f32.mrb[0].mxu0
      %v5560 = vadd.f32 0.0, %v5559
      %5561 = vmatprep.mubr.bf16.mxu0 0
      %5562 = vmatmul.mubr.bf16.gmra.mrb[0].mxu0 %v5511
      %v5563 = vpop.f32.mrb[0].mxu0
      %v5564 = vadd.f32 0.0, %v5563
      %v5565 = vpop.f32.mrb[0].mxu0
      %v5566 = vadd.f32 0.0, %v5565
      %v5567 = vpop.f32.mrb[0].mxu0
      %v5568 = vadd.f32 0.0, %v5567
      %v5569 = vpop.f32.mrb[0].mxu0
      %v5570 = vadd.f32 0.0, %v5569
      %5571 = vmatprep.mubr.bf16.mxu0 0
      %5572 = vmatmul.mubr.bf16.gmra.mrb[0].mxu0 %v5514
      %v5573 = vpop.f32.mrb[0].mxu0
      %v5574 = vadd.f32 0.0, %v5573
      %v5575 = vpop.f32.mrb[0].mxu0
      %v5576 = vadd.f32 0.0, %v5575
      %v5577 = vpop.f32.mrb[0].mxu0
      %v5578 = vadd.f32 0.0, %v5577
      %v5579 = vpop.f32.mrb[0].mxu0
      %v5580 = vadd.f32 0.0, %v5579
      %5581 = vmatprep.mubr.bf16.mxu0 0
      %5582 = vmatmul.mubr.bf16.gmra.mrb[0].mxu0 %v5517
      %v5583 = vpop.f32.mrb[0].mxu0
      %v5584 = vadd.f32 0.0, %v5583
      %v5585 = vpop.f32.mrb[0].mxu0
      %v5586 = vadd.f32 0.0, %v5585
      %v5587 = vpop.f32.mrb[0].mxu0
      %v5588 = vadd.f32 0.0, %v5587
      %v5589 = vpop.f32.mrb[0].mxu0
      %v5590 = vadd.f32 0.0, %v5589
      %5591 = vdwg.mxu0
      %v5592 = vadd.f32 %v5365, %v5554
      %v5593 = vadd.f32 %v5366, %v5556
      %v5594 = vadd.f32 %v5367, %v5558
      %v5595 = vadd.f32 %v5368, %v5560
      %v5596 = vadd.f32 %v5369, %v5564
      %v5597 = vadd.f32 %v5370, %v5566
      %v5598 = vadd.f32 %v5371, %v5568
      %v5599 = vadd.f32 %v5372, %v5570
      %v5600 = vadd.f32 %v5373, %v5574
      %v5601 = vadd.f32 %v5374, %v5576
      %v5602 = vadd.f32 %v5375, %v5578
      %v5603 = vadd.f32 %v5376, %v5580
      %v5604 = vadd.f32 %v5377, %v5584
      %v5605 = vadd.f32 %v5378, %v5586
      %v5606 = vadd.f32 %v5379, %v5588
      %v5607 = vadd.f32 %v5380, %v5590
      %s5608 = scalar_lea.vmem %s9, 1792
      %v5609 = vld [vmem:[%s5608] sm:$0xff]
      %v5610 = vld [vmem:[%s5608 + $0x8] sm:$0xff]
      %v5611 = vld [vmem:[%s5608 + $0x10] sm:$0xff]
      %v5612 = vld [vmem:[%s5608 + $0x18] sm:$0xff]
      %v5613 = vld [vmem:[%s5608 + $0x20] sm:$0xff]
      %v5614 = vld [vmem:[%s5608 + $0x28] sm:$0xff]
      %v5615 = vld [vmem:[%s5608 + $0x30] sm:$0xff]
      %v5616 = vld [vmem:[%s5608 + $0x38] sm:$0xff]
      %v5617 = vld [vmem:[%s5608 + $0x40] sm:$0xff]
      %v5618 = vld [vmem:[%s5608 + $0x48] sm:$0xff]
      %v5619 = vld [vmem:[%s5608 + $0x50] sm:$0xff]
      %v5620 = vld [vmem:[%s5608 + $0x58] sm:$0xff]
      %v5621 = vld [vmem:[%s5608 + $0x60] sm:$0xff]
      %v5622 = vld [vmem:[%s5608 + $0x68] sm:$0xff]
      %v5623 = vld [vmem:[%s5608 + $0x70] sm:$0xff]
      %v5624 = vld [vmem:[%s5608 + $0x78] sm:$0xff]
      %v5625 = vld [vmem:[%s5608 + $0x80] sm:$0xff]
      %v5626 = vld [vmem:[%s5608 + $0x88] sm:$0xff]
      %v5627 = vld [vmem:[%s5608 + $0x90] sm:$0xff]
      %v5628 = vld [vmem:[%s5608 + $0x98] sm:$0xff]
      %v5629 = vld [vmem:[%s5608 + $0xa0] sm:$0xff]
      %v5630 = vld [vmem:[%s5608 + $0xa8] sm:$0xff]
      %v5631 = vld [vmem:[%s5608 + $0xb0] sm:$0xff]
      %v5632 = vld [vmem:[%s5608 + $0xb8] sm:$0xff]
      %v5633 = vld [vmem:[%s5608 + $0xc0] sm:$0xff]
      %v5634 = vld [vmem:[%s5608 + $0xc8] sm:$0xff]
      %v5635 = vld [vmem:[%s5608 + $0xd0] sm:$0xff]
      %v5636 = vld [vmem:[%s5608 + $0xd8] sm:$0xff]
      %v5637 = vld [vmem:[%s5608 + $0xe0] sm:$0xff]
      %v5638 = vld [vmem:[%s5608 + $0xe8] sm:$0xff]
      %v5639 = vld [vmem:[%s5608 + $0xf0] sm:$0xff]
      %v5640 = vld [vmem:[%s5608 + $0xf8] sm:$0xff]
      %v5650 = vunpack.c.l.b16 %v5390
      %v5651 = vunpack.c.h.b16 %v5390
      %v5652 = vunpack.c.l.b16 %v5391
      %v5653 = vunpack.c.h.b16 %v5391
      %v5654 = vunpack.c.l.b16 %v5392
      %v5655 = vunpack.c.h.b16 %v5392
      %v5656 = vunpack.c.l.b16 %v5393
      %v5657 = vunpack.c.h.b16 %v5393
      %v5658 = vunpack.c.l.b16 %v5394
      %v5659 = vunpack.c.h.b16 %v5394
      %v5660 = vunpack.c.l.b16 %v5395
      %v5661 = vunpack.c.h.b16 %v5395
      %v5662 = vunpack.c.l.b16 %v5396
      %v5663 = vunpack.c.h.b16 %v5396
      %v5664 = vunpack.c.l.b16 %v5397
      %v5665 = vunpack.c.h.b16 %v5397
      %v5666 = vunpack.c.l.b16 %v5398
      %v5667 = vunpack.c.h.b16 %v5398
      %v5668 = vpack.c.b16 %v5652, %v5650
      %v5669 = vpack.c.b16 %v5653, %v5651
      %v5670 = vpack.c.b16 %v5656, %v5654
      %v5671 = vpack.c.b16 %v5657, %v5655
      %v5672 = vpack.c.b16 %v5660, %v5658
      %v5673 = vpack.c.b16 %v5661, %v5659
      %v5674 = vpack.c.b16 %v5664, %v5662
      %v5675 = vpack.c.b16 %v5665, %v5663
      %v5676 = vpack.c.b16 %v5666, %v5666
      %v5677 = vpack.c.b16 %v5667, %v5667
      %v5679 = vshrl.u32 %v5668, 16
      %v5681 = vshll.u32 %v5668, 16
      %v5683 = vrot.slane %v5681, 1
      %v5684 = vor.u32 %v5679, %v5683
      %v5686 = vshll.u32 %v5670, 16
      %v5688 = vrot.slane %v5686, 1
      %v5689 = vsel %vm1970, %v5684, %v5688
      %v5691 = vshrl.u32 %v5669, 16
      %v5693 = vshll.u32 %v5669, 16
      %v5695 = vrot.slane %v5693, 1
      %v5696 = vor.u32 %v5691, %v5695
      %v5698 = vshll.u32 %v5671, 16
      %v5700 = vrot.slane %v5698, 1
      %v5701 = vsel %vm1970, %v5696, %v5700
      %v5702 = vshrl.u32 %v5670, 16
      %v5704 = vor.u32 %v5702, %v5688
      %v5706 = vshll.u32 %v5672, 16
      %v5708 = vrot.slane %v5706, 1
      %v5709 = vsel %vm1970, %v5704, %v5708
      %v5710 = vshrl.u32 %v5671, 16
      %v5712 = vor.u32 %v5710, %v5700
      %v5714 = vshll.u32 %v5673, 16
      %v5716 = vrot.slane %v5714, 1
      %v5717 = vsel %vm1970, %v5712, %v5716
      %v5718 = vshrl.u32 %v5672, 16
      %v5720 = vor.u32 %v5718, %v5708
      %v5722 = vshll.u32 %v5674, 16
      %v5724 = vrot.slane %v5722, 1
      %v5725 = vsel %vm1970, %v5720, %v5724
      %v5726 = vshrl.u32 %v5673, 16
      %v5728 = vor.u32 %v5726, %v5716
      %v5730 = vshll.u32 %v5675, 16
      %v5732 = vrot.slane %v5730, 1
      %v5733 = vsel %vm1970, %v5728, %v5732
      %v5734 = vshrl.u32 %v5674, 16
      %v5736 = vor.u32 %v5734, %v5724
      %v5738 = vshll.u32 %v5676, 16
      %v5740 = vrot.slane %v5738, 1
      %v5741 = vsel %vm1970, %v5736, %v5740
      %v5742 = vshrl.u32 %v5675, 16
      %v5744 = vor.u32 %v5742, %v5732
      %v5746 = vshll.u32 %v5677, 16
      %v5748 = vrot.slane %v5746, 1
      %v5749 = vsel %vm1970, %v5744, %v5748
      %v5790 = vunpack.c.l.b16 %v5609
      %v5791 = vunpack.c.h.b16 %v5609
      %v5792 = vunpack.c.l.b16 %v5610
      %v5793 = vunpack.c.h.b16 %v5610
      %v5794 = vunpack.c.l.b16 %v5611
      %v5795 = vunpack.c.h.b16 %v5611
      %v5796 = vunpack.c.l.b16 %v5612
      %v5797 = vunpack.c.h.b16 %v5612
      %v5798 = vunpack.c.l.b16 %v5613
      %v5799 = vunpack.c.h.b16 %v5613
      %v5800 = vunpack.c.l.b16 %v5614
      %v5801 = vunpack.c.h.b16 %v5614
      %v5802 = vunpack.c.l.b16 %v5615
      %v5803 = vunpack.c.h.b16 %v5615
      %v5804 = vunpack.c.l.b16 %v5616
      %v5805 = vunpack.c.h.b16 %v5616
      %v5806 = vunpack.c.l.b16 %v5617
      %v5807 = vunpack.c.h.b16 %v5617
      %v5808 = vunpack.c.l.b16 %v5618
      %v5809 = vunpack.c.h.b16 %v5618
      %v5810 = vunpack.c.l.b16 %v5619
      %v5811 = vunpack.c.h.b16 %v5619
      %v5812 = vunpack.c.l.b16 %v5620
      %v5813 = vunpack.c.h.b16 %v5620
      %v5814 = vunpack.c.l.b16 %v5621
      %v5815 = vunpack.c.h.b16 %v5621
      %v5816 = vunpack.c.l.b16 %v5622
      %v5817 = vunpack.c.h.b16 %v5622
      %v5818 = vunpack.c.l.b16 %v5623
      %v5819 = vunpack.c.h.b16 %v5623
      %v5820 = vunpack.c.l.b16 %v5624
      %v5821 = vunpack.c.h.b16 %v5624
      %v5822 = vunpack.c.l.b16 %v5625
      %v5823 = vunpack.c.h.b16 %v5625
      %v5824 = vunpack.c.l.b16 %v5626
      %v5825 = vunpack.c.h.b16 %v5626
      %v5826 = vunpack.c.l.b16 %v5627
      %v5827 = vunpack.c.h.b16 %v5627
      %v5828 = vunpack.c.l.b16 %v5628
      %v5829 = vunpack.c.h.b16 %v5628
      %v5830 = vunpack.c.l.b16 %v5629
      %v5831 = vunpack.c.h.b16 %v5629
      %v5832 = vunpack.c.l.b16 %v5630
      %v5833 = vunpack.c.h.b16 %v5630
      %v5834 = vunpack.c.l.b16 %v5631
      %v5835 = vunpack.c.h.b16 %v5631
      %v5836 = vunpack.c.l.b16 %v5632
      %v5837 = vunpack.c.h.b16 %v5632
      %v5838 = vunpack.c.l.b16 %v5633
      %v5839 = vunpack.c.h.b16 %v5633
      %v5840 = vunpack.c.l.b16 %v5634
      %v5841 = vunpack.c.h.b16 %v5634
      %v5842 = vunpack.c.l.b16 %v5635
      %v5843 = vunpack.c.h.b16 %v5635
      %v5844 = vunpack.c.l.b16 %v5636
      %v5845 = vunpack.c.h.b16 %v5636
      %v5846 = vunpack.c.l.b16 %v5637
      %v5847 = vunpack.c.h.b16 %v5637
      %v5848 = vunpack.c.l.b16 %v5638
      %v5849 = vunpack.c.h.b16 %v5638
      %v5850 = vunpack.c.l.b16 %v5639
      %v5851 = vunpack.c.h.b16 %v5639
      %v5852 = vunpack.c.l.b16 %v5640
      %v5853 = vunpack.c.h.b16 %v5640
      %v5854 = vpack.c.b16 %v5792, %v5790
      %v5855 = vpack.c.b16 %v5793, %v5791
      %v5856 = vpack.c.b16 %v5796, %v5794
      %v5857 = vpack.c.b16 %v5797, %v5795
      %v5858 = vpack.c.b16 %v5800, %v5798
      %v5859 = vpack.c.b16 %v5801, %v5799
      %v5860 = vpack.c.b16 %v5804, %v5802
      %v5861 = vpack.c.b16 %v5805, %v5803
      %v5862 = vpack.c.b16 %v5808, %v5806
      %v5863 = vpack.c.b16 %v5809, %v5807
      %v5864 = vpack.c.b16 %v5812, %v5810
      %v5865 = vpack.c.b16 %v5813, %v5811
      %v5866 = vpack.c.b16 %v5816, %v5814
      %v5867 = vpack.c.b16 %v5817, %v5815
      %v5868 = vpack.c.b16 %v5820, %v5818
      %v5869 = vpack.c.b16 %v5821, %v5819
      %v5870 = vpack.c.b16 %v5824, %v5822
      %v5871 = vpack.c.b16 %v5825, %v5823
      %v5872 = vpack.c.b16 %v5828, %v5826
      %v5873 = vpack.c.b16 %v5829, %v5827
      %v5874 = vpack.c.b16 %v5832, %v5830
      %v5875 = vpack.c.b16 %v5833, %v5831
      %v5876 = vpack.c.b16 %v5836, %v5834
      %v5877 = vpack.c.b16 %v5837, %v5835
      %v5878 = vpack.c.b16 %v5840, %v5838
      %v5879 = vpack.c.b16 %v5841, %v5839
      %v5880 = vpack.c.b16 %v5844, %v5842
      %v5881 = vpack.c.b16 %v5845, %v5843
      %v5882 = vpack.c.b16 %v5848, %v5846
      %v5883 = vpack.c.b16 %v5849, %v5847
      %v5884 = vpack.c.b16 %v5852, %v5850
      %v5885 = vpack.c.b16 %v5853, %v5851
      %5918 = vmatprep.subr.bf16.mxu0 %v5855
      %5919 = vmatpush1.bf16.msra.mxu0 %v5854
      %5920 = vmatprep.subr.bf16.mxu0 %v5857
      %5921 = vmatpush1.bf16.msra.mxu0 %v5856
      %5922 = vmatprep.subr.bf16.mxu0 %v5859
      %5923 = vmatpush1.bf16.msra.mxu0 %v5858
      %5924 = vmatprep.subr.bf16.mxu0 %v5861
      %5925 = vmatpush1.bf16.msra.mxu0 %v5860
      %5926 = vmatprep.subr.bf16.mxu0 %v5863
      %5927 = vmatpush1.bf16.msra.mxu0 %v5862
      %5928 = vmatprep.subr.bf16.mxu0 %v5865
      %5929 = vmatpush1.bf16.msra.mxu0 %v5864
      %5930 = vmatprep.subr.bf16.mxu0 %v5867
      %5931 = vmatpush1.bf16.msra.mxu0 %v5866
      %5932 = vmatprep.subr.bf16.mxu0 %v5869
      %5933 = vmatpush1.bf16.msra.mxu0 %v5868
      %5934 = vmatprep.subr.bf16.mxu0 %v5871
      %5935 = vmatpush1.bf16.msra.mxu0 %v5870
      %5936 = vmatprep.subr.bf16.mxu0 %v5873
      %5937 = vmatpush1.bf16.msra.mxu0 %v5872
      %5938 = vmatprep.subr.bf16.mxu0 %v5875
      %5939 = vmatpush1.bf16.msra.mxu0 %v5874
      %5940 = vmatprep.subr.bf16.mxu0 %v5877
      %5941 = vmatpush1.bf16.msra.mxu0 %v5876
      %5942 = vmatprep.subr.bf16.mxu0 %v5879
      %5943 = vmatpush1.bf16.msra.mxu0 %v5878
      %5944 = vmatprep.subr.bf16.mxu0 %v5881
      %5945 = vmatpush1.bf16.msra.mxu0 %v5880
      %5946 = vmatprep.subr.bf16.mxu0 %v5883
      %5947 = vmatpush1.bf16.msra.mxu0 %v5882
      %5948 = vmatprep.subr.bf16.mxu0 %v5885
      %5949 = vmatpush1.bf16.msra.mxu0 %v5884
      %5950 = vmatprep.mubr.bf16.mxu0 %v5701
      %5951 = vmatmul.mubr.bf16.gmra.mrb[0].mxu0 %v5689
      %v5952 = vpop.f32.mrb[0].mxu0
      %v5953 = vadd.f32 0.0, %v5952
      %v5954 = vpop.f32.mrb[0].mxu0
      %v5955 = vadd.f32 0.0, %v5954
      %v5956 = vpop.f32.mrb[0].mxu0
      %v5957 = vadd.f32 0.0, %v5956
      %v5958 = vpop.f32.mrb[0].mxu0
      %v5959 = vadd.f32 0.0, %v5958
      %5960 = vmatprep.mubr.bf16.mxu0 %v5717
      %5961 = vmatmul.mubr.bf16.gmra.mrb[0].mxu0 %v5709
      %v5962 = vpop.f32.mrb[0].mxu0
      %v5963 = vadd.f32 0.0, %v5962
      %v5964 = vpop.f32.mrb[0].mxu0
      %v5965 = vadd.f32 0.0, %v5964
      %v5966 = vpop.f32.mrb[0].mxu0
      %v5967 = vadd.f32 0.0, %v5966
      %v5968 = vpop.f32.mrb[0].mxu0
      %v5969 = vadd.f32 0.0, %v5968
      %5970 = vmatprep.mubr.bf16.mxu0 %v5733
      %5971 = vmatmul.mubr.bf16.gmra.mrb[0].mxu0 %v5725
      %v5972 = vpop.f32.mrb[0].mxu0
      %v5973 = vadd.f32 0.0, %v5972
      %v5974 = vpop.f32.mrb[0].mxu0
      %v5975 = vadd.f32 0.0, %v5974
      %v5976 = vpop.f32.mrb[0].mxu0
      %v5977 = vadd.f32 0.0, %v5976
      %v5978 = vpop.f32.mrb[0].mxu0
      %v5979 = vadd.f32 0.0, %v5978
      %5980 = vmatprep.mubr.bf16.mxu0 %v5749
      %5981 = vmatmul.mubr.bf16.gmra.mrb[0].mxu0 %v5741
      %v5982 = vpop.f32.mrb[0].mxu0
      %v5983 = vadd.f32 0.0, %v5982
      %v5984 = vpop.f32.mrb[0].mxu0
      %v5985 = vadd.f32 0.0, %v5984
      %v5986 = vpop.f32.mrb[0].mxu0
      %v5987 = vadd.f32 0.0, %v5986
      %v5988 = vpop.f32.mrb[0].mxu0
      %v5989 = vadd.f32 0.0, %v5988
      %5990 = vdwg.mxu0
      %v5991 = vadd.f32 %v5592, %v5953
      %v5992 = vadd.f32 %v5593, %v5955
      %v5993 = vadd.f32 %v5594, %v5957
      %v5994 = vadd.f32 %v5595, %v5959
      %v5995 = vadd.f32 %v5596, %v5963
      %v5996 = vadd.f32 %v5597, %v5965
      %v5997 = vadd.f32 %v5598, %v5967
      %v5998 = vadd.f32 %v5599, %v5969
      %v5999 = vadd.f32 %v5600, %v5973
      %v6000 = vadd.f32 %v5601, %v5975
      %v6001 = vadd.f32 %v5602, %v5977
      %v6002 = vadd.f32 %v5603, %v5979
      %v6003 = vadd.f32 %v5604, %v5983
      %v6004 = vadd.f32 %v5605, %v5985
      %v6005 = vadd.f32 %v5606, %v5987
      %v6006 = vadd.f32 %v5607, %v5989
      %v6007 = vld [vmem:[#allocation2 + $0x8] sm:$0xe]
      %v6008 = vld [vmem:[#allocation3 + $0x10] sm:$0xee]
      %v6009 = vmul.bf16 %v6007, %v2610
      %v6010 = vmul.bf16 %v5382, %v2613
      %v6011 = vmul.bf16 %v5383, %v2616
      %v6012 = vmul.bf16 %v5384, %v2619
      %v6013 = vmul.bf16 %v5385, %v2622
      %v6014 = vmul.bf16 %v5386, %v2625
      %v6015 = vmul.bf16 %v5387, %v2628
      %v6016 = vmul.bf16 %v5388, %v2631
      %v6017 = vmul.bf16 %v5389, %v2632
      %v6018 = vmul.bf16 %v6008, %v2610
      %v6019 = vmul.bf16 %v5391, %v2613
      %v6020 = vmul.bf16 %v5392, %v2616
      %v6021 = vmul.bf16 %v5393, %v2619
      %v6022 = vmul.bf16 %v5394, %v2622
      %v6023 = vmul.bf16 %v5395, %v2625
      %v6024 = vmul.bf16 %v5396, %v2628
      %v6025 = vmul.bf16 %v5397, %v2631
      %v6026 = vmul.bf16 %v5398, %v2632
      %s6027 = scalar_lea.vmem %s8, 512
      %v6028 = vld [vmem:[%s6027] sm:$0xff]
      %v6029 = vld [vmem:[%s6027 + $0x8] sm:$0xff]
      %v6030 = vld [vmem:[%s6027 + $0x10] sm:$0xff]
      %v6031 = vld [vmem:[%s6027 + $0x18] sm:$0xff]
      %v6032 = vld [vmem:[%s6027 + $0x20] sm:$0xff]
      %v6033 = vld [vmem:[%s6027 + $0x28] sm:$0xff]
      %v6034 = vld [vmem:[%s6027 + $0x30] sm:$0xff]
      %v6035 = vld [vmem:[%s6027 + $0x38] sm:$0xff]
      %v6045 = vunpack.c.l.b16 %v6009
      %v6046 = vunpack.c.l.b16 %v6010
      %v6047 = vunpack.c.l.b16 %v6011
      %v6048 = vunpack.c.l.b16 %v6012
      %v6049 = vunpack.c.l.b16 %v6013
      %v6050 = vunpack.c.l.b16 %v6014
      %v6051 = vunpack.c.l.b16 %v6015
      %v6052 = vunpack.c.l.b16 %v6016
      %v6053 = vunpack.c.l.b16 %v6017
      %v6054 = vpack.c.b16 %v6046, %v6045
      %v6055 = vpack.c.b16 %v6048, %v6047
      %v6056 = vpack.c.b16 %v6050, %v6049
      %v6057 = vpack.c.b16 %v6052, %v6051
      %v6058 = vpack.c.b16 %v6053, %v6053
      %v6059 = vrot.slane %v6054, 1
      %v6060 = vrot.slane %v6055, 1
      %v6061 = vsel %vm2692, %v6059, %v6060
      %v6062 = vrot.slane %v6056, 1
      %v6063 = vsel %vm2692, %v6060, %v6062
      %v6064 = vrot.slane %v6057, 1
      %v6065 = vsel %vm2692, %v6062, %v6064
      %v6066 = vrot.slane %v6058, 1
      %v6067 = vsel %vm2692, %v6064, %v6066
      %v6076 = vunpack.c.l.b16 %v6028
      %v6077 = vunpack.c.h.b16 %v6028
      %v6078 = vunpack.c.l.b16 %v6029
      %v6079 = vunpack.c.h.b16 %v6029
      %v6080 = vunpack.c.l.b16 %v6030
      %v6081 = vunpack.c.h.b16 %v6030
      %v6082 = vunpack.c.l.b16 %v6031
      %v6083 = vunpack.c.h.b16 %v6031
      %v6084 = vunpack.c.l.b16 %v6032
      %v6085 = vunpack.c.h.b16 %v6032
      %v6086 = vunpack.c.l.b16 %v6033
      %v6087 = vunpack.c.h.b16 %v6033
      %v6088 = vunpack.c.l.b16 %v6034
      %v6089 = vunpack.c.h.b16 %v6034
      %v6090 = vunpack.c.l.b16 %v6035
      %v6091 = vunpack.c.h.b16 %v6035
      %v6092 = vpack.c.b16 %v6078, %v6076
      %v6093 = vpack.c.b16 %v6079, %v6077
      %v6094 = vpack.c.b16 %v6082, %v6080
      %v6095 = vpack.c.b16 %v6083, %v6081
      %v6096 = vpack.c.b16 %v6086, %v6084
      %v6097 = vpack.c.b16 %v6087, %v6085
      %v6098 = vpack.c.b16 %v6090, %v6088
      %v6099 = vpack.c.b16 %v6091, %v6089
      %v6109 = vsel %vm1834, %v6061, 0
      %v6112 = vsel %vm1834, %v6063, 0
      %v6115 = vsel %vm1834, %v6065, 0
      %v6118 = vsel %vm1834, %v6067, 0
      %6120 = vmatprep.subr.bf16.mxu0 %v6093
      %6121 = vmatpush1.bf16.msra.mxu0 %v6092
      %6122 = vmatprep.subr.bf16.mxu0 %v6095
      %6123 = vmatpush1.bf16.msra.mxu0 %v6094
      %6124 = vmatprep.subr.bf16.mxu0 %v6097
      %6125 = vmatpush1.bf16.msra.mxu0 %v6096
      %6126 = vmatprep.subr.bf16.mxu0 %v6099
      %6127 = vmatpush1.bf16.msra.mxu0 %v6098
      %6128 = vmatprep.subr.bf16.mxu0 0
      %6129 = vmatpush1.bf16.msra.mxu0 0
      %6130 = vmatprep.subr.bf16.mxu0 0
      %6131 = vmatpush1.bf16.msra.mxu0 0
      %6132 = vmatprep.subr.bf16.mxu0 0
      %6133 = vmatpush1.bf16.msra.mxu0 0
      %6134 = vmatprep.subr.bf16.mxu0 0
      %6135 = vmatpush1.bf16.msra.mxu0 0
      %6136 = vmatprep.subr.bf16.mxu0 0
      %6137 = vmatpush1.bf16.msra.mxu0 0
      %6138 = vmatprep.subr.bf16.mxu0 0
      %6139 = vmatpush1.bf16.msra.mxu0 0
      %6140 = vmatprep.subr.bf16.mxu0 0
      %6141 = vmatpush1.bf16.msra.mxu0 0
      %6142 = vmatprep.subr.bf16.mxu0 0
      %6143 = vmatpush1.bf16.msra.mxu0 0
      %6144 = vmatprep.subr.bf16.mxu0 0
      %6145 = vmatpush1.bf16.msra.mxu0 0
      %6146 = vmatprep.subr.bf16.mxu0 0
      %6147 = vmatpush1.bf16.msra.mxu0 0
      %6148 = vmatprep.subr.bf16.mxu0 0
      %6149 = vmatpush1.bf16.msra.mxu0 0
      %6150 = vmatprep.subr.bf16.mxu0 0
      %6151 = vmatpush1.bf16.msra.mxu0 0
      %6152 = vmatprep.mubr.bf16.mxu0 0
      %6153 = vmatmul.mubr.bf16.gmra.mrb[0].mxu0 %v6109
      %v6154 = vpop.f32.mrb[0].mxu0
      %v6155 = vadd.f32 0.0, %v6154
      %v6156 = vpop.f32.mrb[0].mxu0
      %v6157 = vadd.f32 0.0, %v6156
      %v6158 = vpop.f32.mrb[0].mxu0
      %v6159 = vadd.f32 0.0, %v6158
      %v6160 = vpop.f32.mrb[0].mxu0
      %v6161 = vadd.f32 0.0, %v6160
      %6162 = vmatprep.mubr.bf16.mxu0 0
      %6163 = vmatmul.mubr.bf16.gmra.mrb[0].mxu0 %v6112
      %v6164 = vpop.f32.mrb[0].mxu0
      %v6165 = vadd.f32 0.0, %v6164
      %v6166 = vpop.f32.mrb[0].mxu0
      %v6167 = vadd.f32 0.0, %v6166
      %v6168 = vpop.f32.mrb[0].mxu0
      %v6169 = vadd.f32 0.0, %v6168
      %v6170 = vpop.f32.mrb[0].mxu0
      %v6171 = vadd.f32 0.0, %v6170
      %6172 = vmatprep.mubr.bf16.mxu0 0
      %6173 = vmatmul.mubr.bf16.gmra.mrb[0].mxu0 %v6115
      %v6174 = vpop.f32.mrb[0].mxu0
      %v6175 = vadd.f32 0.0, %v6174
      %v6176 = vpop.f32.mrb[0].mxu0
      %v6177 = vadd.f32 0.0, %v6176
      %v6178 = vpop.f32.mrb[0].mxu0
      %v6179 = vadd.f32 0.0, %v6178
      %v6180 = vpop.f32.mrb[0].mxu0
      %v6181 = vadd.f32 0.0, %v6180
      %6182 = vmatprep.mubr.bf16.mxu0 0
      %6183 = vmatmul.mubr.bf16.gmra.mrb[0].mxu0 %v6118
      %v6184 = vpop.f32.mrb[0].mxu0
      %v6185 = vadd.f32 0.0, %v6184
      %v6186 = vpop.f32.mrb[0].mxu0
      %v6187 = vadd.f32 0.0, %v6186
      %v6188 = vpop.f32.mrb[0].mxu0
      %v6189 = vadd.f32 0.0, %v6188
      %v6190 = vpop.f32.mrb[0].mxu0
      %v6191 = vadd.f32 0.0, %v6190
      %6192 = vdwg.mxu0
      %v6193 = vadd.f32 %v5991, %v6155
      %v6194 = vadd.f32 %v5992, %v6157
      %v6195 = vadd.f32 %v5993, %v6159
      %v6196 = vadd.f32 %v5994, %v6161
      %v6197 = vadd.f32 %v5995, %v6165
      %v6198 = vadd.f32 %v5996, %v6167
      %v6199 = vadd.f32 %v5997, %v6169
      %v6200 = vadd.f32 %v5998, %v6171
      %v6201 = vadd.f32 %v5999, %v6175
      %v6202 = vadd.f32 %v6000, %v6177
      %v6203 = vadd.f32 %v6001, %v6179
      %v6204 = vadd.f32 %v6002, %v6181
      %v6205 = vadd.f32 %v6003, %v6185
      %v6206 = vadd.f32 %v6004, %v6187
      %v6207 = vadd.f32 %v6005, %v6189
      %v6208 = vadd.f32 %v6006, %v6191
      %s6209 = scalar_lea.vmem %s9, 2048
      %v6210 = vld [vmem:[%s6209] sm:$0xff]
      %v6211 = vld [vmem:[%s6209 + $0x8] sm:$0xff]
      %v6212 = vld [vmem:[%s6209 + $0x10] sm:$0xff]
      %v6213 = vld [vmem:[%s6209 + $0x18] sm:$0xff]
      %v6214 = vld [vmem:[%s6209 + $0x20] sm:$0xff]
      %v6215 = vld [vmem:[%s6209 + $0x28] sm:$0xff]
      %v6216 = vld [vmem:[%s6209 + $0x30] sm:$0xff]
      %v6217 = vld [vmem:[%s6209 + $0x38] sm:$0xff]
      %v6218 = vld [vmem:[%s6209 + $0x40] sm:$0xff]
      %v6219 = vld [vmem:[%s6209 + $0x48] sm:$0xff]
      %v6220 = vld [vmem:[%s6209 + $0x50] sm:$0xff]
      %v6221 = vld [vmem:[%s6209 + $0x58] sm:$0xff]
      %v6222 = vld [vmem:[%s6209 + $0x60] sm:$0xff]
      %v6223 = vld [vmem:[%s6209 + $0x68] sm:$0xff]
      %v6224 = vld [vmem:[%s6209 + $0x70] sm:$0xff]
      %v6225 = vld [vmem:[%s6209 + $0x78] sm:$0xff]
      %v6226 = vld [vmem:[%s6209 + $0x80] sm:$0xff]
      %v6227 = vld [vmem:[%s6209 + $0x88] sm:$0xff]
      %v6228 = vld [vmem:[%s6209 + $0x90] sm:$0xff]
      %v6229 = vld [vmem:[%s6209 + $0x98] sm:$0xff]
      %v6230 = vld [vmem:[%s6209 + $0xa0] sm:$0xff]
      %v6231 = vld [vmem:[%s6209 + $0xa8] sm:$0xff]
      %v6232 = vld [vmem:[%s6209 + $0xb0] sm:$0xff]
      %v6233 = vld [vmem:[%s6209 + $0xb8] sm:$0xff]
      %v6234 = vld [vmem:[%s6209 + $0xc0] sm:$0xff]
      %v6235 = vld [vmem:[%s6209 + $0xc8] sm:$0xff]
      %v6236 = vld [vmem:[%s6209 + $0xd0] sm:$0xff]
      %v6237 = vld [vmem:[%s6209 + $0xd8] sm:$0xff]
      %v6238 = vld [vmem:[%s6209 + $0xe0] sm:$0xff]
      %v6239 = vld [vmem:[%s6209 + $0xe8] sm:$0xff]
      %v6240 = vld [vmem:[%s6209 + $0xf0] sm:$0xff]
      %v6241 = vld [vmem:[%s6209 + $0xf8] sm:$0xff]
      %v6251 = vunpack.c.l.b16 %v6018
      %v6252 = vunpack.c.h.b16 %v6018
      %v6253 = vunpack.c.l.b16 %v6019
      %v6254 = vunpack.c.h.b16 %v6019
      %v6255 = vunpack.c.l.b16 %v6020
      %v6256 = vunpack.c.h.b16 %v6020
      %v6257 = vunpack.c.l.b16 %v6021
      %v6258 = vunpack.c.h.b16 %v6021
      %v6259 = vunpack.c.l.b16 %v6022
      %v6260 = vunpack.c.h.b16 %v6022
      %v6261 = vunpack.c.l.b16 %v6023
      %v6262 = vunpack.c.h.b16 %v6023
      %v6263 = vunpack.c.l.b16 %v6024
      %v6264 = vunpack.c.h.b16 %v6024
      %v6265 = vunpack.c.l.b16 %v6025
      %v6266 = vunpack.c.h.b16 %v6025
      %v6267 = vunpack.c.l.b16 %v6026
      %v6268 = vunpack.c.h.b16 %v6026
      %v6269 = vpack.c.b16 %v6253, %v6251
      %v6270 = vpack.c.b16 %v6254, %v6252
      %v6271 = vpack.c.b16 %v6257, %v6255
      %v6272 = vpack.c.b16 %v6258, %v6256
      %v6273 = vpack.c.b16 %v6261, %v6259
      %v6274 = vpack.c.b16 %v6262, %v6260
      %v6275 = vpack.c.b16 %v6265, %v6263
      %v6276 = vpack.c.b16 %v6266, %v6264
      %v6277 = vpack.c.b16 %v6267, %v6267
      %v6278 = vpack.c.b16 %v6268, %v6268
      %v6279 = vrot.slane %v6269, 1
      %v6280 = vrot.slane %v6271, 1
      %v6281 = vsel %vm2692, %v6279, %v6280
      %v6282 = vrot.slane %v6270, 1
      %v6283 = vrot.slane %v6272, 1
      %v6284 = vsel %vm2692, %v6282, %v6283
      %v6285 = vrot.slane %v6273, 1
      %v6286 = vsel %vm2692, %v6280, %v6285
      %v6287 = vrot.slane %v6274, 1
      %v6288 = vsel %vm2692, %v6283, %v6287
      %v6289 = vrot.slane %v6275, 1
      %v6290 = vsel %vm2692, %v6285, %v6289
      %v6291 = vrot.slane %v6276, 1
      %v6292 = vsel %vm2692, %v6287, %v6291
      %v6293 = vrot.slane %v6277, 1
      %v6294 = vsel %vm2692, %v6289, %v6293
      %v6295 = vrot.slane %v6278, 1
      %v6296 = vsel %vm2692, %v6291, %v6295
      %v6337 = vunpack.c.l.b16 %v6210
      %v6338 = vunpack.c.h.b16 %v6210
      %v6339 = vunpack.c.l.b16 %v6211
      %v6340 = vunpack.c.h.b16 %v6211
      %v6341 = vunpack.c.l.b16 %v6212
      %v6342 = vunpack.c.h.b16 %v6212
      %v6343 = vunpack.c.l.b16 %v6213
      %v6344 = vunpack.c.h.b16 %v6213
      %v6345 = vunpack.c.l.b16 %v6214
      %v6346 = vunpack.c.h.b16 %v6214
      %v6347 = vunpack.c.l.b16 %v6215
      %v6348 = vunpack.c.h.b16 %v6215
      %v6349 = vunpack.c.l.b16 %v6216
      %v6350 = vunpack.c.h.b16 %v6216
      %v6351 = vunpack.c.l.b16 %v6217
      %v6352 = vunpack.c.h.b16 %v6217
      %v6353 = vunpack.c.l.b16 %v6218
      %v6354 = vunpack.c.h.b16 %v6218
      %v6355 = vunpack.c.l.b16 %v6219
      %v6356 = vunpack.c.h.b16 %v6219
      %v6357 = vunpack.c.l.b16 %v6220
      %v6358 = vunpack.c.h.b16 %v6220
      %v6359 = vunpack.c.l.b16 %v6221
      %v6360 = vunpack.c.h.b16 %v6221
      %v6361 = vunpack.c.l.b16 %v6222
      %v6362 = vunpack.c.h.b16 %v6222
      %v6363 = vunpack.c.l.b16 %v6223
      %v6364 = vunpack.c.h.b16 %v6223
      %v6365 = vunpack.c.l.b16 %v6224
      %v6366 = vunpack.c.h.b16 %v6224
      %v6367 = vunpack.c.l.b16 %v6225
      %v6368 = vunpack.c.h.b16 %v6225
      %v6369 = vunpack.c.l.b16 %v6226
      %v6370 = vunpack.c.h.b16 %v6226
      %v6371 = vunpack.c.l.b16 %v6227
      %v6372 = vunpack.c.h.b16 %v6227
      %v6373 = vunpack.c.l.b16 %v6228
      %v6374 = vunpack.c.h.b16 %v6228
      %v6375 = vunpack.c.l.b16 %v6229
      %v6376 = vunpack.c.h.b16 %v6229
      %v6377 = vunpack.c.l.b16 %v6230
      %v6378 = vunpack.c.h.b16 %v6230
      %v6379 = vunpack.c.l.b16 %v6231
      %v6380 = vunpack.c.h.b16 %v6231
      %v6381 = vunpack.c.l.b16 %v6232
      %v6382 = vunpack.c.h.b16 %v6232
      %v6383 = vunpack.c.l.b16 %v6233
      %v6384 = vunpack.c.h.b16 %v6233
      %v6385 = vunpack.c.l.b16 %v6234
      %v6386 = vunpack.c.h.b16 %v6234
      %v6387 = vunpack.c.l.b16 %v6235
      %v6388 = vunpack.c.h.b16 %v6235
      %v6389 = vunpack.c.l.b16 %v6236
      %v6390 = vunpack.c.h.b16 %v6236
      %v6391 = vunpack.c.l.b16 %v6237
      %v6392 = vunpack.c.h.b16 %v6237
      %v6393 = vunpack.c.l.b16 %v6238
      %v6394 = vunpack.c.h.b16 %v6238
      %v6395 = vunpack.c.l.b16 %v6239
      %v6396 = vunpack.c.h.b16 %v6239
      %v6397 = vunpack.c.l.b16 %v6240
      %v6398 = vunpack.c.h.b16 %v6240
      %v6399 = vunpack.c.l.b16 %v6241
      %v6400 = vunpack.c.h.b16 %v6241
      %v6401 = vpack.c.b16 %v6339, %v6337
      %v6402 = vpack.c.b16 %v6340, %v6338
      %v6403 = vpack.c.b16 %v6343, %v6341
      %v6404 = vpack.c.b16 %v6344, %v6342
      %v6405 = vpack.c.b16 %v6347, %v6345
      %v6406 = vpack.c.b16 %v6348, %v6346
      %v6407 = vpack.c.b16 %v6351, %v6349
      %v6408 = vpack.c.b16 %v6352, %v6350
      %v6409 = vpack.c.b16 %v6355, %v6353
      %v6410 = vpack.c.b16 %v6356, %v6354
      %v6411 = vpack.c.b16 %v6359, %v6357
      %v6412 = vpack.c.b16 %v6360, %v6358
      %v6413 = vpack.c.b16 %v6363, %v6361
      %v6414 = vpack.c.b16 %v6364, %v6362
      %v6415 = vpack.c.b16 %v6367, %v6365
      %v6416 = vpack.c.b16 %v6368, %v6366
      %v6417 = vpack.c.b16 %v6371, %v6369
      %v6418 = vpack.c.b16 %v6372, %v6370
      %v6419 = vpack.c.b16 %v6375, %v6373
      %v6420 = vpack.c.b16 %v6376, %v6374
      %v6421 = vpack.c.b16 %v6379, %v6377
      %v6422 = vpack.c.b16 %v6380, %v6378
      %v6423 = vpack.c.b16 %v6383, %v6381
      %v6424 = vpack.c.b16 %v6384, %v6382
      %v6425 = vpack.c.b16 %v6387, %v6385
      %v6426 = vpack.c.b16 %v6388, %v6386
      %v6427 = vpack.c.b16 %v6391, %v6389
      %v6428 = vpack.c.b16 %v6392, %v6390
      %v6429 = vpack.c.b16 %v6395, %v6393
      %v6430 = vpack.c.b16 %v6396, %v6394
      %v6431 = vpack.c.b16 %v6399, %v6397
      %v6432 = vpack.c.b16 %v6400, %v6398
      %6465 = vmatprep.subr.bf16.mxu0 %v6402
      %6466 = vmatpush1.bf16.msra.mxu0 %v6401
      %6467 = vmatprep.subr.bf16.mxu0 %v6404
      %6468 = vmatpush1.bf16.msra.mxu0 %v6403
      %6469 = vmatprep.subr.bf16.mxu0 %v6406
      %6470 = vmatpush1.bf16.msra.mxu0 %v6405
      %6471 = vmatprep.subr.bf16.mxu0 %v6408
      %6472 = vmatpush1.bf16.msra.mxu0 %v6407
      %6473 = vmatprep.subr.bf16.mxu0 %v6410
      %6474 = vmatpush1.bf16.msra.mxu0 %v6409
      %6475 = vmatprep.subr.bf16.mxu0 %v6412
      %6476 = vmatpush1.bf16.msra.mxu0 %v6411
      %6477 = vmatprep.subr.bf16.mxu0 %v6414
      %6478 = vmatpush1.bf16.msra.mxu0 %v6413
      %6479 = vmatprep.subr.bf16.mxu0 %v6416
      %6480 = vmatpush1.bf16.msra.mxu0 %v6415
      %6481 = vmatprep.subr.bf16.mxu0 %v6418
      %6482 = vmatpush1.bf16.msra.mxu0 %v6417
      %6483 = vmatprep.subr.bf16.mxu0 %v6420
      %6484 = vmatpush1.bf16.msra.mxu0 %v6419
      %6485 = vmatprep.subr.bf16.mxu0 %v6422
      %6486 = vmatpush1.bf16.msra.mxu0 %v6421
      %6487 = vmatprep.subr.bf16.mxu0 %v6424
      %6488 = vmatpush1.bf16.msra.mxu0 %v6423
      %6489 = vmatprep.subr.bf16.mxu0 %v6426
      %6490 = vmatpush1.bf16.msra.mxu0 %v6425
      %6491 = vmatprep.subr.bf16.mxu0 %v6428
      %6492 = vmatpush1.bf16.msra.mxu0 %v6427
      %6493 = vmatprep.subr.bf16.mxu0 %v6430
      %6494 = vmatpush1.bf16.msra.mxu0 %v6429
      %6495 = vmatprep.subr.bf16.mxu0 %v6432
      %6496 = vmatpush1.bf16.msra.mxu0 %v6431
      %6497 = vmatprep.mubr.bf16.mxu0 %v6284
      %6498 = vmatmul.mubr.bf16.gmra.mrb[0].mxu0 %v6281
      %v6499 = vpop.f32.mrb[0].mxu0
      %v6500 = vadd.f32 0.0, %v6499
      %v6501 = vpop.f32.mrb[0].mxu0
      %v6502 = vadd.f32 0.0, %v6501
      %v6503 = vpop.f32.mrb[0].mxu0
      %v6504 = vadd.f32 0.0, %v6503
      %v6505 = vpop.f32.mrb[0].mxu0
      %v6506 = vadd.f32 0.0, %v6505
      %6507 = vmatprep.mubr.bf16.mxu0 %v6288
      %6508 = vmatmul.mubr.bf16.gmra.mrb[0].mxu0 %v6286
      %v6509 = vpop.f32.mrb[0].mxu0
      %v6510 = vadd.f32 0.0, %v6509
      %v6511 = vpop.f32.mrb[0].mxu0
      %v6512 = vadd.f32 0.0, %v6511
      %v6513 = vpop.f32.mrb[0].mxu0
      %v6514 = vadd.f32 0.0, %v6513
      %v6515 = vpop.f32.mrb[0].mxu0
      %v6516 = vadd.f32 0.0, %v6515
      %6517 = vmatprep.mubr.bf16.mxu0 %v6292
      %6518 = vmatmul.mubr.bf16.gmra.mrb[0].mxu0 %v6290
      %v6519 = vpop.f32.mrb[0].mxu0
      %v6520 = vadd.f32 0.0, %v6519
      %v6521 = vpop.f32.mrb[0].mxu0
      %v6522 = vadd.f32 0.0, %v6521
      %v6523 = vpop.f32.mrb[0].mxu0
      %v6524 = vadd.f32 0.0, %v6523
      %v6525 = vpop.f32.mrb[0].mxu0
      %v6526 = vadd.f32 0.0, %v6525
      %6527 = vmatprep.mubr.bf16.mxu0 %v6296
      %6528 = vmatmul.mubr.bf16.gmra.mrb[0].mxu0 %v6294
      %v6529 = vpop.f32.mrb[0].mxu0
      %v6530 = vadd.f32 0.0, %v6529
      %v6531 = vpop.f32.mrb[0].mxu0
      %v6532 = vadd.f32 0.0, %v6531
      %v6533 = vpop.f32.mrb[0].mxu0
      %v6534 = vadd.f32 0.0, %v6533
      %v6535 = vpop.f32.mrb[0].mxu0
      %v6536 = vadd.f32 0.0, %v6535
      %6537 = vdwg.mxu0
      %v6538 = vadd.f32 %v6193, %v6500
      %v6539 = vadd.f32 %v6194, %v6502
      %v6540 = vadd.f32 %v6195, %v6504
      %v6541 = vadd.f32 %v6196, %v6506
      %v6542 = vadd.f32 %v6197, %v6510
      %v6543 = vadd.f32 %v6198, %v6512
      %v6544 = vadd.f32 %v6199, %v6514
      %v6545 = vadd.f32 %v6200, %v6516
      %v6546 = vadd.f32 %v6201, %v6520
      %v6547 = vadd.f32 %v6202, %v6522
      %v6548 = vadd.f32 %v6203, %v6524
      %v6549 = vadd.f32 %v6204, %v6526
      %v6550 = vadd.f32 %v6205, %v6530
      %v6551 = vadd.f32 %v6206, %v6532
      %v6552 = vadd.f32 %v6207, %v6534
      %v6553 = vadd.f32 %v6208, %v6536
      %v6554 = vpack.c.bf16 %v6540, %v6538
      %v6555 = vpack.c.bf16 %v6541, %v6539
      %v6556 = vpack.c.bf16 %v6544, %v6542
      %v6557 = vpack.c.bf16 %v6545, %v6543
      %v6558 = vpack.c.bf16 %v6548, %v6546
      %v6559 = vpack.c.bf16 %v6549, %v6547
      %v6560 = vpack.c.bf16 %v6552, %v6550
      %v6561 = vpack.c.bf16 %v6553, %v6551
      %v6570 = vunpack.c.l.b16 %v6554
      %v6571 = vunpack.c.l.b16 %v6555
      %v6572 = vunpack.c.h.b16 %v6554
      %v6573 = vunpack.c.h.b16 %v6555
      %v6574 = vunpack.c.l.b16 %v6556
      %v6575 = vunpack.c.l.b16 %v6557
      %v6576 = vunpack.c.h.b16 %v6556
      %v6577 = vunpack.c.h.b16 %v6557
      %v6578 = vunpack.c.l.b16 %v6558
      %v6579 = vunpack.c.l.b16 %v6559
      %v6580 = vunpack.c.h.b16 %v6558
      %v6581 = vunpack.c.h.b16 %v6559
      %v6582 = vunpack.c.l.b16 %v6560
      %v6583 = vunpack.c.l.b16 %v6561
      %v6584 = vunpack.c.h.b16 %v6560
      %v6585 = vunpack.c.h.b16 %v6561
      %v6586 = vpack.c.b16 %v6571, %v6570
      %v6587 = vpack.c.b16 %v6573, %v6572
      %v6588 = vpack.c.b16 %v6575, %v6574
      %v6589 = vpack.c.b16 %v6577, %v6576
      %v6590 = vpack.c.b16 %v6579, %v6578
      %v6591 = vpack.c.b16 %v6581, %v6580
      %v6592 = vpack.c.b16 %v6583, %v6582
      %v6593 = vpack.c.b16 %v6585, %v6584
      %6602 = vst [vmem:[%s753] sm:$0xff] %v6586
      %6603 = vst [vmem:[%s753 + $0x8] sm:$0xff] %v6587
      %6604 = vst [vmem:[%s753 + $0x10] sm:$0xff] %v6588
      %6605 = vst [vmem:[%s753 + $0x18] sm:$0xff] %v6589
      %6606 = vst [vmem:[%s753 + $0x20] sm:$0xff] %v6590
      %6607 = vst [vmem:[%s753 + $0x28] sm:$0xff] %v6591
      %6608 = vst [vmem:[%s753 + $0x30] sm:$0xff] %v6592
      %6609 = vst [vmem:[%s753 + $0x38] sm:$0xff] %v6593
      %v6610 = vadd.f32 %v6538, %v6540
      %v6611 = vadd.f32 %v6610, %v6542
      %v6612 = vadd.f32 %v6611, %v6544
      %v6613 = vadd.f32 %v6612, %v6546
      %v6614 = vadd.f32 %v6613, %v6548
      %v6615 = vadd.f32 %v6614, %v6550
      %v6616 = vadd.f32 %v6615, %v6552
      %v6617 = vrot.slane %v6616, 4
      %v6618 = vadd.f32 %v6616, %v6617
      %v6619 = vrot.slane %v6618, 2
      %v6620 = vadd.f32 %v6618, %v6619
      %v6621 = vrot.slane %v6620, 1
      %v6622 = vadd.f32 %v6620, %v6621
      %v6623 = vadd.f32 %v6539, %v6541
      %v6624 = vadd.f32 %v6623, %v6543
      %v6625 = vadd.f32 %v6624, %v6545
      %v6626 = vadd.f32 %v6625, %v6547
      %v6627 = vadd.f32 %v6626, %v6549
      %v6628 = vadd.f32 %v6627, %v6551
      %v6629 = vadd.f32 %v6628, %v6553
      %v6630 = vrot.slane %v6629, 4
      %v6631 = vadd.f32 %v6629, %v6630
      %v6632 = vrot.slane %v6631, 2
      %v6633 = vadd.f32 %v6631, %v6632
      %v6634 = vrot.slane %v6633, 1
      %v6635 = vadd.f32 %v6633, %v6634
      %v6638 = vcombine.low %v6622, %v6635
      %v6640 = vunpack.c.l.s4 1966171168
      %v6641 = vunpack.c.0.s8 %v6640
      %v6642 = vlaneseq
      %v6643 = vshrl.u32 %v6642, 7
      %v6644 = vsub.s32 %v6641, %v6643
      %v6645 = vrot.slane %v6638, %v6644
      %v6647 = vunpack.c.l.s4 1966171168
      %v6648 = vunpack.c.0.s8 %v6647
      %v6649 = vlaneseq
      %v6650 = vshrl.u32 %v6649, 7
      %v6651 = vsub.s32 %v6648, %v6650
      %v6652 = vrot.slane %v6645, %v6651
      %v6654 = vlaneseq
      %vm6655 = vcmp.ge.s32.totalorder %v6654, 0
      %vm6656 = vcmp.lt.s32.totalorder %v6654, 256
      %vm6657 = vmand %vm6655, %vm6656
      %6658 = vst.msk [vmem:[%s759] sm:$0x3] %vm6657, %v6652
      %v6659 = vmul.f32 %v6538, %v6538
      %v6660 = vmul.f32 %v6539, %v6539
      %v6661 = vmul.f32 %v6540, %v6540
      %v6662 = vmul.f32 %v6541, %v6541
      %v6663 = vmul.f32 %v6542, %v6542
      %v6664 = vmul.f32 %v6543, %v6543
      %v6665 = vmul.f32 %v6544, %v6544
      %v6666 = vmul.f32 %v6545, %v6545
      %v6667 = vmul.f32 %v6546, %v6546
      %v6668 = vmul.f32 %v6547, %v6547
      %v6669 = vmul.f32 %v6548, %v6548
      %v6670 = vmul.f32 %v6549, %v6549
      %v6671 = vmul.f32 %v6550, %v6550
      %v6672 = vmul.f32 %v6551, %v6551
      %v6673 = vmul.f32 %v6552, %v6552
      %v6674 = vmul.f32 %v6553, %v6553
      %v6675 = vadd.f32 %v6659, %v6661
      %v6676 = vadd.f32 %v6675, %v6663
      %v6677 = vadd.f32 %v6676, %v6665
      %v6678 = vadd.f32 %v6677, %v6667
      %v6679 = vadd.f32 %v6678, %v6669
      %v6680 = vadd.f32 %v6679, %v6671
      %v6681 = vadd.f32 %v6680, %v6673
      %v6682 = vrot.slane %v6681, 4
      %v6683 = vadd.f32 %v6681, %v6682
      %v6684 = vrot.slane %v6683, 2
      %v6685 = vadd.f32 %v6683, %v6684
      %v6686 = vrot.slane %v6685, 1
      %v6687 = vadd.f32 %v6685, %v6686
      %v6688 = vadd.f32 %v6660, %v6662
      %v6689 = vadd.f32 %v6688, %v6664
      %v6690 = vadd.f32 %v6689, %v6666
      %v6691 = vadd.f32 %v6690, %v6668
      %v6692 = vadd.f32 %v6691, %v6670
      %v6693 = vadd.f32 %v6692, %v6672
      %v6694 = vadd.f32 %v6693, %v6674
      %v6695 = vrot.slane %v6694, 4
      %v6696 = vadd.f32 %v6694, %v6695
      %v6697 = vrot.slane %v6696, 2
      %v6698 = vadd.f32 %v6696, %v6697
      %v6699 = vrot.slane %v6698, 1
      %v6700 = vadd.f32 %v6698, %v6699
      %v6703 = vcombine.low %v6687, %v6700
      %v6705 = vunpack.c.l.s4 1966171168
      %v6706 = vunpack.c.0.s8 %v6705
      %v6707 = vlaneseq
      %v6708 = vshrl.u32 %v6707, 7
      %v6709 = vsub.s32 %v6706, %v6708
      %v6710 = vrot.slane %v6703, %v6709
      %v6712 = vunpack.c.l.s4 1966171168
      %v6713 = vunpack.c.0.s8 %v6712
      %v6714 = vlaneseq
      %v6715 = vshrl.u32 %v6714, 7
      %v6716 = vsub.s32 %v6713, %v6715
      %v6717 = vrot.slane %v6710, %v6716
      %6719 = vst.msk [vmem:[%s765] sm:$0x3] %vm6657, %v6717
      %s6720 = smul.u32 8, %s29
      %p6721 = scmp.lt.s32.totalorder %s28, 1
      %s6722 = scalar_select %p6721, %s28, 1
      %p6723 = scmp.lt.s32.totalorder %s6720, 7
      %s6724 = scalar_select %p6723, %s6720, 7
      %s6725 = smul.addr %s6724, 2
      %s6726 = smul.addr %s6722, 16
      %s6727 = sadd.s32 %s6725, %s6726
      %s6728 = smul.addr %s6727, 4
      %s6729 = scalar_lea.vmem %s10, %s6728
      %s6730 = sadd.s32 %s28, %s29
      %p6731 = scmp.lt.s32.totalorder %s6730, 1
      %s6732 = scalar_select %p6731, %s6730, 1
      %s6733 = smul.addr %s6732, 2
      %s6734 = scalar_lea.vmem %s11, %s6733
      %s6735 = sadd.s32 %s28, %s29
      %p6736 = scmp.lt.s32.totalorder %s6735, 1
      %s6737 = scalar_select %p6736, %s6735, 1
      %s6738 = smul.addr %s6737, 2
      %s6739 = scalar_lea.vmem %s12, %s6738
      // Predicated region
      $region77: #{decoder_forward.4} parent=59 // pred_check
        %p6740 = pneg %p340
      $region78: #{decoder_forward.4} parent=59 // pred_check_branch
        %6742 = sbr.rel (%p6740) target = $region80
      $region79: #{decoder_forward.4} parent=59 // pred_region
        %s6743 = smul.u32 8, %s29
      $region80: #{decoder_forward.4} parent=59 // pred_fallthru
        _
      // Predicated region
      $region81: #{decoder_forward.4} parent=59 // pred_check
        %p6744 = pneg %p368
      $region82: #{decoder_forward.4} parent=59 // pred_check_branch
        %6746 = sbr.rel (%p6744) target = $region84
      $region83: #{decoder_forward.4} parent=59 // pred_region
        %s6747 = sadd.s32 %s28, %s29
      $region84: #{decoder_forward.4} parent=59 // pred_fallthru
        _
      // Predicated region
      $region85: #{decoder_forward.4} parent=59 // pred_check
        %p6748 = pneg %p396
      $region86: #{decoder_forward.4} parent=59 // pred_check_branch
        %6750 = sbr.rel (%p6748) target = $region88
      $region87: #{decoder_forward.4} parent=59 // pred_region
        %s6751 = sadd.s32 %s28, %s29
      $region88: #{decoder_forward.4} parent=59 // pred_fallthru
        _
    $region60: #{decoder_forward.4} parent=5 // pred_fallthru
      _
    %p6752 = scmp.le.s32.totalorder 2, %s19
    // Predicated region
    $region89: #{decoder_forward.4} parent=5 // pred_check
      %p6753 = pneg %p6752
    $region90: #{decoder_forward.4} parent=5 // pred_check_branch
      %6755 = sbr.rel (%p6753) target = $region92
    $region91: #{decoder_forward.4} parent=5 // pred_region
      %s6756 = ssub.s32 %s19, 2
      // Predicated region
      $region93: #{decoder_forward.4} parent=91 // pred_check
        %p6757 = pneg %p346
      $region94: #{decoder_forward.4} parent=91 // pred_check_branch
        %6759 = sbr.rel (%p6757) target = $region96
      $region95: #{decoder_forward.4} parent=91 // pred_region
        %s6760 = smul.u32 8, %s31
        %p6761 = scmp.lt.s32.totalorder %s30, 1
        %s6762 = scalar_select %p6761, %s30, 1
        %p6763 = scmp.lt.s32.totalorder %s6760, 7
        %s6764 = scalar_select %p6763, %s6760, 7
        %s6765 = smul.addr %s6764, 2
        %s6766 = smul.addr %s6762, 16
        %s6767 = sadd.s32 %s6765, %s6766
        %s6768 = smul.addr %s6767, 4
        %s6769 = scalar_lea.vmem %s10, %s6768
      $region96: #{decoder_forward.4} parent=91 // pred_fallthru
        _
      // Predicated region
      $region97: #{decoder_forward.4} parent=91 // pred_check
        %p6770 = pneg %p374
      $region98: #{decoder_forward.4} parent=91 // pred_check_branch
        %6772 = sbr.rel (%p6770) target = $region100
      $region99: #{decoder_forward.4} parent=91 // pred_region
        %s6773 = sadd.s32 %s30, %s31
        %p6774 = scmp.lt.s32.totalorder %s6773, 1
        %s6775 = scalar_select %p6774, %s6773, 1
        %s6776 = smul.addr %s6775, 2
        %s6777 = scalar_lea.vmem %s11, %s6776
      $region100: #{decoder_forward.4} parent=91 // pred_fallthru
        _
      // Predicated region
      $region101: #{decoder_forward.4} parent=91 // pred_check
        %p6778 = pneg %p402
      $region102: #{decoder_forward.4} parent=91 // pred_check_branch
        %6780 = sbr.rel (%p6778) target = $region104
      $region103: #{decoder_forward.4} parent=91 // pred_region
        %s6781 = sadd.s32 %s30, %s31
        %p6782 = scmp.lt.s32.totalorder %s6781, 1
        %s6783 = scalar_select %p6782, %s6781, 1
        %s6784 = smul.addr %s6783, 2
        %s6785 = scalar_lea.vmem %s12, %s6784
      $region104: #{decoder_forward.4} parent=91 // pred_fallthru
        _
    $region92: #{decoder_forward.4} parent=5 // pred_fallthru
      _
  $region6: #{decoder_forward.4} parent=0 // loop_footer
    %s23 = sadd.s32 1, %s19
  $region7: #{decoder_forward.4} parent=0 // loop_footer_branch
    %18 = sbr.rel target = $region3
  $region8: #{decoder_forward.4} parent=0 // loop_exit
    _

</llo_original>
